<compile_context>
chip_gen: v7x
topology: tpu7x:2x2x1
jax: 0.10.0
libtpu: 0.0.40
codegen_flags: <defaults>
</compile_context>

<pallas_src>
import functools

import jax
import jax.numpy as jnp
from jax.experimental import pallas as pl
from jax.experimental.pallas import tpu as pltpu

NG = 3  # gates fused in the stacked-input conv: [update | reset | out(x-part)]


def _sigmoid(x):
    # Exact reciprocal (f32 divide): in a recurrent cell the approx EUP reciprocal's
    # error compounds across time steps (perf-review correctness note).
    return 1.0 / (1.0 + jnp.exp(-x))


def _convgru_kernel(xs_pad_ref,   # (Bb, Hp, Wp, CIN+CH) bf16 zero-padded cat([x, prev])
                    prev_ref,     # (Bb, H*W, CH) f32 un-quantized prev state (for blend)
                    w_xs_ref,     # (K*K*(CIN+CH), NG*CH) bf16 im2col weights [u|r|o_x]
                    w_pr_ref,     # (K*K*CH, CH) bf16 im2col out-gate weights (prev rows)
                    b_ref,        # (1, NG*CH) f32 biases [bu|br|bo]
                    out_ref,      # (Bb, H*W, CH) f32 new hidden state (natural layout)
                    col_xs,       # VMEM (Bb, H, W, K*K*(CIN+CH)) bf16 im2col scratch
                    col_pr,       # VMEM (Bb, H, W, K*K*CH)       bf16 im2col scratch
                    pr_pad,       # VMEM (Bb, Hp, Wp, CH)         bf16 padded prev*reset
                    *, H, W, K, CIN, CH, Bb):
    P = K // 2
    C = CIN + CH
    M = Bb * H * W

    # ---- im2col of the stacked input: one lane-slice copy per kernel offset ----
    for dy in range(K):
        for dx in range(K):
            off = dy * K + dx
            col_xs[:, :, :, off * C:(off + 1) * C] = xs_pad_ref[:, dy:dy + H, dx:dx + W, :]

    # ---- one big-K MXU matmul for all three gates (f32 accumulation) ----
    acc = jnp.dot(col_xs[...].reshape(M, K * K * C), w_xs_ref[...],
                  preferred_element_type=jnp.float32)            # (M, NG*CH)
    acc = acc + b_ref[...]                                       # broadcast bias once

    gates = _sigmoid(acc[:, :2 * CH])          # single EUP pass for update+reset
    update = gates[:, :CH]                     # (M, CH) f32
    reset = gates[:, CH:]                      # (M, CH) f32
    pre_out = acc[:, 2 * CH:]                  # x-part of the out gate (+ bo)

    prev = prev_ref[...].reshape(M, CH)        # f32, never bf16-round-tripped

    # ---- zero-padded prev*reset, its im2col, one more matmul ----
    # Only the P-wide halo ring is zeroed (rows as whole-sublane slabs, columns only
    # over the interior rows); the interior is fully overwritten every invocation.
    pr = (prev * reset).reshape(Bb, H, W, CH).astype(pr_pad.dtype)
    if P > 0:
        zrow = jnp.zeros((Bb, P, W + 2 * P, CH), pr_pad.dtype)
        zcol = jnp.zeros((Bb, H, P, CH), pr_pad.dtype)
        pr_pad[:, :P, :, :] = zrow
        pr_pad[:, P + H:, :, :] = zrow
        pr_pad[:, P:P + H, :P, :] = zcol
        pr_pad[:, P:P + H, P + W:, :] = zcol
    pr_pad[:, P:P + H, P:P + W, :] = pr

    for dy in range(K):
        for dx in range(K):
            off = dy * K + dx
            col_pr[:, :, :, off * CH:(off + 1) * CH] = pr_pad[:, dy:dy + H, dx:dx + W, :]

    pre_out = pre_out + jnp.dot(col_pr[...].reshape(M, K * K * CH), w_pr_ref[...],
                                preferred_element_type=jnp.float32)
    out_inputs = jnp.tanh(pre_out)                               # (M, CH) f32

    # ---- GRU blend (f32) and natural-layout writeback ----
    new_state = prev * (1.0 - update) + out_inputs * update
    out_ref[...] = new_state.reshape(Bb, H * W, CH)


def conv_gru_cell(x_nchw, prev_nchw, wu, wr, wo, bu, br, bo, *, batch_block=None):
    """ConvGRUCell.forward.  x_nchw: (B, CIN, H, W); prev_nchw: (B, CH, H, W) or None."""
    B, CIN, H, W = x_nchw.shape
    CH = wu.shape[0]
    K = wu.shape[-1]
    P = K // 2
    Hp, Wp = H + 2 * P, W + 2 * P
    C = CIN + CH
    KKC = K * K * C

    if prev_nchw is None:
        prev_nchw = jnp.zeros((B, CH, H, W), x_nchw.dtype)

    # Fold >=2 images into the matmul M dimension per grid step.  For larger batches
    # keep (B // bb) even so v7x's two TensorCores get equal work.
    if batch_block is None:
        batch_block = 2 if B % 2 == 0 else 1
    bb = batch_block
    assert B % bb == 0, "batch must be divisible by the batch block"
    n_steps = B // bb

    # NCHW -> NHWC; bf16 stream for the MXU matmuls, separate f32 prev for the blend.
    x = jnp.transpose(x_nchw, (0, 2, 3, 1))
    prev = jnp.transpose(prev_nchw, (0, 2, 3, 1))
    xs = jnp.concatenate([x, prev], axis=-1).astype(jnp.bfloat16)       # (B,H,W,C)
    xs_pad = jnp.pad(xs, ((0, 0), (P, P), (P, P), (0, 0)))              # (B,Hp,Wp,C)
    prev_f32 = prev.astype(jnp.float32).reshape(B, H * W, CH)

    # PyTorch conv weight (O, I, kH, kW) -> im2col matrix with rows (dy, dx, c_in).
    def to_khwio(w):
        return jnp.transpose(w, (2, 3, 1, 0)).astype(jnp.float32)       # (kH,kW,I,O)

    wu_, wr_, wo_ = to_khwio(wu), to_khwio(wr), to_khwio(wo)
    wo_x = wo_.at[:, :, CIN:, :].set(0.0)            # out gate: keep only the x rows here
    w_xs = jnp.concatenate([wu_, wr_, wo_x], axis=-1) \
              .reshape(KKC, NG * CH).astype(jnp.bfloat16)                # (K*K*C, 3CH)
    w_pr = wo_[:, :, CIN:, :].reshape(K * K * CH, CH).astype(jnp.bfloat16)
    b_all = jnp.concatenate([bu, br, bo]).reshape(1, NG * CH).astype(jnp.float32)

    kernel = functools.partial(_convgru_kernel, H=H, W=W, K=K, CIN=CIN, CH=CH, Bb=bb)

    # Grid-invariant operands: single-buffer them once the grid actually pipelines.
    const_mode = pl.Buffered(1) if n_steps > 1 else None

    # VMEM budget ~3/4 of physical: 96 MiB on v5e/v6e (128 MiB), 48 MiB on v7x (64 MiB).
    try:
        vmem_cap = pltpu.get_tpu_info().vmem_capacity_bytes
    except Exception:
        vmem_cap = 64 * 1024 * 1024
    vmem_limit = min(96 * 1024 * 1024, (3 * vmem_cap) // 4)

    out_flat = pl.pallas_call(
        kernel,
        out_shape=jax.ShapeDtypeStruct((B, H * W, CH), jnp.float32),
        grid_spec=pltpu.PrefetchScalarGridSpec(
            num_scalar_prefetch=0,
            grid=(n_steps,),
            in_specs=[
                pl.BlockSpec((bb, Hp, Wp, C), lambda b: (b, 0, 0, 0)),
                pl.BlockSpec((bb, H * W, CH), lambda b: (b, 0, 0)),
                pl.BlockSpec((KKC, NG * CH), lambda b: (0, 0), pipeline_mode=const_mode),
                pl.BlockSpec((K * K * CH, CH), lambda b: (0, 0), pipeline_mode=const_mode),
                pl.BlockSpec((1, NG * CH), lambda b: (0, 0), pipeline_mode=const_mode),
            ],
            out_specs=pl.BlockSpec((bb, H * W, CH), lambda b: (b, 0, 0)),
            scratch_shapes=[
                pltpu.VMEM((bb, H, W, KKC), jnp.bfloat16),
                pltpu.VMEM((bb, H, W, K * K * CH), jnp.bfloat16),
                pltpu.VMEM((bb, Hp, Wp, CH), jnp.bfloat16),
            ],
        ),
        compiler_params=pltpu.CompilerParams(
            dimension_semantics=("parallel",),
            vmem_limit_bytes=vmem_limit),
        # TODO(synk): at production H/W add an H-tile grid axis with a (K-1)-row halo,
        # sized against v7x's 64 MiB VMEM *including* the 128-lane padding of the
        # C=12 / C=8 channel dims, and keep the parallel grid length a multiple of 2.
    )(xs_pad, prev_f32, w_xs, w_pr, b_all)

    # (B, H*W, CH) -> (B, H, W, CH) -> NCHW; cheap XLA shuffle in the wrapper.
    return jnp.transpose(out_flat.reshape(B, H, W, CH), (0, 3, 1, 2))


# ---------------- deterministic parameter init (mirrors the module __init__) ----
def orthogonal_conv_weight(key, out_ch, in_ch, k):
    """Orthogonal init of a conv weight (out_ch, in_ch, k, k), orthonormal rows."""
    n = in_ch * k * k
    a = jax.random.normal(key, (n, max(n, out_ch)), jnp.float32)
    q, _ = jnp.linalg.qr(a)
    w = q[:, :out_ch].T                       # (out_ch, n), orthonormal rows
    return w.reshape(out_ch, in_ch, k, k).astype(jnp.float32)


# ---------------- plain-JAX reference for verification --------------------------
def reference_conv_gru(x, prev, wu, wr, wo, bu, br, bo):
    dn = ("NCHW", "OIHW", "NCHW")

    def conv(inp, w, b):
        y = jax.lax.conv_general_dilated(
            inp, w, window_strides=(1, 1), padding="SAME",
            dimension_numbers=dn, precision=jax.lax.Precision.HIGHEST)
        return y + b.reshape(1, -1, 1, 1)

    stacked = jnp.concatenate([x, prev], axis=1)
    update = jax.nn.sigmoid(conv(stacked, wu, bu))
    reset = jax.nn.sigmoid(conv(stacked, wr, br))
    out_inputs = jnp.tanh(conv(jnp.concatenate([x, prev * reset], axis=1), wo, bo))
    return prev * (1.0 - update) + out_inputs * update


if __name__ == "__main__":
    B, CIN, CH, H, W, K = 2, 4, 8, 16, 16, 3

    key = jax.random.PRNGKey(0)
    k_x, k_h, k_wu, k_wr, k_wo = jax.random.split(key, 5)

    # The kernel streams activations/weights in bf16 (f32 accumulate).  Quantize the
    # test data to bf16-representable values so the f32 reference sees exactly the
    # numbers the kernel sees; remaining differences are accumulation order plus the
    # bf16 rounding of prev*reset inside the out-gate conv.
    q = lambda a: a.astype(jnp.bfloat16).astype(jnp.float32)

    x = q(jax.random.normal(k_x, (B, CIN, H, W), jnp.float32))
    prev_state = q(jax.random.normal(k_h, (B, CH, H, W), jnp.float32))

    wu = q(orthogonal_conv_weight(k_wu, CH, CIN + CH, K))
    wr = q(orthogonal_conv_weight(k_wr, CH, CIN + CH, K))
    wo = q(orthogonal_conv_weight(k_wo, CH, CIN + CH, K))
    bu = jnp.zeros((CH,), jnp.float32)   # init.constant(bias, 0.0)
    br = jnp.zeros((CH,), jnp.float32)
    bo = jnp.zeros((CH,), jnp.float32)

    new_state = conv_gru_cell(x, prev_state, wu, wr, wo, bu, br, bo)
    new_state = jax.block_until_ready(new_state)
    assert new_state.shape == (B, CH, H, W)

    ref = reference_conv_gru(x, prev_state, wu, wr, wo, bu, br, bo)
    if not jnp.allclose(new_state, ref, atol=2e-2, rtol=2e-2):
        max_err = float(jnp.max(jnp.abs(new_state - ref)))
        raise AssertionError(f"Pallas kernel mismatch vs reference, max|err|={max_err}")

    print("KERNEL_OK")
</pallas_src>

<mosaic_0001>
module attributes {stable_mosaic.version = 11 : i64} {
  func.func @_convgru_kernel(%arg0: i32, %arg1: memref<2x18x18x12xbf16, #tpu.memory_space<vmem>>, %arg2: memref<2x256x8xf32, #tpu.memory_space<vmem>>, %arg3: memref<108x24xbf16, #tpu.memory_space<vmem>>, %arg4: memref<72x8xbf16, #tpu.memory_space<vmem>>, %arg5: memref<1x24xf32, #tpu.memory_space<vmem>>, %arg6: memref<2x256x8xf32, #tpu.memory_space<vmem>>, %arg7: memref<2x16x16x108xbf16, #tpu.memory_space<vmem>>, %arg8: memref<2x16x16x72xbf16, #tpu.memory_space<vmem>>, %arg9: memref<2x18x18x8xbf16, #tpu.memory_space<vmem>>) attributes {dimension_semantics = [#tpu.dimension_semantics<parallel>], iteration_bounds = array<i64: 1>, scalar_prefetch = 0 : i64, scratch_operands = 3 : i64, tpu.core_type = #tpu.core_type<tc>, window_params = [{transform_indices = @transform_0, window_bounds = array<i64: 2, 18, 18, 12>}, {transform_indices = @transform_1, window_bounds = array<i64: 2, 256, 8>}, {pipeline_mode = #tpu.pipeline_mode<synchronous>, transform_indices = @transform_2, window_bounds = array<i64: 108, 24>}, {pipeline_mode = #tpu.pipeline_mode<synchronous>, transform_indices = @transform_3, window_bounds = array<i64: 72, 8>}, {pipeline_mode = #tpu.pipeline_mode<synchronous>, transform_indices = @transform_4, window_bounds = array<i64: 1, 24>}, {transform_indices = @transform_5, window_bounds = array<i64: 2, 256, 8>}]} {
    %c0 = arith.constant 0 : index
    %c0_0 = arith.constant 0 : index
    %c0_1 = arith.constant 0 : index
    %c0_2 = arith.constant 0 : index
    %0 = vector.load %arg1[%c0, %c0_0, %c0_1, %c0_2] : memref<2x18x18x12xbf16, #tpu.memory_space<vmem>>, vector<2x16x16x12xbf16>
    %c0_3 = arith.constant 0 : index
    %c0_4 = arith.constant 0 : index
    %c0_5 = arith.constant 0 : index
    %c0_6 = arith.constant 0 : index
    %1 = vector.load %arg7[%c0_3, %c0_4, %c0_5, %c0_6] : memref<2x16x16x108xbf16, #tpu.memory_space<vmem>>, vector<2x16x16x12xbf16>
    tpu.vector_store %arg7[%c0_3, %c0_4, %c0_5, %c0_6], %0 {strides = array<i32>} : memref<2x16x16x108xbf16, #tpu.memory_space<vmem>>, vector<2x16x16x12xbf16>,
    %c0_7 = arith.constant 0 : index
    %c0_8 = arith.constant 0 : index
    %c1 = arith.constant 1 : index
    %c0_9 = arith.constant 0 : index
    %2 = vector.load %arg1[%c0_7, %c0_8, %c1, %c0_9] : memref<2x18x18x12xbf16, #tpu.memory_space<vmem>>, vector<2x16x16x12xbf16>
    %c0_10 = arith.constant 0 : index
    %c0_11 = arith.constant 0 : index
    %c0_12 = arith.constant 0 : index
    %c12 = arith.constant 12 : index
    %3 = vector.load %arg7[%c0_10, %c0_11, %c0_12, %c12] : memref<2x16x16x108xbf16, #tpu.memory_space<vmem>>, vector<2x16x16x12xbf16>
    tpu.vector_store %arg7[%c0_10, %c0_11, %c0_12, %c12], %2 {strides = array<i32>} : memref<2x16x16x108xbf16, #tpu.memory_space<vmem>>, vector<2x16x16x12xbf16>,
    %c0_13 = arith.constant 0 : index
    %c0_14 = arith.constant 0 : index
    %c2 = arith.constant 2 : index
    %c0_15 = arith.constant 0 : index
    %4 = vector.load %arg1[%c0_13, %c0_14, %c2, %c0_15] : memref<2x18x18x12xbf16, #tpu.memory_space<vmem>>, vector<2x16x16x12xbf16>
    %c0_16 = arith.constant 0 : index
    %c0_17 = arith.constant 0 : index
    %c0_18 = arith.constant 0 : index
    %c24 = arith.constant 24 : index
    %5 = vector.load %arg7[%c0_16, %c0_17, %c0_18, %c24] : memref<2x16x16x108xbf16, #tpu.memory_space<vmem>>, vector<2x16x16x12xbf16>
    tpu.vector_store %arg7[%c0_16, %c0_17, %c0_18, %c24], %4 {strides = array<i32>} : memref<2x16x16x108xbf16, #tpu.memory_space<vmem>>, vector<2x16x16x12xbf16>,
    %c0_19 = arith.constant 0 : index
    %c1_20 = arith.constant 1 : index
    %c0_21 = arith.constant 0 : index
    %c0_22 = arith.constant 0 : index
    %6 = vector.load %arg1[%c0_19, %c1_20, %c0_21, %c0_22] : memref<2x18x18x12xbf16, #tpu.memory_space<vmem>>, vector<2x16x16x12xbf16>
    %c0_23 = arith.constant 0 : index
    %c0_24 = arith.constant 0 : index
    %c0_25 = arith.constant 0 : index
    %c36 = arith.constant 36 : index
    %7 = vector.load %arg7[%c0_23, %c0_24, %c0_25, %c36] : memref<2x16x16x108xbf16, #tpu.memory_space<vmem>>, vector<2x16x16x12xbf16>
    tpu.vector_store %arg7[%c0_23, %c0_24, %c0_25, %c36], %6 {strides = array<i32>} : memref<2x16x16x108xbf16, #tpu.memory_space<vmem>>, vector<2x16x16x12xbf16>,
    %c0_26 = arith.constant 0 : index
    %c1_27 = arith.constant 1 : index
    %c1_28 = arith.constant 1 : index
    %c0_29 = arith.constant 0 : index
    %8 = vector.load %arg1[%c0_26, %c1_27, %c1_28, %c0_29] : memref<2x18x18x12xbf16, #tpu.memory_space<vmem>>, vector<2x16x16x12xbf16>
    %c0_30 = arith.constant 0 : index
    %c0_31 = arith.constant 0 : index
    %c0_32 = arith.constant 0 : index
    %c48 = arith.constant 48 : index
    %9 = vector.load %arg7[%c0_30, %c0_31, %c0_32, %c48] : memref<2x16x16x108xbf16, #tpu.memory_space<vmem>>, vector<2x16x16x12xbf16>
    tpu.vector_store %arg7[%c0_30, %c0_31, %c0_32, %c48], %8 {strides = array<i32>} : memref<2x16x16x108xbf16, #tpu.memory_space<vmem>>, vector<2x16x16x12xbf16>,
    %c0_33 = arith.constant 0 : index
    %c1_34 = arith.constant 1 : index
    %c2_35 = arith.constant 2 : index
    %c0_36 = arith.constant 0 : index
    %10 = vector.load %arg1[%c0_33, %c1_34, %c2_35, %c0_36] : memref<2x18x18x12xbf16, #tpu.memory_space<vmem>>, vector<2x16x16x12xbf16>
    %c0_37 = arith.constant 0 : index
    %c0_38 = arith.constant 0 : index
    %c0_39 = arith.constant 0 : index
    %c60 = arith.constant 60 : index
    %11 = vector.load %arg7[%c0_37, %c0_38, %c0_39, %c60] : memref<2x16x16x108xbf16, #tpu.memory_space<vmem>>, vector<2x16x16x12xbf16>
    tpu.vector_store %arg7[%c0_37, %c0_38, %c0_39, %c60], %10 {strides = array<i32>} : memref<2x16x16x108xbf16, #tpu.memory_space<vmem>>, vector<2x16x16x12xbf16>,
    %c0_40 = arith.constant 0 : index
    %c2_41 = arith.constant 2 : index
    %c0_42 = arith.constant 0 : index
    %c0_43 = arith.constant 0 : index
    %12 = vector.load %arg1[%c0_40, %c2_41, %c0_42, %c0_43] : memref<2x18x18x12xbf16, #tpu.memory_space<vmem>>, vector<2x16x16x12xbf16>
    %c0_44 = arith.constant 0 : index
    %c0_45 = arith.constant 0 : index
    %c0_46 = arith.constant 0 : index
    %c72 = arith.constant 72 : index
    %13 = vector.load %arg7[%c0_44, %c0_45, %c0_46, %c72] : memref<2x16x16x108xbf16, #tpu.memory_space<vmem>>, vector<2x16x16x12xbf16>
    tpu.vector_store %arg7[%c0_44, %c0_45, %c0_46, %c72], %12 {strides = array<i32>} : memref<2x16x16x108xbf16, #tpu.memory_space<vmem>>, vector<2x16x16x12xbf16>,
    %c0_47 = arith.constant 0 : index
    %c2_48 = arith.constant 2 : index
    %c1_49 = arith.constant 1 : index
    %c0_50 = arith.constant 0 : index
    %14 = vector.load %arg1[%c0_47, %c2_48, %c1_49, %c0_50] : memref<2x18x18x12xbf16, #tpu.memory_space<vmem>>, vector<2x16x16x12xbf16>
    %c0_51 = arith.constant 0 : index
    %c0_52 = arith.constant 0 : index
    %c0_53 = arith.constant 0 : index
    %c84 = arith.constant 84 : index
    %15 = vector.load %arg7[%c0_51, %c0_52, %c0_53, %c84] : memref<2x16x16x108xbf16, #tpu.memory_space<vmem>>, vector<2x16x16x12xbf16>
    tpu.vector_store %arg7[%c0_51, %c0_52, %c0_53, %c84], %14 {strides = array<i32>} : memref<2x16x16x108xbf16, #tpu.memory_space<vmem>>, vector<2x16x16x12xbf16>,
    %c0_54 = arith.constant 0 : index
    %c2_55 = arith.constant 2 : index
    %c2_56 = arith.constant 2 : index
    %c0_57 = arith.constant 0 : index
    %16 = vector.load %arg1[%c0_54, %c2_55, %c2_56, %c0_57] : memref<2x18x18x12xbf16, #tpu.memory_space<vmem>>, vector<2x16x16x12xbf16>
    %c0_58 = arith.constant 0 : index
    %c0_59 = arith.constant 0 : index
    %c0_60 = arith.constant 0 : index
    %c96 = arith.constant 96 : index
    %17 = vector.load %arg7[%c0_58, %c0_59, %c0_60, %c96] : memref<2x16x16x108xbf16, #tpu.memory_space<vmem>>, vector<2x16x16x12xbf16>
    tpu.vector_store %arg7[%c0_58, %c0_59, %c0_60, %c96], %16 {strides = array<i32>} : memref<2x16x16x108xbf16, #tpu.memory_space<vmem>>, vector<2x16x16x12xbf16>,
    %c0_61 = arith.constant 0 : index
    %c0_62 = arith.constant 0 : index
    %c0_63 = arith.constant 0 : index
    %c0_64 = arith.constant 0 : index
    %18 = vector.load %arg7[%c0_61, %c0_62, %c0_63, %c0_64] : memref<2x16x16x108xbf16, #tpu.memory_space<vmem>>, vector<2x16x16x108xbf16>
    %19 = vector.shape_cast %18 : vector<2x16x16x108xbf16> to vector<512x108xbf16>
    %c0_65 = arith.constant 0 : index
    %c0_66 = arith.constant 0 : index
    %20 = vector.load %arg3[%c0_65, %c0_66] : memref<108x24xbf16, #tpu.memory_space<vmem>>, vector<108x24xbf16>
    %cst = arith.constant dense<0.000000e+00> : vector<512x24xf32>
    %21 = tpu.matmul %19, %20, %cst {dimension_numbers = #tpu.dot_dimension_numbers<[1], [0], [0], [1], [0, 0, 1, 1], [], []>} : vector<512x108xbf16>, vector<108x24xbf16>, vector<512x24xf32> -> vector<512x24xf32>
    %c0_67 = arith.constant 0 : index
    %c0_68 = arith.constant 0 : index
    %22 = vector.load %arg5[%c0_67, %c0_68] : memref<1x24xf32, #tpu.memory_space<vmem>>, vector<1x24xf32>
    %23 = vector.broadcast %22 : vector<1x24xf32> to vector<512x24xf32>
    %24 = arith.addf %21, %23 : vector<512x24xf32>
    %25 = vector.extract_strided_slice %24 {offsets = [0, 0], sizes = [512, 16], strides = [1, 1]} : vector<512x24xf32> to vector<512x16xf32>
    %cst_69 = arith.constant 0.000000e+00 : f32
    %26 = vector.broadcast %cst_69 : f32 to vector<512x16xf32>
    %27 = arith.subf %26, %25 : vector<512x16xf32>
    %28 = math.exp %27 : vector<512x16xf32>
    %cst_70 = arith.constant 1.000000e+00 : f32
    %29 = vector.broadcast %cst_70 : f32 to vector<512x16xf32>
    %30 = arith.addf %29, %28 : vector<512x16xf32>
    %cst_71 = arith.constant 1.000000e+00 : f32
    %31 = vector.broadcast %cst_71 : f32 to vector<512x16xf32>
    %32 = arith.divf %31, %30 : vector<512x16xf32>
    %33 = vector.extract_strided_slice %32 {offsets = [0, 0], sizes = [512, 8], strides = [1, 1]} : vector<512x16xf32> to vector<512x8xf32>
    %34 = vector.extract_strided_slice %32 {offsets = [0, 8], sizes = [512, 8], strides = [1, 1]} : vector<512x16xf32> to vector<512x8xf32>
    %35 = vector.extract_strided_slice %24 {offsets = [0, 16], sizes = [512, 8], strides = [1, 1]} : vector<512x24xf32> to vector<512x8xf32>
    %c0_72 = arith.constant 0 : index
    %c0_73 = arith.constant 0 : index
    %c0_74 = arith.constant 0 : index
    %36 = vector.load %arg2[%c0_72, %c0_73, %c0_74] : memref<2x256x8xf32, #tpu.memory_space<vmem>>, vector<2x256x8xf32>
    %37 = vector.shape_cast %36 : vector<2x256x8xf32> to vector<512x8xf32>
    %38 = arith.mulf %37, %34 : vector<512x8xf32>
    %39 = vector.shape_cast %38 : vector<512x8xf32> to vector<2x16x16x8xf32>
    %40 = arith.truncf %39 : vector<2x16x16x8xf32> to vector<2x16x16x8xbf16>
    %cst_75 = arith.constant 0.000000e+00 : bf16
    %41 = vector.broadcast %cst_75 : bf16 to vector<2x1x18x8xbf16>
    %cst_76 = arith.constant 0.000000e+00 : bf16
    %42 = vector.broadcast %cst_76 : bf16 to vector<2x16x1x8xbf16>
    %c0_77 = arith.constant 0 : index
    %c0_78 = arith.constant 0 : index
    %c0_79 = arith.constant 0 : index
    %c0_80 = arith.constant 0 : index
    %43 = vector.load %arg9[%c0_77, %c0_78, %c0_79, %c0_80] : memref<2x18x18x8xbf16, #tpu.memory_space<vmem>>, vector<2x1x18x8xbf16>
    tpu.vector_store %arg9[%c0_77, %c0_78, %c0_79, %c0_80], %41 {strides = array<i32>} : memref<2x18x18x8xbf16, #tpu.memory_space<vmem>>, vector<2x1x18x8xbf16>,
    %c0_81 = arith.constant 0 : index
    %c17 = arith.constant 17 : index
    %c0_82 = arith.constant 0 : index
    %c0_83 = arith.constant 0 : index
    %44 = vector.load %arg9[%c0_81, %c17, %c0_82, %c0_83] : memref<2x18x18x8xbf16, #tpu.memory_space<vmem>>, vector<2x1x18x8xbf16>
    tpu.vector_store %arg9[%c0_81, %c17, %c0_82, %c0_83], %41 {strides = array<i32>} : memref<2x18x18x8xbf16, #tpu.memory_space<vmem>>, vector<2x1x18x8xbf16>,
    %c0_84 = arith.constant 0 : index
    %c1_85 = arith.constant 1 : index
    %c0_86 = arith.constant 0 : index
    %c0_87 = arith.constant 0 : index
    %45 = vector.load %arg9[%c0_84, %c1_85, %c0_86, %c0_87] : memref<2x18x18x8xbf16, #tpu.memory_space<vmem>>, vector<2x16x1x8xbf16>
    tpu.vector_store %arg9[%c0_84, %c1_85, %c0_86, %c0_87], %42 {strides = array<i32>} : memref<2x18x18x8xbf16, #tpu.memory_space<vmem>>, vector<2x16x1x8xbf16>,
    %c0_88 = arith.constant 0 : index
    %c1_89 = arith.constant 1 : index
    %c17_90 = arith.constant 17 : index
    %c0_91 = arith.constant 0 : index
    %46 = vector.load %arg9[%c0_88, %c1_89, %c17_90, %c0_91] : memref<2x18x18x8xbf16, #tpu.memory_space<vmem>>, vector<2x16x1x8xbf16>
    tpu.vector_store %arg9[%c0_88, %c1_89, %c17_90, %c0_91], %42 {strides = array<i32>} : memref<2x18x18x8xbf16, #tpu.memory_space<vmem>>, vector<2x16x1x8xbf16>,
    %c0_92 = arith.constant 0 : index
    %c1_93 = arith.constant 1 : index
    %c1_94 = arith.constant 1 : index
    %c0_95 = arith.constant 0 : index
    %47 = vector.load %arg9[%c0_92, %c1_93, %c1_94, %c0_95] : memref<2x18x18x8xbf16, #tpu.memory_space<vmem>>, vector<2x16x16x8xbf16>
    tpu.vector_store %arg9[%c0_92, %c1_93, %c1_94, %c0_95], %40 {strides = array<i32>} : memref<2x18x18x8xbf16, #tpu.memory_space<vmem>>, vector<2x16x16x8xbf16>,
    %c0_96 = arith.constant 0 : index
    %c0_97 = arith.constant 0 : index
    %c0_98 = arith.constant 0 : index
    %c0_99 = arith.constant 0 : index
    %48 = vector.load %arg9[%c0_96, %c0_97, %c0_98, %c0_99] : memref<2x18x18x8xbf16, #tpu.memory_space<vmem>>, vector<2x16x16x8xbf16>
    %c0_100 = arith.constant 0 : index
    %c0_101 = arith.constant 0 : index
    %c0_102 = arith.constant 0 : index
    %c0_103 = arith.constant 0 : index
    %49 = vector.load %arg8[%c0_100, %c0_101, %c0_102, %c0_103] : memref<2x16x16x72xbf16, #tpu.memory_space<vmem>>, vector<2x16x16x8xbf16>
    tpu.vector_store %arg8[%c0_100, %c0_101, %c0_102, %c0_103], %48 {strides = array<i32>} : memref<2x16x16x72xbf16, #tpu.memory_space<vmem>>, vector<2x16x16x8xbf16>,
    %c0_104 = arith.constant 0 : index
    %c0_105 = arith.constant 0 : index
    %c1_106 = arith.constant 1 : index
    %c0_107 = arith.constant 0 : index
    %50 = vector.load %arg9[%c0_104, %c0_105, %c1_106, %c0_107] : memref<2x18x18x8xbf16, #tpu.memory_space<vmem>>, vector<2x16x16x8xbf16>
    %c0_108 = arith.constant 0 : index
    %c0_109 = arith.constant 0 : index
    %c0_110 = arith.constant 0 : index
    %c8 = arith.constant 8 : index
    %51 = vector.load %arg8[%c0_108, %c0_109, %c0_110, %c8] : memref<2x16x16x72xbf16, #tpu.memory_space<vmem>>, vector<2x16x16x8xbf16>
    tpu.vector_store %arg8[%c0_108, %c0_109, %c0_110, %c8], %50 {strides = array<i32>} : memref<2x16x16x72xbf16, #tpu.memory_space<vmem>>, vector<2x16x16x8xbf16>,
    %c0_111 = arith.constant 0 : index
    %c0_112 = arith.constant 0 : index
    %c2_113 = arith.constant 2 : index
    %c0_114 = arith.constant 0 : index
    %52 = vector.load %arg9[%c0_111, %c0_112, %c2_113, %c0_114] : memref<2x18x18x8xbf16, #tpu.memory_space<vmem>>, vector<2x16x16x8xbf16>
    %c0_115 = arith.constant 0 : index
    %c0_116 = arith.constant 0 : index
    %c0_117 = arith.constant 0 : index
    %c16 = arith.constant 16 : index
    %53 = vector.load %arg8[%c0_115, %c0_116, %c0_117, %c16] : memref<2x16x16x72xbf16, #tpu.memory_space<vmem>>, vector<2x16x16x8xbf16>
    tpu.vector_store %arg8[%c0_115, %c0_116, %c0_117, %c16], %52 {strides = array<i32>} : memref<2x16x16x72xbf16, #tpu.memory_space<vmem>>, vector<2x16x16x8xbf16>,
    %c0_118 = arith.constant 0 : index
    %c1_119 = arith.constant 1 : index
    %c0_120 = arith.constant 0 : index
    %c0_121 = arith.constant 0 : index
    %54 = vector.load %arg9[%c0_118, %c1_119, %c0_120, %c0_121] : memref<2x18x18x8xbf16, #tpu.memory_space<vmem>>, vector<2x16x16x8xbf16>
    %c0_122 = arith.constant 0 : index
    %c0_123 = arith.constant 0 : index
    %c0_124 = arith.constant 0 : index
    %c24_125 = arith.constant 24 : index
    %55 = vector.load %arg8[%c0_122, %c0_123, %c0_124, %c24_125] : memref<2x16x16x72xbf16, #tpu.memory_space<vmem>>, vector<2x16x16x8xbf16>
    tpu.vector_store %arg8[%c0_122, %c0_123, %c0_124, %c24_125], %54 {strides = array<i32>} : memref<2x16x16x72xbf16, #tpu.memory_space<vmem>>, vector<2x16x16x8xbf16>,
    %c0_126 = arith.constant 0 : index
    %c1_127 = arith.constant 1 : index
    %c1_128 = arith.constant 1 : index
    %c0_129 = arith.constant 0 : index
    %56 = vector.load %arg9[%c0_126, %c1_127, %c1_128, %c0_129] : memref<2x18x18x8xbf16, #tpu.memory_space<vmem>>, vector<2x16x16x8xbf16>
    %c0_130 = arith.constant 0 : index
    %c0_131 = arith.constant 0 : index
    %c0_132 = arith.constant 0 : index
    %c32 = arith.constant 32 : index
    %57 = vector.load %arg8[%c0_130, %c0_131, %c0_132, %c32] : memref<2x16x16x72xbf16, #tpu.memory_space<vmem>>, vector<2x16x16x8xbf16>
    tpu.vector_store %arg8[%c0_130, %c0_131, %c0_132, %c32], %56 {strides = array<i32>} : memref<2x16x16x72xbf16, #tpu.memory_space<vmem>>, vector<2x16x16x8xbf16>,
    %c0_133 = arith.constant 0 : index
    %c1_134 = arith.constant 1 : index
    %c2_135 = arith.constant 2 : index
    %c0_136 = arith.constant 0 : index
    %58 = vector.load %arg9[%c0_133, %c1_134, %c2_135, %c0_136] : memref<2x18x18x8xbf16, #tpu.memory_space<vmem>>, vector<2x16x16x8xbf16>
    %c0_137 = arith.constant 0 : index
    %c0_138 = arith.constant 0 : index
    %c0_139 = arith.constant 0 : index
    %c40 = arith.constant 40 : index
    %59 = vector.load %arg8[%c0_137, %c0_138, %c0_139, %c40] : memref<2x16x16x72xbf16, #tpu.memory_space<vmem>>, vector<2x16x16x8xbf16>
    tpu.vector_store %arg8[%c0_137, %c0_138, %c0_139, %c40], %58 {strides = array<i32>} : memref<2x16x16x72xbf16, #tpu.memory_space<vmem>>, vector<2x16x16x8xbf16>,
    %c0_140 = arith.constant 0 : index
    %c2_141 = arith.constant 2 : index
    %c0_142 = arith.constant 0 : index
    %c0_143 = arith.constant 0 : index
    %60 = vector.load %arg9[%c0_140, %c2_141, %c0_142, %c0_143] : memref<2x18x18x8xbf16, #tpu.memory_space<vmem>>, vector<2x16x16x8xbf16>
    %c0_144 = arith.constant 0 : index
    %c0_145 = arith.constant 0 : index
    %c0_146 = arith.constant 0 : index
    %c48_147 = arith.constant 48 : index
    %61 = vector.load %arg8[%c0_144, %c0_145, %c0_146, %c48_147] : memref<2x16x16x72xbf16, #tpu.memory_space<vmem>>, vector<2x16x16x8xbf16>
    tpu.vector_store %arg8[%c0_144, %c0_145, %c0_146, %c48_147], %60 {strides = array<i32>} : memref<2x16x16x72xbf16, #tpu.memory_space<vmem>>, vector<2x16x16x8xbf16>,
    %c0_148 = arith.constant 0 : index
    %c2_149 = arith.constant 2 : index
    %c1_150 = arith.constant 1 : index
    %c0_151 = arith.constant 0 : index
    %62 = vector.load %arg9[%c0_148, %c2_149, %c1_150, %c0_151] : memref<2x18x18x8xbf16, #tpu.memory_space<vmem>>, vector<2x16x16x8xbf16>
    %c0_152 = arith.constant 0 : index
    %c0_153 = arith.constant 0 : index
    %c0_154 = arith.constant 0 : index
    %c56 = arith.constant 56 : index
    %63 = vector.load %arg8[%c0_152, %c0_153, %c0_154, %c56] : memref<2x16x16x72xbf16, #tpu.memory_space<vmem>>, vector<2x16x16x8xbf16>
    tpu.vector_store %arg8[%c0_152, %c0_153, %c0_154, %c56], %62 {strides = array<i32>} : memref<2x16x16x72xbf16, #tpu.memory_space<vmem>>, vector<2x16x16x8xbf16>,
    %c0_155 = arith.constant 0 : index
    %c2_156 = arith.constant 2 : index
    %c2_157 = arith.constant 2 : index
    %c0_158 = arith.constant 0 : index
    %64 = vector.load %arg9[%c0_155, %c2_156, %c2_157, %c0_158] : memref<2x18x18x8xbf16, #tpu.memory_space<vmem>>, vector<2x16x16x8xbf16>
    %c0_159 = arith.constant 0 : index
    %c0_160 = arith.constant 0 : index
    %c0_161 = arith.constant 0 : index
    %c64 = arith.constant 64 : index
    %65 = vector.load %arg8[%c0_159, %c0_160, %c0_161, %c64] : memref<2x16x16x72xbf16, #tpu.memory_space<vmem>>, vector<2x16x16x8xbf16>
    tpu.vector_store %arg8[%c0_159, %c0_160, %c0_161, %c64], %64 {strides = array<i32>} : memref<2x16x16x72xbf16, #tpu.memory_space<vmem>>, vector<2x16x16x8xbf16>,
    %c0_162 = arith.constant 0 : index
    %c0_163 = arith.constant 0 : index
    %c0_164 = arith.constant 0 : index
    %c0_165 = arith.constant 0 : index
    %66 = vector.load %arg8[%c0_162, %c0_163, %c0_164, %c0_165] : memref<2x16x16x72xbf16, #tpu.memory_space<vmem>>, vector<2x16x16x72xbf16>
    %67 = vector.shape_cast %66 : vector<2x16x16x72xbf16> to vector<512x72xbf16>
    %c0_166 = arith.constant 0 : index
    %c0_167 = arith.constant 0 : index
    %68 = vector.load %arg4[%c0_166, %c0_167] : memref<72x8xbf16, #tpu.memory_space<vmem>>, vector<72x8xbf16>
    %cst_168 = arith.constant dense<0.000000e+00> : vector<512x8xf32>
    %69 = tpu.matmul %67, %68, %cst_168 {dimension_numbers = #tpu.dot_dimension_numbers<[1], [0], [0], [1], [0, 0, 1, 1], [], []>} : vector<512x72xbf16>, vector<72x8xbf16>, vector<512x8xf32> -> vector<512x8xf32>
    %70 = arith.addf %35, %69 : vector<512x8xf32>
    %71 = math.tanh %70 : vector<512x8xf32>
    %cst_169 = arith.constant 1.000000e+00 : f32
    %72 = vector.broadcast %cst_169 : f32 to vector<512x8xf32>
    %73 = arith.subf %72, %33 : vector<512x8xf32>
    %74 = arith.mulf %37, %73 : vector<512x8xf32>
    %75 = arith.mulf %71, %33 : vector<512x8xf32>
    %76 = arith.addf %74, %75 : vector<512x8xf32>
    %77 = vector.shape_cast %76 : vector<512x8xf32> to vector<2x256x8xf32>
    %c0_170 = arith.constant 0 : index
    %c0_171 = arith.constant 0 : index
    %c0_172 = arith.constant 0 : index
    %78 = vector.load %arg6[%c0_170, %c0_171, %c0_172] : memref<2x256x8xf32, #tpu.memory_space<vmem>>, vector<2x256x8xf32>
    tpu.vector_store %arg6[%c0_170, %c0_171, %c0_172], %77 {strides = array<i32>} : memref<2x256x8xf32, #tpu.memory_space<vmem>>, vector<2x256x8xf32>,
    return
  }
  func.func @transform_0(%arg0: i32) -> (i32, i32, i32, i32) {
    %c0_i32 = arith.constant 0 : i32
    %c0_i32_0 = arith.constant 0 : i32
    %c0_i32_1 = arith.constant 0 : i32
    %c0_i32_2 = arith.constant 0 : i32
    return %arg0, %c0_i32, %c0_i32_0, %c0_i32_1 : i32, i32, i32, i32
  }
  func.func @transform_1(%arg0: i32) -> (i32, i32, i32) {
    %c0_i32 = arith.constant 0 : i32
    %c0_i32_0 = arith.constant 0 : i32
    %c0_i32_1 = arith.constant 0 : i32
    return %arg0, %c0_i32, %c0_i32_0 : i32, i32, i32
  }
  func.func @transform_2(%arg0: i32) -> (i32, i32) {
    %c0_i32 = arith.constant 0 : i32
    %c0_i32_0 = arith.constant 0 : i32
    %c0_i32_1 = arith.constant 0 : i32
    return %c0_i32, %c0_i32_0 : i32, i32
  }
  func.func @transform_3(%arg0: i32) -> (i32, i32) {
    %c0_i32 = arith.constant 0 : i32
    %c0_i32_0 = arith.constant 0 : i32
    %c0_i32_1 = arith.constant 0 : i32
    return %c0_i32, %c0_i32_0 : i32, i32
  }
  func.func @transform_4(%arg0: i32) -> (i32, i32) {
    %c0_i32 = arith.constant 0 : i32
    %c0_i32_0 = arith.constant 0 : i32
    %c0_i32_1 = arith.constant 0 : i32
    return %c0_i32, %c0_i32_0 : i32, i32
  }
  func.func @transform_5(%arg0: i32) -> (i32, i32, i32) {
    %c0_i32 = arith.constant 0 : i32
    %c0_i32_0 = arith.constant 0 : i32
    %c0_i32_1 = arith.constant 0 : i32
    return %arg0, %c0_i32, %c0_i32_0 : i32, i32, i32
  }
}

</mosaic_0001>

<llo_original>
// kernel: tpu_custom_call.1
$region0: #{tpu_custom_call.1}
  #allocation0 [shape = 'u32[]', space=smem, size = 0x4, offset = 0x4, fixed_abs, tag = 'smem constant byte address 0x4 - core index']
  #allocation1 [shape = 'u32[144,128]{1,0:T(1,128)}', space=vmem, size = 0x12000, scoped, tag = 'internal scratch']
  #allocation2 [shape = 'bf16[2,16,16,108]{3,2,1,0:T(16,128)(2,1)}', space=vmem, size = 0x20000, scoped, tag = 'scratch operand']
  #allocation3 [shape = 'bf16[2,16,16,72]{3,2,1,0:T(16,128)(2,1)}', space=vmem, size = 0x20000, scoped, tag = 'scratch operand']
  #allocation4 [shape = 'bf16[2,18,18,8]{3,2,1,0:T(8,128)(2,1)}', space=vmem, size = 0x36000, scoped, tag = 'scratch operand']
  %s0 = inlined_call_operand.vmem [shape: bf16[2,18,18,12], index: 0, kind: input, shape index: {}]
  %s1 = inlined_call_operand.vmem [shape: f32[2,256,8], index: 1, kind: input, shape index: {}]
  %s2 = inlined_call_operand.vmem [shape: bf16[108,24], index: 2, kind: input, shape index: {}]
  %s3 = inlined_call_operand.vmem [shape: bf16[72,8], index: 3, kind: input, shape index: {}]
  %s4 = inlined_call_operand.vmem [shape: f32[1,24], index: 4, kind: input, shape index: {}]
  %s5 = inlined_call_operand.vmem [shape: f32[2,256,8], index: 5, kind: output, shape index: {}]
  %s6 = sld [smem:[#allocation0]]
  $region30: #{tpu_custom_call.1} parent=0
    _
  %s8 = ssub.s32 1, %s6
  %s9 = scalar_select 0, %s8, %s6
  // Predicated region
  $region2: #{tpu_custom_call.1} parent=0 // pred_check
    _
  $region3: #{tpu_custom_call.1} parent=0 // pred_check_branch
    %11 = sbr.rel (0) target = $region5
  $region4: #{tpu_custom_call.1} parent=0 // pred_region
    _
  $region5: #{tpu_custom_call.1} parent=0 // pred_fallthru
    _
  // Predicated region
  $region6: #{tpu_custom_call.1} parent=0 // pred_check
    _
  $region7: #{tpu_custom_call.1} parent=0 // pred_check_branch
    %13 = sbr.rel (0) target = $region9
  $region8: #{tpu_custom_call.1} parent=0 // pred_region
    _
  $region9: #{tpu_custom_call.1} parent=0 // pred_fallthru
    _
  // Predicated region
  $region10: #{tpu_custom_call.1} parent=0 // pred_check
    _
  $region11: #{tpu_custom_call.1} parent=0 // pred_check_branch
    %15 = sbr.rel (0) target = $region13
  $region12: #{tpu_custom_call.1} parent=0 // pred_region
    _
  $region13: #{tpu_custom_call.1} parent=0 // pred_fallthru
    _
  // Predicated region
  $region14: #{tpu_custom_call.1} parent=0 // pred_check
    _
  $region15: #{tpu_custom_call.1} parent=0 // pred_check_branch
    %17 = sbr.rel (0) target = $region17
  $region16: #{tpu_custom_call.1} parent=0 // pred_region
    _
  $region17: #{tpu_custom_call.1} parent=0 // pred_fallthru
    _
  // Predicated region
  $region18: #{tpu_custom_call.1} parent=0 // pred_check
    _
  $region19: #{tpu_custom_call.1} parent=0 // pred_check_branch
    %19 = sbr.rel (0) target = $region21
  $region20: #{tpu_custom_call.1} parent=0 // pred_region
    _
  $region21: #{tpu_custom_call.1} parent=0 // pred_fallthru
    _
  %v21 = vld [vmem:[%s0] sm:$0xf]
  %v22 = vld [vmem:[%s0 + $0x4] sm:$0xf]
  %v23 = vld [vmem:[%s0 + $0xc] sm:$0xf]
  %v24 = vld [vmem:[%s0 + $0x10] sm:$0xf]
  %v25 = vld [vmem:[%s0 + $0x18] sm:$0xf]
  %v26 = vld [vmem:[%s0 + $0x1c] sm:$0xf]
  %v27 = vld [vmem:[%s0 + $0x24] sm:$0xf]
  %v28 = vld [vmem:[%s0 + $0x28] sm:$0xf]
  %v29 = vld [vmem:[%s0 + $0x30] sm:$0xf]
  %v30 = vld [vmem:[%s0 + $0x34] sm:$0xf]
  %v31 = vld [vmem:[%s0 + $0x3c] sm:$0xf]
  %v32 = vld [vmem:[%s0 + $0x40] sm:$0xf]
  %v33 = vld [vmem:[%s0 + $0x48] sm:$0xf]
  %v34 = vld [vmem:[%s0 + $0x4c] sm:$0xf]
  %v35 = vld [vmem:[%s0 + $0x54] sm:$0xf]
  %v36 = vld [vmem:[%s0 + $0x58] sm:$0xf]
  %v37 = vld [vmem:[%s0 + $0x60] sm:$0xf]
  %v38 = vld [vmem:[%s0 + $0x64] sm:$0xf]
  %v39 = vld [vmem:[%s0 + $0x6c] sm:$0xf]
  %v40 = vld [vmem:[%s0 + $0x70] sm:$0xf]
  %v41 = vld [vmem:[%s0 + $0x78] sm:$0xf]
  %v42 = vld [vmem:[%s0 + $0x7c] sm:$0xf]
  %v43 = vld [vmem:[%s0 + $0x84] sm:$0xf]
  %v44 = vld [vmem:[%s0 + $0x88] sm:$0xf]
  %v45 = vld [vmem:[%s0 + $0x90] sm:$0xf]
  %v46 = vld [vmem:[%s0 + $0x94] sm:$0xf]
  %v47 = vld [vmem:[%s0 + $0x9c] sm:$0xf]
  %v48 = vld [vmem:[%s0 + $0xa0] sm:$0xf]
  %v49 = vld [vmem:[%s0 + $0xa8] sm:$0xf]
  %v50 = vld [vmem:[%s0 + $0xac] sm:$0xf]
  %v51 = vld [vmem:[%s0 + $0xb4] sm:$0xf]
  %v52 = vld [vmem:[%s0 + $0xb8] sm:$0xf]
  %v53 = vld [vmem:[%s0 + $0xd8] sm:$0xf]
  %v54 = vld [vmem:[%s0 + $0xdc] sm:$0xf]
  %v55 = vld [vmem:[%s0 + $0xe4] sm:$0xf]
  %v56 = vld [vmem:[%s0 + $0xe8] sm:$0xf]
  %v57 = vld [vmem:[%s0 + $0xf0] sm:$0xf]
  %v58 = vld [vmem:[%s0 + $0xf4] sm:$0xf]
  %v59 = vld [vmem:[%s0 + $0xfc] sm:$0xf]
  %v60 = vld [vmem:[%s0 + $0x100] sm:$0xf]
  %v61 = vld [vmem:[%s0 + $0x108] sm:$0xf]
  %v62 = vld [vmem:[%s0 + $0x10c] sm:$0xf]
  %v63 = vld [vmem:[%s0 + $0x114] sm:$0xf]
  %v64 = vld [vmem:[%s0 + $0x118] sm:$0xf]
  %v65 = vld [vmem:[%s0 + $0x120] sm:$0xf]
  %v66 = vld [vmem:[%s0 + $0x124] sm:$0xf]
  %v67 = vld [vmem:[%s0 + $0x12c] sm:$0xf]
  %v68 = vld [vmem:[%s0 + $0x130] sm:$0xf]
  %v69 = vld [vmem:[%s0 + $0x138] sm:$0xf]
  %v70 = vld [vmem:[%s0 + $0x13c] sm:$0xf]
  %v71 = vld [vmem:[%s0 + $0x144] sm:$0xf]
  %v72 = vld [vmem:[%s0 + $0x148] sm:$0xf]
  %v73 = vld [vmem:[%s0 + $0x150] sm:$0xf]
  %v74 = vld [vmem:[%s0 + $0x154] sm:$0xf]
  %v75 = vld [vmem:[%s0 + $0x15c] sm:$0xf]
  %v76 = vld [vmem:[%s0 + $0x160] sm:$0xf]
  %v77 = vld [vmem:[%s0 + $0x168] sm:$0xf]
  %v78 = vld [vmem:[%s0 + $0x16c] sm:$0xf]
  %v79 = vld [vmem:[%s0 + $0x174] sm:$0xf]
  %v80 = vld [vmem:[%s0 + $0x178] sm:$0xf]
  %v81 = vld [vmem:[%s0 + $0x180] sm:$0xf]
  %v82 = vld [vmem:[%s0 + $0x184] sm:$0xf]
  %v83 = vld [vmem:[%s0 + $0x18c] sm:$0xf]
  %v84 = vld [vmem:[%s0 + $0x190] sm:$0xf]
  %v149 = vunpack.c.l.b16 %v21
  %v150 = vunpack.c.l.b16 %v22
  %v151 = vunpack.c.l.b16 %v23
  %v152 = vunpack.c.l.b16 %v24
  %v153 = vunpack.c.l.b16 %v25
  %v154 = vunpack.c.l.b16 %v26
  %v155 = vunpack.c.l.b16 %v27
  %v156 = vunpack.c.l.b16 %v28
  %v157 = vunpack.c.l.b16 %v29
  %v158 = vunpack.c.l.b16 %v30
  %v159 = vunpack.c.l.b16 %v31
  %v160 = vunpack.c.l.b16 %v32
  %v161 = vunpack.c.l.b16 %v33
  %v162 = vunpack.c.l.b16 %v34
  %v163 = vunpack.c.l.b16 %v35
  %v164 = vunpack.c.l.b16 %v36
  %v165 = vunpack.c.l.b16 %v37
  %v166 = vunpack.c.l.b16 %v38
  %v167 = vunpack.c.l.b16 %v39
  %v168 = vunpack.c.l.b16 %v40
  %v169 = vunpack.c.l.b16 %v41
  %v170 = vunpack.c.l.b16 %v42
  %v171 = vunpack.c.l.b16 %v43
  %v172 = vunpack.c.l.b16 %v44
  %v173 = vunpack.c.l.b16 %v45
  %v174 = vunpack.c.l.b16 %v46
  %v175 = vunpack.c.l.b16 %v47
  %v176 = vunpack.c.l.b16 %v48
  %v177 = vunpack.c.l.b16 %v49
  %v178 = vunpack.c.l.b16 %v50
  %v179 = vunpack.c.l.b16 %v51
  %v180 = vunpack.c.l.b16 %v52
  %v181 = vunpack.c.l.b16 %v53
  %v182 = vunpack.c.l.b16 %v54
  %v183 = vunpack.c.l.b16 %v55
  %v184 = vunpack.c.l.b16 %v56
  %v185 = vunpack.c.l.b16 %v57
  %v186 = vunpack.c.l.b16 %v58
  %v187 = vunpack.c.l.b16 %v59
  %v188 = vunpack.c.l.b16 %v60
  %v189 = vunpack.c.l.b16 %v61
  %v190 = vunpack.c.l.b16 %v62
  %v191 = vunpack.c.l.b16 %v63
  %v192 = vunpack.c.l.b16 %v64
  %v193 = vunpack.c.l.b16 %v65
  %v194 = vunpack.c.l.b16 %v66
  %v195 = vunpack.c.l.b16 %v67
  %v196 = vunpack.c.l.b16 %v68
  %v197 = vunpack.c.l.b16 %v69
  %v198 = vunpack.c.l.b16 %v70
  %v199 = vunpack.c.l.b16 %v71
  %v200 = vunpack.c.l.b16 %v72
  %v201 = vunpack.c.l.b16 %v73
  %v202 = vunpack.c.l.b16 %v74
  %v203 = vunpack.c.l.b16 %v75
  %v204 = vunpack.c.l.b16 %v76
  %v205 = vunpack.c.l.b16 %v77
  %v206 = vunpack.c.l.b16 %v78
  %v207 = vunpack.c.l.b16 %v79
  %v208 = vunpack.c.l.b16 %v80
  %v209 = vunpack.c.l.b16 %v81
  %v210 = vunpack.c.l.b16 %v82
  %v211 = vunpack.c.l.b16 %v83
  %v212 = vunpack.c.l.b16 %v84
  %v213 = vpack.c.b16 %v150, %v149
  %v214 = vpack.c.b16 %v152, %v151
  %v215 = vpack.c.b16 %v154, %v153
  %v216 = vpack.c.b16 %v156, %v155
  %v217 = vpack.c.b16 %v158, %v157
  %v218 = vpack.c.b16 %v160, %v159
  %v219 = vpack.c.b16 %v162, %v161
  %v220 = vpack.c.b16 %v164, %v163
  %v221 = vpack.c.b16 %v166, %v165
  %v222 = vpack.c.b16 %v168, %v167
  %v223 = vpack.c.b16 %v170, %v169
  %v224 = vpack.c.b16 %v172, %v171
  %v225 = vpack.c.b16 %v174, %v173
  %v226 = vpack.c.b16 %v176, %v175
  %v227 = vpack.c.b16 %v178, %v177
  %v228 = vpack.c.b16 %v180, %v179
  %v229 = vpack.c.b16 %v182, %v181
  %v230 = vpack.c.b16 %v184, %v183
  %v231 = vpack.c.b16 %v186, %v185
  %v232 = vpack.c.b16 %v188, %v187
  %v233 = vpack.c.b16 %v190, %v189
  %v234 = vpack.c.b16 %v192, %v191
  %v235 = vpack.c.b16 %v194, %v193
  %v236 = vpack.c.b16 %v196, %v195
  %v237 = vpack.c.b16 %v198, %v197
  %v238 = vpack.c.b16 %v200, %v199
  %v239 = vpack.c.b16 %v202, %v201
  %v240 = vpack.c.b16 %v204, %v203
  %v241 = vpack.c.b16 %v206, %v205
  %v242 = vpack.c.b16 %v208, %v207
  %v243 = vpack.c.b16 %v210, %v209
  %v244 = vpack.c.b16 %v212, %v211
  %vm277 = vcmask 97280
  %278 = vst.msk [vmem:[#allocation2] sm:$0xff] %vm277, %v213
  %279 = vst.msk [vmem:[#allocation2 + $0x8] sm:$0xff] %vm277, %v214
  %280 = vst.msk [vmem:[#allocation2 + $0x10] sm:$0xff] %vm277, %v215
  %281 = vst.msk [vmem:[#allocation2 + $0x18] sm:$0xff] %vm277, %v216
  %282 = vst.msk [vmem:[#allocation2 + $0x20] sm:$0xff] %vm277, %v217
  %283 = vst.msk [vmem:[#allocation2 + $0x28] sm:$0xff] %vm277, %v218
  %284 = vst.msk [vmem:[#allocation2 + $0x30] sm:$0xff] %vm277, %v219
  %285 = vst.msk [vmem:[#allocation2 + $0x38] sm:$0xff] %vm277, %v220
  %286 = vst.msk [vmem:[#allocation2 + $0x40] sm:$0xff] %vm277, %v221
  %287 = vst.msk [vmem:[#allocation2 + $0x48] sm:$0xff] %vm277, %v222
  %288 = vst.msk [vmem:[#allocation2 + $0x50] sm:$0xff] %vm277, %v223
  %289 = vst.msk [vmem:[#allocation2 + $0x58] sm:$0xff] %vm277, %v224
  %290 = vst.msk [vmem:[#allocation2 + $0x60] sm:$0xff] %vm277, %v225
  %291 = vst.msk [vmem:[#allocation2 + $0x68] sm:$0xff] %vm277, %v226
  %292 = vst.msk [vmem:[#allocation2 + $0x70] sm:$0xff] %vm277, %v227
  %293 = vst.msk [vmem:[#allocation2 + $0x78] sm:$0xff] %vm277, %v228
  %294 = vst.msk [vmem:[#allocation2 + $0x80] sm:$0xff] %vm277, %v229
  %295 = vst.msk [vmem:[#allocation2 + $0x88] sm:$0xff] %vm277, %v230
  %296 = vst.msk [vmem:[#allocation2 + $0x90] sm:$0xff] %vm277, %v231
  %297 = vst.msk [vmem:[#allocation2 + $0x98] sm:$0xff] %vm277, %v232
  %298 = vst.msk [vmem:[#allocation2 + $0xa0] sm:$0xff] %vm277, %v233
  %299 = vst.msk [vmem:[#allocation2 + $0xa8] sm:$0xff] %vm277, %v234
  %300 = vst.msk [vmem:[#allocation2 + $0xb0] sm:$0xff] %vm277, %v235
  %301 = vst.msk [vmem:[#allocation2 + $0xb8] sm:$0xff] %vm277, %v236
  %302 = vst.msk [vmem:[#allocation2 + $0xc0] sm:$0xff] %vm277, %v237
  %303 = vst.msk [vmem:[#allocation2 + $0xc8] sm:$0xff] %vm277, %v238
  %304 = vst.msk [vmem:[#allocation2 + $0xd0] sm:$0xff] %vm277, %v239
  %305 = vst.msk [vmem:[#allocation2 + $0xd8] sm:$0xff] %vm277, %v240
  %306 = vst.msk [vmem:[#allocation2 + $0xe0] sm:$0xff] %vm277, %v241
  %307 = vst.msk [vmem:[#allocation2 + $0xe8] sm:$0xff] %vm277, %v242
  %308 = vst.msk [vmem:[#allocation2 + $0xf0] sm:$0xff] %vm277, %v243
  %309 = vst.msk [vmem:[#allocation2 + $0xf8] sm:$0xff] %vm277, %v244
  %v310 = vld [vmem:[%s0] sm:$0xf]
  %v311 = vld [vmem:[%s0 + $0x4] sm:$0xf]
  %v312 = vld [vmem:[%s0 + $0x8] sm:$0x1]
  %v313 = vld [vmem:[%s0 + $0xc] sm:$0xf]
  %v314 = vld [vmem:[%s0 + $0x10] sm:$0xf]
  %v315 = vld [vmem:[%s0 + $0x14] sm:$0x1]
  %v316 = vld [vmem:[%s0 + $0x18] sm:$0xf]
  %v317 = vld [vmem:[%s0 + $0x1c] sm:$0xf]
  %v318 = vld [vmem:[%s0 + $0x20] sm:$0x1]
  %v319 = vld [vmem:[%s0 + $0x24] sm:$0xf]
  %v320 = vld [vmem:[%s0 + $0x28] sm:$0xf]
  %v321 = vld [vmem:[%s0 + $0x2c] sm:$0x1]
  %v322 = vld [vmem:[%s0 + $0x30] sm:$0xf]
  %v323 = vld [vmem:[%s0 + $0x34] sm:$0xf]
  %v324 = vld [vmem:[%s0 + $0x38] sm:$0x1]
  %v325 = vld [vmem:[%s0 + $0x3c] sm:$0xf]
  %v326 = vld [vmem:[%s0 + $0x40] sm:$0xf]
  %v327 = vld [vmem:[%s0 + $0x44] sm:$0x1]
  %v328 = vld [vmem:[%s0 + $0x48] sm:$0xf]
  %v329 = vld [vmem:[%s0 + $0x4c] sm:$0xf]
  %v330 = vld [vmem:[%s0 + $0x50] sm:$0x1]
  %v331 = vld [vmem:[%s0 + $0x54] sm:$0xf]
  %v332 = vld [vmem:[%s0 + $0x58] sm:$0xf]
  %v333 = vld [vmem:[%s0 + $0x5c] sm:$0x1]
  %v334 = vld [vmem:[%s0 + $0x60] sm:$0xf]
  %v335 = vld [vmem:[%s0 + $0x64] sm:$0xf]
  %v336 = vld [vmem:[%s0 + $0x68] sm:$0x1]
  %v337 = vld [vmem:[%s0 + $0x6c] sm:$0xf]
  %v338 = vld [vmem:[%s0 + $0x70] sm:$0xf]
  %v339 = vld [vmem:[%s0 + $0x74] sm:$0x1]
  %v340 = vld [vmem:[%s0 + $0x78] sm:$0xf]
  %v341 = vld [vmem:[%s0 + $0x7c] sm:$0xf]
  %v342 = vld [vmem:[%s0 + $0x80] sm:$0x1]
  %v343 = vld [vmem:[%s0 + $0x84] sm:$0xf]
  %v344 = vld [vmem:[%s0 + $0x88] sm:$0xf]
  %v345 = vld [vmem:[%s0 + $0x8c] sm:$0x1]
  %v346 = vld [vmem:[%s0 + $0x90] sm:$0xf]
  %v347 = vld [vmem:[%s0 + $0x94] sm:$0xf]
  %v348 = vld [vmem:[%s0 + $0x98] sm:$0x1]
  %v349 = vld [vmem:[%s0 + $0x9c] sm:$0xf]
  %v350 = vld [vmem:[%s0 + $0xa0] sm:$0xf]
  %v351 = vld [vmem:[%s0 + $0xa4] sm:$0x1]
  %v352 = vld [vmem:[%s0 + $0xa8] sm:$0xf]
  %v353 = vld [vmem:[%s0 + $0xac] sm:$0xf]
  %v354 = vld [vmem:[%s0 + $0xb0] sm:$0x1]
  %v355 = vld [vmem:[%s0 + $0xb4] sm:$0xf]
  %v356 = vld [vmem:[%s0 + $0xb8] sm:$0xf]
  %v357 = vld [vmem:[%s0 + $0xbc] sm:$0x1]
  %v358 = vld [vmem:[%s0 + $0xd8] sm:$0xf]
  %v359 = vld [vmem:[%s0 + $0xdc] sm:$0xf]
  %v360 = vld [vmem:[%s0 + $0xe0] sm:$0x1]
  %v361 = vld [vmem:[%s0 + $0xe4] sm:$0xf]
  %v362 = vld [vmem:[%s0 + $0xe8] sm:$0xf]
  %v363 = vld [vmem:[%s0 + $0xec] sm:$0x1]
  %v364 = vld [vmem:[%s0 + $0xf0] sm:$0xf]
  %v365 = vld [vmem:[%s0 + $0xf4] sm:$0xf]
  %v366 = vld [vmem:[%s0 + $0xf8] sm:$0x1]
  %v367 = vld [vmem:[%s0 + $0xfc] sm:$0xf]
  %v368 = vld [vmem:[%s0 + $0x100] sm:$0xf]
  %v369 = vld [vmem:[%s0 + $0x104] sm:$0x1]
  %v370 = vld [vmem:[%s0 + $0x108] sm:$0xf]
  %v371 = vld [vmem:[%s0 + $0x10c] sm:$0xf]
  %v372 = vld [vmem:[%s0 + $0x110] sm:$0x1]
  %v373 = vld [vmem:[%s0 + $0x114] sm:$0xf]
  %v374 = vld [vmem:[%s0 + $0x118] sm:$0xf]
  %v375 = vld [vmem:[%s0 + $0x11c] sm:$0x1]
  %v376 = vld [vmem:[%s0 + $0x120] sm:$0xf]
  %v377 = vld [vmem:[%s0 + $0x124] sm:$0xf]
  %v378 = vld [vmem:[%s0 + $0x128] sm:$0x1]
  %v379 = vld [vmem:[%s0 + $0x12c] sm:$0xf]
  %v380 = vld [vmem:[%s0 + $0x130] sm:$0xf]
  %v381 = vld [vmem:[%s0 + $0x134] sm:$0x1]
  %v382 = vld [vmem:[%s0 + $0x138] sm:$0xf]
  %v383 = vld [vmem:[%s0 + $0x13c] sm:$0xf]
  %v384 = vld [vmem:[%s0 + $0x140] sm:$0x1]
  %v385 = vld [vmem:[%s0 + $0x144] sm:$0xf]
  %v386 = vld [vmem:[%s0 + $0x148] sm:$0xf]
  %v387 = vld [vmem:[%s0 + $0x14c] sm:$0x1]
  %v388 = vld [vmem:[%s0 + $0x150] sm:$0xf]
  %v389 = vld [vmem:[%s0 + $0x154] sm:$0xf]
  %v390 = vld [vmem:[%s0 + $0x158] sm:$0x1]
  %v391 = vld [vmem:[%s0 + $0x15c] sm:$0xf]
  %v392 = vld [vmem:[%s0 + $0x160] sm:$0xf]
  %v393 = vld [vmem:[%s0 + $0x164] sm:$0x1]
  %v394 = vld [vmem:[%s0 + $0x168] sm:$0xf]
  %v395 = vld [vmem:[%s0 + $0x16c] sm:$0xf]
  %v396 = vld [vmem:[%s0 + $0x170] sm:$0x1]
  %v397 = vld [vmem:[%s0 + $0x174] sm:$0xf]
  %v398 = vld [vmem:[%s0 + $0x178] sm:$0xf]
  %v399 = vld [vmem:[%s0 + $0x17c] sm:$0x1]
  %v400 = vld [vmem:[%s0 + $0x180] sm:$0xf]
  %v401 = vld [vmem:[%s0 + $0x184] sm:$0xf]
  %v402 = vld [vmem:[%s0 + $0x188] sm:$0x1]
  %v403 = vld [vmem:[%s0 + $0x18c] sm:$0xf]
  %v404 = vld [vmem:[%s0 + $0x190] sm:$0xf]
  %v405 = vld [vmem:[%s0 + $0x194] sm:$0x1]
  %v502 = vunpack.c.l.b16 %v310
  %v503 = vunpack.c.l.b16 %v311
  %v504 = vunpack.c.l.b16 %v312
  %v505 = vunpack.c.l.b16 %v313
  %v506 = vunpack.c.l.b16 %v314
  %v507 = vunpack.c.l.b16 %v315
  %v508 = vunpack.c.l.b16 %v316
  %v509 = vunpack.c.l.b16 %v317
  %v510 = vunpack.c.l.b16 %v318
  %v511 = vunpack.c.l.b16 %v319
  %v512 = vunpack.c.l.b16 %v320
  %v513 = vunpack.c.l.b16 %v321
  %v514 = vunpack.c.l.b16 %v322
  %v515 = vunpack.c.l.b16 %v323
  %v516 = vunpack.c.l.b16 %v324
  %v517 = vunpack.c.l.b16 %v325
  %v518 = vunpack.c.l.b16 %v326
  %v519 = vunpack.c.l.b16 %v327
  %v520 = vunpack.c.l.b16 %v328
  %v521 = vunpack.c.l.b16 %v329
  %v522 = vunpack.c.l.b16 %v330
  %v523 = vunpack.c.l.b16 %v331
  %v524 = vunpack.c.l.b16 %v332
  %v525 = vunpack.c.l.b16 %v333
  %v526 = vunpack.c.l.b16 %v334
  %v527 = vunpack.c.l.b16 %v335
  %v528 = vunpack.c.l.b16 %v336
  %v529 = vunpack.c.l.b16 %v337
  %v530 = vunpack.c.l.b16 %v338
  %v531 = vunpack.c.l.b16 %v339
  %v532 = vunpack.c.l.b16 %v340
  %v533 = vunpack.c.l.b16 %v341
  %v534 = vunpack.c.l.b16 %v342
  %v535 = vunpack.c.l.b16 %v343
  %v536 = vunpack.c.l.b16 %v344
  %v537 = vunpack.c.l.b16 %v345
  %v538 = vunpack.c.l.b16 %v346
  %v539 = vunpack.c.l.b16 %v347
  %v540 = vunpack.c.l.b16 %v348
  %v541 = vunpack.c.l.b16 %v349
  %v542 = vunpack.c.l.b16 %v350
  %v543 = vunpack.c.l.b16 %v351
  %v544 = vunpack.c.l.b16 %v352
  %v545 = vunpack.c.l.b16 %v353
  %v546 = vunpack.c.l.b16 %v354
  %v547 = vunpack.c.l.b16 %v355
  %v548 = vunpack.c.l.b16 %v356
  %v549 = vunpack.c.l.b16 %v357
  %v550 = vunpack.c.l.b16 %v358
  %v551 = vunpack.c.l.b16 %v359
  %v552 = vunpack.c.l.b16 %v360
  %v553 = vunpack.c.l.b16 %v361
  %v554 = vunpack.c.l.b16 %v362
  %v555 = vunpack.c.l.b16 %v363
  %v556 = vunpack.c.l.b16 %v364
  %v557 = vunpack.c.l.b16 %v365
  %v558 = vunpack.c.l.b16 %v366
  %v559 = vunpack.c.l.b16 %v367
  %v560 = vunpack.c.l.b16 %v368
  %v561 = vunpack.c.l.b16 %v369
  %v562 = vunpack.c.l.b16 %v370
  %v563 = vunpack.c.l.b16 %v371
  %v564 = vunpack.c.l.b16 %v372
  %v565 = vunpack.c.l.b16 %v373
  %v566 = vunpack.c.l.b16 %v374
  %v567 = vunpack.c.l.b16 %v375
  %v568 = vunpack.c.l.b16 %v376
  %v569 = vunpack.c.l.b16 %v377
  %v570 = vunpack.c.l.b16 %v378
  %v571 = vunpack.c.l.b16 %v379
  %v572 = vunpack.c.l.b16 %v380
  %v573 = vunpack.c.l.b16 %v381
  %v574 = vunpack.c.l.b16 %v382
  %v575 = vunpack.c.l.b16 %v383
  %v576 = vunpack.c.l.b16 %v384
  %v577 = vunpack.c.l.b16 %v385
  %v578 = vunpack.c.l.b16 %v386
  %v579 = vunpack.c.l.b16 %v387
  %v580 = vunpack.c.l.b16 %v388
  %v581 = vunpack.c.l.b16 %v389
  %v582 = vunpack.c.l.b16 %v390
  %v583 = vunpack.c.l.b16 %v391
  %v584 = vunpack.c.l.b16 %v392
  %v585 = vunpack.c.l.b16 %v393
  %v586 = vunpack.c.l.b16 %v394
  %v587 = vunpack.c.l.b16 %v395
  %v588 = vunpack.c.l.b16 %v396
  %v589 = vunpack.c.l.b16 %v397
  %v590 = vunpack.c.l.b16 %v398
  %v591 = vunpack.c.l.b16 %v399
  %v592 = vunpack.c.l.b16 %v400
  %v593 = vunpack.c.l.b16 %v401
  %v594 = vunpack.c.l.b16 %v402
  %v595 = vunpack.c.l.b16 %v403
  %v596 = vunpack.c.l.b16 %v404
  %v597 = vunpack.c.l.b16 %v405
  %v598 = vpack.c.b16 %v503, %v502
  %v599 = vpack.c.b16 %v504, %v504
  %v600 = vpack.c.b16 %v506, %v505
  %v601 = vpack.c.b16 %v507, %v507
  %v602 = vpack.c.b16 %v509, %v508
  %v603 = vpack.c.b16 %v510, %v510
  %v604 = vpack.c.b16 %v512, %v511
  %v605 = vpack.c.b16 %v513, %v513
  %v606 = vpack.c.b16 %v515, %v514
  %v607 = vpack.c.b16 %v516, %v516
  %v608 = vpack.c.b16 %v518, %v517
  %v609 = vpack.c.b16 %v519, %v519
  %v610 = vpack.c.b16 %v521, %v520
  %v611 = vpack.c.b16 %v522, %v522
  %v612 = vpack.c.b16 %v524, %v523
  %v613 = vpack.c.b16 %v525, %v525
  %v614 = vpack.c.b16 %v527, %v526
  %v615 = vpack.c.b16 %v528, %v528
  %v616 = vpack.c.b16 %v530, %v529
  %v617 = vpack.c.b16 %v531, %v531
  %v618 = vpack.c.b16 %v533, %v532
  %v619 = vpack.c.b16 %v534, %v534
  %v620 = vpack.c.b16 %v536, %v535
  %v621 = vpack.c.b16 %v537, %v537
  %v622 = vpack.c.b16 %v539, %v538
  %v623 = vpack.c.b16 %v540, %v540
  %v624 = vpack.c.b16 %v542, %v541
  %v625 = vpack.c.b16 %v543, %v543
  %v626 = vpack.c.b16 %v545, %v544
  %v627 = vpack.c.b16 %v546, %v546
  %v628 = vpack.c.b16 %v548, %v547
  %v629 = vpack.c.b16 %v549, %v549
  %v630 = vpack.c.b16 %v551, %v550
  %v631 = vpack.c.b16 %v552, %v552
  %v632 = vpack.c.b16 %v554, %v553
  %v633 = vpack.c.b16 %v555, %v555
  %v634 = vpack.c.b16 %v557, %v556
  %v635 = vpack.c.b16 %v558, %v558
  %v636 = vpack.c.b16 %v560, %v559
  %v637 = vpack.c.b16 %v561, %v561
  %v638 = vpack.c.b16 %v563, %v562
  %v639 = vpack.c.b16 %v564, %v564
  %v640 = vpack.c.b16 %v566, %v565
  %v641 = vpack.c.b16 %v567, %v567
  %v642 = vpack.c.b16 %v569, %v568
  %v643 = vpack.c.b16 %v570, %v570
  %v644 = vpack.c.b16 %v572, %v571
  %v645 = vpack.c.b16 %v573, %v573
  %v646 = vpack.c.b16 %v575, %v574
  %v647 = vpack.c.b16 %v576, %v576
  %v648 = vpack.c.b16 %v578, %v577
  %v649 = vpack.c.b16 %v579, %v579
  %v650 = vpack.c.b16 %v581, %v580
  %v651 = vpack.c.b16 %v582, %v582
  %v652 = vpack.c.b16 %v584, %v583
  %v653 = vpack.c.b16 %v585, %v585
  %v654 = vpack.c.b16 %v587, %v586
  %v655 = vpack.c.b16 %v588, %v588
  %v656 = vpack.c.b16 %v590, %v589
  %v657 = vpack.c.b16 %v591, %v591
  %v658 = vpack.c.b16 %v593, %v592
  %v659 = vpack.c.b16 %v594, %v594
  %v660 = vpack.c.b16 %v596, %v595
  %v661 = vpack.c.b16 %v597, %v597
  %vm662 = vsmask.f32 7424
  %v664 = vshrl.u32 %v598, 16
  %v666 = vshll.u32 %v598, 16
  %v668 = vrot.slane %v666, 1
  %v669 = vor.u32 %v664, %v668
  %v671 = vshll.u32 %v599, 16
  %v673 = vrot.slane %v671, 1
  %v674 = vsel %vm662, %v669, %v673
  %v676 = vshrl.u32 %v600, 16
  %v678 = vshll.u32 %v600, 16
  %v680 = vrot.slane %v678, 1
  %v681 = vor.u32 %v676, %v680
  %v683 = vshll.u32 %v601, 16
  %v685 = vrot.slane %v683, 1
  %v686 = vsel %vm662, %v681, %v685
  %v688 = vshrl.u32 %v602, 16
  %v690 = vshll.u32 %v602, 16
  %v692 = vrot.slane %v690, 1
  %v693 = vor.u32 %v688, %v692
  %v695 = vshll.u32 %v603, 16
  %v697 = vrot.slane %v695, 1
  %v698 = vsel %vm662, %v693, %v697
  %v700 = vshrl.u32 %v604, 16
  %v702 = vshll.u32 %v604, 16
  %v704 = vrot.slane %v702, 1
  %v705 = vor.u32 %v700, %v704
  %v707 = vshll.u32 %v605, 16
  %v709 = vrot.slane %v707, 1
  %v710 = vsel %vm662, %v705, %v709
  %v712 = vshrl.u32 %v606, 16
  %v714 = vshll.u32 %v606, 16
  %v716 = vrot.slane %v714, 1
  %v717 = vor.u32 %v712, %v716
  %v719 = vshll.u32 %v607, 16
  %v721 = vrot.slane %v719, 1
  %v722 = vsel %vm662, %v717, %v721
  %v724 = vshrl.u32 %v608, 16
  %v726 = vshll.u32 %v608, 16
  %v728 = vrot.slane %v726, 1
  %v729 = vor.u32 %v724, %v728
  %v731 = vshll.u32 %v609, 16
  %v733 = vrot.slane %v731, 1
  %v734 = vsel %vm662, %v729, %v733
  %v736 = vshrl.u32 %v610, 16
  %v738 = vshll.u32 %v610, 16
  %v740 = vrot.slane %v738, 1
  %v741 = vor.u32 %v736, %v740
  %v743 = vshll.u32 %v611, 16
  %v745 = vrot.slane %v743, 1
  %v746 = vsel %vm662, %v741, %v745
  %v748 = vshrl.u32 %v612, 16
  %v750 = vshll.u32 %v612, 16
  %v752 = vrot.slane %v750, 1
  %v753 = vor.u32 %v748, %v752
  %v755 = vshll.u32 %v613, 16
  %v757 = vrot.slane %v755, 1
  %v758 = vsel %vm662, %v753, %v757
  %v760 = vshrl.u32 %v614, 16
  %v762 = vshll.u32 %v614, 16
  %v764 = vrot.slane %v762, 1
  %v765 = vor.u32 %v760, %v764
  %v767 = vshll.u32 %v615, 16
  %v769 = vrot.slane %v767, 1
  %v770 = vsel %vm662, %v765, %v769
  %v772 = vshrl.u32 %v616, 16
  %v774 = vshll.u32 %v616, 16
  %v776 = vrot.slane %v774, 1
  %v777 = vor.u32 %v772, %v776
  %v779 = vshll.u32 %v617, 16
  %v781 = vrot.slane %v779, 1
  %v782 = vsel %vm662, %v777, %v781
  %v784 = vshrl.u32 %v618, 16
  %v786 = vshll.u32 %v618, 16
  %v788 = vrot.slane %v786, 1
  %v789 = vor.u32 %v784, %v788
  %v791 = vshll.u32 %v619, 16
  %v793 = vrot.slane %v791, 1
  %v794 = vsel %vm662, %v789, %v793
  %v796 = vshrl.u32 %v620, 16
  %v798 = vshll.u32 %v620, 16
  %v800 = vrot.slane %v798, 1
  %v801 = vor.u32 %v796, %v800
  %v803 = vshll.u32 %v621, 16
  %v805 = vrot.slane %v803, 1
  %v806 = vsel %vm662, %v801, %v805
  %v808 = vshrl.u32 %v622, 16
  %v810 = vshll.u32 %v622, 16
  %v812 = vrot.slane %v810, 1
  %v813 = vor.u32 %v808, %v812
  %v815 = vshll.u32 %v623, 16
  %v817 = vrot.slane %v815, 1
  %v818 = vsel %vm662, %v813, %v817
  %v820 = vshrl.u32 %v624, 16
  %v822 = vshll.u32 %v624, 16
  %v824 = vrot.slane %v822, 1
  %v825 = vor.u32 %v820, %v824
  %v827 = vshll.u32 %v625, 16
  %v829 = vrot.slane %v827, 1
  %v830 = vsel %vm662, %v825, %v829
  %v832 = vshrl.u32 %v626, 16
  %v834 = vshll.u32 %v626, 16
  %v836 = vrot.slane %v834, 1
  %v837 = vor.u32 %v832, %v836
  %v839 = vshll.u32 %v627, 16
  %v841 = vrot.slane %v839, 1
  %v842 = vsel %vm662, %v837, %v841
  %v844 = vshrl.u32 %v628, 16
  %v846 = vshll.u32 %v628, 16
  %v848 = vrot.slane %v846, 1
  %v849 = vor.u32 %v844, %v848
  %v851 = vshll.u32 %v629, 16
  %v853 = vrot.slane %v851, 1
  %v854 = vsel %vm662, %v849, %v853
  %v856 = vshrl.u32 %v630, 16
  %v858 = vshll.u32 %v630, 16
  %v860 = vrot.slane %v858, 1
  %v861 = vor.u32 %v856, %v860
  %v863 = vshll.u32 %v631, 16
  %v865 = vrot.slane %v863, 1
  %v866 = vsel %vm662, %v861, %v865
  %v868 = vshrl.u32 %v632, 16
  %v870 = vshll.u32 %v632, 16
  %v872 = vrot.slane %v870, 1
  %v873 = vor.u32 %v868, %v872
  %v875 = vshll.u32 %v633, 16
  %v877 = vrot.slane %v875, 1
  %v878 = vsel %vm662, %v873, %v877
  %v880 = vshrl.u32 %v634, 16
  %v882 = vshll.u32 %v634, 16
  %v884 = vrot.slane %v882, 1
  %v885 = vor.u32 %v880, %v884
  %v887 = vshll.u32 %v635, 16
  %v889 = vrot.slane %v887, 1
  %v890 = vsel %vm662, %v885, %v889
  %v892 = vshrl.u32 %v636, 16
  %v894 = vshll.u32 %v636, 16
  %v896 = vrot.slane %v894, 1
  %v897 = vor.u32 %v892, %v896
  %v899 = vshll.u32 %v637, 16
  %v901 = vrot.slane %v899, 1
  %v902 = vsel %vm662, %v897, %v901
  %v904 = vshrl.u32 %v638, 16
  %v906 = vshll.u32 %v638, 16
  %v908 = vrot.slane %v906, 1
  %v909 = vor.u32 %v904, %v908
  %v911 = vshll.u32 %v639, 16
  %v913 = vrot.slane %v911, 1
  %v914 = vsel %vm662, %v909, %v913
  %v916 = vshrl.u32 %v640, 16
  %v918 = vshll.u32 %v640, 16
  %v920 = vrot.slane %v918, 1
  %v921 = vor.u32 %v916, %v920
  %v923 = vshll.u32 %v641, 16
  %v925 = vrot.slane %v923, 1
  %v926 = vsel %vm662, %v921, %v925
  %v928 = vshrl.u32 %v642, 16
  %v930 = vshll.u32 %v642, 16
  %v932 = vrot.slane %v930, 1
  %v933 = vor.u32 %v928, %v932
  %v935 = vshll.u32 %v643, 16
  %v937 = vrot.slane %v935, 1
  %v938 = vsel %vm662, %v933, %v937
  %v940 = vshrl.u32 %v644, 16
  %v942 = vshll.u32 %v644, 16
  %v944 = vrot.slane %v942, 1
  %v945 = vor.u32 %v940, %v944
  %v947 = vshll.u32 %v645, 16
  %v949 = vrot.slane %v947, 1
  %v950 = vsel %vm662, %v945, %v949
  %v952 = vshrl.u32 %v646, 16
  %v954 = vshll.u32 %v646, 16
  %v956 = vrot.slane %v954, 1
  %v957 = vor.u32 %v952, %v956
  %v959 = vshll.u32 %v647, 16
  %v961 = vrot.slane %v959, 1
  %v962 = vsel %vm662, %v957, %v961
  %v964 = vshrl.u32 %v648, 16
  %v966 = vshll.u32 %v648, 16
  %v968 = vrot.slane %v966, 1
  %v969 = vor.u32 %v964, %v968
  %v971 = vshll.u32 %v649, 16
  %v973 = vrot.slane %v971, 1
  %v974 = vsel %vm662, %v969, %v973
  %v976 = vshrl.u32 %v650, 16
  %v978 = vshll.u32 %v650, 16
  %v980 = vrot.slane %v978, 1
  %v981 = vor.u32 %v976, %v980
  %v983 = vshll.u32 %v651, 16
  %v985 = vrot.slane %v983, 1
  %v986 = vsel %vm662, %v981, %v985
  %v988 = vshrl.u32 %v652, 16
  %v990 = vshll.u32 %v652, 16
  %v992 = vrot.slane %v990, 1
  %v993 = vor.u32 %v988, %v992
  %v995 = vshll.u32 %v653, 16
  %v997 = vrot.slane %v995, 1
  %v998 = vsel %vm662, %v993, %v997
  %v1000 = vshrl.u32 %v654, 16
  %v1002 = vshll.u32 %v654, 16
  %v1004 = vrot.slane %v1002, 1
  %v1005 = vor.u32 %v1000, %v1004
  %v1007 = vshll.u32 %v655, 16
  %v1009 = vrot.slane %v1007, 1
  %v1010 = vsel %vm662, %v1005, %v1009
  %v1012 = vshrl.u32 %v656, 16
  %v1014 = vshll.u32 %v656, 16
  %v1016 = vrot.slane %v1014, 1
  %v1017 = vor.u32 %v1012, %v1016
  %v1019 = vshll.u32 %v657, 16
  %v1021 = vrot.slane %v1019, 1
  %v1022 = vsel %vm662, %v1017, %v1021
  %v1024 = vshrl.u32 %v658, 16
  %v1026 = vshll.u32 %v658, 16
  %v1028 = vrot.slane %v1026, 1
  %v1029 = vor.u32 %v1024, %v1028
  %v1031 = vshll.u32 %v659, 16
  %v1033 = vrot.slane %v1031, 1
  %v1034 = vsel %vm662, %v1029, %v1033
  %v1036 = vshrl.u32 %v660, 16
  %v1038 = vshll.u32 %v660, 16
  %v1040 = vrot.slane %v1038, 1
  %v1041 = vor.u32 %v1036, %v1040
  %v1043 = vshll.u32 %v661, 16
  %v1045 = vrot.slane %v1043, 1
  %v1046 = vsel %vm662, %v1041, %v1045
  %1047 = vrot.lane.b32.xlu0 %v674, 12
  %v1048 = vpop.permute.xlu0 %1047
  %1049 = vrot.lane.b32.xlu0 %v686, 12
  %v1050 = vpop.permute.xlu0 %1049
  %1051 = vrot.lane.b32.xlu0 %v698, 12
  %v1052 = vpop.permute.xlu0 %1051
  %1053 = vrot.lane.b32.xlu0 %v710, 12
  %v1054 = vpop.permute.xlu0 %1053
  %1055 = vrot.lane.b32.xlu0 %v722, 12
  %v1056 = vpop.permute.xlu0 %1055
  %1057 = vrot.lane.b32.xlu0 %v734, 12
  %v1058 = vpop.permute.xlu0 %1057
  %1059 = vrot.lane.b32.xlu0 %v746, 12
  %v1060 = vpop.permute.xlu0 %1059
  %1061 = vrot.lane.b32.xlu0 %v758, 12
  %v1062 = vpop.permute.xlu0 %1061
  %1063 = vrot.lane.b32.xlu0 %v770, 12
  %v1064 = vpop.permute.xlu0 %1063
  %1065 = vrot.lane.b32.xlu0 %v782, 12
  %v1066 = vpop.permute.xlu0 %1065
  %1067 = vrot.lane.b32.xlu0 %v794, 12
  %v1068 = vpop.permute.xlu0 %1067
  %1069 = vrot.lane.b32.xlu0 %v806, 12
  %v1070 = vpop.permute.xlu0 %1069
  %1071 = vrot.lane.b32.xlu0 %v818, 12
  %v1072 = vpop.permute.xlu0 %1071
  %1073 = vrot.lane.b32.xlu0 %v830, 12
  %v1074 = vpop.permute.xlu0 %1073
  %1075 = vrot.lane.b32.xlu0 %v842, 12
  %v1076 = vpop.permute.xlu0 %1075
  %1077 = vrot.lane.b32.xlu0 %v854, 12
  %v1078 = vpop.permute.xlu0 %1077
  %1079 = vrot.lane.b32.xlu0 %v866, 12
  %v1080 = vpop.permute.xlu0 %1079
  %1081 = vrot.lane.b32.xlu0 %v878, 12
  %v1082 = vpop.permute.xlu0 %1081
  %1083 = vrot.lane.b32.xlu0 %v890, 12
  %v1084 = vpop.permute.xlu0 %1083
  %1085 = vrot.lane.b32.xlu0 %v902, 12
  %v1086 = vpop.permute.xlu0 %1085
  %1087 = vrot.lane.b32.xlu0 %v914, 12
  %v1088 = vpop.permute.xlu0 %1087
  %1089 = vrot.lane.b32.xlu0 %v926, 12
  %v1090 = vpop.permute.xlu0 %1089
  %1091 = vrot.lane.b32.xlu0 %v938, 12
  %v1092 = vpop.permute.xlu0 %1091
  %1093 = vrot.lane.b32.xlu0 %v950, 12
  %v1094 = vpop.permute.xlu0 %1093
  %1095 = vrot.lane.b32.xlu0 %v962, 12
  %v1096 = vpop.permute.xlu0 %1095
  %1097 = vrot.lane.b32.xlu0 %v974, 12
  %v1098 = vpop.permute.xlu0 %1097
  %1099 = vrot.lane.b32.xlu0 %v986, 12
  %v1100 = vpop.permute.xlu0 %1099
  %1101 = vrot.lane.b32.xlu0 %v998, 12
  %v1102 = vpop.permute.xlu0 %1101
  %1103 = vrot.lane.b32.xlu0 %v1010, 12
  %v1104 = vpop.permute.xlu0 %1103
  %1105 = vrot.lane.b32.xlu0 %v1022, 12
  %v1106 = vpop.permute.xlu0 %1105
  %1107 = vrot.lane.b32.xlu0 %v1034, 12
  %v1108 = vpop.permute.xlu0 %1107
  %1109 = vrot.lane.b32.xlu0 %v1046, 12
  %v1110 = vpop.permute.xlu0 %1109
  %vm1143 = vcmask 195680
  %1144 = vst.msk [vmem:[#allocation2] sm:$0xff] %vm1143, %v1048
  %1145 = vst.msk [vmem:[#allocation2 + $0x8] sm:$0xff] %vm1143, %v1050
  %1146 = vst.msk [vmem:[#allocation2 + $0x10] sm:$0xff] %vm1143, %v1052
  %1147 = vst.msk [vmem:[#allocation2 + $0x18] sm:$0xff] %vm1143, %v1054
  %1148 = vst.msk [vmem:[#allocation2 + $0x20] sm:$0xff] %vm1143, %v1056
  %1149 = vst.msk [vmem:[#allocation2 + $0x28] sm:$0xff] %vm1143, %v1058
  %1150 = vst.msk [vmem:[#allocation2 + $0x30] sm:$0xff] %vm1143, %v1060
  %1151 = vst.msk [vmem:[#allocation2 + $0x38] sm:$0xff] %vm1143, %v1062
  %1152 = vst.msk [vmem:[#allocation2 + $0x40] sm:$0xff] %vm1143, %v1064
  %1153 = vst.msk [vmem:[#allocation2 + $0x48] sm:$0xff] %vm1143, %v1066
  %1154 = vst.msk [vmem:[#allocation2 + $0x50] sm:$0xff] %vm1143, %v1068
  %1155 = vst.msk [vmem:[#allocation2 + $0x58] sm:$0xff] %vm1143, %v1070
  %1156 = vst.msk [vmem:[#allocation2 + $0x60] sm:$0xff] %vm1143, %v1072
  %1157 = vst.msk [vmem:[#allocation2 + $0x68] sm:$0xff] %vm1143, %v1074
  %1158 = vst.msk [vmem:[#allocation2 + $0x70] sm:$0xff] %vm1143, %v1076
  %1159 = vst.msk [vmem:[#allocation2 + $0x78] sm:$0xff] %vm1143, %v1078
  %1160 = vst.msk [vmem:[#allocation2 + $0x80] sm:$0xff] %vm1143, %v1080
  %1161 = vst.msk [vmem:[#allocation2 + $0x88] sm:$0xff] %vm1143, %v1082
  %1162 = vst.msk [vmem:[#allocation2 + $0x90] sm:$0xff] %vm1143, %v1084
  %1163 = vst.msk [vmem:[#allocation2 + $0x98] sm:$0xff] %vm1143, %v1086
  %1164 = vst.msk [vmem:[#allocation2 + $0xa0] sm:$0xff] %vm1143, %v1088
  %1165 = vst.msk [vmem:[#allocation2 + $0xa8] sm:$0xff] %vm1143, %v1090
  %1166 = vst.msk [vmem:[#allocation2 + $0xb0] sm:$0xff] %vm1143, %v1092
  %1167 = vst.msk [vmem:[#allocation2 + $0xb8] sm:$0xff] %vm1143, %v1094
  %1168 = vst.msk [vmem:[#allocation2 + $0xc0] sm:$0xff] %vm1143, %v1096
  %1169 = vst.msk [vmem:[#allocation2 + $0xc8] sm:$0xff] %vm1143, %v1098
  %1170 = vst.msk [vmem:[#allocation2 + $0xd0] sm:$0xff] %vm1143, %v1100
  %1171 = vst.msk [vmem:[#allocation2 + $0xd8] sm:$0xff] %vm1143, %v1102
  %1172 = vst.msk [vmem:[#allocation2 + $0xe0] sm:$0xff] %vm1143, %v1104
  %1173 = vst.msk [vmem:[#allocation2 + $0xe8] sm:$0xff] %vm1143, %v1106
  %1174 = vst.msk [vmem:[#allocation2 + $0xf0] sm:$0xff] %vm1143, %v1108
  %1175 = vst.msk [vmem:[#allocation2 + $0xf8] sm:$0xff] %vm1143, %v1110
  %v1176 = vld [vmem:[%s0] sm:$0xe]
  %v1177 = vld [vmem:[%s0 + $0x4] sm:$0xf]
  %v1178 = vld [vmem:[%s0 + $0x8] sm:$0x1]
  %v1179 = vld [vmem:[%s0 + $0xc] sm:$0xe]
  %v1180 = vld [vmem:[%s0 + $0x10] sm:$0xf]
  %v1181 = vld [vmem:[%s0 + $0x14] sm:$0x1]
  %v1182 = vld [vmem:[%s0 + $0x18] sm:$0xe]
  %v1183 = vld [vmem:[%s0 + $0x1c] sm:$0xf]
  %v1184 = vld [vmem:[%s0 + $0x20] sm:$0x1]
  %v1185 = vld [vmem:[%s0 + $0x24] sm:$0xe]
  %v1186 = vld [vmem:[%s0 + $0x28] sm:$0xf]
  %v1187 = vld [vmem:[%s0 + $0x2c] sm:$0x1]
  %v1188 = vld [vmem:[%s0 + $0x30] sm:$0xe]
  %v1189 = vld [vmem:[%s0 + $0x34] sm:$0xf]
  %v1190 = vld [vmem:[%s0 + $0x38] sm:$0x1]
  %v1191 = vld [vmem:[%s0 + $0x3c] sm:$0xe]
  %v1192 = vld [vmem:[%s0 + $0x40] sm:$0xf]
  %v1193 = vld [vmem:[%s0 + $0x44] sm:$0x1]
  %v1194 = vld [vmem:[%s0 + $0x48] sm:$0xe]
  %v1195 = vld [vmem:[%s0 + $0x4c] sm:$0xf]
  %v1196 = vld [vmem:[%s0 + $0x50] sm:$0x1]
  %v1197 = vld [vmem:[%s0 + $0x54] sm:$0xe]
  %v1198 = vld [vmem:[%s0 + $0x58] sm:$0xf]
  %v1199 = vld [vmem:[%s0 + $0x5c] sm:$0x1]
  %v1200 = vld [vmem:[%s0 + $0x60] sm:$0xe]
  %v1201 = vld [vmem:[%s0 + $0x64] sm:$0xf]
  %v1202 = vld [vmem:[%s0 + $0x68] sm:$0x1]
  %v1203 = vld [vmem:[%s0 + $0x6c] sm:$0xe]
  %v1204 = vld [vmem:[%s0 + $0x70] sm:$0xf]
  %v1205 = vld [vmem:[%s0 + $0x74] sm:$0x1]
  %v1206 = vld [vmem:[%s0 + $0x78] sm:$0xe]
  %v1207 = vld [vmem:[%s0 + $0x7c] sm:$0xf]
  %v1208 = vld [vmem:[%s0 + $0x80] sm:$0x1]
  %v1209 = vld [vmem:[%s0 + $0x84] sm:$0xe]
  %v1210 = vld [vmem:[%s0 + $0x88] sm:$0xf]
  %v1211 = vld [vmem:[%s0 + $0x8c] sm:$0x1]
  %v1212 = vld [vmem:[%s0 + $0x90] sm:$0xe]
  %v1213 = vld [vmem:[%s0 + $0x94] sm:$0xf]
  %v1214 = vld [vmem:[%s0 + $0x98] sm:$0x1]
  %v1215 = vld [vmem:[%s0 + $0x9c] sm:$0xe]
  %v1216 = vld [vmem:[%s0 + $0xa0] sm:$0xf]
  %v1217 = vld [vmem:[%s0 + $0xa4] sm:$0x1]
  %v1218 = vld [vmem:[%s0 + $0xa8] sm:$0xe]
  %v1219 = vld [vmem:[%s0 + $0xac] sm:$0xf]
  %v1220 = vld [vmem:[%s0 + $0xb0] sm:$0x1]
  %v1221 = vld [vmem:[%s0 + $0xb4] sm:$0xe]
  %v1222 = vld [vmem:[%s0 + $0xb8] sm:$0xf]
  %v1223 = vld [vmem:[%s0 + $0xbc] sm:$0x1]
  %v1224 = vld [vmem:[%s0 + $0xd8] sm:$0xe]
  %v1225 = vld [vmem:[%s0 + $0xdc] sm:$0xf]
  %v1226 = vld [vmem:[%s0 + $0xe0] sm:$0x1]
  %v1227 = vld [vmem:[%s0 + $0xe4] sm:$0xe]
  %v1228 = vld [vmem:[%s0 + $0xe8] sm:$0xf]
  %v1229 = vld [vmem:[%s0 + $0xec] sm:$0x1]
  %v1230 = vld [vmem:[%s0 + $0xf0] sm:$0xe]
  %v1231 = vld [vmem:[%s0 + $0xf4] sm:$0xf]
  %v1232 = vld [vmem:[%s0 + $0xf8] sm:$0x1]
  %v1233 = vld [vmem:[%s0 + $0xfc] sm:$0xe]
  %v1234 = vld [vmem:[%s0 + $0x100] sm:$0xf]
  %v1235 = vld [vmem:[%s0 + $0x104] sm:$0x1]
  %v1236 = vld [vmem:[%s0 + $0x108] sm:$0xe]
  %v1237 = vld [vmem:[%s0 + $0x10c] sm:$0xf]
  %v1238 = vld [vmem:[%s0 + $0x110] sm:$0x1]
  %v1239 = vld [vmem:[%s0 + $0x114] sm:$0xe]
  %v1240 = vld [vmem:[%s0 + $0x118] sm:$0xf]
  %v1241 = vld [vmem:[%s0 + $0x11c] sm:$0x1]
  %v1242 = vld [vmem:[%s0 + $0x120] sm:$0xe]
  %v1243 = vld [vmem:[%s0 + $0x124] sm:$0xf]
  %v1244 = vld [vmem:[%s0 + $0x128] sm:$0x1]
  %v1245 = vld [vmem:[%s0 + $0x12c] sm:$0xe]
  %v1246 = vld [vmem:[%s0 + $0x130] sm:$0xf]
  %v1247 = vld [vmem:[%s0 + $0x134] sm:$0x1]
  %v1248 = vld [vmem:[%s0 + $0x138] sm:$0xe]
  %v1249 = vld [vmem:[%s0 + $0x13c] sm:$0xf]
  %v1250 = vld [vmem:[%s0 + $0x140] sm:$0x1]
  %v1251 = vld [vmem:[%s0 + $0x144] sm:$0xe]
  %v1252 = vld [vmem:[%s0 + $0x148] sm:$0xf]
  %v1253 = vld [vmem:[%s0 + $0x14c] sm:$0x1]
  %v1254 = vld [vmem:[%s0 + $0x150] sm:$0xe]
  %v1255 = vld [vmem:[%s0 + $0x154] sm:$0xf]
  %v1256 = vld [vmem:[%s0 + $0x158] sm:$0x1]
  %v1257 = vld [vmem:[%s0 + $0x15c] sm:$0xe]
  %v1258 = vld [vmem:[%s0 + $0x160] sm:$0xf]
  %v1259 = vld [vmem:[%s0 + $0x164] sm:$0x1]
  %v1260 = vld [vmem:[%s0 + $0x168] sm:$0xe]
  %v1261 = vld [vmem:[%s0 + $0x16c] sm:$0xf]
  %v1262 = vld [vmem:[%s0 + $0x170] sm:$0x1]
  %v1263 = vld [vmem:[%s0 + $0x174] sm:$0xe]
  %v1264 = vld [vmem:[%s0 + $0x178] sm:$0xf]
  %v1265 = vld [vmem:[%s0 + $0x17c] sm:$0x1]
  %v1266 = vld [vmem:[%s0 + $0x180] sm:$0xe]
  %v1267 = vld [vmem:[%s0 + $0x184] sm:$0xf]
  %v1268 = vld [vmem:[%s0 + $0x188] sm:$0x1]
  %v1269 = vld [vmem:[%s0 + $0x18c] sm:$0xe]
  %v1270 = vld [vmem:[%s0 + $0x190] sm:$0xf]
  %v1271 = vld [vmem:[%s0 + $0x194] sm:$0x1]
  %v1368 = vunpack.c.l.b16 %v1176
  %v1369 = vunpack.c.l.b16 %v1177
  %v1370 = vunpack.c.l.b16 %v1178
  %v1371 = vunpack.c.l.b16 %v1179
  %v1372 = vunpack.c.l.b16 %v1180
  %v1373 = vunpack.c.l.b16 %v1181
  %v1374 = vunpack.c.l.b16 %v1182
  %v1375 = vunpack.c.l.b16 %v1183
  %v1376 = vunpack.c.l.b16 %v1184
  %v1377 = vunpack.c.l.b16 %v1185
  %v1378 = vunpack.c.l.b16 %v1186
  %v1379 = vunpack.c.l.b16 %v1187
  %v1380 = vunpack.c.l.b16 %v1188
  %v1381 = vunpack.c.l.b16 %v1189
  %v1382 = vunpack.c.l.b16 %v1190
  %v1383 = vunpack.c.l.b16 %v1191
  %v1384 = vunpack.c.l.b16 %v1192
  %v1385 = vunpack.c.l.b16 %v1193
  %v1386 = vunpack.c.l.b16 %v1194
  %v1387 = vunpack.c.l.b16 %v1195
  %v1388 = vunpack.c.l.b16 %v1196
  %v1389 = vunpack.c.l.b16 %v1197
  %v1390 = vunpack.c.l.b16 %v1198
  %v1391 = vunpack.c.l.b16 %v1199
  %v1392 = vunpack.c.l.b16 %v1200
  %v1393 = vunpack.c.l.b16 %v1201
  %v1394 = vunpack.c.l.b16 %v1202
  %v1395 = vunpack.c.l.b16 %v1203
  %v1396 = vunpack.c.l.b16 %v1204
  %v1397 = vunpack.c.l.b16 %v1205
  %v1398 = vunpack.c.l.b16 %v1206
  %v1399 = vunpack.c.l.b16 %v1207
  %v1400 = vunpack.c.l.b16 %v1208
  %v1401 = vunpack.c.l.b16 %v1209
  %v1402 = vunpack.c.l.b16 %v1210
  %v1403 = vunpack.c.l.b16 %v1211
  %v1404 = vunpack.c.l.b16 %v1212
  %v1405 = vunpack.c.l.b16 %v1213
  %v1406 = vunpack.c.l.b16 %v1214
  %v1407 = vunpack.c.l.b16 %v1215
  %v1408 = vunpack.c.l.b16 %v1216
  %v1409 = vunpack.c.l.b16 %v1217
  %v1410 = vunpack.c.l.b16 %v1218
  %v1411 = vunpack.c.l.b16 %v1219
  %v1412 = vunpack.c.l.b16 %v1220
  %v1413 = vunpack.c.l.b16 %v1221
  %v1414 = vunpack.c.l.b16 %v1222
  %v1415 = vunpack.c.l.b16 %v1223
  %v1416 = vunpack.c.l.b16 %v1224
  %v1417 = vunpack.c.l.b16 %v1225
  %v1418 = vunpack.c.l.b16 %v1226
  %v1419 = vunpack.c.l.b16 %v1227
  %v1420 = vunpack.c.l.b16 %v1228
  %v1421 = vunpack.c.l.b16 %v1229
  %v1422 = vunpack.c.l.b16 %v1230
  %v1423 = vunpack.c.l.b16 %v1231
  %v1424 = vunpack.c.l.b16 %v1232
  %v1425 = vunpack.c.l.b16 %v1233
  %v1426 = vunpack.c.l.b16 %v1234
  %v1427 = vunpack.c.l.b16 %v1235
  %v1428 = vunpack.c.l.b16 %v1236
  %v1429 = vunpack.c.l.b16 %v1237
  %v1430 = vunpack.c.l.b16 %v1238
  %v1431 = vunpack.c.l.b16 %v1239
  %v1432 = vunpack.c.l.b16 %v1240
  %v1433 = vunpack.c.l.b16 %v1241
  %v1434 = vunpack.c.l.b16 %v1242
  %v1435 = vunpack.c.l.b16 %v1243
  %v1436 = vunpack.c.l.b16 %v1244
  %v1437 = vunpack.c.l.b16 %v1245
  %v1438 = vunpack.c.l.b16 %v1246
  %v1439 = vunpack.c.l.b16 %v1247
  %v1440 = vunpack.c.l.b16 %v1248
  %v1441 = vunpack.c.l.b16 %v1249
  %v1442 = vunpack.c.l.b16 %v1250
  %v1443 = vunpack.c.l.b16 %v1251
  %v1444 = vunpack.c.l.b16 %v1252
  %v1445 = vunpack.c.l.b16 %v1253
  %v1446 = vunpack.c.l.b16 %v1254
  %v1447 = vunpack.c.l.b16 %v1255
  %v1448 = vunpack.c.l.b16 %v1256
  %v1449 = vunpack.c.l.b16 %v1257
  %v1450 = vunpack.c.l.b16 %v1258
  %v1451 = vunpack.c.l.b16 %v1259
  %v1452 = vunpack.c.l.b16 %v1260
  %v1453 = vunpack.c.l.b16 %v1261
  %v1454 = vunpack.c.l.b16 %v1262
  %v1455 = vunpack.c.l.b16 %v1263
  %v1456 = vunpack.c.l.b16 %v1264
  %v1457 = vunpack.c.l.b16 %v1265
  %v1458 = vunpack.c.l.b16 %v1266
  %v1459 = vunpack.c.l.b16 %v1267
  %v1460 = vunpack.c.l.b16 %v1268
  %v1461 = vunpack.c.l.b16 %v1269
  %v1462 = vunpack.c.l.b16 %v1270
  %v1463 = vunpack.c.l.b16 %v1271
  %v1464 = vpack.c.b16 %v1369, %v1368
  %v1465 = vpack.c.b16 %v1370, %v1370
  %v1466 = vpack.c.b16 %v1372, %v1371
  %v1467 = vpack.c.b16 %v1373, %v1373
  %v1468 = vpack.c.b16 %v1375, %v1374
  %v1469 = vpack.c.b16 %v1376, %v1376
  %v1470 = vpack.c.b16 %v1378, %v1377
  %v1471 = vpack.c.b16 %v1379, %v1379
  %v1472 = vpack.c.b16 %v1381, %v1380
  %v1473 = vpack.c.b16 %v1382, %v1382
  %v1474 = vpack.c.b16 %v1384, %v1383
  %v1475 = vpack.c.b16 %v1385, %v1385
  %v1476 = vpack.c.b16 %v1387, %v1386
  %v1477 = vpack.c.b16 %v1388, %v1388
  %v1478 = vpack.c.b16 %v1390, %v1389
  %v1479 = vpack.c.b16 %v1391, %v1391
  %v1480 = vpack.c.b16 %v1393, %v1392
  %v1481 = vpack.c.b16 %v1394, %v1394
  %v1482 = vpack.c.b16 %v1396, %v1395
  %v1483 = vpack.c.b16 %v1397, %v1397
  %v1484 = vpack.c.b16 %v1399, %v1398
  %v1485 = vpack.c.b16 %v1400, %v1400
  %v1486 = vpack.c.b16 %v1402, %v1401
  %v1487 = vpack.c.b16 %v1403, %v1403
  %v1488 = vpack.c.b16 %v1405, %v1404
  %v1489 = vpack.c.b16 %v1406, %v1406
  %v1490 = vpack.c.b16 %v1408, %v1407
  %v1491 = vpack.c.b16 %v1409, %v1409
  %v1492 = vpack.c.b16 %v1411, %v1410
  %v1493 = vpack.c.b16 %v1412, %v1412
  %v1494 = vpack.c.b16 %v1414, %v1413
  %v1495 = vpack.c.b16 %v1415, %v1415
  %v1496 = vpack.c.b16 %v1417, %v1416
  %v1497 = vpack.c.b16 %v1418, %v1418
  %v1498 = vpack.c.b16 %v1420, %v1419
  %v1499 = vpack.c.b16 %v1421, %v1421
  %v1500 = vpack.c.b16 %v1423, %v1422
  %v1501 = vpack.c.b16 %v1424, %v1424
  %v1502 = vpack.c.b16 %v1426, %v1425
  %v1503 = vpack.c.b16 %v1427, %v1427
  %v1504 = vpack.c.b16 %v1429, %v1428
  %v1505 = vpack.c.b16 %v1430, %v1430
  %v1506 = vpack.c.b16 %v1432, %v1431
  %v1507 = vpack.c.b16 %v1433, %v1433
  %v1508 = vpack.c.b16 %v1435, %v1434
  %v1509 = vpack.c.b16 %v1436, %v1436
  %v1510 = vpack.c.b16 %v1438, %v1437
  %v1511 = vpack.c.b16 %v1439, %v1439
  %v1512 = vpack.c.b16 %v1441, %v1440
  %v1513 = vpack.c.b16 %v1442, %v1442
  %v1514 = vpack.c.b16 %v1444, %v1443
  %v1515 = vpack.c.b16 %v1445, %v1445
  %v1516 = vpack.c.b16 %v1447, %v1446
  %v1517 = vpack.c.b16 %v1448, %v1448
  %v1518 = vpack.c.b16 %v1450, %v1449
  %v1519 = vpack.c.b16 %v1451, %v1451
  %v1520 = vpack.c.b16 %v1453, %v1452
  %v1521 = vpack.c.b16 %v1454, %v1454
  %v1522 = vpack.c.b16 %v1456, %v1455
  %v1523 = vpack.c.b16 %v1457, %v1457
  %v1524 = vpack.c.b16 %v1459, %v1458
  %v1525 = vpack.c.b16 %v1460, %v1460
  %v1526 = vpack.c.b16 %v1462, %v1461
  %v1527 = vpack.c.b16 %v1463, %v1463
  %vm1528 = vcmask 1046528
  %v1529 = vrot.slane %v1464, 1
  %v1530 = vrot.slane %v1465, 1
  %v1531 = vsel %vm1528, %v1529, %v1530
  %v1532 = vrot.slane %v1466, 1
  %v1533 = vrot.slane %v1467, 1
  %v1534 = vsel %vm1528, %v1532, %v1533
  %v1535 = vrot.slane %v1468, 1
  %v1536 = vrot.slane %v1469, 1
  %v1537 = vsel %vm1528, %v1535, %v1536
  %v1538 = vrot.slane %v1470, 1
  %v1539 = vrot.slane %v1471, 1
  %v1540 = vsel %vm1528, %v1538, %v1539
  %v1541 = vrot.slane %v1472, 1
  %v1542 = vrot.slane %v1473, 1
  %v1543 = vsel %vm1528, %v1541, %v1542
  %v1544 = vrot.slane %v1474, 1
  %v1545 = vrot.slane %v1475, 1
  %v1546 = vsel %vm1528, %v1544, %v1545
  %v1547 = vrot.slane %v1476, 1
  %v1548 = vrot.slane %v1477, 1
  %v1549 = vsel %vm1528, %v1547, %v1548
  %v1550 = vrot.slane %v1478, 1
  %v1551 = vrot.slane %v1479, 1
  %v1552 = vsel %vm1528, %v1550, %v1551
  %v1553 = vrot.slane %v1480, 1
  %v1554 = vrot.slane %v1481, 1
  %v1555 = vsel %vm1528, %v1553, %v1554
  %v1556 = vrot.slane %v1482, 1
  %v1557 = vrot.slane %v1483, 1
  %v1558 = vsel %vm1528, %v1556, %v1557
  %v1559 = vrot.slane %v1484, 1
  %v1560 = vrot.slane %v1485, 1
  %v1561 = vsel %vm1528, %v1559, %v1560
  %v1562 = vrot.slane %v1486, 1
  %v1563 = vrot.slane %v1487, 1
  %v1564 = vsel %vm1528, %v1562, %v1563
  %v1565 = vrot.slane %v1488, 1
  %v1566 = vrot.slane %v1489, 1
  %v1567 = vsel %vm1528, %v1565, %v1566
  %v1568 = vrot.slane %v1490, 1
  %v1569 = vrot.slane %v1491, 1
  %v1570 = vsel %vm1528, %v1568, %v1569
  %v1571 = vrot.slane %v1492, 1
  %v1572 = vrot.slane %v1493, 1
  %v1573 = vsel %vm1528, %v1571, %v1572
  %v1574 = vrot.slane %v1494, 1
  %v1575 = vrot.slane %v1495, 1
  %v1576 = vsel %vm1528, %v1574, %v1575
  %v1577 = vrot.slane %v1496, 1
  %v1578 = vrot.slane %v1497, 1
  %v1579 = vsel %vm1528, %v1577, %v1578
  %v1580 = vrot.slane %v1498, 1
  %v1581 = vrot.slane %v1499, 1
  %v1582 = vsel %vm1528, %v1580, %v1581
  %v1583 = vrot.slane %v1500, 1
  %v1584 = vrot.slane %v1501, 1
  %v1585 = vsel %vm1528, %v1583, %v1584
  %v1586 = vrot.slane %v1502, 1
  %v1587 = vrot.slane %v1503, 1
  %v1588 = vsel %vm1528, %v1586, %v1587
  %v1589 = vrot.slane %v1504, 1
  %v1590 = vrot.slane %v1505, 1
  %v1591 = vsel %vm1528, %v1589, %v1590
  %v1592 = vrot.slane %v1506, 1
  %v1593 = vrot.slane %v1507, 1
  %v1594 = vsel %vm1528, %v1592, %v1593
  %v1595 = vrot.slane %v1508, 1
  %v1596 = vrot.slane %v1509, 1
  %v1597 = vsel %vm1528, %v1595, %v1596
  %v1598 = vrot.slane %v1510, 1
  %v1599 = vrot.slane %v1511, 1
  %v1600 = vsel %vm1528, %v1598, %v1599
  %v1601 = vrot.slane %v1512, 1
  %v1602 = vrot.slane %v1513, 1
  %v1603 = vsel %vm1528, %v1601, %v1602
  %v1604 = vrot.slane %v1514, 1
  %v1605 = vrot.slane %v1515, 1
  %v1606 = vsel %vm1528, %v1604, %v1605
  %v1607 = vrot.slane %v1516, 1
  %v1608 = vrot.slane %v1517, 1
  %v1609 = vsel %vm1528, %v1607, %v1608
  %v1610 = vrot.slane %v1518, 1
  %v1611 = vrot.slane %v1519, 1
  %v1612 = vsel %vm1528, %v1610, %v1611
  %v1613 = vrot.slane %v1520, 1
  %v1614 = vrot.slane %v1521, 1
  %v1615 = vsel %vm1528, %v1613, %v1614
  %v1616 = vrot.slane %v1522, 1
  %v1617 = vrot.slane %v1523, 1
  %v1618 = vsel %vm1528, %v1616, %v1617
  %v1619 = vrot.slane %v1524, 1
  %v1620 = vrot.slane %v1525, 1
  %v1621 = vsel %vm1528, %v1619, %v1620
  %v1622 = vrot.slane %v1526, 1
  %v1623 = vrot.slane %v1527, 1
  %v1624 = vsel %vm1528, %v1622, %v1623
  %1625 = vrot.lane.b32.xlu0 %v1531, 24
  %v1626 = vpop.permute.xlu0 %1625
  %1627 = vrot.lane.b32.xlu0 %v1534, 24
  %v1628 = vpop.permute.xlu0 %1627
  %1629 = vrot.lane.b32.xlu0 %v1537, 24
  %v1630 = vpop.permute.xlu0 %1629
  %1631 = vrot.lane.b32.xlu0 %v1540, 24
  %v1632 = vpop.permute.xlu0 %1631
  %1633 = vrot.lane.b32.xlu0 %v1543, 24
  %v1634 = vpop.permute.xlu0 %1633
  %1635 = vrot.lane.b32.xlu0 %v1546, 24
  %v1636 = vpop.permute.xlu0 %1635
  %1637 = vrot.lane.b32.xlu0 %v1549, 24
  %v1638 = vpop.permute.xlu0 %1637
  %1639 = vrot.lane.b32.xlu0 %v1552, 24
  %v1640 = vpop.permute.xlu0 %1639
  %1641 = vrot.lane.b32.xlu0 %v1555, 24
  %v1642 = vpop.permute.xlu0 %1641
  %1643 = vrot.lane.b32.xlu0 %v1558, 24
  %v1644 = vpop.permute.xlu0 %1643
  %1645 = vrot.lane.b32.xlu0 %v1561, 24
  %v1646 = vpop.permute.xlu0 %1645
  %1647 = vrot.lane.b32.xlu0 %v1564, 24
  %v1648 = vpop.permute.xlu0 %1647
  %1649 = vrot.lane.b32.xlu0 %v1567, 24
  %v1650 = vpop.permute.xlu0 %1649
  %1651 = vrot.lane.b32.xlu0 %v1570, 24
  %v1652 = vpop.permute.xlu0 %1651
  %1653 = vrot.lane.b32.xlu0 %v1573, 24
  %v1654 = vpop.permute.xlu0 %1653
  %1655 = vrot.lane.b32.xlu0 %v1576, 24
  %v1656 = vpop.permute.xlu0 %1655
  %1657 = vrot.lane.b32.xlu0 %v1579, 24
  %v1658 = vpop.permute.xlu0 %1657
  %1659 = vrot.lane.b32.xlu0 %v1582, 24
  %v1660 = vpop.permute.xlu0 %1659
  %1661 = vrot.lane.b32.xlu0 %v1585, 24
  %v1662 = vpop.permute.xlu0 %1661
  %1663 = vrot.lane.b32.xlu0 %v1588, 24
  %v1664 = vpop.permute.xlu0 %1663
  %1665 = vrot.lane.b32.xlu0 %v1591, 24
  %v1666 = vpop.permute.xlu0 %1665
  %1667 = vrot.lane.b32.xlu0 %v1594, 24
  %v1668 = vpop.permute.xlu0 %1667
  %1669 = vrot.lane.b32.xlu0 %v1597, 24
  %v1670 = vpop.permute.xlu0 %1669
  %1671 = vrot.lane.b32.xlu0 %v1600, 24
  %v1672 = vpop.permute.xlu0 %1671
  %1673 = vrot.lane.b32.xlu0 %v1603, 24
  %v1674 = vpop.permute.xlu0 %1673
  %1675 = vrot.lane.b32.xlu0 %v1606, 24
  %v1676 = vpop.permute.xlu0 %1675
  %1677 = vrot.lane.b32.xlu0 %v1609, 24
  %v1678 = vpop.permute.xlu0 %1677
  %1679 = vrot.lane.b32.xlu0 %v1612, 24
  %v1680 = vpop.permute.xlu0 %1679
  %1681 = vrot.lane.b32.xlu0 %v1615, 24
  %v1682 = vpop.permute.xlu0 %1681
  %1683 = vrot.lane.b32.xlu0 %v1618, 24
  %v1684 = vpop.permute.xlu0 %1683
  %1685 = vrot.lane.b32.xlu0 %v1621, 24
  %v1686 = vpop.permute.xlu0 %1685
  %1687 = vrot.lane.b32.xlu0 %v1624, 24
  %v1688 = vpop.permute.xlu0 %1687
  %vm1721 = vcmask 294080
  %1722 = vst.msk [vmem:[#allocation2] sm:$0xff] %vm1721, %v1626
  %1723 = vst.msk [vmem:[#allocation2 + $0x8] sm:$0xff] %vm1721, %v1628
  %1724 = vst.msk [vmem:[#allocation2 + $0x10] sm:$0xff] %vm1721, %v1630
  %1725 = vst.msk [vmem:[#allocation2 + $0x18] sm:$0xff] %vm1721, %v1632
  %1726 = vst.msk [vmem:[#allocation2 + $0x20] sm:$0xff] %vm1721, %v1634
  %1727 = vst.msk [vmem:[#allocation2 + $0x28] sm:$0xff] %vm1721, %v1636
  %1728 = vst.msk [vmem:[#allocation2 + $0x30] sm:$0xff] %vm1721, %v1638
  %1729 = vst.msk [vmem:[#allocation2 + $0x38] sm:$0xff] %vm1721, %v1640
  %1730 = vst.msk [vmem:[#allocation2 + $0x40] sm:$0xff] %vm1721, %v1642
  %1731 = vst.msk [vmem:[#allocation2 + $0x48] sm:$0xff] %vm1721, %v1644
  %1732 = vst.msk [vmem:[#allocation2 + $0x50] sm:$0xff] %vm1721, %v1646
  %1733 = vst.msk [vmem:[#allocation2 + $0x58] sm:$0xff] %vm1721, %v1648
  %1734 = vst.msk [vmem:[#allocation2 + $0x60] sm:$0xff] %vm1721, %v1650
  %1735 = vst.msk [vmem:[#allocation2 + $0x68] sm:$0xff] %vm1721, %v1652
  %1736 = vst.msk [vmem:[#allocation2 + $0x70] sm:$0xff] %vm1721, %v1654
  %1737 = vst.msk [vmem:[#allocation2 + $0x78] sm:$0xff] %vm1721, %v1656
  %1738 = vst.msk [vmem:[#allocation2 + $0x80] sm:$0xff] %vm1721, %v1658
  %1739 = vst.msk [vmem:[#allocation2 + $0x88] sm:$0xff] %vm1721, %v1660
  %1740 = vst.msk [vmem:[#allocation2 + $0x90] sm:$0xff] %vm1721, %v1662
  %1741 = vst.msk [vmem:[#allocation2 + $0x98] sm:$0xff] %vm1721, %v1664
  %1742 = vst.msk [vmem:[#allocation2 + $0xa0] sm:$0xff] %vm1721, %v1666
  %1743 = vst.msk [vmem:[#allocation2 + $0xa8] sm:$0xff] %vm1721, %v1668
  %1744 = vst.msk [vmem:[#allocation2 + $0xb0] sm:$0xff] %vm1721, %v1670
  %1745 = vst.msk [vmem:[#allocation2 + $0xb8] sm:$0xff] %vm1721, %v1672
  %1746 = vst.msk [vmem:[#allocation2 + $0xc0] sm:$0xff] %vm1721, %v1674
  %1747 = vst.msk [vmem:[#allocation2 + $0xc8] sm:$0xff] %vm1721, %v1676
  %1748 = vst.msk [vmem:[#allocation2 + $0xd0] sm:$0xff] %vm1721, %v1678
  %1749 = vst.msk [vmem:[#allocation2 + $0xd8] sm:$0xff] %vm1721, %v1680
  %1750 = vst.msk [vmem:[#allocation2 + $0xe0] sm:$0xff] %vm1721, %v1682
  %1751 = vst.msk [vmem:[#allocation2 + $0xe8] sm:$0xff] %vm1721, %v1684
  %1752 = vst.msk [vmem:[#allocation2 + $0xf0] sm:$0xff] %vm1721, %v1686
  %1753 = vst.msk [vmem:[#allocation2 + $0xf8] sm:$0xff] %vm1721, %v1688
  %s1754 = scalar_lea.vmem %s0, 12
  %v1755 = vld [vmem:[%s1754] sm:$0xf]
  %v1756 = vld [vmem:[%s1754 + $0x4] sm:$0xf]
  %v1757 = vld [vmem:[%s1754 + $0xc] sm:$0xf]
  %v1758 = vld [vmem:[%s1754 + $0x10] sm:$0xf]
  %v1759 = vld [vmem:[%s1754 + $0x18] sm:$0xf]
  %v1760 = vld [vmem:[%s1754 + $0x1c] sm:$0xf]
  %v1761 = vld [vmem:[%s1754 + $0x24] sm:$0xf]
  %v1762 = vld [vmem:[%s1754 + $0x28] sm:$0xf]
  %v1763 = vld [vmem:[%s1754 + $0x30] sm:$0xf]
  %v1764 = vld [vmem:[%s1754 + $0x34] sm:$0xf]
  %v1765 = vld [vmem:[%s1754 + $0x3c] sm:$0xf]
  %v1766 = vld [vmem:[%s1754 + $0x40] sm:$0xf]
  %v1767 = vld [vmem:[%s1754 + $0x48] sm:$0xf]
  %v1768 = vld [vmem:[%s1754 + $0x4c] sm:$0xf]
  %v1769 = vld [vmem:[%s1754 + $0x54] sm:$0xf]
  %v1770 = vld [vmem:[%s1754 + $0x58] sm:$0xf]
  %v1771 = vld [vmem:[%s1754 + $0x60] sm:$0xf]
  %v1772 = vld [vmem:[%s1754 + $0x64] sm:$0xf]
  %v1773 = vld [vmem:[%s1754 + $0x6c] sm:$0xf]
  %v1774 = vld [vmem:[%s1754 + $0x70] sm:$0xf]
  %v1775 = vld [vmem:[%s1754 + $0x78] sm:$0xf]
  %v1776 = vld [vmem:[%s1754 + $0x7c] sm:$0xf]
  %v1777 = vld [vmem:[%s1754 + $0x84] sm:$0xf]
  %v1778 = vld [vmem:[%s1754 + $0x88] sm:$0xf]
  %v1779 = vld [vmem:[%s1754 + $0x90] sm:$0xf]
  %v1780 = vld [vmem:[%s1754 + $0x94] sm:$0xf]
  %v1781 = vld [vmem:[%s1754 + $0x9c] sm:$0xf]
  %v1782 = vld [vmem:[%s1754 + $0xa0] sm:$0xf]
  %v1783 = vld [vmem:[%s1754 + $0xa8] sm:$0xf]
  %v1784 = vld [vmem:[%s1754 + $0xac] sm:$0xf]
  %v1785 = vld [vmem:[%s1754 + $0xb4] sm:$0xf]
  %v1786 = vld [vmem:[%s1754 + $0xb8] sm:$0xf]
  %v1787 = vld [vmem:[%s1754 + $0xd8] sm:$0xf]
  %v1788 = vld [vmem:[%s1754 + $0xdc] sm:$0xf]
  %v1789 = vld [vmem:[%s1754 + $0xe4] sm:$0xf]
  %v1790 = vld [vmem:[%s1754 + $0xe8] sm:$0xf]
  %v1791 = vld [vmem:[%s1754 + $0xf0] sm:$0xf]
  %v1792 = vld [vmem:[%s1754 + $0xf4] sm:$0xf]
  %v1793 = vld [vmem:[%s1754 + $0xfc] sm:$0xf]
  %v1794 = vld [vmem:[%s1754 + $0x100] sm:$0xf]
  %v1795 = vld [vmem:[%s1754 + $0x108] sm:$0xf]
  %v1796 = vld [vmem:[%s1754 + $0x10c] sm:$0xf]
  %v1797 = vld [vmem:[%s1754 + $0x114] sm:$0xf]
  %v1798 = vld [vmem:[%s1754 + $0x118] sm:$0xf]
  %v1799 = vld [vmem:[%s1754 + $0x120] sm:$0xf]
  %v1800 = vld [vmem:[%s1754 + $0x124] sm:$0xf]
  %v1801 = vld [vmem:[%s1754 + $0x12c] sm:$0xf]
  %v1802 = vld [vmem:[%s1754 + $0x130] sm:$0xf]
  %v1803 = vld [vmem:[%s1754 + $0x138] sm:$0xf]
  %v1804 = vld [vmem:[%s1754 + $0x13c] sm:$0xf]
  %v1805 = vld [vmem:[%s1754 + $0x144] sm:$0xf]
  %v1806 = vld [vmem:[%s1754 + $0x148] sm:$0xf]
  %v1807 = vld [vmem:[%s1754 + $0x150] sm:$0xf]
  %v1808 = vld [vmem:[%s1754 + $0x154] sm:$0xf]
  %v1809 = vld [vmem:[%s1754 + $0x15c] sm:$0xf]
  %v1810 = vld [vmem:[%s1754 + $0x160] sm:$0xf]
  %v1811 = vld [vmem:[%s1754 + $0x168] sm:$0xf]
  %v1812 = vld [vmem:[%s1754 + $0x16c] sm:$0xf]
  %v1813 = vld [vmem:[%s1754 + $0x174] sm:$0xf]
  %v1814 = vld [vmem:[%s1754 + $0x178] sm:$0xf]
  %v1815 = vld [vmem:[%s1754 + $0x180] sm:$0xf]
  %v1816 = vld [vmem:[%s1754 + $0x184] sm:$0xf]
  %v1817 = vld [vmem:[%s1754 + $0x18c] sm:$0xf]
  %v1818 = vld [vmem:[%s1754 + $0x190] sm:$0xf]
  %v1883 = vunpack.c.l.b16 %v1755
  %v1884 = vunpack.c.l.b16 %v1756
  %v1885 = vunpack.c.l.b16 %v1757
  %v1886 = vunpack.c.l.b16 %v1758
  %v1887 = vunpack.c.l.b16 %v1759
  %v1888 = vunpack.c.l.b16 %v1760
  %v1889 = vunpack.c.l.b16 %v1761
  %v1890 = vunpack.c.l.b16 %v1762
  %v1891 = vunpack.c.l.b16 %v1763
  %v1892 = vunpack.c.l.b16 %v1764
  %v1893 = vunpack.c.l.b16 %v1765
  %v1894 = vunpack.c.l.b16 %v1766
  %v1895 = vunpack.c.l.b16 %v1767
  %v1896 = vunpack.c.l.b16 %v1768
  %v1897 = vunpack.c.l.b16 %v1769
  %v1898 = vunpack.c.l.b16 %v1770
  %v1899 = vunpack.c.l.b16 %v1771
  %v1900 = vunpack.c.l.b16 %v1772
  %v1901 = vunpack.c.l.b16 %v1773
  %v1902 = vunpack.c.l.b16 %v1774
  %v1903 = vunpack.c.l.b16 %v1775
  %v1904 = vunpack.c.l.b16 %v1776
  %v1905 = vunpack.c.l.b16 %v1777
  %v1906 = vunpack.c.l.b16 %v1778
  %v1907 = vunpack.c.l.b16 %v1779
  %v1908 = vunpack.c.l.b16 %v1780
  %v1909 = vunpack.c.l.b16 %v1781
  %v1910 = vunpack.c.l.b16 %v1782
  %v1911 = vunpack.c.l.b16 %v1783
  %v1912 = vunpack.c.l.b16 %v1784
  %v1913 = vunpack.c.l.b16 %v1785
  %v1914 = vunpack.c.l.b16 %v1786
  %v1915 = vunpack.c.l.b16 %v1787
  %v1916 = vunpack.c.l.b16 %v1788
  %v1917 = vunpack.c.l.b16 %v1789
  %v1918 = vunpack.c.l.b16 %v1790
  %v1919 = vunpack.c.l.b16 %v1791
  %v1920 = vunpack.c.l.b16 %v1792
  %v1921 = vunpack.c.l.b16 %v1793
  %v1922 = vunpack.c.l.b16 %v1794
  %v1923 = vunpack.c.l.b16 %v1795
  %v1924 = vunpack.c.l.b16 %v1796
  %v1925 = vunpack.c.l.b16 %v1797
  %v1926 = vunpack.c.l.b16 %v1798
  %v1927 = vunpack.c.l.b16 %v1799
  %v1928 = vunpack.c.l.b16 %v1800
  %v1929 = vunpack.c.l.b16 %v1801
  %v1930 = vunpack.c.l.b16 %v1802
  %v1931 = vunpack.c.l.b16 %v1803
  %v1932 = vunpack.c.l.b16 %v1804
  %v1933 = vunpack.c.l.b16 %v1805
  %v1934 = vunpack.c.l.b16 %v1806
  %v1935 = vunpack.c.l.b16 %v1807
  %v1936 = vunpack.c.l.b16 %v1808
  %v1937 = vunpack.c.l.b16 %v1809
  %v1938 = vunpack.c.l.b16 %v1810
  %v1939 = vunpack.c.l.b16 %v1811
  %v1940 = vunpack.c.l.b16 %v1812
  %v1941 = vunpack.c.l.b16 %v1813
  %v1942 = vunpack.c.l.b16 %v1814
  %v1943 = vunpack.c.l.b16 %v1815
  %v1944 = vunpack.c.l.b16 %v1816
  %v1945 = vunpack.c.l.b16 %v1817
  %v1946 = vunpack.c.l.b16 %v1818
  %v1947 = vpack.c.b16 %v1884, %v1883
  %v1948 = vpack.c.b16 %v1886, %v1885
  %v1949 = vpack.c.b16 %v1888, %v1887
  %v1950 = vpack.c.b16 %v1890, %v1889
  %v1951 = vpack.c.b16 %v1892, %v1891
  %v1952 = vpack.c.b16 %v1894, %v1893
  %v1953 = vpack.c.b16 %v1896, %v1895
  %v1954 = vpack.c.b16 %v1898, %v1897
  %v1955 = vpack.c.b16 %v1900, %v1899
  %v1956 = vpack.c.b16 %v1902, %v1901
  %v1957 = vpack.c.b16 %v1904, %v1903
  %v1958 = vpack.c.b16 %v1906, %v1905
  %v1959 = vpack.c.b16 %v1908, %v1907
  %v1960 = vpack.c.b16 %v1910, %v1909
  %v1961 = vpack.c.b16 %v1912, %v1911
  %v1962 = vpack.c.b16 %v1914, %v1913
  %v1963 = vpack.c.b16 %v1916, %v1915
  %v1964 = vpack.c.b16 %v1918, %v1917
  %v1965 = vpack.c.b16 %v1920, %v1919
  %v1966 = vpack.c.b16 %v1922, %v1921
  %v1967 = vpack.c.b16 %v1924, %v1923
  %v1968 = vpack.c.b16 %v1926, %v1925
  %v1969 = vpack.c.b16 %v1928, %v1927
  %v1970 = vpack.c.b16 %v1930, %v1929
  %v1971 = vpack.c.b16 %v1932, %v1931
  %v1972 = vpack.c.b16 %v1934, %v1933
  %v1973 = vpack.c.b16 %v1936, %v1935
  %v1974 = vpack.c.b16 %v1938, %v1937
  %v1975 = vpack.c.b16 %v1940, %v1939
  %v1976 = vpack.c.b16 %v1942, %v1941
  %v1977 = vpack.c.b16 %v1944, %v1943
  %v1978 = vpack.c.b16 %v1946, %v1945
  %1979 = vrot.lane.b32.xlu0 %v1947, 36
  %v1980 = vpop.permute.xlu0 %1979
  %1981 = vrot.lane.b32.xlu0 %v1948, 36
  %v1982 = vpop.permute.xlu0 %1981
  %1983 = vrot.lane.b32.xlu0 %v1949, 36
  %v1984 = vpop.permute.xlu0 %1983
  %1985 = vrot.lane.b32.xlu0 %v1950, 36
  %v1986 = vpop.permute.xlu0 %1985
  %1987 = vrot.lane.b32.xlu0 %v1951, 36
  %v1988 = vpop.permute.xlu0 %1987
  %1989 = vrot.lane.b32.xlu0 %v1952, 36
  %v1990 = vpop.permute.xlu0 %1989
  %1991 = vrot.lane.b32.xlu0 %v1953, 36
  %v1992 = vpop.permute.xlu0 %1991
  %1993 = vrot.lane.b32.xlu0 %v1954, 36
  %v1994 = vpop.permute.xlu0 %1993
  %1995 = vrot.lane.b32.xlu0 %v1955, 36
  %v1996 = vpop.permute.xlu0 %1995
  %1997 = vrot.lane.b32.xlu0 %v1956, 36
  %v1998 = vpop.permute.xlu0 %1997
  %1999 = vrot.lane.b32.xlu0 %v1957, 36
  %v2000 = vpop.permute.xlu0 %1999
  %2001 = vrot.lane.b32.xlu0 %v1958, 36
  %v2002 = vpop.permute.xlu0 %2001
  %2003 = vrot.lane.b32.xlu0 %v1959, 36
  %v2004 = vpop.permute.xlu0 %2003
  %2005 = vrot.lane.b32.xlu0 %v1960, 36
  %v2006 = vpop.permute.xlu0 %2005
  %2007 = vrot.lane.b32.xlu0 %v1961, 36
  %v2008 = vpop.permute.xlu0 %2007
  %2009 = vrot.lane.b32.xlu0 %v1962, 36
  %v2010 = vpop.permute.xlu0 %2009
  %2011 = vrot.lane.b32.xlu0 %v1963, 36
  %v2012 = vpop.permute.xlu0 %2011
  %2013 = vrot.lane.b32.xlu0 %v1964, 36
  %v2014 = vpop.permute.xlu0 %2013
  %2015 = vrot.lane.b32.xlu0 %v1965, 36
  %v2016 = vpop.permute.xlu0 %2015
  %2017 = vrot.lane.b32.xlu0 %v1966, 36
  %v2018 = vpop.permute.xlu0 %2017
  %2019 = vrot.lane.b32.xlu0 %v1967, 36
  %v2020 = vpop.permute.xlu0 %2019
  %2021 = vrot.lane.b32.xlu0 %v1968, 36
  %v2022 = vpop.permute.xlu0 %2021
  %2023 = vrot.lane.b32.xlu0 %v1969, 36
  %v2024 = vpop.permute.xlu0 %2023
  %2025 = vrot.lane.b32.xlu0 %v1970, 36
  %v2026 = vpop.permute.xlu0 %2025
  %2027 = vrot.lane.b32.xlu0 %v1971, 36
  %v2028 = vpop.permute.xlu0 %2027
  %2029 = vrot.lane.b32.xlu0 %v1972, 36
  %v2030 = vpop.permute.xlu0 %2029
  %2031 = vrot.lane.b32.xlu0 %v1973, 36
  %v2032 = vpop.permute.xlu0 %2031
  %2033 = vrot.lane.b32.xlu0 %v1974, 36
  %v2034 = vpop.permute.xlu0 %2033
  %2035 = vrot.lane.b32.xlu0 %v1975, 36
  %v2036 = vpop.permute.xlu0 %2035
  %2037 = vrot.lane.b32.xlu0 %v1976, 36
  %v2038 = vpop.permute.xlu0 %2037
  %2039 = vrot.lane.b32.xlu0 %v1977, 36
  %v2040 = vpop.permute.xlu0 %2039
  %2041 = vrot.lane.b32.xlu0 %v1978, 36
  %v2042 = vpop.permute.xlu0 %2041
  %vm2075 = vcmask 392480
  %2076 = vst.msk [vmem:[#allocation2] sm:$0xff] %vm2075, %v1980
  %2077 = vst.msk [vmem:[#allocation2 + $0x8] sm:$0xff] %vm2075, %v1982
  %2078 = vst.msk [vmem:[#allocation2 + $0x10] sm:$0xff] %vm2075, %v1984
  %2079 = vst.msk [vmem:[#allocation2 + $0x18] sm:$0xff] %vm2075, %v1986
  %2080 = vst.msk [vmem:[#allocation2 + $0x20] sm:$0xff] %vm2075, %v1988
  %2081 = vst.msk [vmem:[#allocation2 + $0x28] sm:$0xff] %vm2075, %v1990
  %2082 = vst.msk [vmem:[#allocation2 + $0x30] sm:$0xff] %vm2075, %v1992
  %2083 = vst.msk [vmem:[#allocation2 + $0x38] sm:$0xff] %vm2075, %v1994
  %2084 = vst.msk [vmem:[#allocation2 + $0x40] sm:$0xff] %vm2075, %v1996
  %2085 = vst.msk [vmem:[#allocation2 + $0x48] sm:$0xff] %vm2075, %v1998
  %2086 = vst.msk [vmem:[#allocation2 + $0x50] sm:$0xff] %vm2075, %v2000
  %2087 = vst.msk [vmem:[#allocation2 + $0x58] sm:$0xff] %vm2075, %v2002
  %2088 = vst.msk [vmem:[#allocation2 + $0x60] sm:$0xff] %vm2075, %v2004
  %2089 = vst.msk [vmem:[#allocation2 + $0x68] sm:$0xff] %vm2075, %v2006
  %2090 = vst.msk [vmem:[#allocation2 + $0x70] sm:$0xff] %vm2075, %v2008
  %2091 = vst.msk [vmem:[#allocation2 + $0x78] sm:$0xff] %vm2075, %v2010
  %2092 = vst.msk [vmem:[#allocation2 + $0x80] sm:$0xff] %vm2075, %v2012
  %2093 = vst.msk [vmem:[#allocation2 + $0x88] sm:$0xff] %vm2075, %v2014
  %2094 = vst.msk [vmem:[#allocation2 + $0x90] sm:$0xff] %vm2075, %v2016
  %2095 = vst.msk [vmem:[#allocation2 + $0x98] sm:$0xff] %vm2075, %v2018
  %2096 = vst.msk [vmem:[#allocation2 + $0xa0] sm:$0xff] %vm2075, %v2020
  %2097 = vst.msk [vmem:[#allocation2 + $0xa8] sm:$0xff] %vm2075, %v2022
  %2098 = vst.msk [vmem:[#allocation2 + $0xb0] sm:$0xff] %vm2075, %v2024
  %2099 = vst.msk [vmem:[#allocation2 + $0xb8] sm:$0xff] %vm2075, %v2026
  %2100 = vst.msk [vmem:[#allocation2 + $0xc0] sm:$0xff] %vm2075, %v2028
  %2101 = vst.msk [vmem:[#allocation2 + $0xc8] sm:$0xff] %vm2075, %v2030
  %2102 = vst.msk [vmem:[#allocation2 + $0xd0] sm:$0xff] %vm2075, %v2032
  %2103 = vst.msk [vmem:[#allocation2 + $0xd8] sm:$0xff] %vm2075, %v2034
  %2104 = vst.msk [vmem:[#allocation2 + $0xe0] sm:$0xff] %vm2075, %v2036
  %2105 = vst.msk [vmem:[#allocation2 + $0xe8] sm:$0xff] %vm2075, %v2038
  %2106 = vst.msk [vmem:[#allocation2 + $0xf0] sm:$0xff] %vm2075, %v2040
  %2107 = vst.msk [vmem:[#allocation2 + $0xf8] sm:$0xff] %vm2075, %v2042
  %v2108 = vld [vmem:[%s1754] sm:$0xf]
  %v2109 = vld [vmem:[%s1754 + $0x4] sm:$0xf]
  %v2110 = vld [vmem:[%s1754 + $0x8] sm:$0x1]
  %v2111 = vld [vmem:[%s1754 + $0xc] sm:$0xf]
  %v2112 = vld [vmem:[%s1754 + $0x10] sm:$0xf]
  %v2113 = vld [vmem:[%s1754 + $0x14] sm:$0x1]
  %v2114 = vld [vmem:[%s1754 + $0x18] sm:$0xf]
  %v2115 = vld [vmem:[%s1754 + $0x1c] sm:$0xf]
  %v2116 = vld [vmem:[%s1754 + $0x20] sm:$0x1]
  %v2117 = vld [vmem:[%s1754 + $0x24] sm:$0xf]
  %v2118 = vld [vmem:[%s1754 + $0x28] sm:$0xf]
  %v2119 = vld [vmem:[%s1754 + $0x2c] sm:$0x1]
  %v2120 = vld [vmem:[%s1754 + $0x30] sm:$0xf]
  %v2121 = vld [vmem:[%s1754 + $0x34] sm:$0xf]
  %v2122 = vld [vmem:[%s1754 + $0x38] sm:$0x1]
  %v2123 = vld [vmem:[%s1754 + $0x3c] sm:$0xf]
  %v2124 = vld [vmem:[%s1754 + $0x40] sm:$0xf]
  %v2125 = vld [vmem:[%s1754 + $0x44] sm:$0x1]
  %v2126 = vld [vmem:[%s1754 + $0x48] sm:$0xf]
  %v2127 = vld [vmem:[%s1754 + $0x4c] sm:$0xf]
  %v2128 = vld [vmem:[%s1754 + $0x50] sm:$0x1]
  %v2129 = vld [vmem:[%s1754 + $0x54] sm:$0xf]
  %v2130 = vld [vmem:[%s1754 + $0x58] sm:$0xf]
  %v2131 = vld [vmem:[%s1754 + $0x5c] sm:$0x1]
  %v2132 = vld [vmem:[%s1754 + $0x60] sm:$0xf]
  %v2133 = vld [vmem:[%s1754 + $0x64] sm:$0xf]
  %v2134 = vld [vmem:[%s1754 + $0x68] sm:$0x1]
  %v2135 = vld [vmem:[%s1754 + $0x6c] sm:$0xf]
  %v2136 = vld [vmem:[%s1754 + $0x70] sm:$0xf]
  %v2137 = vld [vmem:[%s1754 + $0x74] sm:$0x1]
  %v2138 = vld [vmem:[%s1754 + $0x78] sm:$0xf]
  %v2139 = vld [vmem:[%s1754 + $0x7c] sm:$0xf]
  %v2140 = vld [vmem:[%s1754 + $0x80] sm:$0x1]
  %v2141 = vld [vmem:[%s1754 + $0x84] sm:$0xf]
  %v2142 = vld [vmem:[%s1754 + $0x88] sm:$0xf]
  %v2143 = vld [vmem:[%s1754 + $0x8c] sm:$0x1]
  %v2144 = vld [vmem:[%s1754 + $0x90] sm:$0xf]
  %v2145 = vld [vmem:[%s1754 + $0x94] sm:$0xf]
  %v2146 = vld [vmem:[%s1754 + $0x98] sm:$0x1]
  %v2147 = vld [vmem:[%s1754 + $0x9c] sm:$0xf]
  %v2148 = vld [vmem:[%s1754 + $0xa0] sm:$0xf]
  %v2149 = vld [vmem:[%s1754 + $0xa4] sm:$0x1]
  %v2150 = vld [vmem:[%s1754 + $0xa8] sm:$0xf]
  %v2151 = vld [vmem:[%s1754 + $0xac] sm:$0xf]
  %v2152 = vld [vmem:[%s1754 + $0xb0] sm:$0x1]
  %v2153 = vld [vmem:[%s1754 + $0xb4] sm:$0xf]
  %v2154 = vld [vmem:[%s1754 + $0xb8] sm:$0xf]
  %v2155 = vld [vmem:[%s1754 + $0xbc] sm:$0x1]
  %v2156 = vld [vmem:[%s1754 + $0xd8] sm:$0xf]
  %v2157 = vld [vmem:[%s1754 + $0xdc] sm:$0xf]
  %v2158 = vld [vmem:[%s1754 + $0xe0] sm:$0x1]
  %v2159 = vld [vmem:[%s1754 + $0xe4] sm:$0xf]
  %v2160 = vld [vmem:[%s1754 + $0xe8] sm:$0xf]
  %v2161 = vld [vmem:[%s1754 + $0xec] sm:$0x1]
  %v2162 = vld [vmem:[%s1754 + $0xf0] sm:$0xf]
  %v2163 = vld [vmem:[%s1754 + $0xf4] sm:$0xf]
  %v2164 = vld [vmem:[%s1754 + $0xf8] sm:$0x1]
  %v2165 = vld [vmem:[%s1754 + $0xfc] sm:$0xf]
  %v2166 = vld [vmem:[%s1754 + $0x100] sm:$0xf]
  %v2167 = vld [vmem:[%s1754 + $0x104] sm:$0x1]
  %v2168 = vld [vmem:[%s1754 + $0x108] sm:$0xf]
  %v2169 = vld [vmem:[%s1754 + $0x10c] sm:$0xf]
  %v2170 = vld [vmem:[%s1754 + $0x110] sm:$0x1]
  %v2171 = vld [vmem:[%s1754 + $0x114] sm:$0xf]
  %v2172 = vld [vmem:[%s1754 + $0x118] sm:$0xf]
  %v2173 = vld [vmem:[%s1754 + $0x11c] sm:$0x1]
  %v2174 = vld [vmem:[%s1754 + $0x120] sm:$0xf]
  %v2175 = vld [vmem:[%s1754 + $0x124] sm:$0xf]
  %v2176 = vld [vmem:[%s1754 + $0x128] sm:$0x1]
  %v2177 = vld [vmem:[%s1754 + $0x12c] sm:$0xf]
  %v2178 = vld [vmem:[%s1754 + $0x130] sm:$0xf]
  %v2179 = vld [vmem:[%s1754 + $0x134] sm:$0x1]
  %v2180 = vld [vmem:[%s1754 + $0x138] sm:$0xf]
  %v2181 = vld [vmem:[%s1754 + $0x13c] sm:$0xf]
  %v2182 = vld [vmem:[%s1754 + $0x140] sm:$0x1]
  %v2183 = vld [vmem:[%s1754 + $0x144] sm:$0xf]
  %v2184 = vld [vmem:[%s1754 + $0x148] sm:$0xf]
  %v2185 = vld [vmem:[%s1754 + $0x14c] sm:$0x1]
  %v2186 = vld [vmem:[%s1754 + $0x150] sm:$0xf]
  %v2187 = vld [vmem:[%s1754 + $0x154] sm:$0xf]
  %v2188 = vld [vmem:[%s1754 + $0x158] sm:$0x1]
  %v2189 = vld [vmem:[%s1754 + $0x15c] sm:$0xf]
  %v2190 = vld [vmem:[%s1754 + $0x160] sm:$0xf]
  %v2191 = vld [vmem:[%s1754 + $0x164] sm:$0x1]
  %v2192 = vld [vmem:[%s1754 + $0x168] sm:$0xf]
  %v2193 = vld [vmem:[%s1754 + $0x16c] sm:$0xf]
  %v2194 = vld [vmem:[%s1754 + $0x170] sm:$0x1]
  %v2195 = vld [vmem:[%s1754 + $0x174] sm:$0xf]
  %v2196 = vld [vmem:[%s1754 + $0x178] sm:$0xf]
  %v2197 = vld [vmem:[%s1754 + $0x17c] sm:$0x1]
  %v2198 = vld [vmem:[%s1754 + $0x180] sm:$0xf]
  %v2199 = vld [vmem:[%s1754 + $0x184] sm:$0xf]
  %v2200 = vld [vmem:[%s1754 + $0x188] sm:$0x1]
  %v2201 = vld [vmem:[%s1754 + $0x18c] sm:$0xf]
  %v2202 = vld [vmem:[%s1754 + $0x190] sm:$0xf]
  %v2203 = vld [vmem:[%s1754 + $0x194] sm:$0x1]
  %v2300 = vunpack.c.l.b16 %v2108
  %v2301 = vunpack.c.l.b16 %v2109
  %v2302 = vunpack.c.l.b16 %v2110
  %v2303 = vunpack.c.l.b16 %v2111
  %v2304 = vunpack.c.l.b16 %v2112
  %v2305 = vunpack.c.l.b16 %v2113
  %v2306 = vunpack.c.l.b16 %v2114
  %v2307 = vunpack.c.l.b16 %v2115
  %v2308 = vunpack.c.l.b16 %v2116
  %v2309 = vunpack.c.l.b16 %v2117
  %v2310 = vunpack.c.l.b16 %v2118
  %v2311 = vunpack.c.l.b16 %v2119
  %v2312 = vunpack.c.l.b16 %v2120
  %v2313 = vunpack.c.l.b16 %v2121
  %v2314 = vunpack.c.l.b16 %v2122
  %v2315 = vunpack.c.l.b16 %v2123
  %v2316 = vunpack.c.l.b16 %v2124
  %v2317 = vunpack.c.l.b16 %v2125
  %v2318 = vunpack.c.l.b16 %v2126
  %v2319 = vunpack.c.l.b16 %v2127
  %v2320 = vunpack.c.l.b16 %v2128
  %v2321 = vunpack.c.l.b16 %v2129
  %v2322 = vunpack.c.l.b16 %v2130
  %v2323 = vunpack.c.l.b16 %v2131
  %v2324 = vunpack.c.l.b16 %v2132
  %v2325 = vunpack.c.l.b16 %v2133
  %v2326 = vunpack.c.l.b16 %v2134
  %v2327 = vunpack.c.l.b16 %v2135
  %v2328 = vunpack.c.l.b16 %v2136
  %v2329 = vunpack.c.l.b16 %v2137
  %v2330 = vunpack.c.l.b16 %v2138
  %v2331 = vunpack.c.l.b16 %v2139
  %v2332 = vunpack.c.l.b16 %v2140
  %v2333 = vunpack.c.l.b16 %v2141
  %v2334 = vunpack.c.l.b16 %v2142
  %v2335 = vunpack.c.l.b16 %v2143
  %v2336 = vunpack.c.l.b16 %v2144
  %v2337 = vunpack.c.l.b16 %v2145
  %v2338 = vunpack.c.l.b16 %v2146
  %v2339 = vunpack.c.l.b16 %v2147
  %v2340 = vunpack.c.l.b16 %v2148
  %v2341 = vunpack.c.l.b16 %v2149
  %v2342 = vunpack.c.l.b16 %v2150
  %v2343 = vunpack.c.l.b16 %v2151
  %v2344 = vunpack.c.l.b16 %v2152
  %v2345 = vunpack.c.l.b16 %v2153
  %v2346 = vunpack.c.l.b16 %v2154
  %v2347 = vunpack.c.l.b16 %v2155
  %v2348 = vunpack.c.l.b16 %v2156
  %v2349 = vunpack.c.l.b16 %v2157
  %v2350 = vunpack.c.l.b16 %v2158
  %v2351 = vunpack.c.l.b16 %v2159
  %v2352 = vunpack.c.l.b16 %v2160
  %v2353 = vunpack.c.l.b16 %v2161
  %v2354 = vunpack.c.l.b16 %v2162
  %v2355 = vunpack.c.l.b16 %v2163
  %v2356 = vunpack.c.l.b16 %v2164
  %v2357 = vunpack.c.l.b16 %v2165
  %v2358 = vunpack.c.l.b16 %v2166
  %v2359 = vunpack.c.l.b16 %v2167
  %v2360 = vunpack.c.l.b16 %v2168
  %v2361 = vunpack.c.l.b16 %v2169
  %v2362 = vunpack.c.l.b16 %v2170
  %v2363 = vunpack.c.l.b16 %v2171
  %v2364 = vunpack.c.l.b16 %v2172
  %v2365 = vunpack.c.l.b16 %v2173
  %v2366 = vunpack.c.l.b16 %v2174
  %v2367 = vunpack.c.l.b16 %v2175
  %v2368 = vunpack.c.l.b16 %v2176
  %v2369 = vunpack.c.l.b16 %v2177
  %v2370 = vunpack.c.l.b16 %v2178
  %v2371 = vunpack.c.l.b16 %v2179
  %v2372 = vunpack.c.l.b16 %v2180
  %v2373 = vunpack.c.l.b16 %v2181
  %v2374 = vunpack.c.l.b16 %v2182
  %v2375 = vunpack.c.l.b16 %v2183
  %v2376 = vunpack.c.l.b16 %v2184
  %v2377 = vunpack.c.l.b16 %v2185
  %v2378 = vunpack.c.l.b16 %v2186
  %v2379 = vunpack.c.l.b16 %v2187
  %v2380 = vunpack.c.l.b16 %v2188
  %v2381 = vunpack.c.l.b16 %v2189
  %v2382 = vunpack.c.l.b16 %v2190
  %v2383 = vunpack.c.l.b16 %v2191
  %v2384 = vunpack.c.l.b16 %v2192
  %v2385 = vunpack.c.l.b16 %v2193
  %v2386 = vunpack.c.l.b16 %v2194
  %v2387 = vunpack.c.l.b16 %v2195
  %v2388 = vunpack.c.l.b16 %v2196
  %v2389 = vunpack.c.l.b16 %v2197
  %v2390 = vunpack.c.l.b16 %v2198
  %v2391 = vunpack.c.l.b16 %v2199
  %v2392 = vunpack.c.l.b16 %v2200
  %v2393 = vunpack.c.l.b16 %v2201
  %v2394 = vunpack.c.l.b16 %v2202
  %v2395 = vunpack.c.l.b16 %v2203
  %v2396 = vpack.c.b16 %v2301, %v2300
  %v2397 = vpack.c.b16 %v2302, %v2302
  %v2398 = vpack.c.b16 %v2304, %v2303
  %v2399 = vpack.c.b16 %v2305, %v2305
  %v2400 = vpack.c.b16 %v2307, %v2306
  %v2401 = vpack.c.b16 %v2308, %v2308
  %v2402 = vpack.c.b16 %v2310, %v2309
  %v2403 = vpack.c.b16 %v2311, %v2311
  %v2404 = vpack.c.b16 %v2313, %v2312
  %v2405 = vpack.c.b16 %v2314, %v2314
  %v2406 = vpack.c.b16 %v2316, %v2315
  %v2407 = vpack.c.b16 %v2317, %v2317
  %v2408 = vpack.c.b16 %v2319, %v2318
  %v2409 = vpack.c.b16 %v2320, %v2320
  %v2410 = vpack.c.b16 %v2322, %v2321
  %v2411 = vpack.c.b16 %v2323, %v2323
  %v2412 = vpack.c.b16 %v2325, %v2324
  %v2413 = vpack.c.b16 %v2326, %v2326
  %v2414 = vpack.c.b16 %v2328, %v2327
  %v2415 = vpack.c.b16 %v2329, %v2329
  %v2416 = vpack.c.b16 %v2331, %v2330
  %v2417 = vpack.c.b16 %v2332, %v2332
  %v2418 = vpack.c.b16 %v2334, %v2333
  %v2419 = vpack.c.b16 %v2335, %v2335
  %v2420 = vpack.c.b16 %v2337, %v2336
  %v2421 = vpack.c.b16 %v2338, %v2338
  %v2422 = vpack.c.b16 %v2340, %v2339
  %v2423 = vpack.c.b16 %v2341, %v2341
  %v2424 = vpack.c.b16 %v2343, %v2342
  %v2425 = vpack.c.b16 %v2344, %v2344
  %v2426 = vpack.c.b16 %v2346, %v2345
  %v2427 = vpack.c.b16 %v2347, %v2347
  %v2428 = vpack.c.b16 %v2349, %v2348
  %v2429 = vpack.c.b16 %v2350, %v2350
  %v2430 = vpack.c.b16 %v2352, %v2351
  %v2431 = vpack.c.b16 %v2353, %v2353
  %v2432 = vpack.c.b16 %v2355, %v2354
  %v2433 = vpack.c.b16 %v2356, %v2356
  %v2434 = vpack.c.b16 %v2358, %v2357
  %v2435 = vpack.c.b16 %v2359, %v2359
  %v2436 = vpack.c.b16 %v2361, %v2360
  %v2437 = vpack.c.b16 %v2362, %v2362
  %v2438 = vpack.c.b16 %v2364, %v2363
  %v2439 = vpack.c.b16 %v2365, %v2365
  %v2440 = vpack.c.b16 %v2367, %v2366
  %v2441 = vpack.c.b16 %v2368, %v2368
  %v2442 = vpack.c.b16 %v2370, %v2369
  %v2443 = vpack.c.b16 %v2371, %v2371
  %v2444 = vpack.c.b16 %v2373, %v2372
  %v2445 = vpack.c.b16 %v2374, %v2374
  %v2446 = vpack.c.b16 %v2376, %v2375
  %v2447 = vpack.c.b16 %v2377, %v2377
  %v2448 = vpack.c.b16 %v2379, %v2378
  %v2449 = vpack.c.b16 %v2380, %v2380
  %v2450 = vpack.c.b16 %v2382, %v2381
  %v2451 = vpack.c.b16 %v2383, %v2383
  %v2452 = vpack.c.b16 %v2385, %v2384
  %v2453 = vpack.c.b16 %v2386, %v2386
  %v2454 = vpack.c.b16 %v2388, %v2387
  %v2455 = vpack.c.b16 %v2389, %v2389
  %v2456 = vpack.c.b16 %v2391, %v2390
  %v2457 = vpack.c.b16 %v2392, %v2392
  %v2458 = vpack.c.b16 %v2394, %v2393
  %v2459 = vpack.c.b16 %v2395, %v2395
  %v2461 = vshrl.u32 %v2396, 16
  %v2463 = vshll.u32 %v2396, 16
  %v2465 = vrot.slane %v2463, 1
  %v2466 = vor.u32 %v2461, %v2465
  %v2468 = vshll.u32 %v2397, 16
  %v2470 = vrot.slane %v2468, 1
  %v2471 = vsel %vm662, %v2466, %v2470
  %v2473 = vshrl.u32 %v2398, 16
  %v2475 = vshll.u32 %v2398, 16
  %v2477 = vrot.slane %v2475, 1
  %v2478 = vor.u32 %v2473, %v2477
  %v2480 = vshll.u32 %v2399, 16
  %v2482 = vrot.slane %v2480, 1
  %v2483 = vsel %vm662, %v2478, %v2482
  %v2485 = vshrl.u32 %v2400, 16
  %v2487 = vshll.u32 %v2400, 16
  %v2489 = vrot.slane %v2487, 1
  %v2490 = vor.u32 %v2485, %v2489
  %v2492 = vshll.u32 %v2401, 16
  %v2494 = vrot.slane %v2492, 1
  %v2495 = vsel %vm662, %v2490, %v2494
  %v2497 = vshrl.u32 %v2402, 16
  %v2499 = vshll.u32 %v2402, 16
  %v2501 = vrot.slane %v2499, 1
  %v2502 = vor.u32 %v2497, %v2501
  %v2504 = vshll.u32 %v2403, 16
  %v2506 = vrot.slane %v2504, 1
  %v2507 = vsel %vm662, %v2502, %v2506
  %v2509 = vshrl.u32 %v2404, 16
  %v2511 = vshll.u32 %v2404, 16
  %v2513 = vrot.slane %v2511, 1
  %v2514 = vor.u32 %v2509, %v2513
  %v2516 = vshll.u32 %v2405, 16
  %v2518 = vrot.slane %v2516, 1
  %v2519 = vsel %vm662, %v2514, %v2518
  %v2521 = vshrl.u32 %v2406, 16
  %v2523 = vshll.u32 %v2406, 16
  %v2525 = vrot.slane %v2523, 1
  %v2526 = vor.u32 %v2521, %v2525
  %v2528 = vshll.u32 %v2407, 16
  %v2530 = vrot.slane %v2528, 1
  %v2531 = vsel %vm662, %v2526, %v2530
  %v2533 = vshrl.u32 %v2408, 16
  %v2535 = vshll.u32 %v2408, 16
  %v2537 = vrot.slane %v2535, 1
  %v2538 = vor.u32 %v2533, %v2537
  %v2540 = vshll.u32 %v2409, 16
  %v2542 = vrot.slane %v2540, 1
  %v2543 = vsel %vm662, %v2538, %v2542
  %v2545 = vshrl.u32 %v2410, 16
  %v2547 = vshll.u32 %v2410, 16
  %v2549 = vrot.slane %v2547, 1
  %v2550 = vor.u32 %v2545, %v2549
  %v2552 = vshll.u32 %v2411, 16
  %v2554 = vrot.slane %v2552, 1
  %v2555 = vsel %vm662, %v2550, %v2554
  %v2557 = vshrl.u32 %v2412, 16
  %v2559 = vshll.u32 %v2412, 16
  %v2561 = vrot.slane %v2559, 1
  %v2562 = vor.u32 %v2557, %v2561
  %v2564 = vshll.u32 %v2413, 16
  %v2566 = vrot.slane %v2564, 1
  %v2567 = vsel %vm662, %v2562, %v2566
  %v2569 = vshrl.u32 %v2414, 16
  %v2571 = vshll.u32 %v2414, 16
  %v2573 = vrot.slane %v2571, 1
  %v2574 = vor.u32 %v2569, %v2573
  %v2576 = vshll.u32 %v2415, 16
  %v2578 = vrot.slane %v2576, 1
  %v2579 = vsel %vm662, %v2574, %v2578
  %v2581 = vshrl.u32 %v2416, 16
  %v2583 = vshll.u32 %v2416, 16
  %v2585 = vrot.slane %v2583, 1
  %v2586 = vor.u32 %v2581, %v2585
  %v2588 = vshll.u32 %v2417, 16
  %v2590 = vrot.slane %v2588, 1
  %v2591 = vsel %vm662, %v2586, %v2590
  %v2593 = vshrl.u32 %v2418, 16
  %v2595 = vshll.u32 %v2418, 16
  %v2597 = vrot.slane %v2595, 1
  %v2598 = vor.u32 %v2593, %v2597
  %v2600 = vshll.u32 %v2419, 16
  %v2602 = vrot.slane %v2600, 1
  %v2603 = vsel %vm662, %v2598, %v2602
  %v2605 = vshrl.u32 %v2420, 16
  %v2607 = vshll.u32 %v2420, 16
  %v2609 = vrot.slane %v2607, 1
  %v2610 = vor.u32 %v2605, %v2609
  %v2612 = vshll.u32 %v2421, 16
  %v2614 = vrot.slane %v2612, 1
  %v2615 = vsel %vm662, %v2610, %v2614
  %v2617 = vshrl.u32 %v2422, 16
  %v2619 = vshll.u32 %v2422, 16
  %v2621 = vrot.slane %v2619, 1
  %v2622 = vor.u32 %v2617, %v2621
  %v2624 = vshll.u32 %v2423, 16
  %v2626 = vrot.slane %v2624, 1
  %v2627 = vsel %vm662, %v2622, %v2626
  %v2629 = vshrl.u32 %v2424, 16
  %v2631 = vshll.u32 %v2424, 16
  %v2633 = vrot.slane %v2631, 1
  %v2634 = vor.u32 %v2629, %v2633
  %v2636 = vshll.u32 %v2425, 16
  %v2638 = vrot.slane %v2636, 1
  %v2639 = vsel %vm662, %v2634, %v2638
  %v2641 = vshrl.u32 %v2426, 16
  %v2643 = vshll.u32 %v2426, 16
  %v2645 = vrot.slane %v2643, 1
  %v2646 = vor.u32 %v2641, %v2645
  %v2648 = vshll.u32 %v2427, 16
  %v2650 = vrot.slane %v2648, 1
  %v2651 = vsel %vm662, %v2646, %v2650
  %v2653 = vshrl.u32 %v2428, 16
  %v2655 = vshll.u32 %v2428, 16
  %v2657 = vrot.slane %v2655, 1
  %v2658 = vor.u32 %v2653, %v2657
  %v2660 = vshll.u32 %v2429, 16
  %v2662 = vrot.slane %v2660, 1
  %v2663 = vsel %vm662, %v2658, %v2662
  %v2665 = vshrl.u32 %v2430, 16
  %v2667 = vshll.u32 %v2430, 16
  %v2669 = vrot.slane %v2667, 1
  %v2670 = vor.u32 %v2665, %v2669
  %v2672 = vshll.u32 %v2431, 16
  %v2674 = vrot.slane %v2672, 1
  %v2675 = vsel %vm662, %v2670, %v2674
  %v2677 = vshrl.u32 %v2432, 16
  %v2679 = vshll.u32 %v2432, 16
  %v2681 = vrot.slane %v2679, 1
  %v2682 = vor.u32 %v2677, %v2681
  %v2684 = vshll.u32 %v2433, 16
  %v2686 = vrot.slane %v2684, 1
  %v2687 = vsel %vm662, %v2682, %v2686
  %v2689 = vshrl.u32 %v2434, 16
  %v2691 = vshll.u32 %v2434, 16
  %v2693 = vrot.slane %v2691, 1
  %v2694 = vor.u32 %v2689, %v2693
  %v2696 = vshll.u32 %v2435, 16
  %v2698 = vrot.slane %v2696, 1
  %v2699 = vsel %vm662, %v2694, %v2698
  %v2701 = vshrl.u32 %v2436, 16
  %v2703 = vshll.u32 %v2436, 16
  %v2705 = vrot.slane %v2703, 1
  %v2706 = vor.u32 %v2701, %v2705
  %v2708 = vshll.u32 %v2437, 16
  %v2710 = vrot.slane %v2708, 1
  %v2711 = vsel %vm662, %v2706, %v2710
  %v2713 = vshrl.u32 %v2438, 16
  %v2715 = vshll.u32 %v2438, 16
  %v2717 = vrot.slane %v2715, 1
  %v2718 = vor.u32 %v2713, %v2717
  %v2720 = vshll.u32 %v2439, 16
  %v2722 = vrot.slane %v2720, 1
  %v2723 = vsel %vm662, %v2718, %v2722
  %v2725 = vshrl.u32 %v2440, 16
  %v2727 = vshll.u32 %v2440, 16
  %v2729 = vrot.slane %v2727, 1
  %v2730 = vor.u32 %v2725, %v2729
  %v2732 = vshll.u32 %v2441, 16
  %v2734 = vrot.slane %v2732, 1
  %v2735 = vsel %vm662, %v2730, %v2734
  %v2737 = vshrl.u32 %v2442, 16
  %v2739 = vshll.u32 %v2442, 16
  %v2741 = vrot.slane %v2739, 1
  %v2742 = vor.u32 %v2737, %v2741
  %v2744 = vshll.u32 %v2443, 16
  %v2746 = vrot.slane %v2744, 1
  %v2747 = vsel %vm662, %v2742, %v2746
  %v2749 = vshrl.u32 %v2444, 16
  %v2751 = vshll.u32 %v2444, 16
  %v2753 = vrot.slane %v2751, 1
  %v2754 = vor.u32 %v2749, %v2753
  %v2756 = vshll.u32 %v2445, 16
  %v2758 = vrot.slane %v2756, 1
  %v2759 = vsel %vm662, %v2754, %v2758
  %v2761 = vshrl.u32 %v2446, 16
  %v2763 = vshll.u32 %v2446, 16
  %v2765 = vrot.slane %v2763, 1
  %v2766 = vor.u32 %v2761, %v2765
  %v2768 = vshll.u32 %v2447, 16
  %v2770 = vrot.slane %v2768, 1
  %v2771 = vsel %vm662, %v2766, %v2770
  %v2773 = vshrl.u32 %v2448, 16
  %v2775 = vshll.u32 %v2448, 16
  %v2777 = vrot.slane %v2775, 1
  %v2778 = vor.u32 %v2773, %v2777
  %v2780 = vshll.u32 %v2449, 16
  %v2782 = vrot.slane %v2780, 1
  %v2783 = vsel %vm662, %v2778, %v2782
  %v2785 = vshrl.u32 %v2450, 16
  %v2787 = vshll.u32 %v2450, 16
  %v2789 = vrot.slane %v2787, 1
  %v2790 = vor.u32 %v2785, %v2789
  %v2792 = vshll.u32 %v2451, 16
  %v2794 = vrot.slane %v2792, 1
  %v2795 = vsel %vm662, %v2790, %v2794
  %v2797 = vshrl.u32 %v2452, 16
  %v2799 = vshll.u32 %v2452, 16
  %v2801 = vrot.slane %v2799, 1
  %v2802 = vor.u32 %v2797, %v2801
  %v2804 = vshll.u32 %v2453, 16
  %v2806 = vrot.slane %v2804, 1
  %v2807 = vsel %vm662, %v2802, %v2806
  %v2809 = vshrl.u32 %v2454, 16
  %v2811 = vshll.u32 %v2454, 16
  %v2813 = vrot.slane %v2811, 1
  %v2814 = vor.u32 %v2809, %v2813
  %v2816 = vshll.u32 %v2455, 16
  %v2818 = vrot.slane %v2816, 1
  %v2819 = vsel %vm662, %v2814, %v2818
  %v2821 = vshrl.u32 %v2456, 16
  %v2823 = vshll.u32 %v2456, 16
  %v2825 = vrot.slane %v2823, 1
  %v2826 = vor.u32 %v2821, %v2825
  %v2828 = vshll.u32 %v2457, 16
  %v2830 = vrot.slane %v2828, 1
  %v2831 = vsel %vm662, %v2826, %v2830
  %v2833 = vshrl.u32 %v2458, 16
  %v2835 = vshll.u32 %v2458, 16
  %v2837 = vrot.slane %v2835, 1
  %v2838 = vor.u32 %v2833, %v2837
  %v2840 = vshll.u32 %v2459, 16
  %v2842 = vrot.slane %v2840, 1
  %v2843 = vsel %vm662, %v2838, %v2842
  %2844 = vrot.lane.b32.xlu0 %v2471, 48
  %v2845 = vpop.permute.xlu0 %2844
  %2846 = vrot.lane.b32.xlu0 %v2483, 48
  %v2847 = vpop.permute.xlu0 %2846
  %2848 = vrot.lane.b32.xlu0 %v2495, 48
  %v2849 = vpop.permute.xlu0 %2848
  %2850 = vrot.lane.b32.xlu0 %v2507, 48
  %v2851 = vpop.permute.xlu0 %2850
  %2852 = vrot.lane.b32.xlu0 %v2519, 48
  %v2853 = vpop.permute.xlu0 %2852
  %2854 = vrot.lane.b32.xlu0 %v2531, 48
  %v2855 = vpop.permute.xlu0 %2854
  %2856 = vrot.lane.b32.xlu0 %v2543, 48
  %v2857 = vpop.permute.xlu0 %2856
  %2858 = vrot.lane.b32.xlu0 %v2555, 48
  %v2859 = vpop.permute.xlu0 %2858
  %2860 = vrot.lane.b32.xlu0 %v2567, 48
  %v2861 = vpop.permute.xlu0 %2860
  %2862 = vrot.lane.b32.xlu0 %v2579, 48
  %v2863 = vpop.permute.xlu0 %2862
  %2864 = vrot.lane.b32.xlu0 %v2591, 48
  %v2865 = vpop.permute.xlu0 %2864
  %2866 = vrot.lane.b32.xlu0 %v2603, 48
  %v2867 = vpop.permute.xlu0 %2866
  %2868 = vrot.lane.b32.xlu0 %v2615, 48
  %v2869 = vpop.permute.xlu0 %2868
  %2870 = vrot.lane.b32.xlu0 %v2627, 48
  %v2871 = vpop.permute.xlu0 %2870
  %2872 = vrot.lane.b32.xlu0 %v2639, 48
  %v2873 = vpop.permute.xlu0 %2872
  %2874 = vrot.lane.b32.xlu0 %v2651, 48
  %v2875 = vpop.permute.xlu0 %2874
  %2876 = vrot.lane.b32.xlu0 %v2663, 48
  %v2877 = vpop.permute.xlu0 %2876
  %2878 = vrot.lane.b32.xlu0 %v2675, 48
  %v2879 = vpop.permute.xlu0 %2878
  %2880 = vrot.lane.b32.xlu0 %v2687, 48
  %v2881 = vpop.permute.xlu0 %2880
  %2882 = vrot.lane.b32.xlu0 %v2699, 48
  %v2883 = vpop.permute.xlu0 %2882
  %2884 = vrot.lane.b32.xlu0 %v2711, 48
  %v2885 = vpop.permute.xlu0 %2884
  %2886 = vrot.lane.b32.xlu0 %v2723, 48
  %v2887 = vpop.permute.xlu0 %2886
  %2888 = vrot.lane.b32.xlu0 %v2735, 48
  %v2889 = vpop.permute.xlu0 %2888
  %2890 = vrot.lane.b32.xlu0 %v2747, 48
  %v2891 = vpop.permute.xlu0 %2890
  %2892 = vrot.lane.b32.xlu0 %v2759, 48
  %v2893 = vpop.permute.xlu0 %2892
  %2894 = vrot.lane.b32.xlu0 %v2771, 48
  %v2895 = vpop.permute.xlu0 %2894
  %2896 = vrot.lane.b32.xlu0 %v2783, 48
  %v2897 = vpop.permute.xlu0 %2896
  %2898 = vrot.lane.b32.xlu0 %v2795, 48
  %v2899 = vpop.permute.xlu0 %2898
  %2900 = vrot.lane.b32.xlu0 %v2807, 48
  %v2901 = vpop.permute.xlu0 %2900
  %2902 = vrot.lane.b32.xlu0 %v2819, 48
  %v2903 = vpop.permute.xlu0 %2902
  %2904 = vrot.lane.b32.xlu0 %v2831, 48
  %v2905 = vpop.permute.xlu0 %2904
  %2906 = vrot.lane.b32.xlu0 %v2843, 48
  %v2907 = vpop.permute.xlu0 %2906
  %vm2940 = vcmask 490880
  %2941 = vst.msk [vmem:[#allocation2] sm:$0xff] %vm2940, %v2845
  %2942 = vst.msk [vmem:[#allocation2 + $0x8] sm:$0xff] %vm2940, %v2847
  %2943 = vst.msk [vmem:[#allocation2 + $0x10] sm:$0xff] %vm2940, %v2849
  %2944 = vst.msk [vmem:[#allocation2 + $0x18] sm:$0xff] %vm2940, %v2851
  %2945 = vst.msk [vmem:[#allocation2 + $0x20] sm:$0xff] %vm2940, %v2853
  %2946 = vst.msk [vmem:[#allocation2 + $0x28] sm:$0xff] %vm2940, %v2855
  %2947 = vst.msk [vmem:[#allocation2 + $0x30] sm:$0xff] %vm2940, %v2857
  %2948 = vst.msk [vmem:[#allocation2 + $0x38] sm:$0xff] %vm2940, %v2859
  %2949 = vst.msk [vmem:[#allocation2 + $0x40] sm:$0xff] %vm2940, %v2861
  %2950 = vst.msk [vmem:[#allocation2 + $0x48] sm:$0xff] %vm2940, %v2863
  %2951 = vst.msk [vmem:[#allocation2 + $0x50] sm:$0xff] %vm2940, %v2865
  %2952 = vst.msk [vmem:[#allocation2 + $0x58] sm:$0xff] %vm2940, %v2867
  %2953 = vst.msk [vmem:[#allocation2 + $0x60] sm:$0xff] %vm2940, %v2869
  %2954 = vst.msk [vmem:[#allocation2 + $0x68] sm:$0xff] %vm2940, %v2871
  %2955 = vst.msk [vmem:[#allocation2 + $0x70] sm:$0xff] %vm2940, %v2873
  %2956 = vst.msk [vmem:[#allocation2 + $0x78] sm:$0xff] %vm2940, %v2875
  %2957 = vst.msk [vmem:[#allocation2 + $0x80] sm:$0xff] %vm2940, %v2877
  %2958 = vst.msk [vmem:[#allocation2 + $0x88] sm:$0xff] %vm2940, %v2879
  %2959 = vst.msk [vmem:[#allocation2 + $0x90] sm:$0xff] %vm2940, %v2881
  %2960 = vst.msk [vmem:[#allocation2 + $0x98] sm:$0xff] %vm2940, %v2883
  %2961 = vst.msk [vmem:[#allocation2 + $0xa0] sm:$0xff] %vm2940, %v2885
  %2962 = vst.msk [vmem:[#allocation2 + $0xa8] sm:$0xff] %vm2940, %v2887
  %2963 = vst.msk [vmem:[#allocation2 + $0xb0] sm:$0xff] %vm2940, %v2889
  %2964 = vst.msk [vmem:[#allocation2 + $0xb8] sm:$0xff] %vm2940, %v2891
  %2965 = vst.msk [vmem:[#allocation2 + $0xc0] sm:$0xff] %vm2940, %v2893
  %2966 = vst.msk [vmem:[#allocation2 + $0xc8] sm:$0xff] %vm2940, %v2895
  %2967 = vst.msk [vmem:[#allocation2 + $0xd0] sm:$0xff] %vm2940, %v2897
  %2968 = vst.msk [vmem:[#allocation2 + $0xd8] sm:$0xff] %vm2940, %v2899
  %2969 = vst.msk [vmem:[#allocation2 + $0xe0] sm:$0xff] %vm2940, %v2901
  %2970 = vst.msk [vmem:[#allocation2 + $0xe8] sm:$0xff] %vm2940, %v2903
  %2971 = vst.msk [vmem:[#allocation2 + $0xf0] sm:$0xff] %vm2940, %v2905
  %2972 = vst.msk [vmem:[#allocation2 + $0xf8] sm:$0xff] %vm2940, %v2907
  %v2973 = vld [vmem:[%s1754] sm:$0xe]
  %v2974 = vld [vmem:[%s1754 + $0x4] sm:$0xf]
  %v2975 = vld [vmem:[%s1754 + $0x8] sm:$0x1]
  %v2976 = vld [vmem:[%s1754 + $0xc] sm:$0xe]
  %v2977 = vld [vmem:[%s1754 + $0x10] sm:$0xf]
  %v2978 = vld [vmem:[%s1754 + $0x14] sm:$0x1]
  %v2979 = vld [vmem:[%s1754 + $0x18] sm:$0xe]
  %v2980 = vld [vmem:[%s1754 + $0x1c] sm:$0xf]
  %v2981 = vld [vmem:[%s1754 + $0x20] sm:$0x1]
  %v2982 = vld [vmem:[%s1754 + $0x24] sm:$0xe]
  %v2983 = vld [vmem:[%s1754 + $0x28] sm:$0xf]
  %v2984 = vld [vmem:[%s1754 + $0x2c] sm:$0x1]
  %v2985 = vld [vmem:[%s1754 + $0x30] sm:$0xe]
  %v2986 = vld [vmem:[%s1754 + $0x34] sm:$0xf]
  %v2987 = vld [vmem:[%s1754 + $0x38] sm:$0x1]
  %v2988 = vld [vmem:[%s1754 + $0x3c] sm:$0xe]
  %v2989 = vld [vmem:[%s1754 + $0x40] sm:$0xf]
  %v2990 = vld [vmem:[%s1754 + $0x44] sm:$0x1]
  %v2991 = vld [vmem:[%s1754 + $0x48] sm:$0xe]
  %v2992 = vld [vmem:[%s1754 + $0x4c] sm:$0xf]
  %v2993 = vld [vmem:[%s1754 + $0x50] sm:$0x1]
  %v2994 = vld [vmem:[%s1754 + $0x54] sm:$0xe]
  %v2995 = vld [vmem:[%s1754 + $0x58] sm:$0xf]
  %v2996 = vld [vmem:[%s1754 + $0x5c] sm:$0x1]
  %v2997 = vld [vmem:[%s1754 + $0x60] sm:$0xe]
  %v2998 = vld [vmem:[%s1754 + $0x64] sm:$0xf]
  %v2999 = vld [vmem:[%s1754 + $0x68] sm:$0x1]
  %v3000 = vld [vmem:[%s1754 + $0x6c] sm:$0xe]
  %v3001 = vld [vmem:[%s1754 + $0x70] sm:$0xf]
  %v3002 = vld [vmem:[%s1754 + $0x74] sm:$0x1]
  %v3003 = vld [vmem:[%s1754 + $0x78] sm:$0xe]
  %v3004 = vld [vmem:[%s1754 + $0x7c] sm:$0xf]
  %v3005 = vld [vmem:[%s1754 + $0x80] sm:$0x1]
  %v3006 = vld [vmem:[%s1754 + $0x84] sm:$0xe]
  %v3007 = vld [vmem:[%s1754 + $0x88] sm:$0xf]
  %v3008 = vld [vmem:[%s1754 + $0x8c] sm:$0x1]
  %v3009 = vld [vmem:[%s1754 + $0x90] sm:$0xe]
  %v3010 = vld [vmem:[%s1754 + $0x94] sm:$0xf]
  %v3011 = vld [vmem:[%s1754 + $0x98] sm:$0x1]
  %v3012 = vld [vmem:[%s1754 + $0x9c] sm:$0xe]
  %v3013 = vld [vmem:[%s1754 + $0xa0] sm:$0xf]
  %v3014 = vld [vmem:[%s1754 + $0xa4] sm:$0x1]
  %v3015 = vld [vmem:[%s1754 + $0xa8] sm:$0xe]
  %v3016 = vld [vmem:[%s1754 + $0xac] sm:$0xf]
  %v3017 = vld [vmem:[%s1754 + $0xb0] sm:$0x1]
  %v3018 = vld [vmem:[%s1754 + $0xb4] sm:$0xe]
  %v3019 = vld [vmem:[%s1754 + $0xb8] sm:$0xf]
  %v3020 = vld [vmem:[%s1754 + $0xbc] sm:$0x1]
  %v3021 = vld [vmem:[%s1754 + $0xd8] sm:$0xe]
  %v3022 = vld [vmem:[%s1754 + $0xdc] sm:$0xf]
  %v3023 = vld [vmem:[%s1754 + $0xe0] sm:$0x1]
  %v3024 = vld [vmem:[%s1754 + $0xe4] sm:$0xe]
  %v3025 = vld [vmem:[%s1754 + $0xe8] sm:$0xf]
  %v3026 = vld [vmem:[%s1754 + $0xec] sm:$0x1]
  %v3027 = vld [vmem:[%s1754 + $0xf0] sm:$0xe]
  %v3028 = vld [vmem:[%s1754 + $0xf4] sm:$0xf]
  %v3029 = vld [vmem:[%s1754 + $0xf8] sm:$0x1]
  %v3030 = vld [vmem:[%s1754 + $0xfc] sm:$0xe]
  %v3031 = vld [vmem:[%s1754 + $0x100] sm:$0xf]
  %v3032 = vld [vmem:[%s1754 + $0x104] sm:$0x1]
  %v3033 = vld [vmem:[%s1754 + $0x108] sm:$0xe]
  %v3034 = vld [vmem:[%s1754 + $0x10c] sm:$0xf]
  %v3035 = vld [vmem:[%s1754 + $0x110] sm:$0x1]
  %v3036 = vld [vmem:[%s1754 + $0x114] sm:$0xe]
  %v3037 = vld [vmem:[%s1754 + $0x118] sm:$0xf]
  %v3038 = vld [vmem:[%s1754 + $0x11c] sm:$0x1]
  %v3039 = vld [vmem:[%s1754 + $0x120] sm:$0xe]
  %v3040 = vld [vmem:[%s1754 + $0x124] sm:$0xf]
  %v3041 = vld [vmem:[%s1754 + $0x128] sm:$0x1]
  %v3042 = vld [vmem:[%s1754 + $0x12c] sm:$0xe]
  %v3043 = vld [vmem:[%s1754 + $0x130] sm:$0xf]
  %v3044 = vld [vmem:[%s1754 + $0x134] sm:$0x1]
  %v3045 = vld [vmem:[%s1754 + $0x138] sm:$0xe]
  %v3046 = vld [vmem:[%s1754 + $0x13c] sm:$0xf]
  %v3047 = vld [vmem:[%s1754 + $0x140] sm:$0x1]
  %v3048 = vld [vmem:[%s1754 + $0x144] sm:$0xe]
  %v3049 = vld [vmem:[%s1754 + $0x148] sm:$0xf]
  %v3050 = vld [vmem:[%s1754 + $0x14c] sm:$0x1]
  %v3051 = vld [vmem:[%s1754 + $0x150] sm:$0xe]
  %v3052 = vld [vmem:[%s1754 + $0x154] sm:$0xf]
  %v3053 = vld [vmem:[%s1754 + $0x158] sm:$0x1]
  %v3054 = vld [vmem:[%s1754 + $0x15c] sm:$0xe]
  %v3055 = vld [vmem:[%s1754 + $0x160] sm:$0xf]
  %v3056 = vld [vmem:[%s1754 + $0x164] sm:$0x1]
  %v3057 = vld [vmem:[%s1754 + $0x168] sm:$0xe]
  %v3058 = vld [vmem:[%s1754 + $0x16c] sm:$0xf]
  %v3059 = vld [vmem:[%s1754 + $0x170] sm:$0x1]
  %v3060 = vld [vmem:[%s1754 + $0x174] sm:$0xe]
  %v3061 = vld [vmem:[%s1754 + $0x178] sm:$0xf]
  %v3062 = vld [vmem:[%s1754 + $0x17c] sm:$0x1]
  %v3063 = vld [vmem:[%s1754 + $0x180] sm:$0xe]
  %v3064 = vld [vmem:[%s1754 + $0x184] sm:$0xf]
  %v3065 = vld [vmem:[%s1754 + $0x188] sm:$0x1]
  %v3066 = vld [vmem:[%s1754 + $0x18c] sm:$0xe]
  %v3067 = vld [vmem:[%s1754 + $0x190] sm:$0xf]
  %v3068 = vld [vmem:[%s1754 + $0x194] sm:$0x1]
  %v3165 = vunpack.c.l.b16 %v2973
  %v3166 = vunpack.c.l.b16 %v2974
  %v3167 = vunpack.c.l.b16 %v2975
  %v3168 = vunpack.c.l.b16 %v2976
  %v3169 = vunpack.c.l.b16 %v2977
  %v3170 = vunpack.c.l.b16 %v2978
  %v3171 = vunpack.c.l.b16 %v2979
  %v3172 = vunpack.c.l.b16 %v2980
  %v3173 = vunpack.c.l.b16 %v2981
  %v3174 = vunpack.c.l.b16 %v2982
  %v3175 = vunpack.c.l.b16 %v2983
  %v3176 = vunpack.c.l.b16 %v2984
  %v3177 = vunpack.c.l.b16 %v2985
  %v3178 = vunpack.c.l.b16 %v2986
  %v3179 = vunpack.c.l.b16 %v2987
  %v3180 = vunpack.c.l.b16 %v2988
  %v3181 = vunpack.c.l.b16 %v2989
  %v3182 = vunpack.c.l.b16 %v2990
  %v3183 = vunpack.c.l.b16 %v2991
  %v3184 = vunpack.c.l.b16 %v2992
  %v3185 = vunpack.c.l.b16 %v2993
  %v3186 = vunpack.c.l.b16 %v2994
  %v3187 = vunpack.c.l.b16 %v2995
  %v3188 = vunpack.c.l.b16 %v2996
  %v3189 = vunpack.c.l.b16 %v2997
  %v3190 = vunpack.c.l.b16 %v2998
  %v3191 = vunpack.c.l.b16 %v2999
  %v3192 = vunpack.c.l.b16 %v3000
  %v3193 = vunpack.c.l.b16 %v3001
  %v3194 = vunpack.c.l.b16 %v3002
  %v3195 = vunpack.c.l.b16 %v3003
  %v3196 = vunpack.c.l.b16 %v3004
  %v3197 = vunpack.c.l.b16 %v3005
  %v3198 = vunpack.c.l.b16 %v3006
  %v3199 = vunpack.c.l.b16 %v3007
  %v3200 = vunpack.c.l.b16 %v3008
  %v3201 = vunpack.c.l.b16 %v3009
  %v3202 = vunpack.c.l.b16 %v3010
  %v3203 = vunpack.c.l.b16 %v3011
  %v3204 = vunpack.c.l.b16 %v3012
  %v3205 = vunpack.c.l.b16 %v3013
  %v3206 = vunpack.c.l.b16 %v3014
  %v3207 = vunpack.c.l.b16 %v3015
  %v3208 = vunpack.c.l.b16 %v3016
  %v3209 = vunpack.c.l.b16 %v3017
  %v3210 = vunpack.c.l.b16 %v3018
  %v3211 = vunpack.c.l.b16 %v3019
  %v3212 = vunpack.c.l.b16 %v3020
  %v3213 = vunpack.c.l.b16 %v3021
  %v3214 = vunpack.c.l.b16 %v3022
  %v3215 = vunpack.c.l.b16 %v3023
  %v3216 = vunpack.c.l.b16 %v3024
  %v3217 = vunpack.c.l.b16 %v3025
  %v3218 = vunpack.c.l.b16 %v3026
  %v3219 = vunpack.c.l.b16 %v3027
  %v3220 = vunpack.c.l.b16 %v3028
  %v3221 = vunpack.c.l.b16 %v3029
  %v3222 = vunpack.c.l.b16 %v3030
  %v3223 = vunpack.c.l.b16 %v3031
  %v3224 = vunpack.c.l.b16 %v3032
  %v3225 = vunpack.c.l.b16 %v3033
  %v3226 = vunpack.c.l.b16 %v3034
  %v3227 = vunpack.c.l.b16 %v3035
  %v3228 = vunpack.c.l.b16 %v3036
  %v3229 = vunpack.c.l.b16 %v3037
  %v3230 = vunpack.c.l.b16 %v3038
  %v3231 = vunpack.c.l.b16 %v3039
  %v3232 = vunpack.c.l.b16 %v3040
  %v3233 = vunpack.c.l.b16 %v3041
  %v3234 = vunpack.c.l.b16 %v3042
  %v3235 = vunpack.c.l.b16 %v3043
  %v3236 = vunpack.c.l.b16 %v3044
  %v3237 = vunpack.c.l.b16 %v3045
  %v3238 = vunpack.c.l.b16 %v3046
  %v3239 = vunpack.c.l.b16 %v3047
  %v3240 = vunpack.c.l.b16 %v3048
  %v3241 = vunpack.c.l.b16 %v3049
  %v3242 = vunpack.c.l.b16 %v3050
  %v3243 = vunpack.c.l.b16 %v3051
  %v3244 = vunpack.c.l.b16 %v3052
  %v3245 = vunpack.c.l.b16 %v3053
  %v3246 = vunpack.c.l.b16 %v3054
  %v3247 = vunpack.c.l.b16 %v3055
  %v3248 = vunpack.c.l.b16 %v3056
  %v3249 = vunpack.c.l.b16 %v3057
  %v3250 = vunpack.c.l.b16 %v3058
  %v3251 = vunpack.c.l.b16 %v3059
  %v3252 = vunpack.c.l.b16 %v3060
  %v3253 = vunpack.c.l.b16 %v3061
  %v3254 = vunpack.c.l.b16 %v3062
  %v3255 = vunpack.c.l.b16 %v3063
  %v3256 = vunpack.c.l.b16 %v3064
  %v3257 = vunpack.c.l.b16 %v3065
  %v3258 = vunpack.c.l.b16 %v3066
  %v3259 = vunpack.c.l.b16 %v3067
  %v3260 = vunpack.c.l.b16 %v3068
  %v3261 = vpack.c.b16 %v3166, %v3165
  %v3262 = vpack.c.b16 %v3167, %v3167
  %v3263 = vpack.c.b16 %v3169, %v3168
  %v3264 = vpack.c.b16 %v3170, %v3170
  %v3265 = vpack.c.b16 %v3172, %v3171
  %v3266 = vpack.c.b16 %v3173, %v3173
  %v3267 = vpack.c.b16 %v3175, %v3174
  %v3268 = vpack.c.b16 %v3176, %v3176
  %v3269 = vpack.c.b16 %v3178, %v3177
  %v3270 = vpack.c.b16 %v3179, %v3179
  %v3271 = vpack.c.b16 %v3181, %v3180
  %v3272 = vpack.c.b16 %v3182, %v3182
  %v3273 = vpack.c.b16 %v3184, %v3183
  %v3274 = vpack.c.b16 %v3185, %v3185
  %v3275 = vpack.c.b16 %v3187, %v3186
  %v3276 = vpack.c.b16 %v3188, %v3188
  %v3277 = vpack.c.b16 %v3190, %v3189
  %v3278 = vpack.c.b16 %v3191, %v3191
  %v3279 = vpack.c.b16 %v3193, %v3192
  %v3280 = vpack.c.b16 %v3194, %v3194
  %v3281 = vpack.c.b16 %v3196, %v3195
  %v3282 = vpack.c.b16 %v3197, %v3197
  %v3283 = vpack.c.b16 %v3199, %v3198
  %v3284 = vpack.c.b16 %v3200, %v3200
  %v3285 = vpack.c.b16 %v3202, %v3201
  %v3286 = vpack.c.b16 %v3203, %v3203
  %v3287 = vpack.c.b16 %v3205, %v3204
  %v3288 = vpack.c.b16 %v3206, %v3206
  %v3289 = vpack.c.b16 %v3208, %v3207
  %v3290 = vpack.c.b16 %v3209, %v3209
  %v3291 = vpack.c.b16 %v3211, %v3210
  %v3292 = vpack.c.b16 %v3212, %v3212
  %v3293 = vpack.c.b16 %v3214, %v3213
  %v3294 = vpack.c.b16 %v3215, %v3215
  %v3295 = vpack.c.b16 %v3217, %v3216
  %v3296 = vpack.c.b16 %v3218, %v3218
  %v3297 = vpack.c.b16 %v3220, %v3219
  %v3298 = vpack.c.b16 %v3221, %v3221
  %v3299 = vpack.c.b16 %v3223, %v3222
  %v3300 = vpack.c.b16 %v3224, %v3224
  %v3301 = vpack.c.b16 %v3226, %v3225
  %v3302 = vpack.c.b16 %v3227, %v3227
  %v3303 = vpack.c.b16 %v3229, %v3228
  %v3304 = vpack.c.b16 %v3230, %v3230
  %v3305 = vpack.c.b16 %v3232, %v3231
  %v3306 = vpack.c.b16 %v3233, %v3233
  %v3307 = vpack.c.b16 %v3235, %v3234
  %v3308 = vpack.c.b16 %v3236, %v3236
  %v3309 = vpack.c.b16 %v3238, %v3237
  %v3310 = vpack.c.b16 %v3239, %v3239
  %v3311 = vpack.c.b16 %v3241, %v3240
  %v3312 = vpack.c.b16 %v3242, %v3242
  %v3313 = vpack.c.b16 %v3244, %v3243
  %v3314 = vpack.c.b16 %v3245, %v3245
  %v3315 = vpack.c.b16 %v3247, %v3246
  %v3316 = vpack.c.b16 %v3248, %v3248
  %v3317 = vpack.c.b16 %v3250, %v3249
  %v3318 = vpack.c.b16 %v3251, %v3251
  %v3319 = vpack.c.b16 %v3253, %v3252
  %v3320 = vpack.c.b16 %v3254, %v3254
  %v3321 = vpack.c.b16 %v3256, %v3255
  %v3322 = vpack.c.b16 %v3257, %v3257
  %v3323 = vpack.c.b16 %v3259, %v3258
  %v3324 = vpack.c.b16 %v3260, %v3260
  %v3325 = vrot.slane %v3261, 1
  %v3326 = vrot.slane %v3262, 1
  %v3327 = vsel %vm1528, %v3325, %v3326
  %v3328 = vrot.slane %v3263, 1
  %v3329 = vrot.slane %v3264, 1
  %v3330 = vsel %vm1528, %v3328, %v3329
  %v3331 = vrot.slane %v3265, 1
  %v3332 = vrot.slane %v3266, 1
  %v3333 = vsel %vm1528, %v3331, %v3332
  %v3334 = vrot.slane %v3267, 1
  %v3335 = vrot.slane %v3268, 1
  %v3336 = vsel %vm1528, %v3334, %v3335
  %v3337 = vrot.slane %v3269, 1
  %v3338 = vrot.slane %v3270, 1
  %v3339 = vsel %vm1528, %v3337, %v3338
  %v3340 = vrot.slane %v3271, 1
  %v3341 = vrot.slane %v3272, 1
  %v3342 = vsel %vm1528, %v3340, %v3341
  %v3343 = vrot.slane %v3273, 1
  %v3344 = vrot.slane %v3274, 1
  %v3345 = vsel %vm1528, %v3343, %v3344
  %v3346 = vrot.slane %v3275, 1
  %v3347 = vrot.slane %v3276, 1
  %v3348 = vsel %vm1528, %v3346, %v3347
  %v3349 = vrot.slane %v3277, 1
  %v3350 = vrot.slane %v3278, 1
  %v3351 = vsel %vm1528, %v3349, %v3350
  %v3352 = vrot.slane %v3279, 1
  %v3353 = vrot.slane %v3280, 1
  %v3354 = vsel %vm1528, %v3352, %v3353
  %v3355 = vrot.slane %v3281, 1
  %v3356 = vrot.slane %v3282, 1
  %v3357 = vsel %vm1528, %v3355, %v3356
  %v3358 = vrot.slane %v3283, 1
  %v3359 = vrot.slane %v3284, 1
  %v3360 = vsel %vm1528, %v3358, %v3359
  %v3361 = vrot.slane %v3285, 1
  %v3362 = vrot.slane %v3286, 1
  %v3363 = vsel %vm1528, %v3361, %v3362
  %v3364 = vrot.slane %v3287, 1
  %v3365 = vrot.slane %v3288, 1
  %v3366 = vsel %vm1528, %v3364, %v3365
  %v3367 = vrot.slane %v3289, 1
  %v3368 = vrot.slane %v3290, 1
  %v3369 = vsel %vm1528, %v3367, %v3368
  %v3370 = vrot.slane %v3291, 1
  %v3371 = vrot.slane %v3292, 1
  %v3372 = vsel %vm1528, %v3370, %v3371
  %v3373 = vrot.slane %v3293, 1
  %v3374 = vrot.slane %v3294, 1
  %v3375 = vsel %vm1528, %v3373, %v3374
  %v3376 = vrot.slane %v3295, 1
  %v3377 = vrot.slane %v3296, 1
  %v3378 = vsel %vm1528, %v3376, %v3377
  %v3379 = vrot.slane %v3297, 1
  %v3380 = vrot.slane %v3298, 1
  %v3381 = vsel %vm1528, %v3379, %v3380
  %v3382 = vrot.slane %v3299, 1
  %v3383 = vrot.slane %v3300, 1
  %v3384 = vsel %vm1528, %v3382, %v3383
  %v3385 = vrot.slane %v3301, 1
  %v3386 = vrot.slane %v3302, 1
  %v3387 = vsel %vm1528, %v3385, %v3386
  %v3388 = vrot.slane %v3303, 1
  %v3389 = vrot.slane %v3304, 1
  %v3390 = vsel %vm1528, %v3388, %v3389
  %v3391 = vrot.slane %v3305, 1
  %v3392 = vrot.slane %v3306, 1
  %v3393 = vsel %vm1528, %v3391, %v3392
  %v3394 = vrot.slane %v3307, 1
  %v3395 = vrot.slane %v3308, 1
  %v3396 = vsel %vm1528, %v3394, %v3395
  %v3397 = vrot.slane %v3309, 1
  %v3398 = vrot.slane %v3310, 1
  %v3399 = vsel %vm1528, %v3397, %v3398
  %v3400 = vrot.slane %v3311, 1
  %v3401 = vrot.slane %v3312, 1
  %v3402 = vsel %vm1528, %v3400, %v3401
  %v3403 = vrot.slane %v3313, 1
  %v3404 = vrot.slane %v3314, 1
  %v3405 = vsel %vm1528, %v3403, %v3404
  %v3406 = vrot.slane %v3315, 1
  %v3407 = vrot.slane %v3316, 1
  %v3408 = vsel %vm1528, %v3406, %v3407
  %v3409 = vrot.slane %v3317, 1
  %v3410 = vrot.slane %v3318, 1
  %v3411 = vsel %vm1528, %v3409, %v3410
  %v3412 = vrot.slane %v3319, 1
  %v3413 = vrot.slane %v3320, 1
  %v3414 = vsel %vm1528, %v3412, %v3413
  %v3415 = vrot.slane %v3321, 1
  %v3416 = vrot.slane %v3322, 1
  %v3417 = vsel %vm1528, %v3415, %v3416
  %v3418 = vrot.slane %v3323, 1
  %v3419 = vrot.slane %v3324, 1
  %v3420 = vsel %vm1528, %v3418, %v3419
  %3421 = vrot.lane.b32.xlu0 %v3327, 60
  %v3422 = vpop.permute.xlu0 %3421
  %3423 = vrot.lane.b32.xlu0 %v3330, 60
  %v3424 = vpop.permute.xlu0 %3423
  %3425 = vrot.lane.b32.xlu0 %v3333, 60
  %v3426 = vpop.permute.xlu0 %3425
  %3427 = vrot.lane.b32.xlu0 %v3336, 60
  %v3428 = vpop.permute.xlu0 %3427
  %3429 = vrot.lane.b32.xlu0 %v3339, 60
  %v3430 = vpop.permute.xlu0 %3429
  %3431 = vrot.lane.b32.xlu0 %v3342, 60
  %v3432 = vpop.permute.xlu0 %3431
  %3433 = vrot.lane.b32.xlu0 %v3345, 60
  %v3434 = vpop.permute.xlu0 %3433
  %3435 = vrot.lane.b32.xlu0 %v3348, 60
  %v3436 = vpop.permute.xlu0 %3435
  %3437 = vrot.lane.b32.xlu0 %v3351, 60
  %v3438 = vpop.permute.xlu0 %3437
  %3439 = vrot.lane.b32.xlu0 %v3354, 60
  %v3440 = vpop.permute.xlu0 %3439
  %3441 = vrot.lane.b32.xlu0 %v3357, 60
  %v3442 = vpop.permute.xlu0 %3441
  %3443 = vrot.lane.b32.xlu0 %v3360, 60
  %v3444 = vpop.permute.xlu0 %3443
  %3445 = vrot.lane.b32.xlu0 %v3363, 60
  %v3446 = vpop.permute.xlu0 %3445
  %3447 = vrot.lane.b32.xlu0 %v3366, 60
  %v3448 = vpop.permute.xlu0 %3447
  %3449 = vrot.lane.b32.xlu0 %v3369, 60
  %v3450 = vpop.permute.xlu0 %3449
  %3451 = vrot.lane.b32.xlu0 %v3372, 60
  %v3452 = vpop.permute.xlu0 %3451
  %3453 = vrot.lane.b32.xlu0 %v3375, 60
  %v3454 = vpop.permute.xlu0 %3453
  %3455 = vrot.lane.b32.xlu0 %v3378, 60
  %v3456 = vpop.permute.xlu0 %3455
  %3457 = vrot.lane.b32.xlu0 %v3381, 60
  %v3458 = vpop.permute.xlu0 %3457
  %3459 = vrot.lane.b32.xlu0 %v3384, 60
  %v3460 = vpop.permute.xlu0 %3459
  %3461 = vrot.lane.b32.xlu0 %v3387, 60
  %v3462 = vpop.permute.xlu0 %3461
  %3463 = vrot.lane.b32.xlu0 %v3390, 60
  %v3464 = vpop.permute.xlu0 %3463
  %3465 = vrot.lane.b32.xlu0 %v3393, 60
  %v3466 = vpop.permute.xlu0 %3465
  %3467 = vrot.lane.b32.xlu0 %v3396, 60
  %v3468 = vpop.permute.xlu0 %3467
  %3469 = vrot.lane.b32.xlu0 %v3399, 60
  %v3470 = vpop.permute.xlu0 %3469
  %3471 = vrot.lane.b32.xlu0 %v3402, 60
  %v3472 = vpop.permute.xlu0 %3471
  %3473 = vrot.lane.b32.xlu0 %v3405, 60
  %v3474 = vpop.permute.xlu0 %3473
  %3475 = vrot.lane.b32.xlu0 %v3408, 60
  %v3476 = vpop.permute.xlu0 %3475
  %3477 = vrot.lane.b32.xlu0 %v3411, 60
  %v3478 = vpop.permute.xlu0 %3477
  %3479 = vrot.lane.b32.xlu0 %v3414, 60
  %v3480 = vpop.permute.xlu0 %3479
  %3481 = vrot.lane.b32.xlu0 %v3417, 60
  %v3482 = vpop.permute.xlu0 %3481
  %3483 = vrot.lane.b32.xlu0 %v3420, 60
  %v3484 = vpop.permute.xlu0 %3483
  %vm3517 = vcmask 589280
  %3518 = vst.msk [vmem:[#allocation2] sm:$0xff] %vm3517, %v3422
  %3519 = vst.msk [vmem:[#allocation2 + $0x8] sm:$0xff] %vm3517, %v3424
  %3520 = vst.msk [vmem:[#allocation2 + $0x10] sm:$0xff] %vm3517, %v3426
  %3521 = vst.msk [vmem:[#allocation2 + $0x18] sm:$0xff] %vm3517, %v3428
  %3522 = vst.msk [vmem:[#allocation2 + $0x20] sm:$0xff] %vm3517, %v3430
  %3523 = vst.msk [vmem:[#allocation2 + $0x28] sm:$0xff] %vm3517, %v3432
  %3524 = vst.msk [vmem:[#allocation2 + $0x30] sm:$0xff] %vm3517, %v3434
  %3525 = vst.msk [vmem:[#allocation2 + $0x38] sm:$0xff] %vm3517, %v3436
  %3526 = vst.msk [vmem:[#allocation2 + $0x40] sm:$0xff] %vm3517, %v3438
  %3527 = vst.msk [vmem:[#allocation2 + $0x48] sm:$0xff] %vm3517, %v3440
  %3528 = vst.msk [vmem:[#allocation2 + $0x50] sm:$0xff] %vm3517, %v3442
  %3529 = vst.msk [vmem:[#allocation2 + $0x58] sm:$0xff] %vm3517, %v3444
  %3530 = vst.msk [vmem:[#allocation2 + $0x60] sm:$0xff] %vm3517, %v3446
  %3531 = vst.msk [vmem:[#allocation2 + $0x68] sm:$0xff] %vm3517, %v3448
  %3532 = vst.msk [vmem:[#allocation2 + $0x70] sm:$0xff] %vm3517, %v3450
  %3533 = vst.msk [vmem:[#allocation2 + $0x78] sm:$0xff] %vm3517, %v3452
  %3534 = vst.msk [vmem:[#allocation2 + $0x80] sm:$0xff] %vm3517, %v3454
  %3535 = vst.msk [vmem:[#allocation2 + $0x88] sm:$0xff] %vm3517, %v3456
  %3536 = vst.msk [vmem:[#allocation2 + $0x90] sm:$0xff] %vm3517, %v3458
  %3537 = vst.msk [vmem:[#allocation2 + $0x98] sm:$0xff] %vm3517, %v3460
  %3538 = vst.msk [vmem:[#allocation2 + $0xa0] sm:$0xff] %vm3517, %v3462
  %3539 = vst.msk [vmem:[#allocation2 + $0xa8] sm:$0xff] %vm3517, %v3464
  %3540 = vst.msk [vmem:[#allocation2 + $0xb0] sm:$0xff] %vm3517, %v3466
  %3541 = vst.msk [vmem:[#allocation2 + $0xb8] sm:$0xff] %vm3517, %v3468
  %3542 = vst.msk [vmem:[#allocation2 + $0xc0] sm:$0xff] %vm3517, %v3470
  %3543 = vst.msk [vmem:[#allocation2 + $0xc8] sm:$0xff] %vm3517, %v3472
  %3544 = vst.msk [vmem:[#allocation2 + $0xd0] sm:$0xff] %vm3517, %v3474
  %3545 = vst.msk [vmem:[#allocation2 + $0xd8] sm:$0xff] %vm3517, %v3476
  %3546 = vst.msk [vmem:[#allocation2 + $0xe0] sm:$0xff] %vm3517, %v3478
  %3547 = vst.msk [vmem:[#allocation2 + $0xe8] sm:$0xff] %vm3517, %v3480
  %3548 = vst.msk [vmem:[#allocation2 + $0xf0] sm:$0xff] %vm3517, %v3482
  %3549 = vst.msk [vmem:[#allocation2 + $0xf8] sm:$0xff] %vm3517, %v3484
  %s3550 = scalar_lea.vmem %s0, 24
  %v3551 = vld [vmem:[%s3550] sm:$0xf]
  %v3552 = vld [vmem:[%s3550 + $0x4] sm:$0xf]
  %v3553 = vld [vmem:[%s3550 + $0xc] sm:$0xf]
  %v3554 = vld [vmem:[%s3550 + $0x10] sm:$0xf]
  %v3555 = vld [vmem:[%s3550 + $0x18] sm:$0xf]
  %v3556 = vld [vmem:[%s3550 + $0x1c] sm:$0xf]
  %v3557 = vld [vmem:[%s3550 + $0x24] sm:$0xf]
  %v3558 = vld [vmem:[%s3550 + $0x28] sm:$0xf]
  %v3559 = vld [vmem:[%s3550 + $0x30] sm:$0xf]
  %v3560 = vld [vmem:[%s3550 + $0x34] sm:$0xf]
  %v3561 = vld [vmem:[%s3550 + $0x3c] sm:$0xf]
  %v3562 = vld [vmem:[%s3550 + $0x40] sm:$0xf]
  %v3563 = vld [vmem:[%s3550 + $0x48] sm:$0xf]
  %v3564 = vld [vmem:[%s3550 + $0x4c] sm:$0xf]
  %v3565 = vld [vmem:[%s3550 + $0x54] sm:$0xf]
  %v3566 = vld [vmem:[%s3550 + $0x58] sm:$0xf]
  %v3567 = vld [vmem:[%s3550 + $0x60] sm:$0xf]
  %v3568 = vld [vmem:[%s3550 + $0x64] sm:$0xf]
  %v3569 = vld [vmem:[%s3550 + $0x6c] sm:$0xf]
  %v3570 = vld [vmem:[%s3550 + $0x70] sm:$0xf]
  %v3571 = vld [vmem:[%s3550 + $0x78] sm:$0xf]
  %v3572 = vld [vmem:[%s3550 + $0x7c] sm:$0xf]
  %v3573 = vld [vmem:[%s3550 + $0x84] sm:$0xf]
  %v3574 = vld [vmem:[%s3550 + $0x88] sm:$0xf]
  %v3575 = vld [vmem:[%s3550 + $0x90] sm:$0xf]
  %v3576 = vld [vmem:[%s3550 + $0x94] sm:$0xf]
  %v3577 = vld [vmem:[%s3550 + $0x9c] sm:$0xf]
  %v3578 = vld [vmem:[%s3550 + $0xa0] sm:$0xf]
  %v3579 = vld [vmem:[%s3550 + $0xa8] sm:$0xf]
  %v3580 = vld [vmem:[%s3550 + $0xac] sm:$0xf]
  %v3581 = vld [vmem:[%s3550 + $0xb4] sm:$0xf]
  %v3582 = vld [vmem:[%s3550 + $0xb8] sm:$0xf]
  %v3583 = vld [vmem:[%s3550 + $0xd8] sm:$0xf]
  %v3584 = vld [vmem:[%s3550 + $0xdc] sm:$0xf]
  %v3585 = vld [vmem:[%s3550 + $0xe4] sm:$0xf]
  %v3586 = vld [vmem:[%s3550 + $0xe8] sm:$0xf]
  %v3587 = vld [vmem:[%s3550 + $0xf0] sm:$0xf]
  %v3588 = vld [vmem:[%s3550 + $0xf4] sm:$0xf]
  %v3589 = vld [vmem:[%s3550 + $0xfc] sm:$0xf]
  %v3590 = vld [vmem:[%s3550 + $0x100] sm:$0xf]
  %v3591 = vld [vmem:[%s3550 + $0x108] sm:$0xf]
  %v3592 = vld [vmem:[%s3550 + $0x10c] sm:$0xf]
  %v3593 = vld [vmem:[%s3550 + $0x114] sm:$0xf]
  %v3594 = vld [vmem:[%s3550 + $0x118] sm:$0xf]
  %v3595 = vld [vmem:[%s3550 + $0x120] sm:$0xf]
  %v3596 = vld [vmem:[%s3550 + $0x124] sm:$0xf]
  %v3597 = vld [vmem:[%s3550 + $0x12c] sm:$0xf]
  %v3598 = vld [vmem:[%s3550 + $0x130] sm:$0xf]
  %v3599 = vld [vmem:[%s3550 + $0x138] sm:$0xf]
  %v3600 = vld [vmem:[%s3550 + $0x13c] sm:$0xf]
  %v3601 = vld [vmem:[%s3550 + $0x144] sm:$0xf]
  %v3602 = vld [vmem:[%s3550 + $0x148] sm:$0xf]
  %v3603 = vld [vmem:[%s3550 + $0x150] sm:$0xf]
  %v3604 = vld [vmem:[%s3550 + $0x154] sm:$0xf]
  %v3605 = vld [vmem:[%s3550 + $0x15c] sm:$0xf]
  %v3606 = vld [vmem:[%s3550 + $0x160] sm:$0xf]
  %v3607 = vld [vmem:[%s3550 + $0x168] sm:$0xf]
  %v3608 = vld [vmem:[%s3550 + $0x16c] sm:$0xf]
  %v3609 = vld [vmem:[%s3550 + $0x174] sm:$0xf]
  %v3610 = vld [vmem:[%s3550 + $0x178] sm:$0xf]
  %v3611 = vld [vmem:[%s3550 + $0x180] sm:$0xf]
  %v3612 = vld [vmem:[%s3550 + $0x184] sm:$0xf]
  %v3613 = vld [vmem:[%s3550 + $0x18c] sm:$0xf]
  %v3614 = vld [vmem:[%s3550 + $0x190] sm:$0xf]
  %v3679 = vunpack.c.l.b16 %v3551
  %v3680 = vunpack.c.l.b16 %v3552
  %v3681 = vunpack.c.l.b16 %v3553
  %v3682 = vunpack.c.l.b16 %v3554
  %v3683 = vunpack.c.l.b16 %v3555
  %v3684 = vunpack.c.l.b16 %v3556
  %v3685 = vunpack.c.l.b16 %v3557
  %v3686 = vunpack.c.l.b16 %v3558
  %v3687 = vunpack.c.l.b16 %v3559
  %v3688 = vunpack.c.l.b16 %v3560
  %v3689 = vunpack.c.l.b16 %v3561
  %v3690 = vunpack.c.l.b16 %v3562
  %v3691 = vunpack.c.l.b16 %v3563
  %v3692 = vunpack.c.l.b16 %v3564
  %v3693 = vunpack.c.l.b16 %v3565
  %v3694 = vunpack.c.l.b16 %v3566
  %v3695 = vunpack.c.l.b16 %v3567
  %v3696 = vunpack.c.l.b16 %v3568
  %v3697 = vunpack.c.l.b16 %v3569
  %v3698 = vunpack.c.l.b16 %v3570
  %v3699 = vunpack.c.l.b16 %v3571
  %v3700 = vunpack.c.l.b16 %v3572
  %v3701 = vunpack.c.l.b16 %v3573
  %v3702 = vunpack.c.l.b16 %v3574
  %v3703 = vunpack.c.l.b16 %v3575
  %v3704 = vunpack.c.l.b16 %v3576
  %v3705 = vunpack.c.l.b16 %v3577
  %v3706 = vunpack.c.l.b16 %v3578
  %v3707 = vunpack.c.l.b16 %v3579
  %v3708 = vunpack.c.l.b16 %v3580
  %v3709 = vunpack.c.l.b16 %v3581
  %v3710 = vunpack.c.l.b16 %v3582
  %v3711 = vunpack.c.l.b16 %v3583
  %v3712 = vunpack.c.l.b16 %v3584
  %v3713 = vunpack.c.l.b16 %v3585
  %v3714 = vunpack.c.l.b16 %v3586
  %v3715 = vunpack.c.l.b16 %v3587
  %v3716 = vunpack.c.l.b16 %v3588
  %v3717 = vunpack.c.l.b16 %v3589
  %v3718 = vunpack.c.l.b16 %v3590
  %v3719 = vunpack.c.l.b16 %v3591
  %v3720 = vunpack.c.l.b16 %v3592
  %v3721 = vunpack.c.l.b16 %v3593
  %v3722 = vunpack.c.l.b16 %v3594
  %v3723 = vunpack.c.l.b16 %v3595
  %v3724 = vunpack.c.l.b16 %v3596
  %v3725 = vunpack.c.l.b16 %v3597
  %v3726 = vunpack.c.l.b16 %v3598
  %v3727 = vunpack.c.l.b16 %v3599
  %v3728 = vunpack.c.l.b16 %v3600
  %v3729 = vunpack.c.l.b16 %v3601
  %v3730 = vunpack.c.l.b16 %v3602
  %v3731 = vunpack.c.l.b16 %v3603
  %v3732 = vunpack.c.l.b16 %v3604
  %v3733 = vunpack.c.l.b16 %v3605
  %v3734 = vunpack.c.l.b16 %v3606
  %v3735 = vunpack.c.l.b16 %v3607
  %v3736 = vunpack.c.l.b16 %v3608
  %v3737 = vunpack.c.l.b16 %v3609
  %v3738 = vunpack.c.l.b16 %v3610
  %v3739 = vunpack.c.l.b16 %v3611
  %v3740 = vunpack.c.l.b16 %v3612
  %v3741 = vunpack.c.l.b16 %v3613
  %v3742 = vunpack.c.l.b16 %v3614
  %v3743 = vpack.c.b16 %v3680, %v3679
  %v3744 = vpack.c.b16 %v3682, %v3681
  %v3745 = vpack.c.b16 %v3684, %v3683
  %v3746 = vpack.c.b16 %v3686, %v3685
  %v3747 = vpack.c.b16 %v3688, %v3687
  %v3748 = vpack.c.b16 %v3690, %v3689
  %v3749 = vpack.c.b16 %v3692, %v3691
  %v3750 = vpack.c.b16 %v3694, %v3693
  %v3751 = vpack.c.b16 %v3696, %v3695
  %v3752 = vpack.c.b16 %v3698, %v3697
  %v3753 = vpack.c.b16 %v3700, %v3699
  %v3754 = vpack.c.b16 %v3702, %v3701
  %v3755 = vpack.c.b16 %v3704, %v3703
  %v3756 = vpack.c.b16 %v3706, %v3705
  %v3757 = vpack.c.b16 %v3708, %v3707
  %v3758 = vpack.c.b16 %v3710, %v3709
  %v3759 = vpack.c.b16 %v3712, %v3711
  %v3760 = vpack.c.b16 %v3714, %v3713
  %v3761 = vpack.c.b16 %v3716, %v3715
  %v3762 = vpack.c.b16 %v3718, %v3717
  %v3763 = vpack.c.b16 %v3720, %v3719
  %v3764 = vpack.c.b16 %v3722, %v3721
  %v3765 = vpack.c.b16 %v3724, %v3723
  %v3766 = vpack.c.b16 %v3726, %v3725
  %v3767 = vpack.c.b16 %v3728, %v3727
  %v3768 = vpack.c.b16 %v3730, %v3729
  %v3769 = vpack.c.b16 %v3732, %v3731
  %v3770 = vpack.c.b16 %v3734, %v3733
  %v3771 = vpack.c.b16 %v3736, %v3735
  %v3772 = vpack.c.b16 %v3738, %v3737
  %v3773 = vpack.c.b16 %v3740, %v3739
  %v3774 = vpack.c.b16 %v3742, %v3741
  %3775 = vrot.lane.b32.xlu0 %v3743, 72
  %v3776 = vpop.permute.xlu0 %3775
  %3777 = vrot.lane.b32.xlu0 %v3744, 72
  %v3778 = vpop.permute.xlu0 %3777
  %3779 = vrot.lane.b32.xlu0 %v3745, 72
  %v3780 = vpop.permute.xlu0 %3779
  %3781 = vrot.lane.b32.xlu0 %v3746, 72
  %v3782 = vpop.permute.xlu0 %3781
  %3783 = vrot.lane.b32.xlu0 %v3747, 72
  %v3784 = vpop.permute.xlu0 %3783
  %3785 = vrot.lane.b32.xlu0 %v3748, 72
  %v3786 = vpop.permute.xlu0 %3785
  %3787 = vrot.lane.b32.xlu0 %v3749, 72
  %v3788 = vpop.permute.xlu0 %3787
  %3789 = vrot.lane.b32.xlu0 %v3750, 72
  %v3790 = vpop.permute.xlu0 %3789
  %3791 = vrot.lane.b32.xlu0 %v3751, 72
  %v3792 = vpop.permute.xlu0 %3791
  %3793 = vrot.lane.b32.xlu0 %v3752, 72
  %v3794 = vpop.permute.xlu0 %3793
  %3795 = vrot.lane.b32.xlu0 %v3753, 72
  %v3796 = vpop.permute.xlu0 %3795
  %3797 = vrot.lane.b32.xlu0 %v3754, 72
  %v3798 = vpop.permute.xlu0 %3797
  %3799 = vrot.lane.b32.xlu0 %v3755, 72
  %v3800 = vpop.permute.xlu0 %3799
  %3801 = vrot.lane.b32.xlu0 %v3756, 72
  %v3802 = vpop.permute.xlu0 %3801
  %3803 = vrot.lane.b32.xlu0 %v3757, 72
  %v3804 = vpop.permute.xlu0 %3803
  %3805 = vrot.lane.b32.xlu0 %v3758, 72
  %v3806 = vpop.permute.xlu0 %3805
  %3807 = vrot.lane.b32.xlu0 %v3759, 72
  %v3808 = vpop.permute.xlu0 %3807
  %3809 = vrot.lane.b32.xlu0 %v3760, 72
  %v3810 = vpop.permute.xlu0 %3809
  %3811 = vrot.lane.b32.xlu0 %v3761, 72
  %v3812 = vpop.permute.xlu0 %3811
  %3813 = vrot.lane.b32.xlu0 %v3762, 72
  %v3814 = vpop.permute.xlu0 %3813
  %3815 = vrot.lane.b32.xlu0 %v3763, 72
  %v3816 = vpop.permute.xlu0 %3815
  %3817 = vrot.lane.b32.xlu0 %v3764, 72
  %v3818 = vpop.permute.xlu0 %3817
  %3819 = vrot.lane.b32.xlu0 %v3765, 72
  %v3820 = vpop.permute.xlu0 %3819
  %3821 = vrot.lane.b32.xlu0 %v3766, 72
  %v3822 = vpop.permute.xlu0 %3821
  %3823 = vrot.lane.b32.xlu0 %v3767, 72
  %v3824 = vpop.permute.xlu0 %3823
  %3825 = vrot.lane.b32.xlu0 %v3768, 72
  %v3826 = vpop.permute.xlu0 %3825
  %3827 = vrot.lane.b32.xlu0 %v3769, 72
  %v3828 = vpop.permute.xlu0 %3827
  %3829 = vrot.lane.b32.xlu0 %v3770, 72
  %v3830 = vpop.permute.xlu0 %3829
  %3831 = vrot.lane.b32.xlu0 %v3771, 72
  %v3832 = vpop.permute.xlu0 %3831
  %3833 = vrot.lane.b32.xlu0 %v3772, 72
  %v3834 = vpop.permute.xlu0 %3833
  %3835 = vrot.lane.b32.xlu0 %v3773, 72
  %v3836 = vpop.permute.xlu0 %3835
  %3837 = vrot.lane.b32.xlu0 %v3774, 72
  %v3838 = vpop.permute.xlu0 %3837
  %vm3871 = vcmask 687680
  %3872 = vst.msk [vmem:[#allocation2] sm:$0xff] %vm3871, %v3776
  %3873 = vst.msk [vmem:[#allocation2 + $0x8] sm:$0xff] %vm3871, %v3778
  %3874 = vst.msk [vmem:[#allocation2 + $0x10] sm:$0xff] %vm3871, %v3780
  %3875 = vst.msk [vmem:[#allocation2 + $0x18] sm:$0xff] %vm3871, %v3782
  %3876 = vst.msk [vmem:[#allocation2 + $0x20] sm:$0xff] %vm3871, %v3784
  %3877 = vst.msk [vmem:[#allocation2 + $0x28] sm:$0xff] %vm3871, %v3786
  %3878 = vst.msk [vmem:[#allocation2 + $0x30] sm:$0xff] %vm3871, %v3788
  %3879 = vst.msk [vmem:[#allocation2 + $0x38] sm:$0xff] %vm3871, %v3790
  %3880 = vst.msk [vmem:[#allocation2 + $0x40] sm:$0xff] %vm3871, %v3792
  %3881 = vst.msk [vmem:[#allocation2 + $0x48] sm:$0xff] %vm3871, %v3794
  %3882 = vst.msk [vmem:[#allocation2 + $0x50] sm:$0xff] %vm3871, %v3796
  %3883 = vst.msk [vmem:[#allocation2 + $0x58] sm:$0xff] %vm3871, %v3798
  %3884 = vst.msk [vmem:[#allocation2 + $0x60] sm:$0xff] %vm3871, %v3800
  %3885 = vst.msk [vmem:[#allocation2 + $0x68] sm:$0xff] %vm3871, %v3802
  %3886 = vst.msk [vmem:[#allocation2 + $0x70] sm:$0xff] %vm3871, %v3804
  %3887 = vst.msk [vmem:[#allocation2 + $0x78] sm:$0xff] %vm3871, %v3806
  %3888 = vst.msk [vmem:[#allocation2 + $0x80] sm:$0xff] %vm3871, %v3808
  %3889 = vst.msk [vmem:[#allocation2 + $0x88] sm:$0xff] %vm3871, %v3810
  %3890 = vst.msk [vmem:[#allocation2 + $0x90] sm:$0xff] %vm3871, %v3812
  %3891 = vst.msk [vmem:[#allocation2 + $0x98] sm:$0xff] %vm3871, %v3814
  %3892 = vst.msk [vmem:[#allocation2 + $0xa0] sm:$0xff] %vm3871, %v3816
  %3893 = vst.msk [vmem:[#allocation2 + $0xa8] sm:$0xff] %vm3871, %v3818
  %3894 = vst.msk [vmem:[#allocation2 + $0xb0] sm:$0xff] %vm3871, %v3820
  %3895 = vst.msk [vmem:[#allocation2 + $0xb8] sm:$0xff] %vm3871, %v3822
  %3896 = vst.msk [vmem:[#allocation2 + $0xc0] sm:$0xff] %vm3871, %v3824
  %3897 = vst.msk [vmem:[#allocation2 + $0xc8] sm:$0xff] %vm3871, %v3826
  %3898 = vst.msk [vmem:[#allocation2 + $0xd0] sm:$0xff] %vm3871, %v3828
  %3899 = vst.msk [vmem:[#allocation2 + $0xd8] sm:$0xff] %vm3871, %v3830
  %3900 = vst.msk [vmem:[#allocation2 + $0xe0] sm:$0xff] %vm3871, %v3832
  %3901 = vst.msk [vmem:[#allocation2 + $0xe8] sm:$0xff] %vm3871, %v3834
  %3902 = vst.msk [vmem:[#allocation2 + $0xf0] sm:$0xff] %vm3871, %v3836
  %3903 = vst.msk [vmem:[#allocation2 + $0xf8] sm:$0xff] %vm3871, %v3838
  %v3904 = vld [vmem:[%s3550] sm:$0xf]
  %v3905 = vld [vmem:[%s3550 + $0x4] sm:$0xf]
  %v3906 = vld [vmem:[%s3550 + $0x8] sm:$0x1]
  %v3907 = vld [vmem:[%s3550 + $0xc] sm:$0xf]
  %v3908 = vld [vmem:[%s3550 + $0x10] sm:$0xf]
  %v3909 = vld [vmem:[%s3550 + $0x14] sm:$0x1]
  %v3910 = vld [vmem:[%s3550 + $0x18] sm:$0xf]
  %v3911 = vld [vmem:[%s3550 + $0x1c] sm:$0xf]
  %v3912 = vld [vmem:[%s3550 + $0x20] sm:$0x1]
  %v3913 = vld [vmem:[%s3550 + $0x24] sm:$0xf]
  %v3914 = vld [vmem:[%s3550 + $0x28] sm:$0xf]
  %v3915 = vld [vmem:[%s3550 + $0x2c] sm:$0x1]
  %v3916 = vld [vmem:[%s3550 + $0x30] sm:$0xf]
  %v3917 = vld [vmem:[%s3550 + $0x34] sm:$0xf]
  %v3918 = vld [vmem:[%s3550 + $0x38] sm:$0x1]
  %v3919 = vld [vmem:[%s3550 + $0x3c] sm:$0xf]
  %v3920 = vld [vmem:[%s3550 + $0x40] sm:$0xf]
  %v3921 = vld [vmem:[%s3550 + $0x44] sm:$0x1]
  %v3922 = vld [vmem:[%s3550 + $0x48] sm:$0xf]
  %v3923 = vld [vmem:[%s3550 + $0x4c] sm:$0xf]
  %v3924 = vld [vmem:[%s3550 + $0x50] sm:$0x1]
  %v3925 = vld [vmem:[%s3550 + $0x54] sm:$0xf]
  %v3926 = vld [vmem:[%s3550 + $0x58] sm:$0xf]
  %v3927 = vld [vmem:[%s3550 + $0x5c] sm:$0x1]
  %v3928 = vld [vmem:[%s3550 + $0x60] sm:$0xf]
  %v3929 = vld [vmem:[%s3550 + $0x64] sm:$0xf]
  %v3930 = vld [vmem:[%s3550 + $0x68] sm:$0x1]
  %v3931 = vld [vmem:[%s3550 + $0x6c] sm:$0xf]
  %v3932 = vld [vmem:[%s3550 + $0x70] sm:$0xf]
  %v3933 = vld [vmem:[%s3550 + $0x74] sm:$0x1]
  %v3934 = vld [vmem:[%s3550 + $0x78] sm:$0xf]
  %v3935 = vld [vmem:[%s3550 + $0x7c] sm:$0xf]
  %v3936 = vld [vmem:[%s3550 + $0x80] sm:$0x1]
  %v3937 = vld [vmem:[%s3550 + $0x84] sm:$0xf]
  %v3938 = vld [vmem:[%s3550 + $0x88] sm:$0xf]
  %v3939 = vld [vmem:[%s3550 + $0x8c] sm:$0x1]
  %v3940 = vld [vmem:[%s3550 + $0x90] sm:$0xf]
  %v3941 = vld [vmem:[%s3550 + $0x94] sm:$0xf]
  %v3942 = vld [vmem:[%s3550 + $0x98] sm:$0x1]
  %v3943 = vld [vmem:[%s3550 + $0x9c] sm:$0xf]
  %v3944 = vld [vmem:[%s3550 + $0xa0] sm:$0xf]
  %v3945 = vld [vmem:[%s3550 + $0xa4] sm:$0x1]
  %v3946 = vld [vmem:[%s3550 + $0xa8] sm:$0xf]
  %v3947 = vld [vmem:[%s3550 + $0xac] sm:$0xf]
  %v3948 = vld [vmem:[%s3550 + $0xb0] sm:$0x1]
  %v3949 = vld [vmem:[%s3550 + $0xb4] sm:$0xf]
  %v3950 = vld [vmem:[%s3550 + $0xb8] sm:$0xf]
  %v3951 = vld [vmem:[%s3550 + $0xbc] sm:$0x1]
  %v3952 = vld [vmem:[%s3550 + $0xd8] sm:$0xf]
  %v3953 = vld [vmem:[%s3550 + $0xdc] sm:$0xf]
  %v3954 = vld [vmem:[%s3550 + $0xe0] sm:$0x1]
  %v3955 = vld [vmem:[%s3550 + $0xe4] sm:$0xf]
  %v3956 = vld [vmem:[%s3550 + $0xe8] sm:$0xf]
  %v3957 = vld [vmem:[%s3550 + $0xec] sm:$0x1]
  %v3958 = vld [vmem:[%s3550 + $0xf0] sm:$0xf]
  %v3959 = vld [vmem:[%s3550 + $0xf4] sm:$0xf]
  %v3960 = vld [vmem:[%s3550 + $0xf8] sm:$0x1]
  %v3961 = vld [vmem:[%s3550 + $0xfc] sm:$0xf]
  %v3962 = vld [vmem:[%s3550 + $0x100] sm:$0xf]
  %v3963 = vld [vmem:[%s3550 + $0x104] sm:$0x1]
  %v3964 = vld [vmem:[%s3550 + $0x108] sm:$0xf]
  %v3965 = vld [vmem:[%s3550 + $0x10c] sm:$0xf]
  %v3966 = vld [vmem:[%s3550 + $0x110] sm:$0x1]
  %v3967 = vld [vmem:[%s3550 + $0x114] sm:$0xf]
  %v3968 = vld [vmem:[%s3550 + $0x118] sm:$0xf]
  %v3969 = vld [vmem:[%s3550 + $0x11c] sm:$0x1]
  %v3970 = vld [vmem:[%s3550 + $0x120] sm:$0xf]
  %v3971 = vld [vmem:[%s3550 + $0x124] sm:$0xf]
  %v3972 = vld [vmem:[%s3550 + $0x128] sm:$0x1]
  %v3973 = vld [vmem:[%s3550 + $0x12c] sm:$0xf]
  %v3974 = vld [vmem:[%s3550 + $0x130] sm:$0xf]
  %v3975 = vld [vmem:[%s3550 + $0x134] sm:$0x1]
  %v3976 = vld [vmem:[%s3550 + $0x138] sm:$0xf]
  %v3977 = vld [vmem:[%s3550 + $0x13c] sm:$0xf]
  %v3978 = vld [vmem:[%s3550 + $0x140] sm:$0x1]
  %v3979 = vld [vmem:[%s3550 + $0x144] sm:$0xf]
  %v3980 = vld [vmem:[%s3550 + $0x148] sm:$0xf]
  %v3981 = vld [vmem:[%s3550 + $0x14c] sm:$0x1]
  %v3982 = vld [vmem:[%s3550 + $0x150] sm:$0xf]
  %v3983 = vld [vmem:[%s3550 + $0x154] sm:$0xf]
  %v3984 = vld [vmem:[%s3550 + $0x158] sm:$0x1]
  %v3985 = vld [vmem:[%s3550 + $0x15c] sm:$0xf]
  %v3986 = vld [vmem:[%s3550 + $0x160] sm:$0xf]
  %v3987 = vld [vmem:[%s3550 + $0x164] sm:$0x1]
  %v3988 = vld [vmem:[%s3550 + $0x168] sm:$0xf]
  %v3989 = vld [vmem:[%s3550 + $0x16c] sm:$0xf]
  %v3990 = vld [vmem:[%s3550 + $0x170] sm:$0x1]
  %v3991 = vld [vmem:[%s3550 + $0x174] sm:$0xf]
  %v3992 = vld [vmem:[%s3550 + $0x178] sm:$0xf]
  %v3993 = vld [vmem:[%s3550 + $0x17c] sm:$0x1]
  %v3994 = vld [vmem:[%s3550 + $0x180] sm:$0xf]
  %v3995 = vld [vmem:[%s3550 + $0x184] sm:$0xf]
  %v3996 = vld [vmem:[%s3550 + $0x188] sm:$0x1]
  %v3997 = vld [vmem:[%s3550 + $0x18c] sm:$0xf]
  %v3998 = vld [vmem:[%s3550 + $0x190] sm:$0xf]
  %v3999 = vld [vmem:[%s3550 + $0x194] sm:$0x1]
  %v4096 = vunpack.c.l.b16 %v3904
  %v4097 = vunpack.c.l.b16 %v3905
  %v4098 = vunpack.c.l.b16 %v3906
  %v4099 = vunpack.c.l.b16 %v3907
  %v4100 = vunpack.c.l.b16 %v3908
  %v4101 = vunpack.c.l.b16 %v3909
  %v4102 = vunpack.c.l.b16 %v3910
  %v4103 = vunpack.c.l.b16 %v3911
  %v4104 = vunpack.c.l.b16 %v3912
  %v4105 = vunpack.c.l.b16 %v3913
  %v4106 = vunpack.c.l.b16 %v3914
  %v4107 = vunpack.c.l.b16 %v3915
  %v4108 = vunpack.c.l.b16 %v3916
  %v4109 = vunpack.c.l.b16 %v3917
  %v4110 = vunpack.c.l.b16 %v3918
  %v4111 = vunpack.c.l.b16 %v3919
  %v4112 = vunpack.c.l.b16 %v3920
  %v4113 = vunpack.c.l.b16 %v3921
  %v4114 = vunpack.c.l.b16 %v3922
  %v4115 = vunpack.c.l.b16 %v3923
  %v4116 = vunpack.c.l.b16 %v3924
  %v4117 = vunpack.c.l.b16 %v3925
  %v4118 = vunpack.c.l.b16 %v3926
  %v4119 = vunpack.c.l.b16 %v3927
  %v4120 = vunpack.c.l.b16 %v3928
  %v4121 = vunpack.c.l.b16 %v3929
  %v4122 = vunpack.c.l.b16 %v3930
  %v4123 = vunpack.c.l.b16 %v3931
  %v4124 = vunpack.c.l.b16 %v3932
  %v4125 = vunpack.c.l.b16 %v3933
  %v4126 = vunpack.c.l.b16 %v3934
  %v4127 = vunpack.c.l.b16 %v3935
  %v4128 = vunpack.c.l.b16 %v3936
  %v4129 = vunpack.c.l.b16 %v3937
  %v4130 = vunpack.c.l.b16 %v3938
  %v4131 = vunpack.c.l.b16 %v3939
  %v4132 = vunpack.c.l.b16 %v3940
  %v4133 = vunpack.c.l.b16 %v3941
  %v4134 = vunpack.c.l.b16 %v3942
  %v4135 = vunpack.c.l.b16 %v3943
  %v4136 = vunpack.c.l.b16 %v3944
  %v4137 = vunpack.c.l.b16 %v3945
  %v4138 = vunpack.c.l.b16 %v3946
  %v4139 = vunpack.c.l.b16 %v3947
  %v4140 = vunpack.c.l.b16 %v3948
  %v4141 = vunpack.c.l.b16 %v3949
  %v4142 = vunpack.c.l.b16 %v3950
  %v4143 = vunpack.c.l.b16 %v3951
  %v4144 = vunpack.c.l.b16 %v3952
  %v4145 = vunpack.c.l.b16 %v3953
  %v4146 = vunpack.c.l.b16 %v3954
  %v4147 = vunpack.c.l.b16 %v3955
  %v4148 = vunpack.c.l.b16 %v3956
  %v4149 = vunpack.c.l.b16 %v3957
  %v4150 = vunpack.c.l.b16 %v3958
  %v4151 = vunpack.c.l.b16 %v3959
  %v4152 = vunpack.c.l.b16 %v3960
  %v4153 = vunpack.c.l.b16 %v3961
  %v4154 = vunpack.c.l.b16 %v3962
  %v4155 = vunpack.c.l.b16 %v3963
  %v4156 = vunpack.c.l.b16 %v3964
  %v4157 = vunpack.c.l.b16 %v3965
  %v4158 = vunpack.c.l.b16 %v3966
  %v4159 = vunpack.c.l.b16 %v3967
  %v4160 = vunpack.c.l.b16 %v3968
  %v4161 = vunpack.c.l.b16 %v3969
  %v4162 = vunpack.c.l.b16 %v3970
  %v4163 = vunpack.c.l.b16 %v3971
  %v4164 = vunpack.c.l.b16 %v3972
  %v4165 = vunpack.c.l.b16 %v3973
  %v4166 = vunpack.c.l.b16 %v3974
  %v4167 = vunpack.c.l.b16 %v3975
  %v4168 = vunpack.c.l.b16 %v3976
  %v4169 = vunpack.c.l.b16 %v3977
  %v4170 = vunpack.c.l.b16 %v3978
  %v4171 = vunpack.c.l.b16 %v3979
  %v4172 = vunpack.c.l.b16 %v3980
  %v4173 = vunpack.c.l.b16 %v3981
  %v4174 = vunpack.c.l.b16 %v3982
  %v4175 = vunpack.c.l.b16 %v3983
  %v4176 = vunpack.c.l.b16 %v3984
  %v4177 = vunpack.c.l.b16 %v3985
  %v4178 = vunpack.c.l.b16 %v3986
  %v4179 = vunpack.c.l.b16 %v3987
  %v4180 = vunpack.c.l.b16 %v3988
  %v4181 = vunpack.c.l.b16 %v3989
  %v4182 = vunpack.c.l.b16 %v3990
  %v4183 = vunpack.c.l.b16 %v3991
  %v4184 = vunpack.c.l.b16 %v3992
  %v4185 = vunpack.c.l.b16 %v3993
  %v4186 = vunpack.c.l.b16 %v3994
  %v4187 = vunpack.c.l.b16 %v3995
  %v4188 = vunpack.c.l.b16 %v3996
  %v4189 = vunpack.c.l.b16 %v3997
  %v4190 = vunpack.c.l.b16 %v3998
  %v4191 = vunpack.c.l.b16 %v3999
  %v4192 = vpack.c.b16 %v4097, %v4096
  %v4193 = vpack.c.b16 %v4098, %v4098
  %v4194 = vpack.c.b16 %v4100, %v4099
  %v4195 = vpack.c.b16 %v4101, %v4101
  %v4196 = vpack.c.b16 %v4103, %v4102
  %v4197 = vpack.c.b16 %v4104, %v4104
  %v4198 = vpack.c.b16 %v4106, %v4105
  %v4199 = vpack.c.b16 %v4107, %v4107
  %v4200 = vpack.c.b16 %v4109, %v4108
  %v4201 = vpack.c.b16 %v4110, %v4110
  %v4202 = vpack.c.b16 %v4112, %v4111
  %v4203 = vpack.c.b16 %v4113, %v4113
  %v4204 = vpack.c.b16 %v4115, %v4114
  %v4205 = vpack.c.b16 %v4116, %v4116
  %v4206 = vpack.c.b16 %v4118, %v4117
  %v4207 = vpack.c.b16 %v4119, %v4119
  %v4208 = vpack.c.b16 %v4121, %v4120
  %v4209 = vpack.c.b16 %v4122, %v4122
  %v4210 = vpack.c.b16 %v4124, %v4123
  %v4211 = vpack.c.b16 %v4125, %v4125
  %v4212 = vpack.c.b16 %v4127, %v4126
  %v4213 = vpack.c.b16 %v4128, %v4128
  %v4214 = vpack.c.b16 %v4130, %v4129
  %v4215 = vpack.c.b16 %v4131, %v4131
  %v4216 = vpack.c.b16 %v4133, %v4132
  %v4217 = vpack.c.b16 %v4134, %v4134
  %v4218 = vpack.c.b16 %v4136, %v4135
  %v4219 = vpack.c.b16 %v4137, %v4137
  %v4220 = vpack.c.b16 %v4139, %v4138
  %v4221 = vpack.c.b16 %v4140, %v4140
  %v4222 = vpack.c.b16 %v4142, %v4141
  %v4223 = vpack.c.b16 %v4143, %v4143
  %v4224 = vpack.c.b16 %v4145, %v4144
  %v4225 = vpack.c.b16 %v4146, %v4146
  %v4226 = vpack.c.b16 %v4148, %v4147
  %v4227 = vpack.c.b16 %v4149, %v4149
  %v4228 = vpack.c.b16 %v4151, %v4150
  %v4229 = vpack.c.b16 %v4152, %v4152
  %v4230 = vpack.c.b16 %v4154, %v4153
  %v4231 = vpack.c.b16 %v4155, %v4155
  %v4232 = vpack.c.b16 %v4157, %v4156
  %v4233 = vpack.c.b16 %v4158, %v4158
  %v4234 = vpack.c.b16 %v4160, %v4159
  %v4235 = vpack.c.b16 %v4161, %v4161
  %v4236 = vpack.c.b16 %v4163, %v4162
  %v4237 = vpack.c.b16 %v4164, %v4164
  %v4238 = vpack.c.b16 %v4166, %v4165
  %v4239 = vpack.c.b16 %v4167, %v4167
  %v4240 = vpack.c.b16 %v4169, %v4168
  %v4241 = vpack.c.b16 %v4170, %v4170
  %v4242 = vpack.c.b16 %v4172, %v4171
  %v4243 = vpack.c.b16 %v4173, %v4173
  %v4244 = vpack.c.b16 %v4175, %v4174
  %v4245 = vpack.c.b16 %v4176, %v4176
  %v4246 = vpack.c.b16 %v4178, %v4177
  %v4247 = vpack.c.b16 %v4179, %v4179
  %v4248 = vpack.c.b16 %v4181, %v4180
  %v4249 = vpack.c.b16 %v4182, %v4182
  %v4250 = vpack.c.b16 %v4184, %v4183
  %v4251 = vpack.c.b16 %v4185, %v4185
  %v4252 = vpack.c.b16 %v4187, %v4186
  %v4253 = vpack.c.b16 %v4188, %v4188
  %v4254 = vpack.c.b16 %v4190, %v4189
  %v4255 = vpack.c.b16 %v4191, %v4191
  %v4257 = vshrl.u32 %v4192, 16
  %v4259 = vshll.u32 %v4192, 16
  %v4261 = vrot.slane %v4259, 1
  %v4262 = vor.u32 %v4257, %v4261
  %v4264 = vshll.u32 %v4193, 16
  %v4266 = vrot.slane %v4264, 1
  %v4267 = vsel %vm662, %v4262, %v4266
  %v4269 = vshrl.u32 %v4194, 16
  %v4271 = vshll.u32 %v4194, 16
  %v4273 = vrot.slane %v4271, 1
  %v4274 = vor.u32 %v4269, %v4273
  %v4276 = vshll.u32 %v4195, 16
  %v4278 = vrot.slane %v4276, 1
  %v4279 = vsel %vm662, %v4274, %v4278
  %v4281 = vshrl.u32 %v4196, 16
  %v4283 = vshll.u32 %v4196, 16
  %v4285 = vrot.slane %v4283, 1
  %v4286 = vor.u32 %v4281, %v4285
  %v4288 = vshll.u32 %v4197, 16
  %v4290 = vrot.slane %v4288, 1
  %v4291 = vsel %vm662, %v4286, %v4290
  %v4293 = vshrl.u32 %v4198, 16
  %v4295 = vshll.u32 %v4198, 16
  %v4297 = vrot.slane %v4295, 1
  %v4298 = vor.u32 %v4293, %v4297
  %v4300 = vshll.u32 %v4199, 16
  %v4302 = vrot.slane %v4300, 1
  %v4303 = vsel %vm662, %v4298, %v4302
  %v4305 = vshrl.u32 %v4200, 16
  %v4307 = vshll.u32 %v4200, 16
  %v4309 = vrot.slane %v4307, 1
  %v4310 = vor.u32 %v4305, %v4309
  %v4312 = vshll.u32 %v4201, 16
  %v4314 = vrot.slane %v4312, 1
  %v4315 = vsel %vm662, %v4310, %v4314
  %v4317 = vshrl.u32 %v4202, 16
  %v4319 = vshll.u32 %v4202, 16
  %v4321 = vrot.slane %v4319, 1
  %v4322 = vor.u32 %v4317, %v4321
  %v4324 = vshll.u32 %v4203, 16
  %v4326 = vrot.slane %v4324, 1
  %v4327 = vsel %vm662, %v4322, %v4326
  %v4329 = vshrl.u32 %v4204, 16
  %v4331 = vshll.u32 %v4204, 16
  %v4333 = vrot.slane %v4331, 1
  %v4334 = vor.u32 %v4329, %v4333
  %v4336 = vshll.u32 %v4205, 16
  %v4338 = vrot.slane %v4336, 1
  %v4339 = vsel %vm662, %v4334, %v4338
  %v4341 = vshrl.u32 %v4206, 16
  %v4343 = vshll.u32 %v4206, 16
  %v4345 = vrot.slane %v4343, 1
  %v4346 = vor.u32 %v4341, %v4345
  %v4348 = vshll.u32 %v4207, 16
  %v4350 = vrot.slane %v4348, 1
  %v4351 = vsel %vm662, %v4346, %v4350
  %v4353 = vshrl.u32 %v4208, 16
  %v4355 = vshll.u32 %v4208, 16
  %v4357 = vrot.slane %v4355, 1
  %v4358 = vor.u32 %v4353, %v4357
  %v4360 = vshll.u32 %v4209, 16
  %v4362 = vrot.slane %v4360, 1
  %v4363 = vsel %vm662, %v4358, %v4362
  %v4365 = vshrl.u32 %v4210, 16
  %v4367 = vshll.u32 %v4210, 16
  %v4369 = vrot.slane %v4367, 1
  %v4370 = vor.u32 %v4365, %v4369
  %v4372 = vshll.u32 %v4211, 16
  %v4374 = vrot.slane %v4372, 1
  %v4375 = vsel %vm662, %v4370, %v4374
  %v4377 = vshrl.u32 %v4212, 16
  %v4379 = vshll.u32 %v4212, 16
  %v4381 = vrot.slane %v4379, 1
  %v4382 = vor.u32 %v4377, %v4381
  %v4384 = vshll.u32 %v4213, 16
  %v4386 = vrot.slane %v4384, 1
  %v4387 = vsel %vm662, %v4382, %v4386
  %v4389 = vshrl.u32 %v4214, 16
  %v4391 = vshll.u32 %v4214, 16
  %v4393 = vrot.slane %v4391, 1
  %v4394 = vor.u32 %v4389, %v4393
  %v4396 = vshll.u32 %v4215, 16
  %v4398 = vrot.slane %v4396, 1
  %v4399 = vsel %vm662, %v4394, %v4398
  %v4401 = vshrl.u32 %v4216, 16
  %v4403 = vshll.u32 %v4216, 16
  %v4405 = vrot.slane %v4403, 1
  %v4406 = vor.u32 %v4401, %v4405
  %v4408 = vshll.u32 %v4217, 16
  %v4410 = vrot.slane %v4408, 1
  %v4411 = vsel %vm662, %v4406, %v4410
  %v4413 = vshrl.u32 %v4218, 16
  %v4415 = vshll.u32 %v4218, 16
  %v4417 = vrot.slane %v4415, 1
  %v4418 = vor.u32 %v4413, %v4417
  %v4420 = vshll.u32 %v4219, 16
  %v4422 = vrot.slane %v4420, 1
  %v4423 = vsel %vm662, %v4418, %v4422
  %v4425 = vshrl.u32 %v4220, 16
  %v4427 = vshll.u32 %v4220, 16
  %v4429 = vrot.slane %v4427, 1
  %v4430 = vor.u32 %v4425, %v4429
  %v4432 = vshll.u32 %v4221, 16
  %v4434 = vrot.slane %v4432, 1
  %v4435 = vsel %vm662, %v4430, %v4434
  %v4437 = vshrl.u32 %v4222, 16
  %v4439 = vshll.u32 %v4222, 16
  %v4441 = vrot.slane %v4439, 1
  %v4442 = vor.u32 %v4437, %v4441
  %v4444 = vshll.u32 %v4223, 16
  %v4446 = vrot.slane %v4444, 1
  %v4447 = vsel %vm662, %v4442, %v4446
  %v4449 = vshrl.u32 %v4224, 16
  %v4451 = vshll.u32 %v4224, 16
  %v4453 = vrot.slane %v4451, 1
  %v4454 = vor.u32 %v4449, %v4453
  %v4456 = vshll.u32 %v4225, 16
  %v4458 = vrot.slane %v4456, 1
  %v4459 = vsel %vm662, %v4454, %v4458
  %v4461 = vshrl.u32 %v4226, 16
  %v4463 = vshll.u32 %v4226, 16
  %v4465 = vrot.slane %v4463, 1
  %v4466 = vor.u32 %v4461, %v4465
  %v4468 = vshll.u32 %v4227, 16
  %v4470 = vrot.slane %v4468, 1
  %v4471 = vsel %vm662, %v4466, %v4470
  %v4473 = vshrl.u32 %v4228, 16
  %v4475 = vshll.u32 %v4228, 16
  %v4477 = vrot.slane %v4475, 1
  %v4478 = vor.u32 %v4473, %v4477
  %v4480 = vshll.u32 %v4229, 16
  %v4482 = vrot.slane %v4480, 1
  %v4483 = vsel %vm662, %v4478, %v4482
  %v4485 = vshrl.u32 %v4230, 16
  %v4487 = vshll.u32 %v4230, 16
  %v4489 = vrot.slane %v4487, 1
  %v4490 = vor.u32 %v4485, %v4489
  %v4492 = vshll.u32 %v4231, 16
  %v4494 = vrot.slane %v4492, 1
  %v4495 = vsel %vm662, %v4490, %v4494
  %v4497 = vshrl.u32 %v4232, 16
  %v4499 = vshll.u32 %v4232, 16
  %v4501 = vrot.slane %v4499, 1
  %v4502 = vor.u32 %v4497, %v4501
  %v4504 = vshll.u32 %v4233, 16
  %v4506 = vrot.slane %v4504, 1
  %v4507 = vsel %vm662, %v4502, %v4506
  %v4509 = vshrl.u32 %v4234, 16
  %v4511 = vshll.u32 %v4234, 16
  %v4513 = vrot.slane %v4511, 1
  %v4514 = vor.u32 %v4509, %v4513
  %v4516 = vshll.u32 %v4235, 16
  %v4518 = vrot.slane %v4516, 1
  %v4519 = vsel %vm662, %v4514, %v4518
  %v4521 = vshrl.u32 %v4236, 16
  %v4523 = vshll.u32 %v4236, 16
  %v4525 = vrot.slane %v4523, 1
  %v4526 = vor.u32 %v4521, %v4525
  %v4528 = vshll.u32 %v4237, 16
  %v4530 = vrot.slane %v4528, 1
  %v4531 = vsel %vm662, %v4526, %v4530
  %v4533 = vshrl.u32 %v4238, 16
  %v4535 = vshll.u32 %v4238, 16
  %v4537 = vrot.slane %v4535, 1
  %v4538 = vor.u32 %v4533, %v4537
  %v4540 = vshll.u32 %v4239, 16
  %v4542 = vrot.slane %v4540, 1
  %v4543 = vsel %vm662, %v4538, %v4542
  %v4545 = vshrl.u32 %v4240, 16
  %v4547 = vshll.u32 %v4240, 16
  %v4549 = vrot.slane %v4547, 1
  %v4550 = vor.u32 %v4545, %v4549
  %v4552 = vshll.u32 %v4241, 16
  %v4554 = vrot.slane %v4552, 1
  %v4555 = vsel %vm662, %v4550, %v4554
  %v4557 = vshrl.u32 %v4242, 16
  %v4559 = vshll.u32 %v4242, 16
  %v4561 = vrot.slane %v4559, 1
  %v4562 = vor.u32 %v4557, %v4561
  %v4564 = vshll.u32 %v4243, 16
  %v4566 = vrot.slane %v4564, 1
  %v4567 = vsel %vm662, %v4562, %v4566
  %v4569 = vshrl.u32 %v4244, 16
  %v4571 = vshll.u32 %v4244, 16
  %v4573 = vrot.slane %v4571, 1
  %v4574 = vor.u32 %v4569, %v4573
  %v4576 = vshll.u32 %v4245, 16
  %v4578 = vrot.slane %v4576, 1
  %v4579 = vsel %vm662, %v4574, %v4578
  %v4581 = vshrl.u32 %v4246, 16
  %v4583 = vshll.u32 %v4246, 16
  %v4585 = vrot.slane %v4583, 1
  %v4586 = vor.u32 %v4581, %v4585
  %v4588 = vshll.u32 %v4247, 16
  %v4590 = vrot.slane %v4588, 1
  %v4591 = vsel %vm662, %v4586, %v4590
  %v4593 = vshrl.u32 %v4248, 16
  %v4595 = vshll.u32 %v4248, 16
  %v4597 = vrot.slane %v4595, 1
  %v4598 = vor.u32 %v4593, %v4597
  %v4600 = vshll.u32 %v4249, 16
  %v4602 = vrot.slane %v4600, 1
  %v4603 = vsel %vm662, %v4598, %v4602
  %v4605 = vshrl.u32 %v4250, 16
  %v4607 = vshll.u32 %v4250, 16
  %v4609 = vrot.slane %v4607, 1
  %v4610 = vor.u32 %v4605, %v4609
  %v4612 = vshll.u32 %v4251, 16
  %v4614 = vrot.slane %v4612, 1
  %v4615 = vsel %vm662, %v4610, %v4614
  %v4617 = vshrl.u32 %v4252, 16
  %v4619 = vshll.u32 %v4252, 16
  %v4621 = vrot.slane %v4619, 1
  %v4622 = vor.u32 %v4617, %v4621
  %v4624 = vshll.u32 %v4253, 16
  %v4626 = vrot.slane %v4624, 1
  %v4627 = vsel %vm662, %v4622, %v4626
  %v4629 = vshrl.u32 %v4254, 16
  %v4631 = vshll.u32 %v4254, 16
  %v4633 = vrot.slane %v4631, 1
  %v4634 = vor.u32 %v4629, %v4633
  %v4636 = vshll.u32 %v4255, 16
  %v4638 = vrot.slane %v4636, 1
  %v4639 = vsel %vm662, %v4634, %v4638
  %4640 = vrot.lane.b32.xlu0 %v4267, 84
  %v4641 = vpop.permute.xlu0 %4640
  %4642 = vrot.lane.b32.xlu0 %v4279, 84
  %v4643 = vpop.permute.xlu0 %4642
  %4644 = vrot.lane.b32.xlu0 %v4291, 84
  %v4645 = vpop.permute.xlu0 %4644
  %4646 = vrot.lane.b32.xlu0 %v4303, 84
  %v4647 = vpop.permute.xlu0 %4646
  %4648 = vrot.lane.b32.xlu0 %v4315, 84
  %v4649 = vpop.permute.xlu0 %4648
  %4650 = vrot.lane.b32.xlu0 %v4327, 84
  %v4651 = vpop.permute.xlu0 %4650
  %4652 = vrot.lane.b32.xlu0 %v4339, 84
  %v4653 = vpop.permute.xlu0 %4652
  %4654 = vrot.lane.b32.xlu0 %v4351, 84
  %v4655 = vpop.permute.xlu0 %4654
  %4656 = vrot.lane.b32.xlu0 %v4363, 84
  %v4657 = vpop.permute.xlu0 %4656
  %4658 = vrot.lane.b32.xlu0 %v4375, 84
  %v4659 = vpop.permute.xlu0 %4658
  %4660 = vrot.lane.b32.xlu0 %v4387, 84
  %v4661 = vpop.permute.xlu0 %4660
  %4662 = vrot.lane.b32.xlu0 %v4399, 84
  %v4663 = vpop.permute.xlu0 %4662
  %4664 = vrot.lane.b32.xlu0 %v4411, 84
  %v4665 = vpop.permute.xlu0 %4664
  %4666 = vrot.lane.b32.xlu0 %v4423, 84
  %v4667 = vpop.permute.xlu0 %4666
  %4668 = vrot.lane.b32.xlu0 %v4435, 84
  %v4669 = vpop.permute.xlu0 %4668
  %4670 = vrot.lane.b32.xlu0 %v4447, 84
  %v4671 = vpop.permute.xlu0 %4670
  %4672 = vrot.lane.b32.xlu0 %v4459, 84
  %v4673 = vpop.permute.xlu0 %4672
  %4674 = vrot.lane.b32.xlu0 %v4471, 84
  %v4675 = vpop.permute.xlu0 %4674
  %4676 = vrot.lane.b32.xlu0 %v4483, 84
  %v4677 = vpop.permute.xlu0 %4676
  %4678 = vrot.lane.b32.xlu0 %v4495, 84
  %v4679 = vpop.permute.xlu0 %4678
  %4680 = vrot.lane.b32.xlu0 %v4507, 84
  %v4681 = vpop.permute.xlu0 %4680
  %4682 = vrot.lane.b32.xlu0 %v4519, 84
  %v4683 = vpop.permute.xlu0 %4682
  %4684 = vrot.lane.b32.xlu0 %v4531, 84
  %v4685 = vpop.permute.xlu0 %4684
  %4686 = vrot.lane.b32.xlu0 %v4543, 84
  %v4687 = vpop.permute.xlu0 %4686
  %4688 = vrot.lane.b32.xlu0 %v4555, 84
  %v4689 = vpop.permute.xlu0 %4688
  %4690 = vrot.lane.b32.xlu0 %v4567, 84
  %v4691 = vpop.permute.xlu0 %4690
  %4692 = vrot.lane.b32.xlu0 %v4579, 84
  %v4693 = vpop.permute.xlu0 %4692
  %4694 = vrot.lane.b32.xlu0 %v4591, 84
  %v4695 = vpop.permute.xlu0 %4694
  %4696 = vrot.lane.b32.xlu0 %v4603, 84
  %v4697 = vpop.permute.xlu0 %4696
  %4698 = vrot.lane.b32.xlu0 %v4615, 84
  %v4699 = vpop.permute.xlu0 %4698
  %4700 = vrot.lane.b32.xlu0 %v4627, 84
  %v4701 = vpop.permute.xlu0 %4700
  %4702 = vrot.lane.b32.xlu0 %v4639, 84
  %v4703 = vpop.permute.xlu0 %4702
  %vm4736 = vcmask 786080
  %4737 = vst.msk [vmem:[#allocation2] sm:$0xff] %vm4736, %v4641
  %4738 = vst.msk [vmem:[#allocation2 + $0x8] sm:$0xff] %vm4736, %v4643
  %4739 = vst.msk [vmem:[#allocation2 + $0x10] sm:$0xff] %vm4736, %v4645
  %4740 = vst.msk [vmem:[#allocation2 + $0x18] sm:$0xff] %vm4736, %v4647
  %4741 = vst.msk [vmem:[#allocation2 + $0x20] sm:$0xff] %vm4736, %v4649
  %4742 = vst.msk [vmem:[#allocation2 + $0x28] sm:$0xff] %vm4736, %v4651
  %4743 = vst.msk [vmem:[#allocation2 + $0x30] sm:$0xff] %vm4736, %v4653
  %4744 = vst.msk [vmem:[#allocation2 + $0x38] sm:$0xff] %vm4736, %v4655
  %4745 = vst.msk [vmem:[#allocation2 + $0x40] sm:$0xff] %vm4736, %v4657
  %4746 = vst.msk [vmem:[#allocation2 + $0x48] sm:$0xff] %vm4736, %v4659
  %4747 = vst.msk [vmem:[#allocation2 + $0x50] sm:$0xff] %vm4736, %v4661
  %4748 = vst.msk [vmem:[#allocation2 + $0x58] sm:$0xff] %vm4736, %v4663
  %4749 = vst.msk [vmem:[#allocation2 + $0x60] sm:$0xff] %vm4736, %v4665
  %4750 = vst.msk [vmem:[#allocation2 + $0x68] sm:$0xff] %vm4736, %v4667
  %4751 = vst.msk [vmem:[#allocation2 + $0x70] sm:$0xff] %vm4736, %v4669
  %4752 = vst.msk [vmem:[#allocation2 + $0x78] sm:$0xff] %vm4736, %v4671
  %4753 = vst.msk [vmem:[#allocation2 + $0x80] sm:$0xff] %vm4736, %v4673
  %4754 = vst.msk [vmem:[#allocation2 + $0x88] sm:$0xff] %vm4736, %v4675
  %4755 = vst.msk [vmem:[#allocation2 + $0x90] sm:$0xff] %vm4736, %v4677
  %4756 = vst.msk [vmem:[#allocation2 + $0x98] sm:$0xff] %vm4736, %v4679
  %4757 = vst.msk [vmem:[#allocation2 + $0xa0] sm:$0xff] %vm4736, %v4681
  %4758 = vst.msk [vmem:[#allocation2 + $0xa8] sm:$0xff] %vm4736, %v4683
  %4759 = vst.msk [vmem:[#allocation2 + $0xb0] sm:$0xff] %vm4736, %v4685
  %4760 = vst.msk [vmem:[#allocation2 + $0xb8] sm:$0xff] %vm4736, %v4687
  %4761 = vst.msk [vmem:[#allocation2 + $0xc0] sm:$0xff] %vm4736, %v4689
  %4762 = vst.msk [vmem:[#allocation2 + $0xc8] sm:$0xff] %vm4736, %v4691
  %4763 = vst.msk [vmem:[#allocation2 + $0xd0] sm:$0xff] %vm4736, %v4693
  %4764 = vst.msk [vmem:[#allocation2 + $0xd8] sm:$0xff] %vm4736, %v4695
  %4765 = vst.msk [vmem:[#allocation2 + $0xe0] sm:$0xff] %vm4736, %v4697
  %4766 = vst.msk [vmem:[#allocation2 + $0xe8] sm:$0xff] %vm4736, %v4699
  %4767 = vst.msk [vmem:[#allocation2 + $0xf0] sm:$0xff] %vm4736, %v4701
  %4768 = vst.msk [vmem:[#allocation2 + $0xf8] sm:$0xff] %vm4736, %v4703
  %v4769 = vld [vmem:[%s3550] sm:$0xe]
  %v4770 = vld [vmem:[%s3550 + $0x4] sm:$0xf]
  %v4771 = vld [vmem:[%s3550 + $0x8] sm:$0x1]
  %v4772 = vld [vmem:[%s3550 + $0xc] sm:$0xe]
  %v4773 = vld [vmem:[%s3550 + $0x10] sm:$0xf]
  %v4774 = vld [vmem:[%s3550 + $0x14] sm:$0x1]
  %v4775 = vld [vmem:[%s3550 + $0x18] sm:$0xe]
  %v4776 = vld [vmem:[%s3550 + $0x1c] sm:$0xf]
  %v4777 = vld [vmem:[%s3550 + $0x20] sm:$0x1]
  %v4778 = vld [vmem:[%s3550 + $0x24] sm:$0xe]
  %v4779 = vld [vmem:[%s3550 + $0x28] sm:$0xf]
  %v4780 = vld [vmem:[%s3550 + $0x2c] sm:$0x1]
  %v4781 = vld [vmem:[%s3550 + $0x30] sm:$0xe]
  %v4782 = vld [vmem:[%s3550 + $0x34] sm:$0xf]
  %v4783 = vld [vmem:[%s3550 + $0x38] sm:$0x1]
  %v4784 = vld [vmem:[%s3550 + $0x3c] sm:$0xe]
  %v4785 = vld [vmem:[%s3550 + $0x40] sm:$0xf]
  %v4786 = vld [vmem:[%s3550 + $0x44] sm:$0x1]
  %v4787 = vld [vmem:[%s3550 + $0x48] sm:$0xe]
  %v4788 = vld [vmem:[%s3550 + $0x4c] sm:$0xf]
  %v4789 = vld [vmem:[%s3550 + $0x50] sm:$0x1]
  %v4790 = vld [vmem:[%s3550 + $0x54] sm:$0xe]
  %v4791 = vld [vmem:[%s3550 + $0x58] sm:$0xf]
  %v4792 = vld [vmem:[%s3550 + $0x5c] sm:$0x1]
  %v4793 = vld [vmem:[%s3550 + $0x60] sm:$0xe]
  %v4794 = vld [vmem:[%s3550 + $0x64] sm:$0xf]
  %v4795 = vld [vmem:[%s3550 + $0x68] sm:$0x1]
  %v4796 = vld [vmem:[%s3550 + $0x6c] sm:$0xe]
  %v4797 = vld [vmem:[%s3550 + $0x70] sm:$0xf]
  %v4798 = vld [vmem:[%s3550 + $0x74] sm:$0x1]
  %v4799 = vld [vmem:[%s3550 + $0x78] sm:$0xe]
  %v4800 = vld [vmem:[%s3550 + $0x7c] sm:$0xf]
  %v4801 = vld [vmem:[%s3550 + $0x80] sm:$0x1]
  %v4802 = vld [vmem:[%s3550 + $0x84] sm:$0xe]
  %v4803 = vld [vmem:[%s3550 + $0x88] sm:$0xf]
  %v4804 = vld [vmem:[%s3550 + $0x8c] sm:$0x1]
  %v4805 = vld [vmem:[%s3550 + $0x90] sm:$0xe]
  %v4806 = vld [vmem:[%s3550 + $0x94] sm:$0xf]
  %v4807 = vld [vmem:[%s3550 + $0x98] sm:$0x1]
  %v4808 = vld [vmem:[%s3550 + $0x9c] sm:$0xe]
  %v4809 = vld [vmem:[%s3550 + $0xa0] sm:$0xf]
  %v4810 = vld [vmem:[%s3550 + $0xa4] sm:$0x1]
  %v4811 = vld [vmem:[%s3550 + $0xa8] sm:$0xe]
  %v4812 = vld [vmem:[%s3550 + $0xac] sm:$0xf]
  %v4813 = vld [vmem:[%s3550 + $0xb0] sm:$0x1]
  %v4814 = vld [vmem:[%s3550 + $0xb4] sm:$0xe]
  %v4815 = vld [vmem:[%s3550 + $0xb8] sm:$0xf]
  %v4816 = vld [vmem:[%s3550 + $0xbc] sm:$0x1]
  %v4817 = vld [vmem:[%s3550 + $0xd8] sm:$0xe]
  %v4818 = vld [vmem:[%s3550 + $0xdc] sm:$0xf]
  %v4819 = vld [vmem:[%s3550 + $0xe0] sm:$0x1]
  %v4820 = vld [vmem:[%s3550 + $0xe4] sm:$0xe]
  %v4821 = vld [vmem:[%s3550 + $0xe8] sm:$0xf]
  %v4822 = vld [vmem:[%s3550 + $0xec] sm:$0x1]
  %v4823 = vld [vmem:[%s3550 + $0xf0] sm:$0xe]
  %v4824 = vld [vmem:[%s3550 + $0xf4] sm:$0xf]
  %v4825 = vld [vmem:[%s3550 + $0xf8] sm:$0x1]
  %v4826 = vld [vmem:[%s3550 + $0xfc] sm:$0xe]
  %v4827 = vld [vmem:[%s3550 + $0x100] sm:$0xf]
  %v4828 = vld [vmem:[%s3550 + $0x104] sm:$0x1]
  %v4829 = vld [vmem:[%s3550 + $0x108] sm:$0xe]
  %v4830 = vld [vmem:[%s3550 + $0x10c] sm:$0xf]
  %v4831 = vld [vmem:[%s3550 + $0x110] sm:$0x1]
  %v4832 = vld [vmem:[%s3550 + $0x114] sm:$0xe]
  %v4833 = vld [vmem:[%s3550 + $0x118] sm:$0xf]
  %v4834 = vld [vmem:[%s3550 + $0x11c] sm:$0x1]
  %v4835 = vld [vmem:[%s3550 + $0x120] sm:$0xe]
  %v4836 = vld [vmem:[%s3550 + $0x124] sm:$0xf]
  %v4837 = vld [vmem:[%s3550 + $0x128] sm:$0x1]
  %v4838 = vld [vmem:[%s3550 + $0x12c] sm:$0xe]
  %v4839 = vld [vmem:[%s3550 + $0x130] sm:$0xf]
  %v4840 = vld [vmem:[%s3550 + $0x134] sm:$0x1]
  %v4841 = vld [vmem:[%s3550 + $0x138] sm:$0xe]
  %v4842 = vld [vmem:[%s3550 + $0x13c] sm:$0xf]
  %v4843 = vld [vmem:[%s3550 + $0x140] sm:$0x1]
  %v4844 = vld [vmem:[%s3550 + $0x144] sm:$0xe]
  %v4845 = vld [vmem:[%s3550 + $0x148] sm:$0xf]
  %v4846 = vld [vmem:[%s3550 + $0x14c] sm:$0x1]
  %v4847 = vld [vmem:[%s3550 + $0x150] sm:$0xe]
  %v4848 = vld [vmem:[%s3550 + $0x154] sm:$0xf]
  %v4849 = vld [vmem:[%s3550 + $0x158] sm:$0x1]
  %v4850 = vld [vmem:[%s3550 + $0x15c] sm:$0xe]
  %v4851 = vld [vmem:[%s3550 + $0x160] sm:$0xf]
  %v4852 = vld [vmem:[%s3550 + $0x164] sm:$0x1]
  %v4853 = vld [vmem:[%s3550 + $0x168] sm:$0xe]
  %v4854 = vld [vmem:[%s3550 + $0x16c] sm:$0xf]
  %v4855 = vld [vmem:[%s3550 + $0x170] sm:$0x1]
  %v4856 = vld [vmem:[%s3550 + $0x174] sm:$0xe]
  %v4857 = vld [vmem:[%s3550 + $0x178] sm:$0xf]
  %v4858 = vld [vmem:[%s3550 + $0x17c] sm:$0x1]
  %v4859 = vld [vmem:[%s3550 + $0x180] sm:$0xe]
  %v4860 = vld [vmem:[%s3550 + $0x184] sm:$0xf]
  %v4861 = vld [vmem:[%s3550 + $0x188] sm:$0x1]
  %v4862 = vld [vmem:[%s3550 + $0x18c] sm:$0xe]
  %v4863 = vld [vmem:[%s3550 + $0x190] sm:$0xf]
  %v4864 = vld [vmem:[%s3550 + $0x194] sm:$0x1]
  %v4961 = vunpack.c.l.b16 %v4769
  %v4962 = vunpack.c.l.b16 %v4770
  %v4963 = vunpack.c.l.b16 %v4771
  %v4964 = vunpack.c.l.b16 %v4772
  %v4965 = vunpack.c.l.b16 %v4773
  %v4966 = vunpack.c.l.b16 %v4774
  %v4967 = vunpack.c.l.b16 %v4775
  %v4968 = vunpack.c.l.b16 %v4776
  %v4969 = vunpack.c.l.b16 %v4777
  %v4970 = vunpack.c.l.b16 %v4778
  %v4971 = vunpack.c.l.b16 %v4779
  %v4972 = vunpack.c.l.b16 %v4780
  %v4973 = vunpack.c.l.b16 %v4781
  %v4974 = vunpack.c.l.b16 %v4782
  %v4975 = vunpack.c.l.b16 %v4783
  %v4976 = vunpack.c.l.b16 %v4784
  %v4977 = vunpack.c.l.b16 %v4785
  %v4978 = vunpack.c.l.b16 %v4786
  %v4979 = vunpack.c.l.b16 %v4787
  %v4980 = vunpack.c.l.b16 %v4788
  %v4981 = vunpack.c.l.b16 %v4789
  %v4982 = vunpack.c.l.b16 %v4790
  %v4983 = vunpack.c.l.b16 %v4791
  %v4984 = vunpack.c.l.b16 %v4792
  %v4985 = vunpack.c.l.b16 %v4793
  %v4986 = vunpack.c.l.b16 %v4794
  %v4987 = vunpack.c.l.b16 %v4795
  %v4988 = vunpack.c.l.b16 %v4796
  %v4989 = vunpack.c.l.b16 %v4797
  %v4990 = vunpack.c.l.b16 %v4798
  %v4991 = vunpack.c.l.b16 %v4799
  %v4992 = vunpack.c.l.b16 %v4800
  %v4993 = vunpack.c.l.b16 %v4801
  %v4994 = vunpack.c.l.b16 %v4802
  %v4995 = vunpack.c.l.b16 %v4803
  %v4996 = vunpack.c.l.b16 %v4804
  %v4997 = vunpack.c.l.b16 %v4805
  %v4998 = vunpack.c.l.b16 %v4806
  %v4999 = vunpack.c.l.b16 %v4807
  %v5000 = vunpack.c.l.b16 %v4808
  %v5001 = vunpack.c.l.b16 %v4809
  %v5002 = vunpack.c.l.b16 %v4810
  %v5003 = vunpack.c.l.b16 %v4811
  %v5004 = vunpack.c.l.b16 %v4812
  %v5005 = vunpack.c.l.b16 %v4813
  %v5006 = vunpack.c.l.b16 %v4814
  %v5007 = vunpack.c.l.b16 %v4815
  %v5008 = vunpack.c.l.b16 %v4816
  %v5009 = vunpack.c.l.b16 %v4817
  %v5010 = vunpack.c.l.b16 %v4818
  %v5011 = vunpack.c.l.b16 %v4819
  %v5012 = vunpack.c.l.b16 %v4820
  %v5013 = vunpack.c.l.b16 %v4821
  %v5014 = vunpack.c.l.b16 %v4822
  %v5015 = vunpack.c.l.b16 %v4823
  %v5016 = vunpack.c.l.b16 %v4824
  %v5017 = vunpack.c.l.b16 %v4825
  %v5018 = vunpack.c.l.b16 %v4826
  %v5019 = vunpack.c.l.b16 %v4827
  %v5020 = vunpack.c.l.b16 %v4828
  %v5021 = vunpack.c.l.b16 %v4829
  %v5022 = vunpack.c.l.b16 %v4830
  %v5023 = vunpack.c.l.b16 %v4831
  %v5024 = vunpack.c.l.b16 %v4832
  %v5025 = vunpack.c.l.b16 %v4833
  %v5026 = vunpack.c.l.b16 %v4834
  %v5027 = vunpack.c.l.b16 %v4835
  %v5028 = vunpack.c.l.b16 %v4836
  %v5029 = vunpack.c.l.b16 %v4837
  %v5030 = vunpack.c.l.b16 %v4838
  %v5031 = vunpack.c.l.b16 %v4839
  %v5032 = vunpack.c.l.b16 %v4840
  %v5033 = vunpack.c.l.b16 %v4841
  %v5034 = vunpack.c.l.b16 %v4842
  %v5035 = vunpack.c.l.b16 %v4843
  %v5036 = vunpack.c.l.b16 %v4844
  %v5037 = vunpack.c.l.b16 %v4845
  %v5038 = vunpack.c.l.b16 %v4846
  %v5039 = vunpack.c.l.b16 %v4847
  %v5040 = vunpack.c.l.b16 %v4848
  %v5041 = vunpack.c.l.b16 %v4849
  %v5042 = vunpack.c.l.b16 %v4850
  %v5043 = vunpack.c.l.b16 %v4851
  %v5044 = vunpack.c.l.b16 %v4852
  %v5045 = vunpack.c.l.b16 %v4853
  %v5046 = vunpack.c.l.b16 %v4854
  %v5047 = vunpack.c.l.b16 %v4855
  %v5048 = vunpack.c.l.b16 %v4856
  %v5049 = vunpack.c.l.b16 %v4857
  %v5050 = vunpack.c.l.b16 %v4858
  %v5051 = vunpack.c.l.b16 %v4859
  %v5052 = vunpack.c.l.b16 %v4860
  %v5053 = vunpack.c.l.b16 %v4861
  %v5054 = vunpack.c.l.b16 %v4862
  %v5055 = vunpack.c.l.b16 %v4863
  %v5056 = vunpack.c.l.b16 %v4864
  %v5057 = vpack.c.b16 %v4962, %v4961
  %v5058 = vpack.c.b16 %v4963, %v4963
  %v5059 = vpack.c.b16 %v4965, %v4964
  %v5060 = vpack.c.b16 %v4966, %v4966
  %v5061 = vpack.c.b16 %v4968, %v4967
  %v5062 = vpack.c.b16 %v4969, %v4969
  %v5063 = vpack.c.b16 %v4971, %v4970
  %v5064 = vpack.c.b16 %v4972, %v4972
  %v5065 = vpack.c.b16 %v4974, %v4973
  %v5066 = vpack.c.b16 %v4975, %v4975
  %v5067 = vpack.c.b16 %v4977, %v4976
  %v5068 = vpack.c.b16 %v4978, %v4978
  %v5069 = vpack.c.b16 %v4980, %v4979
  %v5070 = vpack.c.b16 %v4981, %v4981
  %v5071 = vpack.c.b16 %v4983, %v4982
  %v5072 = vpack.c.b16 %v4984, %v4984
  %v5073 = vpack.c.b16 %v4986, %v4985
  %v5074 = vpack.c.b16 %v4987, %v4987
  %v5075 = vpack.c.b16 %v4989, %v4988
  %v5076 = vpack.c.b16 %v4990, %v4990
  %v5077 = vpack.c.b16 %v4992, %v4991
  %v5078 = vpack.c.b16 %v4993, %v4993
  %v5079 = vpack.c.b16 %v4995, %v4994
  %v5080 = vpack.c.b16 %v4996, %v4996
  %v5081 = vpack.c.b16 %v4998, %v4997
  %v5082 = vpack.c.b16 %v4999, %v4999
  %v5083 = vpack.c.b16 %v5001, %v5000
  %v5084 = vpack.c.b16 %v5002, %v5002
  %v5085 = vpack.c.b16 %v5004, %v5003
  %v5086 = vpack.c.b16 %v5005, %v5005
  %v5087 = vpack.c.b16 %v5007, %v5006
  %v5088 = vpack.c.b16 %v5008, %v5008
  %v5089 = vpack.c.b16 %v5010, %v5009
  %v5090 = vpack.c.b16 %v5011, %v5011
  %v5091 = vpack.c.b16 %v5013, %v5012
  %v5092 = vpack.c.b16 %v5014, %v5014
  %v5093 = vpack.c.b16 %v5016, %v5015
  %v5094 = vpack.c.b16 %v5017, %v5017
  %v5095 = vpack.c.b16 %v5019, %v5018
  %v5096 = vpack.c.b16 %v5020, %v5020
  %v5097 = vpack.c.b16 %v5022, %v5021
  %v5098 = vpack.c.b16 %v5023, %v5023
  %v5099 = vpack.c.b16 %v5025, %v5024
  %v5100 = vpack.c.b16 %v5026, %v5026
  %v5101 = vpack.c.b16 %v5028, %v5027
  %v5102 = vpack.c.b16 %v5029, %v5029
  %v5103 = vpack.c.b16 %v5031, %v5030
  %v5104 = vpack.c.b16 %v5032, %v5032
  %v5105 = vpack.c.b16 %v5034, %v5033
  %v5106 = vpack.c.b16 %v5035, %v5035
  %v5107 = vpack.c.b16 %v5037, %v5036
  %v5108 = vpack.c.b16 %v5038, %v5038
  %v5109 = vpack.c.b16 %v5040, %v5039
  %v5110 = vpack.c.b16 %v5041, %v5041
  %v5111 = vpack.c.b16 %v5043, %v5042
  %v5112 = vpack.c.b16 %v5044, %v5044
  %v5113 = vpack.c.b16 %v5046, %v5045
  %v5114 = vpack.c.b16 %v5047, %v5047
  %v5115 = vpack.c.b16 %v5049, %v5048
  %v5116 = vpack.c.b16 %v5050, %v5050
  %v5117 = vpack.c.b16 %v5052, %v5051
  %v5118 = vpack.c.b16 %v5053, %v5053
  %v5119 = vpack.c.b16 %v5055, %v5054
  %v5120 = vpack.c.b16 %v5056, %v5056
  %v5121 = vrot.slane %v5057, 1
  %v5122 = vrot.slane %v5058, 1
  %v5123 = vsel %vm1528, %v5121, %v5122
  %v5124 = vrot.slane %v5059, 1
  %v5125 = vrot.slane %v5060, 1
  %v5126 = vsel %vm1528, %v5124, %v5125
  %v5127 = vrot.slane %v5061, 1
  %v5128 = vrot.slane %v5062, 1
  %v5129 = vsel %vm1528, %v5127, %v5128
  %v5130 = vrot.slane %v5063, 1
  %v5131 = vrot.slane %v5064, 1
  %v5132 = vsel %vm1528, %v5130, %v5131
  %v5133 = vrot.slane %v5065, 1
  %v5134 = vrot.slane %v5066, 1
  %v5135 = vsel %vm1528, %v5133, %v5134
  %v5136 = vrot.slane %v5067, 1
  %v5137 = vrot.slane %v5068, 1
  %v5138 = vsel %vm1528, %v5136, %v5137
  %v5139 = vrot.slane %v5069, 1
  %v5140 = vrot.slane %v5070, 1
  %v5141 = vsel %vm1528, %v5139, %v5140
  %v5142 = vrot.slane %v5071, 1
  %v5143 = vrot.slane %v5072, 1
  %v5144 = vsel %vm1528, %v5142, %v5143
  %v5145 = vrot.slane %v5073, 1
  %v5146 = vrot.slane %v5074, 1
  %v5147 = vsel %vm1528, %v5145, %v5146
  %v5148 = vrot.slane %v5075, 1
  %v5149 = vrot.slane %v5076, 1
  %v5150 = vsel %vm1528, %v5148, %v5149
  %v5151 = vrot.slane %v5077, 1
  %v5152 = vrot.slane %v5078, 1
  %v5153 = vsel %vm1528, %v5151, %v5152
  %v5154 = vrot.slane %v5079, 1
  %v5155 = vrot.slane %v5080, 1
  %v5156 = vsel %vm1528, %v5154, %v5155
  %v5157 = vrot.slane %v5081, 1
  %v5158 = vrot.slane %v5082, 1
  %v5159 = vsel %vm1528, %v5157, %v5158
  %v5160 = vrot.slane %v5083, 1
  %v5161 = vrot.slane %v5084, 1
  %v5162 = vsel %vm1528, %v5160, %v5161
  %v5163 = vrot.slane %v5085, 1
  %v5164 = vrot.slane %v5086, 1
  %v5165 = vsel %vm1528, %v5163, %v5164
  %v5166 = vrot.slane %v5087, 1
  %v5167 = vrot.slane %v5088, 1
  %v5168 = vsel %vm1528, %v5166, %v5167
  %v5169 = vrot.slane %v5089, 1
  %v5170 = vrot.slane %v5090, 1
  %v5171 = vsel %vm1528, %v5169, %v5170
  %v5172 = vrot.slane %v5091, 1
  %v5173 = vrot.slane %v5092, 1
  %v5174 = vsel %vm1528, %v5172, %v5173
  %v5175 = vrot.slane %v5093, 1
  %v5176 = vrot.slane %v5094, 1
  %v5177 = vsel %vm1528, %v5175, %v5176
  %v5178 = vrot.slane %v5095, 1
  %v5179 = vrot.slane %v5096, 1
  %v5180 = vsel %vm1528, %v5178, %v5179
  %v5181 = vrot.slane %v5097, 1
  %v5182 = vrot.slane %v5098, 1
  %v5183 = vsel %vm1528, %v5181, %v5182
  %v5184 = vrot.slane %v5099, 1
  %v5185 = vrot.slane %v5100, 1
  %v5186 = vsel %vm1528, %v5184, %v5185
  %v5187 = vrot.slane %v5101, 1
  %v5188 = vrot.slane %v5102, 1
  %v5189 = vsel %vm1528, %v5187, %v5188
  %v5190 = vrot.slane %v5103, 1
  %v5191 = vrot.slane %v5104, 1
  %v5192 = vsel %vm1528, %v5190, %v5191
  %v5193 = vrot.slane %v5105, 1
  %v5194 = vrot.slane %v5106, 1
  %v5195 = vsel %vm1528, %v5193, %v5194
  %v5196 = vrot.slane %v5107, 1
  %v5197 = vrot.slane %v5108, 1
  %v5198 = vsel %vm1528, %v5196, %v5197
  %v5199 = vrot.slane %v5109, 1
  %v5200 = vrot.slane %v5110, 1
  %v5201 = vsel %vm1528, %v5199, %v5200
  %v5202 = vrot.slane %v5111, 1
  %v5203 = vrot.slane %v5112, 1
  %v5204 = vsel %vm1528, %v5202, %v5203
  %v5205 = vrot.slane %v5113, 1
  %v5206 = vrot.slane %v5114, 1
  %v5207 = vsel %vm1528, %v5205, %v5206
  %v5208 = vrot.slane %v5115, 1
  %v5209 = vrot.slane %v5116, 1
  %v5210 = vsel %vm1528, %v5208, %v5209
  %v5211 = vrot.slane %v5117, 1
  %v5212 = vrot.slane %v5118, 1
  %v5213 = vsel %vm1528, %v5211, %v5212
  %v5214 = vrot.slane %v5119, 1
  %v5215 = vrot.slane %v5120, 1
  %v5216 = vsel %vm1528, %v5214, %v5215
  %5217 = vrot.lane.b32.xlu0 %v5123, 96
  %v5218 = vpop.permute.xlu0 %5217
  %5219 = vrot.lane.b32.xlu0 %v5126, 96
  %v5220 = vpop.permute.xlu0 %5219
  %5221 = vrot.lane.b32.xlu0 %v5129, 96
  %v5222 = vpop.permute.xlu0 %5221
  %5223 = vrot.lane.b32.xlu0 %v5132, 96
  %v5224 = vpop.permute.xlu0 %5223
  %5225 = vrot.lane.b32.xlu0 %v5135, 96
  %v5226 = vpop.permute.xlu0 %5225
  %5227 = vrot.lane.b32.xlu0 %v5138, 96
  %v5228 = vpop.permute.xlu0 %5227
  %5229 = vrot.lane.b32.xlu0 %v5141, 96
  %v5230 = vpop.permute.xlu0 %5229
  %5231 = vrot.lane.b32.xlu0 %v5144, 96
  %v5232 = vpop.permute.xlu0 %5231
  %5233 = vrot.lane.b32.xlu0 %v5147, 96
  %v5234 = vpop.permute.xlu0 %5233
  %5235 = vrot.lane.b32.xlu0 %v5150, 96
  %v5236 = vpop.permute.xlu0 %5235
  %5237 = vrot.lane.b32.xlu0 %v5153, 96
  %v5238 = vpop.permute.xlu0 %5237
  %5239 = vrot.lane.b32.xlu0 %v5156, 96
  %v5240 = vpop.permute.xlu0 %5239
  %5241 = vrot.lane.b32.xlu0 %v5159, 96
  %v5242 = vpop.permute.xlu0 %5241
  %5243 = vrot.lane.b32.xlu0 %v5162, 96
  %v5244 = vpop.permute.xlu0 %5243
  %5245 = vrot.lane.b32.xlu0 %v5165, 96
  %v5246 = vpop.permute.xlu0 %5245
  %5247 = vrot.lane.b32.xlu0 %v5168, 96
  %v5248 = vpop.permute.xlu0 %5247
  %5249 = vrot.lane.b32.xlu0 %v5171, 96
  %v5250 = vpop.permute.xlu0 %5249
  %5251 = vrot.lane.b32.xlu0 %v5174, 96
  %v5252 = vpop.permute.xlu0 %5251
  %5253 = vrot.lane.b32.xlu0 %v5177, 96
  %v5254 = vpop.permute.xlu0 %5253
  %5255 = vrot.lane.b32.xlu0 %v5180, 96
  %v5256 = vpop.permute.xlu0 %5255
  %5257 = vrot.lane.b32.xlu0 %v5183, 96
  %v5258 = vpop.permute.xlu0 %5257
  %5259 = vrot.lane.b32.xlu0 %v5186, 96
  %v5260 = vpop.permute.xlu0 %5259
  %5261 = vrot.lane.b32.xlu0 %v5189, 96
  %v5262 = vpop.permute.xlu0 %5261
  %5263 = vrot.lane.b32.xlu0 %v5192, 96
  %v5264 = vpop.permute.xlu0 %5263
  %5265 = vrot.lane.b32.xlu0 %v5195, 96
  %v5266 = vpop.permute.xlu0 %5265
  %5267 = vrot.lane.b32.xlu0 %v5198, 96
  %v5268 = vpop.permute.xlu0 %5267
  %5269 = vrot.lane.b32.xlu0 %v5201, 96
  %v5270 = vpop.permute.xlu0 %5269
  %5271 = vrot.lane.b32.xlu0 %v5204, 96
  %v5272 = vpop.permute.xlu0 %5271
  %5273 = vrot.lane.b32.xlu0 %v5207, 96
  %v5274 = vpop.permute.xlu0 %5273
  %5275 = vrot.lane.b32.xlu0 %v5210, 96
  %v5276 = vpop.permute.xlu0 %5275
  %5277 = vrot.lane.b32.xlu0 %v5213, 96
  %v5278 = vpop.permute.xlu0 %5277
  %5279 = vrot.lane.b32.xlu0 %v5216, 96
  %v5280 = vpop.permute.xlu0 %5279
  %vm5313 = vcmask 884480
  %5314 = vst.msk [vmem:[#allocation2] sm:$0xff] %vm5313, %v5218
  %5315 = vst.msk [vmem:[#allocation2 + $0x8] sm:$0xff] %vm5313, %v5220
  %5316 = vst.msk [vmem:[#allocation2 + $0x10] sm:$0xff] %vm5313, %v5222
  %5317 = vst.msk [vmem:[#allocation2 + $0x18] sm:$0xff] %vm5313, %v5224
  %5318 = vst.msk [vmem:[#allocation2 + $0x20] sm:$0xff] %vm5313, %v5226
  %5319 = vst.msk [vmem:[#allocation2 + $0x28] sm:$0xff] %vm5313, %v5228
  %5320 = vst.msk [vmem:[#allocation2 + $0x30] sm:$0xff] %vm5313, %v5230
  %5321 = vst.msk [vmem:[#allocation2 + $0x38] sm:$0xff] %vm5313, %v5232
  %5322 = vst.msk [vmem:[#allocation2 + $0x40] sm:$0xff] %vm5313, %v5234
  %5323 = vst.msk [vmem:[#allocation2 + $0x48] sm:$0xff] %vm5313, %v5236
  %5324 = vst.msk [vmem:[#allocation2 + $0x50] sm:$0xff] %vm5313, %v5238
  %5325 = vst.msk [vmem:[#allocation2 + $0x58] sm:$0xff] %vm5313, %v5240
  %5326 = vst.msk [vmem:[#allocation2 + $0x60] sm:$0xff] %vm5313, %v5242
  %5327 = vst.msk [vmem:[#allocation2 + $0x68] sm:$0xff] %vm5313, %v5244
  %5328 = vst.msk [vmem:[#allocation2 + $0x70] sm:$0xff] %vm5313, %v5246
  %5329 = vst.msk [vmem:[#allocation2 + $0x78] sm:$0xff] %vm5313, %v5248
  %5330 = vst.msk [vmem:[#allocation2 + $0x80] sm:$0xff] %vm5313, %v5250
  %5331 = vst.msk [vmem:[#allocation2 + $0x88] sm:$0xff] %vm5313, %v5252
  %5332 = vst.msk [vmem:[#allocation2 + $0x90] sm:$0xff] %vm5313, %v5254
  %5333 = vst.msk [vmem:[#allocation2 + $0x98] sm:$0xff] %vm5313, %v5256
  %5334 = vst.msk [vmem:[#allocation2 + $0xa0] sm:$0xff] %vm5313, %v5258
  %5335 = vst.msk [vmem:[#allocation2 + $0xa8] sm:$0xff] %vm5313, %v5260
  %5336 = vst.msk [vmem:[#allocation2 + $0xb0] sm:$0xff] %vm5313, %v5262
  %5337 = vst.msk [vmem:[#allocation2 + $0xb8] sm:$0xff] %vm5313, %v5264
  %5338 = vst.msk [vmem:[#allocation2 + $0xc0] sm:$0xff] %vm5313, %v5266
  %5339 = vst.msk [vmem:[#allocation2 + $0xc8] sm:$0xff] %vm5313, %v5268
  %5340 = vst.msk [vmem:[#allocation2 + $0xd0] sm:$0xff] %vm5313, %v5270
  %5341 = vst.msk [vmem:[#allocation2 + $0xd8] sm:$0xff] %vm5313, %v5272
  %5342 = vst.msk [vmem:[#allocation2 + $0xe0] sm:$0xff] %vm5313, %v5274
  %5343 = vst.msk [vmem:[#allocation2 + $0xe8] sm:$0xff] %vm5313, %v5276
  %5344 = vst.msk [vmem:[#allocation2 + $0xf0] sm:$0xff] %vm5313, %v5278
  %5345 = vst.msk [vmem:[#allocation2 + $0xf8] sm:$0xff] %vm5313, %v5280
  %v5346 = vld [vmem:[#allocation2] sm:$0xff]
  %v5347 = vld [vmem:[#allocation2 + $0x8] sm:$0xff]
  %v5348 = vld [vmem:[#allocation2 + $0x10] sm:$0xff]
  %v5349 = vld [vmem:[#allocation2 + $0x18] sm:$0xff]
  %v5350 = vld [vmem:[#allocation2 + $0x20] sm:$0xff]
  %v5351 = vld [vmem:[#allocation2 + $0x28] sm:$0xff]
  %v5352 = vld [vmem:[#allocation2 + $0x30] sm:$0xff]
  %v5353 = vld [vmem:[#allocation2 + $0x38] sm:$0xff]
  %v5354 = vld [vmem:[#allocation2 + $0x40] sm:$0xff]
  %v5355 = vld [vmem:[#allocation2 + $0x48] sm:$0xff]
  %v5356 = vld [vmem:[#allocation2 + $0x50] sm:$0xff]
  %v5357 = vld [vmem:[#allocation2 + $0x58] sm:$0xff]
  %v5358 = vld [vmem:[#allocation2 + $0x60] sm:$0xff]
  %v5359 = vld [vmem:[#allocation2 + $0x68] sm:$0xff]
  %v5360 = vld [vmem:[#allocation2 + $0x70] sm:$0xff]
  %v5361 = vld [vmem:[#allocation2 + $0x78] sm:$0xff]
  %v5362 = vld [vmem:[#allocation2 + $0x80] sm:$0xff]
  %v5363 = vld [vmem:[#allocation2 + $0x88] sm:$0xff]
  %v5364 = vld [vmem:[#allocation2 + $0x90] sm:$0xff]
  %v5365 = vld [vmem:[#allocation2 + $0x98] sm:$0xff]
  %v5366 = vld [vmem:[#allocation2 + $0xa0] sm:$0xff]
  %v5367 = vld [vmem:[#allocation2 + $0xa8] sm:$0xff]
  %v5368 = vld [vmem:[#allocation2 + $0xb0] sm:$0xff]
  %v5369 = vld [vmem:[#allocation2 + $0xb8] sm:$0xff]
  %v5370 = vld [vmem:[#allocation2 + $0xc0] sm:$0xff]
  %v5371 = vld [vmem:[#allocation2 + $0xc8] sm:$0xff]
  %v5372 = vld [vmem:[#allocation2 + $0xd0] sm:$0xff]
  %v5373 = vld [vmem:[#allocation2 + $0xd8] sm:$0xff]
  %v5374 = vld [vmem:[#allocation2 + $0xe0] sm:$0xff]
  %v5375 = vld [vmem:[#allocation2 + $0xe8] sm:$0xff]
  %v5376 = vld [vmem:[#allocation2 + $0xf0] sm:$0xff]
  %v5377 = vld [vmem:[#allocation2 + $0xf8] sm:$0xff]
  %v5378 = vld [vmem:[%s2] sm:$0xf]
  %v5379 = vld [vmem:[%s2 + $0x4] sm:$0xf]
  %v5380 = vld [vmem:[%s2 + $0x8] sm:$0xf]
  %v5381 = vld [vmem:[%s2 + $0xc] sm:$0xf]
  %v5382 = vld [vmem:[%s2 + $0x10] sm:$0xf]
  %v5383 = vld [vmem:[%s2 + $0x14] sm:$0xf]
  %v5384 = vld [vmem:[%s2 + $0x18] sm:$0xf]
  %v5385 = vld [vmem:[%s2 + $0x1c] sm:$0xf]
  %v5386 = vld [vmem:[%s2 + $0x20] sm:$0xf]
  %v5387 = vld [vmem:[%s2 + $0x24] sm:$0xf]
  %v5388 = vld [vmem:[%s2 + $0x28] sm:$0xf]
  %v5389 = vld [vmem:[%s2 + $0x2c] sm:$0xf]
  %v5390 = vld [vmem:[%s2 + $0x30] sm:$0xf]
  %v5391 = vld [vmem:[%s2 + $0x34] sm:$0x3]
  %v5392 = vld [vmem:[%s4] sm:$0x1]
  %v5394 = vlaneseq
  %v5395 = vshrl.u32 %v5394, 7
  %v5396 = vsub.s32 0, %v5395
  %v5397 = vrot.slane %v5392, %v5396
  %v5413 = vunpack.c.l.b16 %v5378
  %v5414 = vunpack.c.l.b16 %v5379
  %v5415 = vunpack.c.l.b16 %v5380
  %v5416 = vunpack.c.l.b16 %v5381
  %v5417 = vunpack.c.l.b16 %v5382
  %v5418 = vunpack.c.l.b16 %v5383
  %v5419 = vunpack.c.l.b16 %v5384
  %v5420 = vunpack.c.l.b16 %v5385
  %v5421 = vunpack.c.l.b16 %v5386
  %v5422 = vunpack.c.l.b16 %v5387
  %v5423 = vunpack.c.l.b16 %v5388
  %v5424 = vunpack.c.l.b16 %v5389
  %v5425 = vunpack.c.l.b16 %v5390
  %v5426 = vunpack.c.l.b16 %v5391
  %v5427 = vpack.c.b16 %v5414, %v5413
  %v5428 = vpack.c.b16 %v5416, %v5415
  %v5429 = vpack.c.b16 %v5418, %v5417
  %v5430 = vpack.c.b16 %v5420, %v5419
  %v5431 = vpack.c.b16 %v5422, %v5421
  %v5432 = vpack.c.b16 %v5424, %v5423
  %v5433 = vpack.c.b16 %v5426, %v5425
  %vm5440 = vcmask 883712
  %v5442 = vsel %vm5440, %v5346, 0
  %v5445 = vsel %vm5440, %v5347, 0
  %v5448 = vsel %vm5440, %v5348, 0
  %v5451 = vsel %vm5440, %v5349, 0
  %v5454 = vsel %vm5440, %v5350, 0
  %v5457 = vsel %vm5440, %v5351, 0
  %v5460 = vsel %vm5440, %v5352, 0
  %v5463 = vsel %vm5440, %v5353, 0
  %v5466 = vsel %vm5440, %v5354, 0
  %v5469 = vsel %vm5440, %v5355, 0
  %v5472 = vsel %vm5440, %v5356, 0
  %v5475 = vsel %vm5440, %v5357, 0
  %v5478 = vsel %vm5440, %v5358, 0
  %v5481 = vsel %vm5440, %v5359, 0
  %v5484 = vsel %vm5440, %v5360, 0
  %v5487 = vsel %vm5440, %v5361, 0
  %v5490 = vsel %vm5440, %v5362, 0
  %v5493 = vsel %vm5440, %v5363, 0
  %v5496 = vsel %vm5440, %v5364, 0
  %v5499 = vsel %vm5440, %v5365, 0
  %v5502 = vsel %vm5440, %v5366, 0
  %v5505 = vsel %vm5440, %v5367, 0
  %v5508 = vsel %vm5440, %v5368, 0
  %v5511 = vsel %vm5440, %v5369, 0
  %v5514 = vsel %vm5440, %v5370, 0
  %v5517 = vsel %vm5440, %v5371, 0
  %v5520 = vsel %vm5440, %v5372, 0
  %v5523 = vsel %vm5440, %v5373, 0
  %v5526 = vsel %vm5440, %v5374, 0
  %v5529 = vsel %vm5440, %v5375, 0
  %v5532 = vsel %vm5440, %v5376, 0
  %v5535 = vsel %vm5440, %v5377, 0
  %vm5537 = vcmask 1045504
  %v5539 = vsel %vm5537, %v5433, 0
  %5541 = vmatprep.subr.bf16.mxu0 0
  %5542 = vmatpush1.bf16.msra.mxu0 %v5427
  %5543 = vmatprep.subr.bf16.mxu0 0
  %5544 = vmatpush1.bf16.msra.mxu0 %v5428
  %5545 = vmatprep.subr.bf16.mxu0 0
  %5546 = vmatpush1.bf16.msra.mxu0 %v5429
  %5547 = vmatprep.subr.bf16.mxu0 0
  %5548 = vmatpush1.bf16.msra.mxu0 %v5430
  %5549 = vmatprep.subr.bf16.mxu0 0
  %5550 = vmatpush1.bf16.msra.mxu0 %v5431
  %5551 = vmatprep.subr.bf16.mxu0 0
  %5552 = vmatpush1.bf16.msra.mxu0 %v5432
  %5553 = vmatprep.subr.bf16.mxu0 0
  %5554 = vmatpush1.bf16.msra.mxu0 %v5539
  %5555 = vmatprep.subr.bf16.mxu0 0
  %5556 = vmatpush1.bf16.msra.mxu0 0
  %5557 = vmatprep.subr.bf16.mxu0 0
  %5558 = vmatpush1.bf16.msra.mxu0 0
  %5559 = vmatprep.subr.bf16.mxu0 0
  %5560 = vmatpush1.bf16.msra.mxu0 0
  %5561 = vmatprep.subr.bf16.mxu0 0
  %5562 = vmatpush1.bf16.msra.mxu0 0
  %5563 = vmatprep.subr.bf16.mxu0 0
  %5564 = vmatpush1.bf16.msra.mxu0 0
  %5565 = vmatprep.subr.bf16.mxu0 0
  %5566 = vmatpush1.bf16.msra.mxu0 0
  %5567 = vmatprep.subr.bf16.mxu0 0
  %5568 = vmatpush1.bf16.msra.mxu0 0
  %5569 = vmatprep.subr.bf16.mxu0 0
  %5570 = vmatpush1.bf16.msra.mxu0 0
  %5571 = vmatprep.subr.bf16.mxu0 0
  %5572 = vmatpush1.bf16.msra.mxu0 0
  %5573 = vmatprep.mubr.bf16.mxu0 0
  %5574 = vmatmul.mubr.bf16.gmra.mrb[0].mxu0 %v5442
  %v5575 = vpop.f32.mrb[0].mxu0
  %v5576 = vadd.f32 %v5397, %v5575
  %v5577 = vpop.f32.mrb[0].mxu0
  %v5578 = vpop.f32.mrb[0].mxu0
  %v5579 = vadd.f32 %v5397, %v5578
  %v5580 = vpop.f32.mrb[0].mxu0
  %5581 = vmatprep.mubr.bf16.mxu0 0
  %5582 = vmatmul.mubr.bf16.gmra.mrb[0].mxu0 %v5445
  %v5583 = vpop.f32.mrb[0].mxu0
  %v5584 = vadd.f32 %v5397, %v5583
  %v5585 = vpop.f32.mrb[0].mxu0
  %v5586 = vpop.f32.mrb[0].mxu0
  %v5587 = vadd.f32 %v5397, %v5586
  %v5588 = vpop.f32.mrb[0].mxu0
  %5589 = vmatprep.mubr.bf16.mxu0 0
  %5590 = vmatmul.mubr.bf16.gmra.mrb[0].mxu0 %v5448
  %v5591 = vpop.f32.mrb[0].mxu0
  %v5592 = vadd.f32 %v5397, %v5591
  %v5593 = vpop.f32.mrb[0].mxu0
  %v5594 = vpop.f32.mrb[0].mxu0
  %v5595 = vadd.f32 %v5397, %v5594
  %v5596 = vpop.f32.mrb[0].mxu0
  %5597 = vmatprep.mubr.bf16.mxu0 0
  %5598 = vmatmul.mubr.bf16.gmra.mrb[0].mxu0 %v5451
  %v5599 = vpop.f32.mrb[0].mxu0
  %v5600 = vadd.f32 %v5397, %v5599
  %v5601 = vpop.f32.mrb[0].mxu0
  %v5602 = vpop.f32.mrb[0].mxu0
  %v5603 = vadd.f32 %v5397, %v5602
  %v5604 = vpop.f32.mrb[0].mxu0
  %5605 = vmatprep.mubr.bf16.mxu0 0
  %5606 = vmatmul.mubr.bf16.gmra.mrb[0].mxu0 %v5454
  %v5607 = vpop.f32.mrb[0].mxu0
  %v5608 = vadd.f32 %v5397, %v5607
  %v5609 = vpop.f32.mrb[0].mxu0
  %v5610 = vpop.f32.mrb[0].mxu0
  %v5611 = vadd.f32 %v5397, %v5610
  %v5612 = vpop.f32.mrb[0].mxu0
  %5613 = vmatprep.mubr.bf16.mxu0 0
  %5614 = vmatmul.mubr.bf16.gmra.mrb[0].mxu0 %v5457
  %v5615 = vpop.f32.mrb[0].mxu0
  %v5616 = vadd.f32 %v5397, %v5615
  %v5617 = vpop.f32.mrb[0].mxu0
  %v5618 = vpop.f32.mrb[0].mxu0
  %v5619 = vadd.f32 %v5397, %v5618
  %v5620 = vpop.f32.mrb[0].mxu0
  %5621 = vmatprep.mubr.bf16.mxu0 0
  %5622 = vmatmul.mubr.bf16.gmra.mrb[0].mxu0 %v5460
  %v5623 = vpop.f32.mrb[0].mxu0
  %v5624 = vadd.f32 %v5397, %v5623
  %v5625 = vpop.f32.mrb[0].mxu0
  %v5626 = vpop.f32.mrb[0].mxu0
  %v5627 = vadd.f32 %v5397, %v5626
  %v5628 = vpop.f32.mrb[0].mxu0
  %5629 = vmatprep.mubr.bf16.mxu0 0
  %5630 = vmatmul.mubr.bf16.gmra.mrb[0].mxu0 %v5463
  %v5631 = vpop.f32.mrb[0].mxu0
  %v5632 = vadd.f32 %v5397, %v5631
  %v5633 = vpop.f32.mrb[0].mxu0
  %v5634 = vpop.f32.mrb[0].mxu0
  %v5635 = vadd.f32 %v5397, %v5634
  %v5636 = vpop.f32.mrb[0].mxu0
  %5637 = vmatprep.mubr.bf16.mxu0 0
  %5638 = vmatmul.mubr.bf16.gmra.mrb[0].mxu0 %v5466
  %v5639 = vpop.f32.mrb[0].mxu0
  %v5640 = vadd.f32 %v5397, %v5639
  %v5641 = vpop.f32.mrb[0].mxu0
  %v5642 = vpop.f32.mrb[0].mxu0
  %v5643 = vadd.f32 %v5397, %v5642
  %v5644 = vpop.f32.mrb[0].mxu0
  %5645 = vmatprep.mubr.bf16.mxu0 0
  %5646 = vmatmul.mubr.bf16.gmra.mrb[0].mxu0 %v5469
  %v5647 = vpop.f32.mrb[0].mxu0
  %v5648 = vadd.f32 %v5397, %v5647
  %v5649 = vpop.f32.mrb[0].mxu0
  %v5650 = vpop.f32.mrb[0].mxu0
  %v5651 = vadd.f32 %v5397, %v5650
  %v5652 = vpop.f32.mrb[0].mxu0
  %5653 = vmatprep.mubr.bf16.mxu0 0
  %5654 = vmatmul.mubr.bf16.gmra.mrb[0].mxu0 %v5472
  %v5655 = vpop.f32.mrb[0].mxu0
  %v5656 = vadd.f32 %v5397, %v5655
  %v5657 = vpop.f32.mrb[0].mxu0
  %v5658 = vpop.f32.mrb[0].mxu0
  %v5659 = vadd.f32 %v5397, %v5658
  %v5660 = vpop.f32.mrb[0].mxu0
  %5661 = vmatprep.mubr.bf16.mxu0 0
  %5662 = vmatmul.mubr.bf16.gmra.mrb[0].mxu0 %v5475
  %v5663 = vpop.f32.mrb[0].mxu0
  %v5664 = vadd.f32 %v5397, %v5663
  %v5665 = vpop.f32.mrb[0].mxu0
  %v5666 = vpop.f32.mrb[0].mxu0
  %v5667 = vadd.f32 %v5397, %v5666
  %v5668 = vpop.f32.mrb[0].mxu0
  %5669 = vmatprep.mubr.bf16.mxu0 0
  %5670 = vmatmul.mubr.bf16.gmra.mrb[0].mxu0 %v5478
  %v5671 = vpop.f32.mrb[0].mxu0
  %v5672 = vadd.f32 %v5397, %v5671
  %v5673 = vpop.f32.mrb[0].mxu0
  %v5674 = vpop.f32.mrb[0].mxu0
  %v5675 = vadd.f32 %v5397, %v5674
  %v5676 = vpop.f32.mrb[0].mxu0
  %5677 = vmatprep.mubr.bf16.mxu0 0
  %5678 = vmatmul.mubr.bf16.gmra.mrb[0].mxu0 %v5481
  %v5679 = vpop.f32.mrb[0].mxu0
  %v5680 = vadd.f32 %v5397, %v5679
  %v5681 = vpop.f32.mrb[0].mxu0
  %v5682 = vpop.f32.mrb[0].mxu0
  %v5683 = vadd.f32 %v5397, %v5682
  %v5684 = vpop.f32.mrb[0].mxu0
  %5685 = vmatprep.mubr.bf16.mxu0 0
  %5686 = vmatmul.mubr.bf16.gmra.mrb[0].mxu0 %v5484
  %v5687 = vpop.f32.mrb[0].mxu0
  %v5688 = vadd.f32 %v5397, %v5687
  %v5689 = vpop.f32.mrb[0].mxu0
  %v5690 = vpop.f32.mrb[0].mxu0
  %v5691 = vadd.f32 %v5397, %v5690
  %v5692 = vpop.f32.mrb[0].mxu0
  %5693 = vmatprep.mubr.bf16.mxu0 0
  %5694 = vmatmul.mubr.bf16.gmra.mrb[0].mxu0 %v5487
  %v5695 = vpop.f32.mrb[0].mxu0
  %v5696 = vadd.f32 %v5397, %v5695
  %v5697 = vpop.f32.mrb[0].mxu0
  %v5698 = vpop.f32.mrb[0].mxu0
  %v5699 = vadd.f32 %v5397, %v5698
  %v5700 = vpop.f32.mrb[0].mxu0
  %5701 = vmatprep.mubr.bf16.mxu0 0
  %5702 = vmatmul.mubr.bf16.gmra.mrb[0].mxu0 %v5490
  %v5703 = vpop.f32.mrb[0].mxu0
  %v5704 = vadd.f32 %v5397, %v5703
  %v5705 = vpop.f32.mrb[0].mxu0
  %v5706 = vpop.f32.mrb[0].mxu0
  %v5707 = vadd.f32 %v5397, %v5706
  %v5708 = vpop.f32.mrb[0].mxu0
  %5709 = vmatprep.mubr.bf16.mxu0 0
  %5710 = vmatmul.mubr.bf16.gmra.mrb[0].mxu0 %v5493
  %v5711 = vpop.f32.mrb[0].mxu0
  %v5712 = vadd.f32 %v5397, %v5711
  %v5713 = vpop.f32.mrb[0].mxu0
  %v5714 = vpop.f32.mrb[0].mxu0
  %v5715 = vadd.f32 %v5397, %v5714
  %v5716 = vpop.f32.mrb[0].mxu0
  %5717 = vmatprep.mubr.bf16.mxu0 0
  %5718 = vmatmul.mubr.bf16.gmra.mrb[0].mxu0 %v5496
  %v5719 = vpop.f32.mrb[0].mxu0
  %v5720 = vadd.f32 %v5397, %v5719
  %v5721 = vpop.f32.mrb[0].mxu0
  %v5722 = vpop.f32.mrb[0].mxu0
  %v5723 = vadd.f32 %v5397, %v5722
  %v5724 = vpop.f32.mrb[0].mxu0
  %5725 = vmatprep.mubr.bf16.mxu0 0
  %5726 = vmatmul.mubr.bf16.gmra.mrb[0].mxu0 %v5499
  %v5727 = vpop.f32.mrb[0].mxu0
  %v5728 = vadd.f32 %v5397, %v5727
  %v5729 = vpop.f32.mrb[0].mxu0
  %v5730 = vpop.f32.mrb[0].mxu0
  %v5731 = vadd.f32 %v5397, %v5730
  %v5732 = vpop.f32.mrb[0].mxu0
  %5733 = vmatprep.mubr.bf16.mxu0 0
  %5734 = vmatmul.mubr.bf16.gmra.mrb[0].mxu0 %v5502
  %v5735 = vpop.f32.mrb[0].mxu0
  %v5736 = vadd.f32 %v5397, %v5735
  %v5737 = vpop.f32.mrb[0].mxu0
  %v5738 = vpop.f32.mrb[0].mxu0
  %v5739 = vadd.f32 %v5397, %v5738
  %v5740 = vpop.f32.mrb[0].mxu0
  %5741 = vmatprep.mubr.bf16.mxu0 0
  %5742 = vmatmul.mubr.bf16.gmra.mrb[0].mxu0 %v5505
  %v5743 = vpop.f32.mrb[0].mxu0
  %v5744 = vadd.f32 %v5397, %v5743
  %v5745 = vpop.f32.mrb[0].mxu0
  %v5746 = vpop.f32.mrb[0].mxu0
  %v5747 = vadd.f32 %v5397, %v5746
  %v5748 = vpop.f32.mrb[0].mxu0
  %5749 = vmatprep.mubr.bf16.mxu0 0
  %5750 = vmatmul.mubr.bf16.gmra.mrb[0].mxu0 %v5508
  %v5751 = vpop.f32.mrb[0].mxu0
  %v5752 = vadd.f32 %v5397, %v5751
  %v5753 = vpop.f32.mrb[0].mxu0
  %v5754 = vpop.f32.mrb[0].mxu0
  %v5755 = vadd.f32 %v5397, %v5754
  %v5756 = vpop.f32.mrb[0].mxu0
  %5757 = vmatprep.mubr.bf16.mxu0 0
  %5758 = vmatmul.mubr.bf16.gmra.mrb[0].mxu0 %v5511
  %v5759 = vpop.f32.mrb[0].mxu0
  %v5760 = vadd.f32 %v5397, %v5759
  %v5761 = vpop.f32.mrb[0].mxu0
  %v5762 = vpop.f32.mrb[0].mxu0
  %v5763 = vadd.f32 %v5397, %v5762
  %v5764 = vpop.f32.mrb[0].mxu0
  %5765 = vmatprep.mubr.bf16.mxu0 0
  %5766 = vmatmul.mubr.bf16.gmra.mrb[0].mxu0 %v5514
  %v5767 = vpop.f32.mrb[0].mxu0
  %v5768 = vadd.f32 %v5397, %v5767
  %v5769 = vpop.f32.mrb[0].mxu0
  %v5770 = vpop.f32.mrb[0].mxu0
  %v5771 = vadd.f32 %v5397, %v5770
  %v5772 = vpop.f32.mrb[0].mxu0
  %5773 = vmatprep.mubr.bf16.mxu0 0
  %5774 = vmatmul.mubr.bf16.gmra.mrb[0].mxu0 %v5517
  %v5775 = vpop.f32.mrb[0].mxu0
  %v5776 = vadd.f32 %v5397, %v5775
  %v5777 = vpop.f32.mrb[0].mxu0
  %v5778 = vpop.f32.mrb[0].mxu0
  %v5779 = vadd.f32 %v5397, %v5778
  %v5780 = vpop.f32.mrb[0].mxu0
  %5781 = vmatprep.mubr.bf16.mxu0 0
  %5782 = vmatmul.mubr.bf16.gmra.mrb[0].mxu0 %v5520
  %v5783 = vpop.f32.mrb[0].mxu0
  %v5784 = vadd.f32 %v5397, %v5783
  %v5785 = vpop.f32.mrb[0].mxu0
  %v5786 = vpop.f32.mrb[0].mxu0
  %v5787 = vadd.f32 %v5397, %v5786
  %v5788 = vpop.f32.mrb[0].mxu0
  %5789 = vmatprep.mubr.bf16.mxu0 0
  %5790 = vmatmul.mubr.bf16.gmra.mrb[0].mxu0 %v5523
  %v5791 = vpop.f32.mrb[0].mxu0
  %v5792 = vadd.f32 %v5397, %v5791
  %v5793 = vpop.f32.mrb[0].mxu0
  %v5794 = vpop.f32.mrb[0].mxu0
  %v5795 = vadd.f32 %v5397, %v5794
  %v5796 = vpop.f32.mrb[0].mxu0
  %5797 = vmatprep.mubr.bf16.mxu0 0
  %5798 = vmatmul.mubr.bf16.gmra.mrb[0].mxu0 %v5526
  %v5799 = vpop.f32.mrb[0].mxu0
  %v5800 = vadd.f32 %v5397, %v5799
  %v5801 = vpop.f32.mrb[0].mxu0
  %v5802 = vpop.f32.mrb[0].mxu0
  %v5803 = vadd.f32 %v5397, %v5802
  %v5804 = vpop.f32.mrb[0].mxu0
  %5805 = vmatprep.mubr.bf16.mxu0 0
  %5806 = vmatmul.mubr.bf16.gmra.mrb[0].mxu0 %v5529
  %v5807 = vpop.f32.mrb[0].mxu0
  %v5808 = vadd.f32 %v5397, %v5807
  %v5809 = vpop.f32.mrb[0].mxu0
  %v5810 = vpop.f32.mrb[0].mxu0
  %v5811 = vadd.f32 %v5397, %v5810
  %v5812 = vpop.f32.mrb[0].mxu0
  %5813 = vmatprep.mubr.bf16.mxu0 0
  %5814 = vmatmul.mubr.bf16.gmra.mrb[0].mxu0 %v5532
  %v5815 = vpop.f32.mrb[0].mxu0
  %v5816 = vadd.f32 %v5397, %v5815
  %v5817 = vpop.f32.mrb[0].mxu0
  %v5818 = vpop.f32.mrb[0].mxu0
  %v5819 = vadd.f32 %v5397, %v5818
  %v5820 = vpop.f32.mrb[0].mxu0
  %5821 = vmatprep.mubr.bf16.mxu0 0
  %5822 = vmatmul.mubr.bf16.gmra.mrb[0].mxu0 %v5535
  %v5823 = vpop.f32.mrb[0].mxu0
  %v5824 = vadd.f32 %v5397, %v5823
  %v5825 = vpop.f32.mrb[0].mxu0
  %v5826 = vpop.f32.mrb[0].mxu0
  %v5827 = vadd.f32 %v5397, %v5826
  %v5828 = vpop.f32.mrb[0].mxu0
  %5829 = vdwg.mxu0
  %v5830 = vsub.f32 0.0, %v5576
  %v5831 = vsub.f32 0.0, %v5579
  %v5832 = vsub.f32 0.0, %v5584
  %v5833 = vsub.f32 0.0, %v5587
  %v5834 = vsub.f32 0.0, %v5592
  %v5835 = vsub.f32 0.0, %v5595
  %v5836 = vsub.f32 0.0, %v5600
  %v5837 = vsub.f32 0.0, %v5603
  %v5838 = vsub.f32 0.0, %v5608
  %v5839 = vsub.f32 0.0, %v5611
  %v5840 = vsub.f32 0.0, %v5616
  %v5841 = vsub.f32 0.0, %v5619
  %v5842 = vsub.f32 0.0, %v5624
  %v5843 = vsub.f32 0.0, %v5627
  %v5844 = vsub.f32 0.0, %v5632
  %v5845 = vsub.f32 0.0, %v5635
  %v5846 = vsub.f32 0.0, %v5640
  %v5847 = vsub.f32 0.0, %v5643
  %v5848 = vsub.f32 0.0, %v5648
  %v5849 = vsub.f32 0.0, %v5651
  %v5850 = vsub.f32 0.0, %v5656
  %v5851 = vsub.f32 0.0, %v5659
  %v5852 = vsub.f32 0.0, %v5664
  %v5853 = vsub.f32 0.0, %v5667
  %v5854 = vsub.f32 0.0, %v5672
  %v5855 = vsub.f32 0.0, %v5675
  %v5856 = vsub.f32 0.0, %v5680
  %v5857 = vsub.f32 0.0, %v5683
  %v5858 = vsub.f32 0.0, %v5688
  %v5859 = vsub.f32 0.0, %v5691
  %v5860 = vsub.f32 0.0, %v5696
  %v5861 = vsub.f32 0.0, %v5699
  %v5862 = vsub.f32 0.0, %v5704
  %v5863 = vsub.f32 0.0, %v5707
  %v5864 = vsub.f32 0.0, %v5712
  %v5865 = vsub.f32 0.0, %v5715
  %v5866 = vsub.f32 0.0, %v5720
  %v5867 = vsub.f32 0.0, %v5723
  %v5868 = vsub.f32 0.0, %v5728
  %v5869 = vsub.f32 0.0, %v5731
  %v5870 = vsub.f32 0.0, %v5736
  %v5871 = vsub.f32 0.0, %v5739
  %v5872 = vsub.f32 0.0, %v5744
  %v5873 = vsub.f32 0.0, %v5747
  %v5874 = vsub.f32 0.0, %v5752
  %v5875 = vsub.f32 0.0, %v5755
  %v5876 = vsub.f32 0.0, %v5760
  %v5877 = vsub.f32 0.0, %v5763
  %v5878 = vsub.f32 0.0, %v5768
  %v5879 = vsub.f32 0.0, %v5771
  %v5880 = vsub.f32 0.0, %v5776
  %v5881 = vsub.f32 0.0, %v5779
  %v5882 = vsub.f32 0.0, %v5784
  %v5883 = vsub.f32 0.0, %v5787
  %v5884 = vsub.f32 0.0, %v5792
  %v5885 = vsub.f32 0.0, %v5795
  %v5886 = vsub.f32 0.0, %v5800
  %v5887 = vsub.f32 0.0, %v5803
  %v5888 = vsub.f32 0.0, %v5808
  %v5889 = vsub.f32 0.0, %v5811
  %v5890 = vsub.f32 0.0, %v5816
  %v5891 = vsub.f32 0.0, %v5819
  %v5892 = vsub.f32 0.0, %v5824
  %v5893 = vsub.f32 0.0, %v5827
  %v5894 = vmul.f32 %v5830, 1.442695
  %v5895 = vpow.pop %v5894
  %v5896 = vmul.f32 %v5831, 1.442695
  %v5897 = vpow.pop %v5896
  %v5898 = vmul.f32 %v5832, 1.442695
  %v5899 = vpow.pop %v5898
  %v5900 = vmul.f32 %v5833, 1.442695
  %v5901 = vpow.pop %v5900
  %v5902 = vmul.f32 %v5834, 1.442695
  %v5903 = vpow.pop %v5902
  %v5904 = vmul.f32 %v5835, 1.442695
  %v5905 = vpow.pop %v5904
  %v5906 = vmul.f32 %v5836, 1.442695
  %v5907 = vpow.pop %v5906
  %v5908 = vmul.f32 %v5837, 1.442695
  %v5909 = vpow.pop %v5908
  %v5910 = vmul.f32 %v5838, 1.442695
  %v5911 = vpow.pop %v5910
  %v5912 = vmul.f32 %v5839, 1.442695
  %v5913 = vpow.pop %v5912
  %v5914 = vmul.f32 %v5840, 1.442695
  %v5915 = vpow.pop %v5914
  %v5916 = vmul.f32 %v5841, 1.442695
  %v5917 = vpow.pop %v5916
  %v5918 = vmul.f32 %v5842, 1.442695
  %v5919 = vpow.pop %v5918
  %v5920 = vmul.f32 %v5843, 1.442695
  %v5921 = vpow.pop %v5920
  %v5922 = vmul.f32 %v5844, 1.442695
  %v5923 = vpow.pop %v5922
  %v5924 = vmul.f32 %v5845, 1.442695
  %v5925 = vpow.pop %v5924
  %v5926 = vmul.f32 %v5846, 1.442695
  %v5927 = vpow.pop %v5926
  %v5928 = vmul.f32 %v5847, 1.442695
  %v5929 = vpow.pop %v5928
  %v5930 = vmul.f32 %v5848, 1.442695
  %v5931 = vpow.pop %v5930
  %v5932 = vmul.f32 %v5849, 1.442695
  %v5933 = vpow.pop %v5932
  %v5934 = vmul.f32 %v5850, 1.442695
  %v5935 = vpow.pop %v5934
  %v5936 = vmul.f32 %v5851, 1.442695
  %v5937 = vpow.pop %v5936
  %v5938 = vmul.f32 %v5852, 1.442695
  %v5939 = vpow.pop %v5938
  %v5940 = vmul.f32 %v5853, 1.442695
  %v5941 = vpow.pop %v5940
  %v5942 = vmul.f32 %v5854, 1.442695
  %v5943 = vpow.pop %v5942
  %v5944 = vmul.f32 %v5855, 1.442695
  %v5945 = vpow.pop %v5944
  %v5946 = vmul.f32 %v5856, 1.442695
  %v5947 = vpow.pop %v5946
  %v5948 = vmul.f32 %v5857, 1.442695
  %v5949 = vpow.pop %v5948
  %v5950 = vmul.f32 %v5858, 1.442695
  %v5951 = vpow.pop %v5950
  %v5952 = vmul.f32 %v5859, 1.442695
  %v5953 = vpow.pop %v5952
  %v5954 = vmul.f32 %v5860, 1.442695
  %v5955 = vpow.pop %v5954
  %v5956 = vmul.f32 %v5861, 1.442695
  %v5957 = vpow.pop %v5956
  %v5958 = vmul.f32 %v5862, 1.442695
  %v5959 = vpow.pop %v5958
  %v5960 = vmul.f32 %v5863, 1.442695
  %v5961 = vpow.pop %v5960
  %v5962 = vmul.f32 %v5864, 1.442695
  %v5963 = vpow.pop %v5962
  %v5964 = vmul.f32 %v5865, 1.442695
  %v5965 = vpow.pop %v5964
  %v5966 = vmul.f32 %v5866, 1.442695
  %v5967 = vpow.pop %v5966
  %v5968 = vmul.f32 %v5867, 1.442695
  %v5969 = vpow.pop %v5968
  %v5970 = vmul.f32 %v5868, 1.442695
  %v5971 = vpow.pop %v5970
  %v5972 = vmul.f32 %v5869, 1.442695
  %v5973 = vpow.pop %v5972
  %v5974 = vmul.f32 %v5870, 1.442695
  %v5975 = vpow.pop %v5974
  %v5976 = vmul.f32 %v5871, 1.442695
  %v5977 = vpow.pop %v5976
  %v5978 = vmul.f32 %v5872, 1.442695
  %v5979 = vpow.pop %v5978
  %v5980 = vmul.f32 %v5873, 1.442695
  %v5981 = vpow.pop %v5980
  %v5982 = vmul.f32 %v5874, 1.442695
  %v5983 = vpow.pop %v5982
  %v5984 = vmul.f32 %v5875, 1.442695
  %v5985 = vpow.pop %v5984
  %v5986 = vmul.f32 %v5876, 1.442695
  %v5987 = vpow.pop %v5986
  %v5988 = vmul.f32 %v5877, 1.442695
  %v5989 = vpow.pop %v5988
  %v5990 = vmul.f32 %v5878, 1.442695
  %v5991 = vpow.pop %v5990
  %v5992 = vmul.f32 %v5879, 1.442695
  %v5993 = vpow.pop %v5992
  %v5994 = vmul.f32 %v5880, 1.442695
  %v5995 = vpow.pop %v5994
  %v5996 = vmul.f32 %v5881, 1.442695
  %v5997 = vpow.pop %v5996
  %v5998 = vmul.f32 %v5882, 1.442695
  %v5999 = vpow.pop %v5998
  %v6000 = vmul.f32 %v5883, 1.442695
  %v6001 = vpow.pop %v6000
  %v6002 = vmul.f32 %v5884, 1.442695
  %v6003 = vpow.pop %v6002
  %v6004 = vmul.f32 %v5885, 1.442695
  %v6005 = vpow.pop %v6004
  %v6006 = vmul.f32 %v5886, 1.442695
  %v6007 = vpow.pop %v6006
  %v6008 = vmul.f32 %v5887, 1.442695
  %v6009 = vpow.pop %v6008
  %v6010 = vmul.f32 %v5888, 1.442695
  %v6011 = vpow.pop %v6010
  %v6012 = vmul.f32 %v5889, 1.442695
  %v6013 = vpow.pop %v6012
  %v6014 = vmul.f32 %v5890, 1.442695
  %v6015 = vpow.pop %v6014
  %v6016 = vmul.f32 %v5891, 1.442695
  %v6017 = vpow.pop %v6016
  %v6018 = vmul.f32 %v5892, 1.442695
  %v6019 = vpow.pop %v6018
  %v6020 = vmul.f32 %v5893, 1.442695
  %v6021 = vpow.pop %v6020
  %v6022 = vadd.f32 %v5895, 1.0
  %v6023 = vadd.f32 %v5897, 1.0
  %v6024 = vadd.f32 %v5899, 1.0
  %v6025 = vadd.f32 %v5901, 1.0
  %v6026 = vadd.f32 %v5903, 1.0
  %v6027 = vadd.f32 %v5905, 1.0
  %v6028 = vadd.f32 %v5907, 1.0
  %v6029 = vadd.f32 %v5909, 1.0
  %v6030 = vadd.f32 %v5911, 1.0
  %v6031 = vadd.f32 %v5913, 1.0
  %v6032 = vadd.f32 %v5915, 1.0
  %v6033 = vadd.f32 %v5917, 1.0
  %v6034 = vadd.f32 %v5919, 1.0
  %v6035 = vadd.f32 %v5921, 1.0
  %v6036 = vadd.f32 %v5923, 1.0
  %v6037 = vadd.f32 %v5925, 1.0
  %v6038 = vadd.f32 %v5927, 1.0
  %v6039 = vadd.f32 %v5929, 1.0
  %v6040 = vadd.f32 %v5931, 1.0
  %v6041 = vadd.f32 %v5933, 1.0
  %v6042 = vadd.f32 %v5935, 1.0
  %v6043 = vadd.f32 %v5937, 1.0
  %v6044 = vadd.f32 %v5939, 1.0
  %v6045 = vadd.f32 %v5941, 1.0
  %v6046 = vadd.f32 %v5943, 1.0
  %v6047 = vadd.f32 %v5945, 1.0
  %v6048 = vadd.f32 %v5947, 1.0
  %v6049 = vadd.f32 %v5949, 1.0
  %v6050 = vadd.f32 %v5951, 1.0
  %v6051 = vadd.f32 %v5953, 1.0
  %v6052 = vadd.f32 %v5955, 1.0
  %v6053 = vadd.f32 %v5957, 1.0
  %v6054 = vadd.f32 %v5959, 1.0
  %v6055 = vadd.f32 %v5961, 1.0
  %v6056 = vadd.f32 %v5963, 1.0
  %v6057 = vadd.f32 %v5965, 1.0
  %v6058 = vadd.f32 %v5967, 1.0
  %v6059 = vadd.f32 %v5969, 1.0
  %v6060 = vadd.f32 %v5971, 1.0
  %v6061 = vadd.f32 %v5973, 1.0
  %v6062 = vadd.f32 %v5975, 1.0
  %v6063 = vadd.f32 %v5977, 1.0
  %v6064 = vadd.f32 %v5979, 1.0
  %v6065 = vadd.f32 %v5981, 1.0
  %v6066 = vadd.f32 %v5983, 1.0
  %v6067 = vadd.f32 %v5985, 1.0
  %v6068 = vadd.f32 %v5987, 1.0
  %v6069 = vadd.f32 %v5989, 1.0
  %v6070 = vadd.f32 %v5991, 1.0
  %v6071 = vadd.f32 %v5993, 1.0
  %v6072 = vadd.f32 %v5995, 1.0
  %v6073 = vadd.f32 %v5997, 1.0
  %v6074 = vadd.f32 %v5999, 1.0
  %v6075 = vadd.f32 %v6001, 1.0
  %v6076 = vadd.f32 %v6003, 1.0
  %v6077 = vadd.f32 %v6005, 1.0
  %v6078 = vadd.f32 %v6007, 1.0
  %v6079 = vadd.f32 %v6009, 1.0
  %v6080 = vadd.f32 %v6011, 1.0
  %v6081 = vadd.f32 %v6013, 1.0
  %v6082 = vadd.f32 %v6015, 1.0
  %v6083 = vadd.f32 %v6017, 1.0
  %v6084 = vadd.f32 %v6019, 1.0
  %v6085 = vadd.f32 %v6021, 1.0
  %v6086 = vrcp.pop %v6022
  %v6087 = vmul.f32 1.0, %v6086
  %v6088 = vrcp.pop %v6023
  %v6089 = vmul.f32 1.0, %v6088
  %v6090 = vrcp.pop %v6024
  %v6091 = vmul.f32 1.0, %v6090
  %v6092 = vrcp.pop %v6025
  %v6093 = vmul.f32 1.0, %v6092
  %v6094 = vrcp.pop %v6026
  %v6095 = vmul.f32 1.0, %v6094
  %v6096 = vrcp.pop %v6027
  %v6097 = vmul.f32 1.0, %v6096
  %v6098 = vrcp.pop %v6028
  %v6099 = vmul.f32 1.0, %v6098
  %v6100 = vrcp.pop %v6029
  %v6101 = vmul.f32 1.0, %v6100
  %v6102 = vrcp.pop %v6030
  %v6103 = vmul.f32 1.0, %v6102
  %v6104 = vrcp.pop %v6031
  %v6105 = vmul.f32 1.0, %v6104
  %v6106 = vrcp.pop %v6032
  %v6107 = vmul.f32 1.0, %v6106
  %v6108 = vrcp.pop %v6033
  %v6109 = vmul.f32 1.0, %v6108
  %v6110 = vrcp.pop %v6034
  %v6111 = vmul.f32 1.0, %v6110
  %v6112 = vrcp.pop %v6035
  %v6113 = vmul.f32 1.0, %v6112
  %v6114 = vrcp.pop %v6036
  %v6115 = vmul.f32 1.0, %v6114
  %v6116 = vrcp.pop %v6037
  %v6117 = vmul.f32 1.0, %v6116
  %v6118 = vrcp.pop %v6038
  %v6119 = vmul.f32 1.0, %v6118
  %v6120 = vrcp.pop %v6039
  %v6121 = vmul.f32 1.0, %v6120
  %v6122 = vrcp.pop %v6040
  %v6123 = vmul.f32 1.0, %v6122
  %v6124 = vrcp.pop %v6041
  %v6125 = vmul.f32 1.0, %v6124
  %v6126 = vrcp.pop %v6042
  %v6127 = vmul.f32 1.0, %v6126
  %v6128 = vrcp.pop %v6043
  %v6129 = vmul.f32 1.0, %v6128
  %v6130 = vrcp.pop %v6044
  %v6131 = vmul.f32 1.0, %v6130
  %v6132 = vrcp.pop %v6045
  %v6133 = vmul.f32 1.0, %v6132
  %v6134 = vrcp.pop %v6046
  %v6135 = vmul.f32 1.0, %v6134
  %v6136 = vrcp.pop %v6047
  %v6137 = vmul.f32 1.0, %v6136
  %v6138 = vrcp.pop %v6048
  %v6139 = vmul.f32 1.0, %v6138
  %v6140 = vrcp.pop %v6049
  %v6141 = vmul.f32 1.0, %v6140
  %v6142 = vrcp.pop %v6050
  %v6143 = vmul.f32 1.0, %v6142
  %v6144 = vrcp.pop %v6051
  %v6145 = vmul.f32 1.0, %v6144
  %v6146 = vrcp.pop %v6052
  %v6147 = vmul.f32 1.0, %v6146
  %v6148 = vrcp.pop %v6053
  %v6149 = vmul.f32 1.0, %v6148
  %v6150 = vrcp.pop %v6054
  %v6151 = vmul.f32 1.0, %v6150
  %v6152 = vrcp.pop %v6055
  %v6153 = vmul.f32 1.0, %v6152
  %v6154 = vrcp.pop %v6056
  %v6155 = vmul.f32 1.0, %v6154
  %v6156 = vrcp.pop %v6057
  %v6157 = vmul.f32 1.0, %v6156
  %v6158 = vrcp.pop %v6058
  %v6159 = vmul.f32 1.0, %v6158
  %v6160 = vrcp.pop %v6059
  %v6161 = vmul.f32 1.0, %v6160
  %v6162 = vrcp.pop %v6060
  %v6163 = vmul.f32 1.0, %v6162
  %v6164 = vrcp.pop %v6061
  %v6165 = vmul.f32 1.0, %v6164
  %v6166 = vrcp.pop %v6062
  %v6167 = vmul.f32 1.0, %v6166
  %v6168 = vrcp.pop %v6063
  %v6169 = vmul.f32 1.0, %v6168
  %v6170 = vrcp.pop %v6064
  %v6171 = vmul.f32 1.0, %v6170
  %v6172 = vrcp.pop %v6065
  %v6173 = vmul.f32 1.0, %v6172
  %v6174 = vrcp.pop %v6066
  %v6175 = vmul.f32 1.0, %v6174
  %v6176 = vrcp.pop %v6067
  %v6177 = vmul.f32 1.0, %v6176
  %v6178 = vrcp.pop %v6068
  %v6179 = vmul.f32 1.0, %v6178
  %v6180 = vrcp.pop %v6069
  %v6181 = vmul.f32 1.0, %v6180
  %v6182 = vrcp.pop %v6070
  %v6183 = vmul.f32 1.0, %v6182
  %v6184 = vrcp.pop %v6071
  %v6185 = vmul.f32 1.0, %v6184
  %v6186 = vrcp.pop %v6072
  %v6187 = vmul.f32 1.0, %v6186
  %v6188 = vrcp.pop %v6073
  %v6189 = vmul.f32 1.0, %v6188
  %v6190 = vrcp.pop %v6074
  %v6191 = vmul.f32 1.0, %v6190
  %v6192 = vrcp.pop %v6075
  %v6193 = vmul.f32 1.0, %v6192
  %v6194 = vrcp.pop %v6076
  %v6195 = vmul.f32 1.0, %v6194
  %v6196 = vrcp.pop %v6077
  %v6197 = vmul.f32 1.0, %v6196
  %v6198 = vrcp.pop %v6078
  %v6199 = vmul.f32 1.0, %v6198
  %v6200 = vrcp.pop %v6079
  %v6201 = vmul.f32 1.0, %v6200
  %v6202 = vrcp.pop %v6080
  %v6203 = vmul.f32 1.0, %v6202
  %v6204 = vrcp.pop %v6081
  %v6205 = vmul.f32 1.0, %v6204
  %v6206 = vrcp.pop %v6082
  %v6207 = vmul.f32 1.0, %v6206
  %v6208 = vrcp.pop %v6083
  %v6209 = vmul.f32 1.0, %v6208
  %v6210 = vrcp.pop %v6084
  %v6211 = vmul.f32 1.0, %v6210
  %v6212 = vrcp.pop %v6085
  %v6213 = vmul.f32 1.0, %v6212
  %v6214 = vld [vmem:[%s1] sm:$0xff]
  %v6215 = vld [vmem:[%s1 + $0x8] sm:$0xff]
  %v6216 = vld [vmem:[%s1 + $0x10] sm:$0xff]
  %v6217 = vld [vmem:[%s1 + $0x18] sm:$0xff]
  %v6218 = vld [vmem:[%s1 + $0x20] sm:$0xff]
  %v6219 = vld [vmem:[%s1 + $0x28] sm:$0xff]
  %v6220 = vld [vmem:[%s1 + $0x30] sm:$0xff]
  %v6221 = vld [vmem:[%s1 + $0x38] sm:$0xff]
  %v6222 = vld [vmem:[%s1 + $0x40] sm:$0xff]
  %v6223 = vld [vmem:[%s1 + $0x48] sm:$0xff]
  %v6224 = vld [vmem:[%s1 + $0x50] sm:$0xff]
  %v6225 = vld [vmem:[%s1 + $0x58] sm:$0xff]
  %v6226 = vld [vmem:[%s1 + $0x60] sm:$0xff]
  %v6227 = vld [vmem:[%s1 + $0x68] sm:$0xff]
  %v6228 = vld [vmem:[%s1 + $0x70] sm:$0xff]
  %v6229 = vld [vmem:[%s1 + $0x78] sm:$0xff]
  %v6230 = vld [vmem:[%s1 + $0x80] sm:$0xff]
  %v6231 = vld [vmem:[%s1 + $0x88] sm:$0xff]
  %v6232 = vld [vmem:[%s1 + $0x90] sm:$0xff]
  %v6233 = vld [vmem:[%s1 + $0x98] sm:$0xff]
  %v6234 = vld [vmem:[%s1 + $0xa0] sm:$0xff]
  %v6235 = vld [vmem:[%s1 + $0xa8] sm:$0xff]
  %v6236 = vld [vmem:[%s1 + $0xb0] sm:$0xff]
  %v6237 = vld [vmem:[%s1 + $0xb8] sm:$0xff]
  %v6238 = vld [vmem:[%s1 + $0xc0] sm:$0xff]
  %v6239 = vld [vmem:[%s1 + $0xc8] sm:$0xff]
  %v6240 = vld [vmem:[%s1 + $0xd0] sm:$0xff]
  %v6241 = vld [vmem:[%s1 + $0xd8] sm:$0xff]
  %v6242 = vld [vmem:[%s1 + $0xe0] sm:$0xff]
  %v6243 = vld [vmem:[%s1 + $0xe8] sm:$0xff]
  %v6244 = vld [vmem:[%s1 + $0xf0] sm:$0xff]
  %v6245 = vld [vmem:[%s1 + $0xf8] sm:$0xff]
  %v6246 = vld [vmem:[%s1 + $0x100] sm:$0xff]
  %v6247 = vld [vmem:[%s1 + $0x108] sm:$0xff]
  %v6248 = vld [vmem:[%s1 + $0x110] sm:$0xff]
  %v6249 = vld [vmem:[%s1 + $0x118] sm:$0xff]
  %v6250 = vld [vmem:[%s1 + $0x120] sm:$0xff]
  %v6251 = vld [vmem:[%s1 + $0x128] sm:$0xff]
  %v6252 = vld [vmem:[%s1 + $0x130] sm:$0xff]
  %v6253 = vld [vmem:[%s1 + $0x138] sm:$0xff]
  %v6254 = vld [vmem:[%s1 + $0x140] sm:$0xff]
  %v6255 = vld [vmem:[%s1 + $0x148] sm:$0xff]
  %v6256 = vld [vmem:[%s1 + $0x150] sm:$0xff]
  %v6257 = vld [vmem:[%s1 + $0x158] sm:$0xff]
  %v6258 = vld [vmem:[%s1 + $0x160] sm:$0xff]
  %v6259 = vld [vmem:[%s1 + $0x168] sm:$0xff]
  %v6260 = vld [vmem:[%s1 + $0x170] sm:$0xff]
  %v6261 = vld [vmem:[%s1 + $0x178] sm:$0xff]
  %v6262 = vld [vmem:[%s1 + $0x180] sm:$0xff]
  %v6263 = vld [vmem:[%s1 + $0x188] sm:$0xff]
  %v6264 = vld [vmem:[%s1 + $0x190] sm:$0xff]
  %v6265 = vld [vmem:[%s1 + $0x198] sm:$0xff]
  %v6266 = vld [vmem:[%s1 + $0x1a0] sm:$0xff]
  %v6267 = vld [vmem:[%s1 + $0x1a8] sm:$0xff]
  %v6268 = vld [vmem:[%s1 + $0x1b0] sm:$0xff]
  %v6269 = vld [vmem:[%s1 + $0x1b8] sm:$0xff]
  %v6270 = vld [vmem:[%s1 + $0x1c0] sm:$0xff]
  %v6271 = vld [vmem:[%s1 + $0x1c8] sm:$0xff]
  %v6272 = vld [vmem:[%s1 + $0x1d0] sm:$0xff]
  %v6273 = vld [vmem:[%s1 + $0x1d8] sm:$0xff]
  %v6274 = vld [vmem:[%s1 + $0x1e0] sm:$0xff]
  %v6275 = vld [vmem:[%s1 + $0x1e8] sm:$0xff]
  %v6276 = vld [vmem:[%s1 + $0x1f0] sm:$0xff]
  %v6277 = vld [vmem:[%s1 + $0x1f8] sm:$0xff]
  %6342 = vrot.lane.b32.xlu0 %v6087, 120
  %v6343 = vpop.permute.xlu0 %6342
  %6344 = vrot.lane.b32.xlu0 %v6089, 120
  %v6345 = vpop.permute.xlu0 %6344
  %6346 = vrot.lane.b32.xlu0 %v6091, 120
  %v6347 = vpop.permute.xlu0 %6346
  %6348 = vrot.lane.b32.xlu0 %v6093, 120
  %v6349 = vpop.permute.xlu0 %6348
  %6350 = vrot.lane.b32.xlu0 %v6095, 120
  %v6351 = vpop.permute.xlu0 %6350
  %6352 = vrot.lane.b32.xlu0 %v6097, 120
  %v6353 = vpop.permute.xlu0 %6352
  %6354 = vrot.lane.b32.xlu0 %v6099, 120
  %v6355 = vpop.permute.xlu0 %6354
  %6356 = vrot.lane.b32.xlu0 %v6101, 120
  %v6357 = vpop.permute.xlu0 %6356
  %6358 = vrot.lane.b32.xlu0 %v6103, 120
  %v6359 = vpop.permute.xlu0 %6358
  %6360 = vrot.lane.b32.xlu0 %v6105, 120
  %v6361 = vpop.permute.xlu0 %6360
  %6362 = vrot.lane.b32.xlu0 %v6107, 120
  %v6363 = vpop.permute.xlu0 %6362
  %6364 = vrot.lane.b32.xlu0 %v6109, 120
  %v6365 = vpop.permute.xlu0 %6364
  %6366 = vrot.lane.b32.xlu0 %v6111, 120
  %v6367 = vpop.permute.xlu0 %6366
  %6368 = vrot.lane.b32.xlu0 %v6113, 120
  %v6369 = vpop.permute.xlu0 %6368
  %6370 = vrot.lane.b32.xlu0 %v6115, 120
  %v6371 = vpop.permute.xlu0 %6370
  %6372 = vrot.lane.b32.xlu0 %v6117, 120
  %v6373 = vpop.permute.xlu0 %6372
  %6374 = vrot.lane.b32.xlu0 %v6119, 120
  %v6375 = vpop.permute.xlu0 %6374
  %6376 = vrot.lane.b32.xlu0 %v6121, 120
  %v6377 = vpop.permute.xlu0 %6376
  %6378 = vrot.lane.b32.xlu0 %v6123, 120
  %v6379 = vpop.permute.xlu0 %6378
  %6380 = vrot.lane.b32.xlu0 %v6125, 120
  %v6381 = vpop.permute.xlu0 %6380
  %6382 = vrot.lane.b32.xlu0 %v6127, 120
  %v6383 = vpop.permute.xlu0 %6382
  %6384 = vrot.lane.b32.xlu0 %v6129, 120
  %v6385 = vpop.permute.xlu0 %6384
  %6386 = vrot.lane.b32.xlu0 %v6131, 120
  %v6387 = vpop.permute.xlu0 %6386
  %6388 = vrot.lane.b32.xlu0 %v6133, 120
  %v6389 = vpop.permute.xlu0 %6388
  %6390 = vrot.lane.b32.xlu0 %v6135, 120
  %v6391 = vpop.permute.xlu0 %6390
  %6392 = vrot.lane.b32.xlu0 %v6137, 120
  %v6393 = vpop.permute.xlu0 %6392
  %6394 = vrot.lane.b32.xlu0 %v6139, 120
  %v6395 = vpop.permute.xlu0 %6394
  %6396 = vrot.lane.b32.xlu0 %v6141, 120
  %v6397 = vpop.permute.xlu0 %6396
  %6398 = vrot.lane.b32.xlu0 %v6143, 120
  %v6399 = vpop.permute.xlu0 %6398
  %6400 = vrot.lane.b32.xlu0 %v6145, 120
  %v6401 = vpop.permute.xlu0 %6400
  %6402 = vrot.lane.b32.xlu0 %v6147, 120
  %v6403 = vpop.permute.xlu0 %6402
  %6404 = vrot.lane.b32.xlu0 %v6149, 120
  %v6405 = vpop.permute.xlu0 %6404
  %6406 = vrot.lane.b32.xlu0 %v6151, 120
  %v6407 = vpop.permute.xlu0 %6406
  %6408 = vrot.lane.b32.xlu0 %v6153, 120
  %v6409 = vpop.permute.xlu0 %6408
  %6410 = vrot.lane.b32.xlu0 %v6155, 120
  %v6411 = vpop.permute.xlu0 %6410
  %6412 = vrot.lane.b32.xlu0 %v6157, 120
  %v6413 = vpop.permute.xlu0 %6412
  %6414 = vrot.lane.b32.xlu0 %v6159, 120
  %v6415 = vpop.permute.xlu0 %6414
  %6416 = vrot.lane.b32.xlu0 %v6161, 120
  %v6417 = vpop.permute.xlu0 %6416
  %6418 = vrot.lane.b32.xlu0 %v6163, 120
  %v6419 = vpop.permute.xlu0 %6418
  %6420 = vrot.lane.b32.xlu0 %v6165, 120
  %v6421 = vpop.permute.xlu0 %6420
  %6422 = vrot.lane.b32.xlu0 %v6167, 120
  %v6423 = vpop.permute.xlu0 %6422
  %6424 = vrot.lane.b32.xlu0 %v6169, 120
  %v6425 = vpop.permute.xlu0 %6424
  %6426 = vrot.lane.b32.xlu0 %v6171, 120
  %v6427 = vpop.permute.xlu0 %6426
  %6428 = vrot.lane.b32.xlu0 %v6173, 120
  %v6429 = vpop.permute.xlu0 %6428
  %6430 = vrot.lane.b32.xlu0 %v6175, 120
  %v6431 = vpop.permute.xlu0 %6430
  %6432 = vrot.lane.b32.xlu0 %v6177, 120
  %v6433 = vpop.permute.xlu0 %6432
  %6434 = vrot.lane.b32.xlu0 %v6179, 120
  %v6435 = vpop.permute.xlu0 %6434
  %6436 = vrot.lane.b32.xlu0 %v6181, 120
  %v6437 = vpop.permute.xlu0 %6436
  %6438 = vrot.lane.b32.xlu0 %v6183, 120
  %v6439 = vpop.permute.xlu0 %6438
  %6440 = vrot.lane.b32.xlu0 %v6185, 120
  %v6441 = vpop.permute.xlu0 %6440
  %6442 = vrot.lane.b32.xlu0 %v6187, 120
  %v6443 = vpop.permute.xlu0 %6442
  %6444 = vrot.lane.b32.xlu0 %v6189, 120
  %v6445 = vpop.permute.xlu0 %6444
  %6446 = vrot.lane.b32.xlu0 %v6191, 120
  %v6447 = vpop.permute.xlu0 %6446
  %6448 = vrot.lane.b32.xlu0 %v6193, 120
  %v6449 = vpop.permute.xlu0 %6448
  %6450 = vrot.lane.b32.xlu0 %v6195, 120
  %v6451 = vpop.permute.xlu0 %6450
  %6452 = vrot.lane.b32.xlu0 %v6197, 120
  %v6453 = vpop.permute.xlu0 %6452
  %6454 = vrot.lane.b32.xlu0 %v6199, 120
  %v6455 = vpop.permute.xlu0 %6454
  %6456 = vrot.lane.b32.xlu0 %v6201, 120
  %v6457 = vpop.permute.xlu0 %6456
  %6458 = vrot.lane.b32.xlu0 %v6203, 120
  %v6459 = vpop.permute.xlu0 %6458
  %6460 = vrot.lane.b32.xlu0 %v6205, 120
  %v6461 = vpop.permute.xlu0 %6460
  %6462 = vrot.lane.b32.xlu0 %v6207, 120
  %v6463 = vpop.permute.xlu0 %6462
  %6464 = vrot.lane.b32.xlu0 %v6209, 120
  %v6465 = vpop.permute.xlu0 %6464
  %6466 = vrot.lane.b32.xlu0 %v6211, 120
  %v6467 = vpop.permute.xlu0 %6466
  %6468 = vrot.lane.b32.xlu0 %v6213, 120
  %v6469 = vpop.permute.xlu0 %6468
  %v6534 = vmul.f32 %v6214, %v6343
  %v6535 = vmul.f32 %v6215, %v6345
  %v6536 = vmul.f32 %v6216, %v6347
  %v6537 = vmul.f32 %v6217, %v6349
  %v6538 = vmul.f32 %v6218, %v6351
  %v6539 = vmul.f32 %v6219, %v6353
  %v6540 = vmul.f32 %v6220, %v6355
  %v6541 = vmul.f32 %v6221, %v6357
  %v6542 = vmul.f32 %v6222, %v6359
  %v6543 = vmul.f32 %v6223, %v6361
  %v6544 = vmul.f32 %v6224, %v6363
  %v6545 = vmul.f32 %v6225, %v6365
  %v6546 = vmul.f32 %v6226, %v6367
  %v6547 = vmul.f32 %v6227, %v6369
  %v6548 = vmul.f32 %v6228, %v6371
  %v6549 = vmul.f32 %v6229, %v6373
  %v6550 = vmul.f32 %v6230, %v6375
  %v6551 = vmul.f32 %v6231, %v6377
  %v6552 = vmul.f32 %v6232, %v6379
  %v6553 = vmul.f32 %v6233, %v6381
  %v6554 = vmul.f32 %v6234, %v6383
  %v6555 = vmul.f32 %v6235, %v6385
  %v6556 = vmul.f32 %v6236, %v6387
  %v6557 = vmul.f32 %v6237, %v6389
  %v6558 = vmul.f32 %v6238, %v6391
  %v6559 = vmul.f32 %v6239, %v6393
  %v6560 = vmul.f32 %v6240, %v6395
  %v6561 = vmul.f32 %v6241, %v6397
  %v6562 = vmul.f32 %v6242, %v6399
  %v6563 = vmul.f32 %v6243, %v6401
  %v6564 = vmul.f32 %v6244, %v6403
  %v6565 = vmul.f32 %v6245, %v6405
  %v6566 = vmul.f32 %v6246, %v6407
  %v6567 = vmul.f32 %v6247, %v6409
  %v6568 = vmul.f32 %v6248, %v6411
  %v6569 = vmul.f32 %v6249, %v6413
  %v6570 = vmul.f32 %v6250, %v6415
  %v6571 = vmul.f32 %v6251, %v6417
  %v6572 = vmul.f32 %v6252, %v6419
  %v6573 = vmul.f32 %v6253, %v6421
  %v6574 = vmul.f32 %v6254, %v6423
  %v6575 = vmul.f32 %v6255, %v6425
  %v6576 = vmul.f32 %v6256, %v6427
  %v6577 = vmul.f32 %v6257, %v6429
  %v6578 = vmul.f32 %v6258, %v6431
  %v6579 = vmul.f32 %v6259, %v6433
  %v6580 = vmul.f32 %v6260, %v6435
  %v6581 = vmul.f32 %v6261, %v6437
  %v6582 = vmul.f32 %v6262, %v6439
  %v6583 = vmul.f32 %v6263, %v6441
  %v6584 = vmul.f32 %v6264, %v6443
  %v6585 = vmul.f32 %v6265, %v6445
  %v6586 = vmul.f32 %v6266, %v6447
  %v6587 = vmul.f32 %v6267, %v6449
  %v6588 = vmul.f32 %v6268, %v6451
  %v6589 = vmul.f32 %v6269, %v6453
  %v6590 = vmul.f32 %v6270, %v6455
  %v6591 = vmul.f32 %v6271, %v6457
  %v6592 = vmul.f32 %v6272, %v6459
  %v6593 = vmul.f32 %v6273, %v6461
  %v6594 = vmul.f32 %v6274, %v6463
  %v6595 = vmul.f32 %v6275, %v6465
  %v6596 = vmul.f32 %v6276, %v6467
  %v6597 = vmul.f32 %v6277, %v6469
  %v6598 = vpack.c.bf16 %v6535, %v6534
  %v6599 = vpack.c.bf16 %v6537, %v6536
  %v6600 = vpack.c.bf16 %v6539, %v6538
  %v6601 = vpack.c.bf16 %v6541, %v6540
  %v6602 = vpack.c.bf16 %v6543, %v6542
  %v6603 = vpack.c.bf16 %v6545, %v6544
  %v6604 = vpack.c.bf16 %v6547, %v6546
  %v6605 = vpack.c.bf16 %v6549, %v6548
  %v6606 = vpack.c.bf16 %v6551, %v6550
  %v6607 = vpack.c.bf16 %v6553, %v6552
  %v6608 = vpack.c.bf16 %v6555, %v6554
  %v6609 = vpack.c.bf16 %v6557, %v6556
  %v6610 = vpack.c.bf16 %v6559, %v6558
  %v6611 = vpack.c.bf16 %v6561, %v6560
  %v6612 = vpack.c.bf16 %v6563, %v6562
  %v6613 = vpack.c.bf16 %v6565, %v6564
  %v6614 = vpack.c.bf16 %v6567, %v6566
  %v6615 = vpack.c.bf16 %v6569, %v6568
  %v6616 = vpack.c.bf16 %v6571, %v6570
  %v6617 = vpack.c.bf16 %v6573, %v6572
  %v6618 = vpack.c.bf16 %v6575, %v6574
  %v6619 = vpack.c.bf16 %v6577, %v6576
  %v6620 = vpack.c.bf16 %v6579, %v6578
  %v6621 = vpack.c.bf16 %v6581, %v6580
  %v6622 = vpack.c.bf16 %v6583, %v6582
  %v6623 = vpack.c.bf16 %v6585, %v6584
  %v6624 = vpack.c.bf16 %v6587, %v6586
  %v6625 = vpack.c.bf16 %v6589, %v6588
  %v6626 = vpack.c.bf16 %v6591, %v6590
  %v6627 = vpack.c.bf16 %v6593, %v6592
  %v6628 = vpack.c.bf16 %v6595, %v6594
  %v6629 = vpack.c.bf16 %v6597, %v6596
  %vm6630 = vcmask 60416
  %6631 = vst.msk [vmem:[#allocation4] sm:$0xf] %vm6630, 0
  %6632 = vst.msk [vmem:[#allocation4 + $0x4] sm:$0xf] %vm6630, 0
  %vm6633 = vcmask 57344
  %6634 = vst.msk [vmem:[#allocation4 + $0x8] sm:$0x1] %vm6633, 0
  %6635 = vst.msk [vmem:[#allocation4 + $0xd8] sm:$0xf] %vm6630, 0
  %6636 = vst.msk [vmem:[#allocation4 + $0xdc] sm:$0xf] %vm6630, 0
  %6637 = vst.msk [vmem:[#allocation4 + $0xe0] sm:$0x1] %vm6633, 0
  %s6638 = scalar_lea.vmem [#allocation4], 204
  %6639 = vst.msk [vmem:[%s6638] sm:$0xf] %vm6630, 0
  %6640 = vst.msk [vmem:[%s6638 + $0x4] sm:$0xf] %vm6630, 0
  %6641 = vst.msk [vmem:[%s6638 + $0x8] sm:$0x1] %vm6633, 0
  %6642 = vst.msk [vmem:[%s6638 + $0xd8] sm:$0xf] %vm6630, 0
  %6643 = vst.msk [vmem:[%s6638 + $0xdc] sm:$0xf] %vm6630, 0
  %6644 = vst.msk [vmem:[%s6638 + $0xe0] sm:$0x1] %vm6633, 0
  %s6645 = scalar_lea.vmem [#allocation4], 12
  %vm6646 = vcmask 57344
  %vm6647 = vsmask.f32 256
  %vm6648 = vmand %vm6646, %vm6647
  %v6649 = vld [vmem:[%s6645] sm:$0x1]
  %v6650 = vsel %vm6648, 0, %v6649
  %6651 = vst [vmem:[%s6645] sm:$0x1] %v6650
  %v6652 = vld [vmem:[%s6645 + $0xc] sm:$0x1]
  %v6653 = vsel %vm6648, 0, %v6652
  %6654 = vst [vmem:[%s6645 + $0xc] sm:$0x1] %v6653
  %v6655 = vld [vmem:[%s6645 + $0x18] sm:$0x1]
  %v6656 = vsel %vm6648, 0, %v6655
  %6657 = vst [vmem:[%s6645 + $0x18] sm:$0x1] %v6656
  %v6658 = vld [vmem:[%s6645 + $0x24] sm:$0x1]
  %v6659 = vsel %vm6648, 0, %v6658
  %6660 = vst [vmem:[%s6645 + $0x24] sm:$0x1] %v6659
  %v6661 = vld [vmem:[%s6645 + $0x30] sm:$0x1]
  %v6662 = vsel %vm6648, 0, %v6661
  %6663 = vst [vmem:[%s6645 + $0x30] sm:$0x1] %v6662
  %v6664 = vld [vmem:[%s6645 + $0x3c] sm:$0x1]
  %v6665 = vsel %vm6648, 0, %v6664
  %6666 = vst [vmem:[%s6645 + $0x3c] sm:$0x1] %v6665
  %v6667 = vld [vmem:[%s6645 + $0x48] sm:$0x1]
  %v6668 = vsel %vm6648, 0, %v6667
  %6669 = vst [vmem:[%s6645 + $0x48] sm:$0x1] %v6668
  %v6670 = vld [vmem:[%s6645 + $0x54] sm:$0x1]
  %v6671 = vsel %vm6648, 0, %v6670
  %6672 = vst [vmem:[%s6645 + $0x54] sm:$0x1] %v6671
  %v6673 = vld [vmem:[%s6645 + $0x60] sm:$0x1]
  %v6674 = vsel %vm6648, 0, %v6673
  %6675 = vst [vmem:[%s6645 + $0x60] sm:$0x1] %v6674
  %v6676 = vld [vmem:[%s6645 + $0x6c] sm:$0x1]
  %v6677 = vsel %vm6648, 0, %v6676
  %6678 = vst [vmem:[%s6645 + $0x6c] sm:$0x1] %v6677
  %v6679 = vld [vmem:[%s6645 + $0x78] sm:$0x1]
  %v6680 = vsel %vm6648, 0, %v6679
  %6681 = vst [vmem:[%s6645 + $0x78] sm:$0x1] %v6680
  %v6682 = vld [vmem:[%s6645 + $0x84] sm:$0x1]
  %v6683 = vsel %vm6648, 0, %v6682
  %6684 = vst [vmem:[%s6645 + $0x84] sm:$0x1] %v6683
  %v6685 = vld [vmem:[%s6645 + $0x90] sm:$0x1]
  %v6686 = vsel %vm6648, 0, %v6685
  %6687 = vst [vmem:[%s6645 + $0x90] sm:$0x1] %v6686
  %v6688 = vld [vmem:[%s6645 + $0x9c] sm:$0x1]
  %v6689 = vsel %vm6648, 0, %v6688
  %6690 = vst [vmem:[%s6645 + $0x9c] sm:$0x1] %v6689
  %v6691 = vld [vmem:[%s6645 + $0xa8] sm:$0x1]
  %v6692 = vsel %vm6648, 0, %v6691
  %6693 = vst [vmem:[%s6645 + $0xa8] sm:$0x1] %v6692
  %v6694 = vld [vmem:[%s6645 + $0xb4] sm:$0x1]
  %v6695 = vsel %vm6648, 0, %v6694
  %6696 = vst [vmem:[%s6645 + $0xb4] sm:$0x1] %v6695
  %v6697 = vld [vmem:[%s6645 + $0xd8] sm:$0x1]
  %v6698 = vsel %vm6648, 0, %v6697
  %6699 = vst [vmem:[%s6645 + $0xd8] sm:$0x1] %v6698
  %v6700 = vld [vmem:[%s6645 + $0xe4] sm:$0x1]
  %v6701 = vsel %vm6648, 0, %v6700
  %6702 = vst [vmem:[%s6645 + $0xe4] sm:$0x1] %v6701
  %v6703 = vld [vmem:[%s6645 + $0xf0] sm:$0x1]
  %v6704 = vsel %vm6648, 0, %v6703
  %6705 = vst [vmem:[%s6645 + $0xf0] sm:$0x1] %v6704
  %v6706 = vld [vmem:[%s6645 + $0xfc] sm:$0x1]
  %v6707 = vsel %vm6648, 0, %v6706
  %6708 = vst [vmem:[%s6645 + $0xfc] sm:$0x1] %v6707
  %v6709 = vld [vmem:[%s6645 + $0x108] sm:$0x1]
  %v6710 = vsel %vm6648, 0, %v6709
  %6711 = vst [vmem:[%s6645 + $0x108] sm:$0x1] %v6710
  %v6712 = vld [vmem:[%s6645 + $0x114] sm:$0x1]
  %v6713 = vsel %vm6648, 0, %v6712
  %6714 = vst [vmem:[%s6645 + $0x114] sm:$0x1] %v6713
  %v6715 = vld [vmem:[%s6645 + $0x120] sm:$0x1]
  %v6716 = vsel %vm6648, 0, %v6715
  %6717 = vst [vmem:[%s6645 + $0x120] sm:$0x1] %v6716
  %v6718 = vld [vmem:[%s6645 + $0x12c] sm:$0x1]
  %v6719 = vsel %vm6648, 0, %v6718
  %6720 = vst [vmem:[%s6645 + $0x12c] sm:$0x1] %v6719
  %v6721 = vld [vmem:[%s6645 + $0x138] sm:$0x1]
  %v6722 = vsel %vm6648, 0, %v6721
  %6723 = vst [vmem:[%s6645 + $0x138] sm:$0x1] %v6722
  %v6724 = vld [vmem:[%s6645 + $0x144] sm:$0x1]
  %v6725 = vsel %vm6648, 0, %v6724
  %6726 = vst [vmem:[%s6645 + $0x144] sm:$0x1] %v6725
  %v6727 = vld [vmem:[%s6645 + $0x150] sm:$0x1]
  %v6728 = vsel %vm6648, 0, %v6727
  %6729 = vst [vmem:[%s6645 + $0x150] sm:$0x1] %v6728
  %v6730 = vld [vmem:[%s6645 + $0x15c] sm:$0x1]
  %v6731 = vsel %vm6648, 0, %v6730
  %6732 = vst [vmem:[%s6645 + $0x15c] sm:$0x1] %v6731
  %v6733 = vld [vmem:[%s6645 + $0x168] sm:$0x1]
  %v6734 = vsel %vm6648, 0, %v6733
  %6735 = vst [vmem:[%s6645 + $0x168] sm:$0x1] %v6734
  %v6736 = vld [vmem:[%s6645 + $0x174] sm:$0x1]
  %v6737 = vsel %vm6648, 0, %v6736
  %6738 = vst [vmem:[%s6645 + $0x174] sm:$0x1] %v6737
  %v6739 = vld [vmem:[%s6645 + $0x180] sm:$0x1]
  %v6740 = vsel %vm6648, 0, %v6739
  %6741 = vst [vmem:[%s6645 + $0x180] sm:$0x1] %v6740
  %v6742 = vld [vmem:[%s6645 + $0x18c] sm:$0x1]
  %v6743 = vsel %vm6648, 0, %v6742
  %6744 = vst [vmem:[%s6645 + $0x18c] sm:$0x1] %v6743
  %vm6745 = vsmask.f32 7938
  %vm6746 = vmand %vm6646, %vm6745
  %v6747 = vld [vmem:[%s6645 + $0x8] sm:$0x1]
  %v6748 = vsel %vm6746, 0, %v6747
  %6749 = vst [vmem:[%s6645 + $0x8] sm:$0x1] %v6748
  %v6750 = vld [vmem:[%s6645 + $0x14] sm:$0x1]
  %v6751 = vsel %vm6746, 0, %v6750
  %6752 = vst [vmem:[%s6645 + $0x14] sm:$0x1] %v6751
  %v6753 = vld [vmem:[%s6645 + $0x20] sm:$0x1]
  %v6754 = vsel %vm6746, 0, %v6753
  %6755 = vst [vmem:[%s6645 + $0x20] sm:$0x1] %v6754
  %v6756 = vld [vmem:[%s6645 + $0x2c] sm:$0x1]
  %v6757 = vsel %vm6746, 0, %v6756
  %6758 = vst [vmem:[%s6645 + $0x2c] sm:$0x1] %v6757
  %v6759 = vld [vmem:[%s6645 + $0x38] sm:$0x1]
  %v6760 = vsel %vm6746, 0, %v6759
  %6761 = vst [vmem:[%s6645 + $0x38] sm:$0x1] %v6760
  %v6762 = vld [vmem:[%s6645 + $0x44] sm:$0x1]
  %v6763 = vsel %vm6746, 0, %v6762
  %6764 = vst [vmem:[%s6645 + $0x44] sm:$0x1] %v6763
  %v6765 = vld [vmem:[%s6645 + $0x50] sm:$0x1]
  %v6766 = vsel %vm6746, 0, %v6765
  %6767 = vst [vmem:[%s6645 + $0x50] sm:$0x1] %v6766
  %v6768 = vld [vmem:[%s6645 + $0x5c] sm:$0x1]
  %v6769 = vsel %vm6746, 0, %v6768
  %6770 = vst [vmem:[%s6645 + $0x5c] sm:$0x1] %v6769
  %v6771 = vld [vmem:[%s6645 + $0x68] sm:$0x1]
  %v6772 = vsel %vm6746, 0, %v6771
  %6773 = vst [vmem:[%s6645 + $0x68] sm:$0x1] %v6772
  %v6774 = vld [vmem:[%s6645 + $0x74] sm:$0x1]
  %v6775 = vsel %vm6746, 0, %v6774
  %6776 = vst [vmem:[%s6645 + $0x74] sm:$0x1] %v6775
  %v6777 = vld [vmem:[%s6645 + $0x80] sm:$0x1]
  %v6778 = vsel %vm6746, 0, %v6777
  %6779 = vst [vmem:[%s6645 + $0x80] sm:$0x1] %v6778
  %v6780 = vld [vmem:[%s6645 + $0x8c] sm:$0x1]
  %v6781 = vsel %vm6746, 0, %v6780
  %6782 = vst [vmem:[%s6645 + $0x8c] sm:$0x1] %v6781
  %v6783 = vld [vmem:[%s6645 + $0x98] sm:$0x1]
  %v6784 = vsel %vm6746, 0, %v6783
  %6785 = vst [vmem:[%s6645 + $0x98] sm:$0x1] %v6784
  %v6786 = vld [vmem:[%s6645 + $0xa4] sm:$0x1]
  %v6787 = vsel %vm6746, 0, %v6786
  %6788 = vst [vmem:[%s6645 + $0xa4] sm:$0x1] %v6787
  %v6789 = vld [vmem:[%s6645 + $0xb0] sm:$0x1]
  %v6790 = vsel %vm6746, 0, %v6789
  %6791 = vst [vmem:[%s6645 + $0xb0] sm:$0x1] %v6790
  %v6792 = vld [vmem:[%s6645 + $0xbc] sm:$0x1]
  %v6793 = vsel %vm6746, 0, %v6792
  %6794 = vst [vmem:[%s6645 + $0xbc] sm:$0x1] %v6793
  %v6795 = vld [vmem:[%s6645 + $0xe0] sm:$0x1]
  %v6796 = vsel %vm6746, 0, %v6795
  %6797 = vst [vmem:[%s6645 + $0xe0] sm:$0x1] %v6796
  %v6798 = vld [vmem:[%s6645 + $0xec] sm:$0x1]
  %v6799 = vsel %vm6746, 0, %v6798
  %6800 = vst [vmem:[%s6645 + $0xec] sm:$0x1] %v6799
  %v6801 = vld [vmem:[%s6645 + $0xf8] sm:$0x1]
  %v6802 = vsel %vm6746, 0, %v6801
  %6803 = vst [vmem:[%s6645 + $0xf8] sm:$0x1] %v6802
  %v6804 = vld [vmem:[%s6645 + $0x104] sm:$0x1]
  %v6805 = vsel %vm6746, 0, %v6804
  %6806 = vst [vmem:[%s6645 + $0x104] sm:$0x1] %v6805
  %v6807 = vld [vmem:[%s6645 + $0x110] sm:$0x1]
  %v6808 = vsel %vm6746, 0, %v6807
  %6809 = vst [vmem:[%s6645 + $0x110] sm:$0x1] %v6808
  %v6810 = vld [vmem:[%s6645 + $0x11c] sm:$0x1]
  %v6811 = vsel %vm6746, 0, %v6810
  %6812 = vst [vmem:[%s6645 + $0x11c] sm:$0x1] %v6811
  %v6813 = vld [vmem:[%s6645 + $0x128] sm:$0x1]
  %v6814 = vsel %vm6746, 0, %v6813
  %6815 = vst [vmem:[%s6645 + $0x128] sm:$0x1] %v6814
  %v6816 = vld [vmem:[%s6645 + $0x134] sm:$0x1]
  %v6817 = vsel %vm6746, 0, %v6816
  %6818 = vst [vmem:[%s6645 + $0x134] sm:$0x1] %v6817
  %v6819 = vld [vmem:[%s6645 + $0x140] sm:$0x1]
  %v6820 = vsel %vm6746, 0, %v6819
  %6821 = vst [vmem:[%s6645 + $0x140] sm:$0x1] %v6820
  %v6822 = vld [vmem:[%s6645 + $0x14c] sm:$0x1]
  %v6823 = vsel %vm6746, 0, %v6822
  %6824 = vst [vmem:[%s6645 + $0x14c] sm:$0x1] %v6823
  %v6825 = vld [vmem:[%s6645 + $0x158] sm:$0x1]
  %v6826 = vsel %vm6746, 0, %v6825
  %6827 = vst [vmem:[%s6645 + $0x158] sm:$0x1] %v6826
  %v6828 = vld [vmem:[%s6645 + $0x164] sm:$0x1]
  %v6829 = vsel %vm6746, 0, %v6828
  %6830 = vst [vmem:[%s6645 + $0x164] sm:$0x1] %v6829
  %v6831 = vld [vmem:[%s6645 + $0x170] sm:$0x1]
  %v6832 = vsel %vm6746, 0, %v6831
  %6833 = vst [vmem:[%s6645 + $0x170] sm:$0x1] %v6832
  %v6834 = vld [vmem:[%s6645 + $0x17c] sm:$0x1]
  %v6835 = vsel %vm6746, 0, %v6834
  %6836 = vst [vmem:[%s6645 + $0x17c] sm:$0x1] %v6835
  %v6837 = vld [vmem:[%s6645 + $0x188] sm:$0x1]
  %v6838 = vsel %vm6746, 0, %v6837
  %6839 = vst [vmem:[%s6645 + $0x188] sm:$0x1] %v6838
  %v6840 = vld [vmem:[%s6645 + $0x194] sm:$0x1]
  %v6841 = vsel %vm6746, 0, %v6840
  %6842 = vst [vmem:[%s6645 + $0x194] sm:$0x1] %v6841
  %v6875 = vunpack.c.l.b16 %v6598
  %v6876 = vunpack.c.h.b16 %v6598
  %v6877 = vunpack.c.l.b16 %v6599
  %v6878 = vunpack.c.h.b16 %v6599
  %v6879 = vunpack.c.l.b16 %v6600
  %v6880 = vunpack.c.h.b16 %v6600
  %v6881 = vunpack.c.l.b16 %v6601
  %v6882 = vunpack.c.h.b16 %v6601
  %v6883 = vunpack.c.l.b16 %v6602
  %v6884 = vunpack.c.h.b16 %v6602
  %v6885 = vunpack.c.l.b16 %v6603
  %v6886 = vunpack.c.h.b16 %v6603
  %v6887 = vunpack.c.l.b16 %v6604
  %v6888 = vunpack.c.h.b16 %v6604
  %v6889 = vunpack.c.l.b16 %v6605
  %v6890 = vunpack.c.h.b16 %v6605
  %v6891 = vunpack.c.l.b16 %v6606
  %v6892 = vunpack.c.h.b16 %v6606
  %v6893 = vunpack.c.l.b16 %v6607
  %v6894 = vunpack.c.h.b16 %v6607
  %v6895 = vunpack.c.l.b16 %v6608
  %v6896 = vunpack.c.h.b16 %v6608
  %v6897 = vunpack.c.l.b16 %v6609
  %v6898 = vunpack.c.h.b16 %v6609
  %v6899 = vunpack.c.l.b16 %v6610
  %v6900 = vunpack.c.h.b16 %v6610
  %v6901 = vunpack.c.l.b16 %v6611
  %v6902 = vunpack.c.h.b16 %v6611
  %v6903 = vunpack.c.l.b16 %v6612
  %v6904 = vunpack.c.h.b16 %v6612
  %v6905 = vunpack.c.l.b16 %v6613
  %v6906 = vunpack.c.h.b16 %v6613
  %v6907 = vunpack.c.l.b16 %v6614
  %v6908 = vunpack.c.h.b16 %v6614
  %v6909 = vunpack.c.l.b16 %v6615
  %v6910 = vunpack.c.h.b16 %v6615
  %v6911 = vunpack.c.l.b16 %v6616
  %v6912 = vunpack.c.h.b16 %v6616
  %v6913 = vunpack.c.l.b16 %v6617
  %v6914 = vunpack.c.h.b16 %v6617
  %v6915 = vunpack.c.l.b16 %v6618
  %v6916 = vunpack.c.h.b16 %v6618
  %v6917 = vunpack.c.l.b16 %v6619
  %v6918 = vunpack.c.h.b16 %v6619
  %v6919 = vunpack.c.l.b16 %v6620
  %v6920 = vunpack.c.h.b16 %v6620
  %v6921 = vunpack.c.l.b16 %v6621
  %v6922 = vunpack.c.h.b16 %v6621
  %v6923 = vunpack.c.l.b16 %v6622
  %v6924 = vunpack.c.h.b16 %v6622
  %v6925 = vunpack.c.l.b16 %v6623
  %v6926 = vunpack.c.h.b16 %v6623
  %v6927 = vunpack.c.l.b16 %v6624
  %v6928 = vunpack.c.h.b16 %v6624
  %v6929 = vunpack.c.l.b16 %v6625
  %v6930 = vunpack.c.h.b16 %v6625
  %v6931 = vunpack.c.l.b16 %v6626
  %v6932 = vunpack.c.h.b16 %v6626
  %v6933 = vunpack.c.l.b16 %v6627
  %v6934 = vunpack.c.h.b16 %v6627
  %v6935 = vunpack.c.l.b16 %v6628
  %v6936 = vunpack.c.h.b16 %v6628
  %v6937 = vunpack.c.l.b16 %v6629
  %v6938 = vunpack.c.h.b16 %v6629
  %v6939 = vpack.c.b16 %v6875, %v6875
  %v6940 = vpack.c.b16 %v6876, %v6876
  %v6941 = vpack.c.b16 %v6877, %v6877
  %v6942 = vpack.c.b16 %v6878, %v6878
  %v6943 = vpack.c.b16 %v6879, %v6879
  %v6944 = vpack.c.b16 %v6880, %v6880
  %v6945 = vpack.c.b16 %v6881, %v6881
  %v6946 = vpack.c.b16 %v6882, %v6882
  %v6947 = vpack.c.b16 %v6883, %v6883
  %v6948 = vpack.c.b16 %v6884, %v6884
  %v6949 = vpack.c.b16 %v6885, %v6885
  %v6950 = vpack.c.b16 %v6886, %v6886
  %v6951 = vpack.c.b16 %v6887, %v6887
  %v6952 = vpack.c.b16 %v6888, %v6888
  %v6953 = vpack.c.b16 %v6889, %v6889
  %v6954 = vpack.c.b16 %v6890, %v6890
  %v6955 = vpack.c.b16 %v6891, %v6891
  %v6956 = vpack.c.b16 %v6892, %v6892
  %v6957 = vpack.c.b16 %v6893, %v6893
  %v6958 = vpack.c.b16 %v6894, %v6894
  %v6959 = vpack.c.b16 %v6895, %v6895
  %v6960 = vpack.c.b16 %v6896, %v6896
  %v6961 = vpack.c.b16 %v6897, %v6897
  %v6962 = vpack.c.b16 %v6898, %v6898
  %v6963 = vpack.c.b16 %v6899, %v6899
  %v6964 = vpack.c.b16 %v6900, %v6900
  %v6965 = vpack.c.b16 %v6901, %v6901
  %v6966 = vpack.c.b16 %v6902, %v6902
  %v6967 = vpack.c.b16 %v6903, %v6903
  %v6968 = vpack.c.b16 %v6904, %v6904
  %v6969 = vpack.c.b16 %v6905, %v6905
  %v6970 = vpack.c.b16 %v6906, %v6906
  %v6971 = vpack.c.b16 %v6907, %v6907
  %v6972 = vpack.c.b16 %v6908, %v6908
  %v6973 = vpack.c.b16 %v6909, %v6909
  %v6974 = vpack.c.b16 %v6910, %v6910
  %v6975 = vpack.c.b16 %v6911, %v6911
  %v6976 = vpack.c.b16 %v6912, %v6912
  %v6977 = vpack.c.b16 %v6913, %v6913
  %v6978 = vpack.c.b16 %v6914, %v6914
  %v6979 = vpack.c.b16 %v6915, %v6915
  %v6980 = vpack.c.b16 %v6916, %v6916
  %v6981 = vpack.c.b16 %v6917, %v6917
  %v6982 = vpack.c.b16 %v6918, %v6918
  %v6983 = vpack.c.b16 %v6919, %v6919
  %v6984 = vpack.c.b16 %v6920, %v6920
  %v6985 = vpack.c.b16 %v6921, %v6921
  %v6986 = vpack.c.b16 %v6922, %v6922
  %v6987 = vpack.c.b16 %v6923, %v6923
  %v6988 = vpack.c.b16 %v6924, %v6924
  %v6989 = vpack.c.b16 %v6925, %v6925
  %v6990 = vpack.c.b16 %v6926, %v6926
  %v6991 = vpack.c.b16 %v6927, %v6927
  %v6992 = vpack.c.b16 %v6928, %v6928
  %v6993 = vpack.c.b16 %v6929, %v6929
  %v6994 = vpack.c.b16 %v6930, %v6930
  %v6995 = vpack.c.b16 %v6931, %v6931
  %v6996 = vpack.c.b16 %v6932, %v6932
  %v6997 = vpack.c.b16 %v6933, %v6933
  %v6998 = vpack.c.b16 %v6934, %v6934
  %v6999 = vpack.c.b16 %v6935, %v6935
  %v7000 = vpack.c.b16 %v6936, %v6936
  %v7001 = vpack.c.b16 %v6937, %v6937
  %v7002 = vpack.c.b16 %v6938, %v6938
  %vm7003 = vsmask.f32 4368
  %vm7004 = vmor %vm6647, %vm7003
  %v7006 = vshrl.u32 %v6939, 16
  %v7008 = vrot.slane %v7006, 7
  %v7009 = vshll.u32 %v6939, 16
  %v7011 = vor.u32 %v7008, %v7009
  %v7012 = vrot.slane %v7008, 4
  %v7014 = vshrl.u32 %v6940, 16
  %v7016 = vrot.slane %v7014, 7
  %v7017 = vshll.u32 %v6940, 16
  %v7019 = vor.u32 %v7016, %v7017
  %v7020 = vsel %vm7004, %v7012, %v7019
  %v7021 = vrot.slane %v7016, 4
  %v7023 = vshrl.u32 %v6941, 16
  %v7025 = vrot.slane %v7023, 7
  %v7026 = vshll.u32 %v6941, 16
  %v7028 = vor.u32 %v7025, %v7026
  %v7029 = vrot.slane %v7025, 4
  %v7031 = vshrl.u32 %v6942, 16
  %v7033 = vrot.slane %v7031, 7
  %v7034 = vshll.u32 %v6942, 16
  %v7036 = vor.u32 %v7033, %v7034
  %v7037 = vsel %vm7004, %v7029, %v7036
  %v7038 = vrot.slane %v7033, 4
  %v7040 = vshrl.u32 %v6943, 16
  %v7042 = vrot.slane %v7040, 7
  %v7043 = vshll.u32 %v6943, 16
  %v7045 = vor.u32 %v7042, %v7043
  %v7046 = vrot.slane %v7042, 4
  %v7048 = vshrl.u32 %v6944, 16
  %v7050 = vrot.slane %v7048, 7
  %v7051 = vshll.u32 %v6944, 16
  %v7053 = vor.u32 %v7050, %v7051
  %v7054 = vsel %vm7004, %v7046, %v7053
  %v7055 = vrot.slane %v7050, 4
  %v7057 = vshrl.u32 %v6945, 16
  %v7059 = vrot.slane %v7057, 7
  %v7060 = vshll.u32 %v6945, 16
  %v7062 = vor.u32 %v7059, %v7060
  %v7063 = vrot.slane %v7059, 4
  %v7065 = vshrl.u32 %v6946, 16
  %v7067 = vrot.slane %v7065, 7
  %v7068 = vshll.u32 %v6946, 16
  %v7070 = vor.u32 %v7067, %v7068
  %v7071 = vsel %vm7004, %v7063, %v7070
  %v7072 = vrot.slane %v7067, 4
  %v7074 = vshrl.u32 %v6947, 16
  %v7076 = vrot.slane %v7074, 7
  %v7077 = vshll.u32 %v6947, 16
  %v7079 = vor.u32 %v7076, %v7077
  %v7080 = vrot.slane %v7076, 4
  %v7082 = vshrl.u32 %v6948, 16
  %v7084 = vrot.slane %v7082, 7
  %v7085 = vshll.u32 %v6948, 16
  %v7087 = vor.u32 %v7084, %v7085
  %v7088 = vsel %vm7004, %v7080, %v7087
  %v7089 = vrot.slane %v7084, 4
  %v7091 = vshrl.u32 %v6949, 16
  %v7093 = vrot.slane %v7091, 7
  %v7094 = vshll.u32 %v6949, 16
  %v7096 = vor.u32 %v7093, %v7094
  %v7097 = vrot.slane %v7093, 4
  %v7099 = vshrl.u32 %v6950, 16
  %v7101 = vrot.slane %v7099, 7
  %v7102 = vshll.u32 %v6950, 16
  %v7104 = vor.u32 %v7101, %v7102
  %v7105 = vsel %vm7004, %v7097, %v7104
  %v7106 = vrot.slane %v7101, 4
  %v7108 = vshrl.u32 %v6951, 16
  %v7110 = vrot.slane %v7108, 7
  %v7111 = vshll.u32 %v6951, 16
  %v7113 = vor.u32 %v7110, %v7111
  %v7114 = vrot.slane %v7110, 4
  %v7116 = vshrl.u32 %v6952, 16
  %v7118 = vrot.slane %v7116, 7
  %v7119 = vshll.u32 %v6952, 16
  %v7121 = vor.u32 %v7118, %v7119
  %v7122 = vsel %vm7004, %v7114, %v7121
  %v7123 = vrot.slane %v7118, 4
  %v7125 = vshrl.u32 %v6953, 16
  %v7127 = vrot.slane %v7125, 7
  %v7128 = vshll.u32 %v6953, 16
  %v7130 = vor.u32 %v7127, %v7128
  %v7131 = vrot.slane %v7127, 4
  %v7133 = vshrl.u32 %v6954, 16
  %v7135 = vrot.slane %v7133, 7
  %v7136 = vshll.u32 %v6954, 16
  %v7138 = vor.u32 %v7135, %v7136
  %v7139 = vsel %vm7004, %v7131, %v7138
  %v7140 = vrot.slane %v7135, 4
  %v7142 = vshrl.u32 %v6955, 16
  %v7144 = vrot.slane %v7142, 7
  %v7145 = vshll.u32 %v6955, 16
  %v7147 = vor.u32 %v7144, %v7145
  %v7148 = vrot.slane %v7144, 4
  %v7150 = vshrl.u32 %v6956, 16
  %v7152 = vrot.slane %v7150, 7
  %v7153 = vshll.u32 %v6956, 16
  %v7155 = vor.u32 %v7152, %v7153
  %v7156 = vsel %vm7004, %v7148, %v7155
  %v7157 = vrot.slane %v7152, 4
  %v7159 = vshrl.u32 %v6957, 16
  %v7161 = vrot.slane %v7159, 7
  %v7162 = vshll.u32 %v6957, 16
  %v7164 = vor.u32 %v7161, %v7162
  %v7165 = vrot.slane %v7161, 4
  %v7167 = vshrl.u32 %v6958, 16
  %v7169 = vrot.slane %v7167, 7
  %v7170 = vshll.u32 %v6958, 16
  %v7172 = vor.u32 %v7169, %v7170
  %v7173 = vsel %vm7004, %v7165, %v7172
  %v7174 = vrot.slane %v7169, 4
  %v7176 = vshrl.u32 %v6959, 16
  %v7178 = vrot.slane %v7176, 7
  %v7179 = vshll.u32 %v6959, 16
  %v7181 = vor.u32 %v7178, %v7179
  %v7182 = vrot.slane %v7178, 4
  %v7184 = vshrl.u32 %v6960, 16
  %v7186 = vrot.slane %v7184, 7
  %v7187 = vshll.u32 %v6960, 16
  %v7189 = vor.u32 %v7186, %v7187
  %v7190 = vsel %vm7004, %v7182, %v7189
  %v7191 = vrot.slane %v7186, 4
  %v7193 = vshrl.u32 %v6961, 16
  %v7195 = vrot.slane %v7193, 7
  %v7196 = vshll.u32 %v6961, 16
  %v7198 = vor.u32 %v7195, %v7196
  %v7199 = vrot.slane %v7195, 4
  %v7201 = vshrl.u32 %v6962, 16
  %v7203 = vrot.slane %v7201, 7
  %v7204 = vshll.u32 %v6962, 16
  %v7206 = vor.u32 %v7203, %v7204
  %v7207 = vsel %vm7004, %v7199, %v7206
  %v7208 = vrot.slane %v7203, 4
  %v7210 = vshrl.u32 %v6963, 16
  %v7212 = vrot.slane %v7210, 7
  %v7213 = vshll.u32 %v6963, 16
  %v7215 = vor.u32 %v7212, %v7213
  %v7216 = vrot.slane %v7212, 4
  %v7218 = vshrl.u32 %v6964, 16
  %v7220 = vrot.slane %v7218, 7
  %v7221 = vshll.u32 %v6964, 16
  %v7223 = vor.u32 %v7220, %v7221
  %v7224 = vsel %vm7004, %v7216, %v7223
  %v7225 = vrot.slane %v7220, 4
  %v7227 = vshrl.u32 %v6965, 16
  %v7229 = vrot.slane %v7227, 7
  %v7230 = vshll.u32 %v6965, 16
  %v7232 = vor.u32 %v7229, %v7230
  %v7233 = vrot.slane %v7229, 4
  %v7235 = vshrl.u32 %v6966, 16
  %v7237 = vrot.slane %v7235, 7
  %v7238 = vshll.u32 %v6966, 16
  %v7240 = vor.u32 %v7237, %v7238
  %v7241 = vsel %vm7004, %v7233, %v7240
  %v7242 = vrot.slane %v7237, 4
  %v7244 = vshrl.u32 %v6967, 16
  %v7246 = vrot.slane %v7244, 7
  %v7247 = vshll.u32 %v6967, 16
  %v7249 = vor.u32 %v7246, %v7247
  %v7250 = vrot.slane %v7246, 4
  %v7252 = vshrl.u32 %v6968, 16
  %v7254 = vrot.slane %v7252, 7
  %v7255 = vshll.u32 %v6968, 16
  %v7257 = vor.u32 %v7254, %v7255
  %v7258 = vsel %vm7004, %v7250, %v7257
  %v7259 = vrot.slane %v7254, 4
  %v7261 = vshrl.u32 %v6969, 16
  %v7263 = vrot.slane %v7261, 7
  %v7264 = vshll.u32 %v6969, 16
  %v7266 = vor.u32 %v7263, %v7264
  %v7267 = vrot.slane %v7263, 4
  %v7269 = vshrl.u32 %v6970, 16
  %v7271 = vrot.slane %v7269, 7
  %v7272 = vshll.u32 %v6970, 16
  %v7274 = vor.u32 %v7271, %v7272
  %v7275 = vsel %vm7004, %v7267, %v7274
  %v7276 = vrot.slane %v7271, 4
  %v7278 = vshrl.u32 %v6971, 16
  %v7280 = vrot.slane %v7278, 7
  %v7281 = vshll.u32 %v6971, 16
  %v7283 = vor.u32 %v7280, %v7281
  %v7284 = vrot.slane %v7280, 4
  %v7286 = vshrl.u32 %v6972, 16
  %v7288 = vrot.slane %v7286, 7
  %v7289 = vshll.u32 %v6972, 16
  %v7291 = vor.u32 %v7288, %v7289
  %v7292 = vsel %vm7004, %v7284, %v7291
  %v7293 = vrot.slane %v7288, 4
  %v7295 = vshrl.u32 %v6973, 16
  %v7297 = vrot.slane %v7295, 7
  %v7298 = vshll.u32 %v6973, 16
  %v7300 = vor.u32 %v7297, %v7298
  %v7301 = vrot.slane %v7297, 4
  %v7303 = vshrl.u32 %v6974, 16
  %v7305 = vrot.slane %v7303, 7
  %v7306 = vshll.u32 %v6974, 16
  %v7308 = vor.u32 %v7305, %v7306
  %v7309 = vsel %vm7004, %v7301, %v7308
  %v7310 = vrot.slane %v7305, 4
  %v7312 = vshrl.u32 %v6975, 16
  %v7314 = vrot.slane %v7312, 7
  %v7315 = vshll.u32 %v6975, 16
  %v7317 = vor.u32 %v7314, %v7315
  %v7318 = vrot.slane %v7314, 4
  %v7320 = vshrl.u32 %v6976, 16
  %v7322 = vrot.slane %v7320, 7
  %v7323 = vshll.u32 %v6976, 16
  %v7325 = vor.u32 %v7322, %v7323
  %v7326 = vsel %vm7004, %v7318, %v7325
  %v7327 = vrot.slane %v7322, 4
  %v7329 = vshrl.u32 %v6977, 16
  %v7331 = vrot.slane %v7329, 7
  %v7332 = vshll.u32 %v6977, 16
  %v7334 = vor.u32 %v7331, %v7332
  %v7335 = vrot.slane %v7331, 4
  %v7337 = vshrl.u32 %v6978, 16
  %v7339 = vrot.slane %v7337, 7
  %v7340 = vshll.u32 %v6978, 16
  %v7342 = vor.u32 %v7339, %v7340
  %v7343 = vsel %vm7004, %v7335, %v7342
  %v7344 = vrot.slane %v7339, 4
  %v7346 = vshrl.u32 %v6979, 16
  %v7348 = vrot.slane %v7346, 7
  %v7349 = vshll.u32 %v6979, 16
  %v7351 = vor.u32 %v7348, %v7349
  %v7352 = vrot.slane %v7348, 4
  %v7354 = vshrl.u32 %v6980, 16
  %v7356 = vrot.slane %v7354, 7
  %v7357 = vshll.u32 %v6980, 16
  %v7359 = vor.u32 %v7356, %v7357
  %v7360 = vsel %vm7004, %v7352, %v7359
  %v7361 = vrot.slane %v7356, 4
  %v7363 = vshrl.u32 %v6981, 16
  %v7365 = vrot.slane %v7363, 7
  %v7366 = vshll.u32 %v6981, 16
  %v7368 = vor.u32 %v7365, %v7366
  %v7369 = vrot.slane %v7365, 4
  %v7371 = vshrl.u32 %v6982, 16
  %v7373 = vrot.slane %v7371, 7
  %v7374 = vshll.u32 %v6982, 16
  %v7376 = vor.u32 %v7373, %v7374
  %v7377 = vsel %vm7004, %v7369, %v7376
  %v7378 = vrot.slane %v7373, 4
  %v7380 = vshrl.u32 %v6983, 16
  %v7382 = vrot.slane %v7380, 7
  %v7383 = vshll.u32 %v6983, 16
  %v7385 = vor.u32 %v7382, %v7383
  %v7386 = vrot.slane %v7382, 4
  %v7388 = vshrl.u32 %v6984, 16
  %v7390 = vrot.slane %v7388, 7
  %v7391 = vshll.u32 %v6984, 16
  %v7393 = vor.u32 %v7390, %v7391
  %v7394 = vsel %vm7004, %v7386, %v7393
  %v7395 = vrot.slane %v7390, 4
  %v7397 = vshrl.u32 %v6985, 16
  %v7399 = vrot.slane %v7397, 7
  %v7400 = vshll.u32 %v6985, 16
  %v7402 = vor.u32 %v7399, %v7400
  %v7403 = vrot.slane %v7399, 4
  %v7405 = vshrl.u32 %v6986, 16
  %v7407 = vrot.slane %v7405, 7
  %v7408 = vshll.u32 %v6986, 16
  %v7410 = vor.u32 %v7407, %v7408
  %v7411 = vsel %vm7004, %v7403, %v7410
  %v7412 = vrot.slane %v7407, 4
  %v7414 = vshrl.u32 %v6987, 16
  %v7416 = vrot.slane %v7414, 7
  %v7417 = vshll.u32 %v6987, 16
  %v7419 = vor.u32 %v7416, %v7417
  %v7420 = vrot.slane %v7416, 4
  %v7422 = vshrl.u32 %v6988, 16
  %v7424 = vrot.slane %v7422, 7
  %v7425 = vshll.u32 %v6988, 16
  %v7427 = vor.u32 %v7424, %v7425
  %v7428 = vsel %vm7004, %v7420, %v7427
  %v7429 = vrot.slane %v7424, 4
  %v7431 = vshrl.u32 %v6989, 16
  %v7433 = vrot.slane %v7431, 7
  %v7434 = vshll.u32 %v6989, 16
  %v7436 = vor.u32 %v7433, %v7434
  %v7437 = vrot.slane %v7433, 4
  %v7439 = vshrl.u32 %v6990, 16
  %v7441 = vrot.slane %v7439, 7
  %v7442 = vshll.u32 %v6990, 16
  %v7444 = vor.u32 %v7441, %v7442
  %v7445 = vsel %vm7004, %v7437, %v7444
  %v7446 = vrot.slane %v7441, 4
  %v7448 = vshrl.u32 %v6991, 16
  %v7450 = vrot.slane %v7448, 7
  %v7451 = vshll.u32 %v6991, 16
  %v7453 = vor.u32 %v7450, %v7451
  %v7454 = vrot.slane %v7450, 4
  %v7456 = vshrl.u32 %v6992, 16
  %v7458 = vrot.slane %v7456, 7
  %v7459 = vshll.u32 %v6992, 16
  %v7461 = vor.u32 %v7458, %v7459
  %v7462 = vsel %vm7004, %v7454, %v7461
  %v7463 = vrot.slane %v7458, 4
  %v7465 = vshrl.u32 %v6993, 16
  %v7467 = vrot.slane %v7465, 7
  %v7468 = vshll.u32 %v6993, 16
  %v7470 = vor.u32 %v7467, %v7468
  %v7471 = vrot.slane %v7467, 4
  %v7473 = vshrl.u32 %v6994, 16
  %v7475 = vrot.slane %v7473, 7
  %v7476 = vshll.u32 %v6994, 16
  %v7478 = vor.u32 %v7475, %v7476
  %v7479 = vsel %vm7004, %v7471, %v7478
  %v7480 = vrot.slane %v7475, 4
  %v7482 = vshrl.u32 %v6995, 16
  %v7484 = vrot.slane %v7482, 7
  %v7485 = vshll.u32 %v6995, 16
  %v7487 = vor.u32 %v7484, %v7485
  %v7488 = vrot.slane %v7484, 4
  %v7490 = vshrl.u32 %v6996, 16
  %v7492 = vrot.slane %v7490, 7
  %v7493 = vshll.u32 %v6996, 16
  %v7495 = vor.u32 %v7492, %v7493
  %v7496 = vsel %vm7004, %v7488, %v7495
  %v7497 = vrot.slane %v7492, 4
  %v7499 = vshrl.u32 %v6997, 16
  %v7501 = vrot.slane %v7499, 7
  %v7502 = vshll.u32 %v6997, 16
  %v7504 = vor.u32 %v7501, %v7502
  %v7505 = vrot.slane %v7501, 4
  %v7507 = vshrl.u32 %v6998, 16
  %v7509 = vrot.slane %v7507, 7
  %v7510 = vshll.u32 %v6998, 16
  %v7512 = vor.u32 %v7509, %v7510
  %v7513 = vsel %vm7004, %v7505, %v7512
  %v7514 = vrot.slane %v7509, 4
  %v7516 = vshrl.u32 %v6999, 16
  %v7518 = vrot.slane %v7516, 7
  %v7519 = vshll.u32 %v6999, 16
  %v7521 = vor.u32 %v7518, %v7519
  %v7522 = vrot.slane %v7518, 4
  %v7524 = vshrl.u32 %v7000, 16
  %v7526 = vrot.slane %v7524, 7
  %v7527 = vshll.u32 %v7000, 16
  %v7529 = vor.u32 %v7526, %v7527
  %v7530 = vsel %vm7004, %v7522, %v7529
  %v7531 = vrot.slane %v7526, 4
  %v7533 = vshrl.u32 %v7001, 16
  %v7535 = vrot.slane %v7533, 7
  %v7536 = vshll.u32 %v7001, 16
  %v7538 = vor.u32 %v7535, %v7536
  %v7539 = vrot.slane %v7535, 4
  %v7541 = vshrl.u32 %v7002, 16
  %v7543 = vrot.slane %v7541, 7
  %v7544 = vshll.u32 %v7002, 16
  %v7546 = vor.u32 %v7543, %v7544
  %v7547 = vsel %vm7004, %v7539, %v7546
  %v7548 = vrot.slane %v7543, 4
  %vm7645 = vcmask 60416
  %vm7646 = vmand %vm7645, %vm6745
  %v7647 = vld [vmem:[%s6645] sm:$0xf]
  %v7648 = vsel %vm7646, %v7011, %v7647
  %7649 = vst [vmem:[%s6645] sm:$0xf] %v7648
  %7650 = vst.msk [vmem:[%s6645 + $0x4] sm:$0xf] %vm6630, %v7020
  %v7651 = vld [vmem:[%s6645 + $0x8] sm:$0x1]
  %v7652 = vsel %vm6648, %v7021, %v7651
  %7653 = vst [vmem:[%s6645 + $0x8] sm:$0x1] %v7652
  %v7654 = vld [vmem:[%s6645 + $0xc] sm:$0xf]
  %v7655 = vsel %vm7646, %v7028, %v7654
  %7656 = vst [vmem:[%s6645 + $0xc] sm:$0xf] %v7655
  %7657 = vst.msk [vmem:[%s6645 + $0x10] sm:$0xf] %vm6630, %v7037
  %v7658 = vld [vmem:[%s6645 + $0x14] sm:$0x1]
  %v7659 = vsel %vm6648, %v7038, %v7658
  %7660 = vst [vmem:[%s6645 + $0x14] sm:$0x1] %v7659
  %v7661 = vld [vmem:[%s6645 + $0x18] sm:$0xf]
  %v7662 = vsel %vm7646, %v7045, %v7661
  %7663 = vst [vmem:[%s6645 + $0x18] sm:$0xf] %v7662
  %7664 = vst.msk [vmem:[%s6645 + $0x1c] sm:$0xf] %vm6630, %v7054
  %v7665 = vld [vmem:[%s6645 + $0x20] sm:$0x1]
  %v7666 = vsel %vm6648, %v7055, %v7665
  %7667 = vst [vmem:[%s6645 + $0x20] sm:$0x1] %v7666
  %v7668 = vld [vmem:[%s6645 + $0x24] sm:$0xf]
  %v7669 = vsel %vm7646, %v7062, %v7668
  %7670 = vst [vmem:[%s6645 + $0x24] sm:$0xf] %v7669
  %7671 = vst.msk [vmem:[%s6645 + $0x28] sm:$0xf] %vm6630, %v7071
  %v7672 = vld [vmem:[%s6645 + $0x2c] sm:$0x1]
  %v7673 = vsel %vm6648, %v7072, %v7672
  %7674 = vst [vmem:[%s6645 + $0x2c] sm:$0x1] %v7673
  %v7675 = vld [vmem:[%s6645 + $0x30] sm:$0xf]
  %v7676 = vsel %vm7646, %v7079, %v7675
  %7677 = vst [vmem:[%s6645 + $0x30] sm:$0xf] %v7676
  %7678 = vst.msk [vmem:[%s6645 + $0x34] sm:$0xf] %vm6630, %v7088
  %v7679 = vld [vmem:[%s6645 + $0x38] sm:$0x1]
  %v7680 = vsel %vm6648, %v7089, %v7679
  %7681 = vst [vmem:[%s6645 + $0x38] sm:$0x1] %v7680
  %v7682 = vld [vmem:[%s6645 + $0x3c] sm:$0xf]
  %v7683 = vsel %vm7646, %v7096, %v7682
  %7684 = vst [vmem:[%s6645 + $0x3c] sm:$0xf] %v7683
  %7685 = vst.msk [vmem:[%s6645 + $0x40] sm:$0xf] %vm6630, %v7105
  %v7686 = vld [vmem:[%s6645 + $0x44] sm:$0x1]
  %v7687 = vsel %vm6648, %v7106, %v7686
  %7688 = vst [vmem:[%s6645 + $0x44] sm:$0x1] %v7687
  %v7689 = vld [vmem:[%s6645 + $0x48] sm:$0xf]
  %v7690 = vsel %vm7646, %v7113, %v7689
  %7691 = vst [vmem:[%s6645 + $0x48] sm:$0xf] %v7690
  %7692 = vst.msk [vmem:[%s6645 + $0x4c] sm:$0xf] %vm6630, %v7122
  %v7693 = vld [vmem:[%s6645 + $0x50] sm:$0x1]
  %v7694 = vsel %vm6648, %v7123, %v7693
  %7695 = vst [vmem:[%s6645 + $0x50] sm:$0x1] %v7694
  %v7696 = vld [vmem:[%s6645 + $0x54] sm:$0xf]
  %v7697 = vsel %vm7646, %v7130, %v7696
  %7698 = vst [vmem:[%s6645 + $0x54] sm:$0xf] %v7697
  %7699 = vst.msk [vmem:[%s6645 + $0x58] sm:$0xf] %vm6630, %v7139
  %v7700 = vld [vmem:[%s6645 + $0x5c] sm:$0x1]
  %v7701 = vsel %vm6648, %v7140, %v7700
  %7702 = vst [vmem:[%s6645 + $0x5c] sm:$0x1] %v7701
  %v7703 = vld [vmem:[%s6645 + $0x60] sm:$0xf]
  %v7704 = vsel %vm7646, %v7147, %v7703
  %7705 = vst [vmem:[%s6645 + $0x60] sm:$0xf] %v7704
  %7706 = vst.msk [vmem:[%s6645 + $0x64] sm:$0xf] %vm6630, %v7156
  %v7707 = vld [vmem:[%s6645 + $0x68] sm:$0x1]
  %v7708 = vsel %vm6648, %v7157, %v7707
  %7709 = vst [vmem:[%s6645 + $0x68] sm:$0x1] %v7708
  %v7710 = vld [vmem:[%s6645 + $0x6c] sm:$0xf]
  %v7711 = vsel %vm7646, %v7164, %v7710
  %7712 = vst [vmem:[%s6645 + $0x6c] sm:$0xf] %v7711
  %7713 = vst.msk [vmem:[%s6645 + $0x70] sm:$0xf] %vm6630, %v7173
  %v7714 = vld [vmem:[%s6645 + $0x74] sm:$0x1]
  %v7715 = vsel %vm6648, %v7174, %v7714
  %7716 = vst [vmem:[%s6645 + $0x74] sm:$0x1] %v7715
  %v7717 = vld [vmem:[%s6645 + $0x78] sm:$0xf]
  %v7718 = vsel %vm7646, %v7181, %v7717
  %7719 = vst [vmem:[%s6645 + $0x78] sm:$0xf] %v7718
  %7720 = vst.msk [vmem:[%s6645 + $0x7c] sm:$0xf] %vm6630, %v7190
  %v7721 = vld [vmem:[%s6645 + $0x80] sm:$0x1]
  %v7722 = vsel %vm6648, %v7191, %v7721
  %7723 = vst [vmem:[%s6645 + $0x80] sm:$0x1] %v7722
  %v7724 = vld [vmem:[%s6645 + $0x84] sm:$0xf]
  %v7725 = vsel %vm7646, %v7198, %v7724
  %7726 = vst [vmem:[%s6645 + $0x84] sm:$0xf] %v7725
  %7727 = vst.msk [vmem:[%s6645 + $0x88] sm:$0xf] %vm6630, %v7207
  %v7728 = vld [vmem:[%s6645 + $0x8c] sm:$0x1]
  %v7729 = vsel %vm6648, %v7208, %v7728
  %7730 = vst [vmem:[%s6645 + $0x8c] sm:$0x1] %v7729
  %v7731 = vld [vmem:[%s6645 + $0x90] sm:$0xf]
  %v7732 = vsel %vm7646, %v7215, %v7731
  %7733 = vst [vmem:[%s6645 + $0x90] sm:$0xf] %v7732
  %7734 = vst.msk [vmem:[%s6645 + $0x94] sm:$0xf] %vm6630, %v7224
  %v7735 = vld [vmem:[%s6645 + $0x98] sm:$0x1]
  %v7736 = vsel %vm6648, %v7225, %v7735
  %7737 = vst [vmem:[%s6645 + $0x98] sm:$0x1] %v7736
  %v7738 = vld [vmem:[%s6645 + $0x9c] sm:$0xf]
  %v7739 = vsel %vm7646, %v7232, %v7738
  %7740 = vst [vmem:[%s6645 + $0x9c] sm:$0xf] %v7739
  %7741 = vst.msk [vmem:[%s6645 + $0xa0] sm:$0xf] %vm6630, %v7241
  %v7742 = vld [vmem:[%s6645 + $0xa4] sm:$0x1]
  %v7743 = vsel %vm6648, %v7242, %v7742
  %7744 = vst [vmem:[%s6645 + $0xa4] sm:$0x1] %v7743
  %v7745 = vld [vmem:[%s6645 + $0xa8] sm:$0xf]
  %v7746 = vsel %vm7646, %v7249, %v7745
  %7747 = vst [vmem:[%s6645 + $0xa8] sm:$0xf] %v7746
  %7748 = vst.msk [vmem:[%s6645 + $0xac] sm:$0xf] %vm6630, %v7258
  %v7749 = vld [vmem:[%s6645 + $0xb0] sm:$0x1]
  %v7750 = vsel %vm6648, %v7259, %v7749
  %7751 = vst [vmem:[%s6645 + $0xb0] sm:$0x1] %v7750
  %v7752 = vld [vmem:[%s6645 + $0xb4] sm:$0xf]
  %v7753 = vsel %vm7646, %v7266, %v7752
  %7754 = vst [vmem:[%s6645 + $0xb4] sm:$0xf] %v7753
  %7755 = vst.msk [vmem:[%s6645 + $0xb8] sm:$0xf] %vm6630, %v7275
  %v7756 = vld [vmem:[%s6645 + $0xbc] sm:$0x1]
  %v7757 = vsel %vm6648, %v7276, %v7756
  %7758 = vst [vmem:[%s6645 + $0xbc] sm:$0x1] %v7757
  %v7759 = vld [vmem:[%s6645 + $0xd8] sm:$0xf]
  %v7760 = vsel %vm7646, %v7283, %v7759
  %7761 = vst [vmem:[%s6645 + $0xd8] sm:$0xf] %v7760
  %7762 = vst.msk [vmem:[%s6645 + $0xdc] sm:$0xf] %vm6630, %v7292
  %v7763 = vld [vmem:[%s6645 + $0xe0] sm:$0x1]
  %v7764 = vsel %vm6648, %v7293, %v7763
  %7765 = vst [vmem:[%s6645 + $0xe0] sm:$0x1] %v7764
  %v7766 = vld [vmem:[%s6645 + $0xe4] sm:$0xf]
  %v7767 = vsel %vm7646, %v7300, %v7766
  %7768 = vst [vmem:[%s6645 + $0xe4] sm:$0xf] %v7767
  %7769 = vst.msk [vmem:[%s6645 + $0xe8] sm:$0xf] %vm6630, %v7309
  %v7770 = vld [vmem:[%s6645 + $0xec] sm:$0x1]
  %v7771 = vsel %vm6648, %v7310, %v7770
  %7772 = vst [vmem:[%s6645 + $0xec] sm:$0x1] %v7771
  %v7773 = vld [vmem:[%s6645 + $0xf0] sm:$0xf]
  %v7774 = vsel %vm7646, %v7317, %v7773
  %7775 = vst [vmem:[%s6645 + $0xf0] sm:$0xf] %v7774
  %7776 = vst.msk [vmem:[%s6645 + $0xf4] sm:$0xf] %vm6630, %v7326
  %v7777 = vld [vmem:[%s6645 + $0xf8] sm:$0x1]
  %v7778 = vsel %vm6648, %v7327, %v7777
  %7779 = vst [vmem:[%s6645 + $0xf8] sm:$0x1] %v7778
  %v7780 = vld [vmem:[%s6645 + $0xfc] sm:$0xf]
  %v7781 = vsel %vm7646, %v7334, %v7780
  %7782 = vst [vmem:[%s6645 + $0xfc] sm:$0xf] %v7781
  %7783 = vst.msk [vmem:[%s6645 + $0x100] sm:$0xf] %vm6630, %v7343
  %v7784 = vld [vmem:[%s6645 + $0x104] sm:$0x1]
  %v7785 = vsel %vm6648, %v7344, %v7784
  %7786 = vst [vmem:[%s6645 + $0x104] sm:$0x1] %v7785
  %v7787 = vld [vmem:[%s6645 + $0x108] sm:$0xf]
  %v7788 = vsel %vm7646, %v7351, %v7787
  %7789 = vst [vmem:[%s6645 + $0x108] sm:$0xf] %v7788
  %7790 = vst.msk [vmem:[%s6645 + $0x10c] sm:$0xf] %vm6630, %v7360
  %v7791 = vld [vmem:[%s6645 + $0x110] sm:$0x1]
  %v7792 = vsel %vm6648, %v7361, %v7791
  %7793 = vst [vmem:[%s6645 + $0x110] sm:$0x1] %v7792
  %v7794 = vld [vmem:[%s6645 + $0x114] sm:$0xf]
  %v7795 = vsel %vm7646, %v7368, %v7794
  %7796 = vst [vmem:[%s6645 + $0x114] sm:$0xf] %v7795
  %7797 = vst.msk [vmem:[%s6645 + $0x118] sm:$0xf] %vm6630, %v7377
  %v7798 = vld [vmem:[%s6645 + $0x11c] sm:$0x1]
  %v7799 = vsel %vm6648, %v7378, %v7798
  %7800 = vst [vmem:[%s6645 + $0x11c] sm:$0x1] %v7799
  %v7801 = vld [vmem:[%s6645 + $0x120] sm:$0xf]
  %v7802 = vsel %vm7646, %v7385, %v7801
  %7803 = vst [vmem:[%s6645 + $0x120] sm:$0xf] %v7802
  %7804 = vst.msk [vmem:[%s6645 + $0x124] sm:$0xf] %vm6630, %v7394
  %v7805 = vld [vmem:[%s6645 + $0x128] sm:$0x1]
  %v7806 = vsel %vm6648, %v7395, %v7805
  %7807 = vst [vmem:[%s6645 + $0x128] sm:$0x1] %v7806
  %v7808 = vld [vmem:[%s6645 + $0x12c] sm:$0xf]
  %v7809 = vsel %vm7646, %v7402, %v7808
  %7810 = vst [vmem:[%s6645 + $0x12c] sm:$0xf] %v7809
  %7811 = vst.msk [vmem:[%s6645 + $0x130] sm:$0xf] %vm6630, %v7411
  %v7812 = vld [vmem:[%s6645 + $0x134] sm:$0x1]
  %v7813 = vsel %vm6648, %v7412, %v7812
  %7814 = vst [vmem:[%s6645 + $0x134] sm:$0x1] %v7813
  %v7815 = vld [vmem:[%s6645 + $0x138] sm:$0xf]
  %v7816 = vsel %vm7646, %v7419, %v7815
  %7817 = vst [vmem:[%s6645 + $0x138] sm:$0xf] %v7816
  %7818 = vst.msk [vmem:[%s6645 + $0x13c] sm:$0xf] %vm6630, %v7428
  %v7819 = vld [vmem:[%s6645 + $0x140] sm:$0x1]
  %v7820 = vsel %vm6648, %v7429, %v7819
  %7821 = vst [vmem:[%s6645 + $0x140] sm:$0x1] %v7820
  %v7822 = vld [vmem:[%s6645 + $0x144] sm:$0xf]
  %v7823 = vsel %vm7646, %v7436, %v7822
  %7824 = vst [vmem:[%s6645 + $0x144] sm:$0xf] %v7823
  %7825 = vst.msk [vmem:[%s6645 + $0x148] sm:$0xf] %vm6630, %v7445
  %v7826 = vld [vmem:[%s6645 + $0x14c] sm:$0x1]
  %v7827 = vsel %vm6648, %v7446, %v7826
  %7828 = vst [vmem:[%s6645 + $0x14c] sm:$0x1] %v7827
  %v7829 = vld [vmem:[%s6645 + $0x150] sm:$0xf]
  %v7830 = vsel %vm7646, %v7453, %v7829
  %7831 = vst [vmem:[%s6645 + $0x150] sm:$0xf] %v7830
  %7832 = vst.msk [vmem:[%s6645 + $0x154] sm:$0xf] %vm6630, %v7462
  %v7833 = vld [vmem:[%s6645 + $0x158] sm:$0x1]
  %v7834 = vsel %vm6648, %v7463, %v7833
  %7835 = vst [vmem:[%s6645 + $0x158] sm:$0x1] %v7834
  %v7836 = vld [vmem:[%s6645 + $0x15c] sm:$0xf]
  %v7837 = vsel %vm7646, %v7470, %v7836
  %7838 = vst [vmem:[%s6645 + $0x15c] sm:$0xf] %v7837
  %7839 = vst.msk [vmem:[%s6645 + $0x160] sm:$0xf] %vm6630, %v7479
  %v7840 = vld [vmem:[%s6645 + $0x164] sm:$0x1]
  %v7841 = vsel %vm6648, %v7480, %v7840
  %7842 = vst [vmem:[%s6645 + $0x164] sm:$0x1] %v7841
  %v7843 = vld [vmem:[%s6645 + $0x168] sm:$0xf]
  %v7844 = vsel %vm7646, %v7487, %v7843
  %7845 = vst [vmem:[%s6645 + $0x168] sm:$0xf] %v7844
  %7846 = vst.msk [vmem:[%s6645 + $0x16c] sm:$0xf] %vm6630, %v7496
  %v7847 = vld [vmem:[%s6645 + $0x170] sm:$0x1]
  %v7848 = vsel %vm6648, %v7497, %v7847
  %7849 = vst [vmem:[%s6645 + $0x170] sm:$0x1] %v7848
  %v7850 = vld [vmem:[%s6645 + $0x174] sm:$0xf]
  %v7851 = vsel %vm7646, %v7504, %v7850
  %7852 = vst [vmem:[%s6645 + $0x174] sm:$0xf] %v7851
  %7853 = vst.msk [vmem:[%s6645 + $0x178] sm:$0xf] %vm6630, %v7513
  %v7854 = vld [vmem:[%s6645 + $0x17c] sm:$0x1]
  %v7855 = vsel %vm6648, %v7514, %v7854
  %7856 = vst [vmem:[%s6645 + $0x17c] sm:$0x1] %v7855
  %v7857 = vld [vmem:[%s6645 + $0x180] sm:$0xf]
  %v7858 = vsel %vm7646, %v7521, %v7857
  %7859 = vst [vmem:[%s6645 + $0x180] sm:$0xf] %v7858
  %7860 = vst.msk [vmem:[%s6645 + $0x184] sm:$0xf] %vm6630, %v7530
  %v7861 = vld [vmem:[%s6645 + $0x188] sm:$0x1]
  %v7862 = vsel %vm6648, %v7531, %v7861
  %7863 = vst [vmem:[%s6645 + $0x188] sm:$0x1] %v7862
  %v7864 = vld [vmem:[%s6645 + $0x18c] sm:$0xf]
  %v7865 = vsel %vm7646, %v7538, %v7864
  %7866 = vst [vmem:[%s6645 + $0x18c] sm:$0xf] %v7865
  %7867 = vst.msk [vmem:[%s6645 + $0x190] sm:$0xf] %vm6630, %v7547
  %v7868 = vld [vmem:[%s6645 + $0x194] sm:$0x1]
  %v7869 = vsel %vm6648, %v7548, %v7868
  %7870 = vst [vmem:[%s6645 + $0x194] sm:$0x1] %v7869
  %v7871 = vld [vmem:[#allocation4] sm:$0xf]
  %v7872 = vld [vmem:[#allocation4 + $0x4] sm:$0xf]
  %v7873 = vld [vmem:[#allocation4 + $0xc] sm:$0xf]
  %v7874 = vld [vmem:[#allocation4 + $0x10] sm:$0xf]
  %v7875 = vld [vmem:[#allocation4 + $0x18] sm:$0xf]
  %v7876 = vld [vmem:[#allocation4 + $0x1c] sm:$0xf]
  %v7877 = vld [vmem:[#allocation4 + $0x24] sm:$0xf]
  %v7878 = vld [vmem:[#allocation4 + $0x28] sm:$0xf]
  %v7879 = vld [vmem:[#allocation4 + $0x30] sm:$0xf]
  %v7880 = vld [vmem:[#allocation4 + $0x34] sm:$0xf]
  %v7881 = vld [vmem:[#allocation4 + $0x3c] sm:$0xf]
  %v7882 = vld [vmem:[#allocation4 + $0x40] sm:$0xf]
  %v7883 = vld [vmem:[#allocation4 + $0x48] sm:$0xf]
  %v7884 = vld [vmem:[#allocation4 + $0x4c] sm:$0xf]
  %v7885 = vld [vmem:[#allocation4 + $0x54] sm:$0xf]
  %v7886 = vld [vmem:[#allocation4 + $0x58] sm:$0xf]
  %v7887 = vld [vmem:[#allocation4 + $0x60] sm:$0xf]
  %v7888 = vld [vmem:[#allocation4 + $0x64] sm:$0xf]
  %v7889 = vld [vmem:[#allocation4 + $0x6c] sm:$0xf]
  %v7890 = vld [vmem:[#allocation4 + $0x70] sm:$0xf]
  %v7891 = vld [vmem:[#allocation4 + $0x78] sm:$0xf]
  %v7892 = vld [vmem:[#allocation4 + $0x7c] sm:$0xf]
  %v7893 = vld [vmem:[#allocation4 + $0x84] sm:$0xf]
  %v7894 = vld [vmem:[#allocation4 + $0x88] sm:$0xf]
  %v7895 = vld [vmem:[#allocation4 + $0x90] sm:$0xf]
  %v7896 = vld [vmem:[#allocation4 + $0x94] sm:$0xf]
  %v7897 = vld [vmem:[#allocation4 + $0x9c] sm:$0xf]
  %v7898 = vld [vmem:[#allocation4 + $0xa0] sm:$0xf]
  %v7899 = vld [vmem:[#allocation4 + $0xa8] sm:$0xf]
  %v7900 = vld [vmem:[#allocation4 + $0xac] sm:$0xf]
  %v7901 = vld [vmem:[#allocation4 + $0xb4] sm:$0xf]
  %v7902 = vld [vmem:[#allocation4 + $0xb8] sm:$0xf]
  %v7903 = vld [vmem:[#allocation4 + $0xd8] sm:$0xf]
  %v7904 = vld [vmem:[#allocation4 + $0xdc] sm:$0xf]
  %v7905 = vld [vmem:[#allocation4 + $0xe4] sm:$0xf]
  %v7906 = vld [vmem:[#allocation4 + $0xe8] sm:$0xf]
  %v7907 = vld [vmem:[#allocation4 + $0xf0] sm:$0xf]
  %v7908 = vld [vmem:[#allocation4 + $0xf4] sm:$0xf]
  %v7909 = vld [vmem:[#allocation4 + $0xfc] sm:$0xf]
  %v7910 = vld [vmem:[#allocation4 + $0x100] sm:$0xf]
  %v7911 = vld [vmem:[#allocation4 + $0x108] sm:$0xf]
  %v7912 = vld [vmem:[#allocation4 + $0x10c] sm:$0xf]
  %v7913 = vld [vmem:[#allocation4 + $0x114] sm:$0xf]
  %v7914 = vld [vmem:[#allocation4 + $0x118] sm:$0xf]
  %v7915 = vld [vmem:[#allocation4 + $0x120] sm:$0xf]
  %v7916 = vld [vmem:[#allocation4 + $0x124] sm:$0xf]
  %v7917 = vld [vmem:[#allocation4 + $0x12c] sm:$0xf]
  %v7918 = vld [vmem:[#allocation4 + $0x130] sm:$0xf]
  %v7919 = vld [vmem:[#allocation4 + $0x138] sm:$0xf]
  %v7920 = vld [vmem:[#allocation4 + $0x13c] sm:$0xf]
  %v7921 = vld [vmem:[#allocation4 + $0x144] sm:$0xf]
  %v7922 = vld [vmem:[#allocation4 + $0x148] sm:$0xf]
  %v7923 = vld [vmem:[#allocation4 + $0x150] sm:$0xf]
  %v7924 = vld [vmem:[#allocation4 + $0x154] sm:$0xf]
  %v7925 = vld [vmem:[#allocation4 + $0x15c] sm:$0xf]
  %v7926 = vld [vmem:[#allocation4 + $0x160] sm:$0xf]
  %v7927 = vld [vmem:[#allocation4 + $0x168] sm:$0xf]
  %v7928 = vld [vmem:[#allocation4 + $0x16c] sm:$0xf]
  %v7929 = vld [vmem:[#allocation4 + $0x174] sm:$0xf]
  %v7930 = vld [vmem:[#allocation4 + $0x178] sm:$0xf]
  %v7931 = vld [vmem:[#allocation4 + $0x180] sm:$0xf]
  %v7932 = vld [vmem:[#allocation4 + $0x184] sm:$0xf]
  %v7933 = vld [vmem:[#allocation4 + $0x18c] sm:$0xf]
  %v7934 = vld [vmem:[#allocation4 + $0x190] sm:$0xf]
  %v7999 = vunpack.c.l.b16 %v7871
  %v8000 = vunpack.c.l.b16 %v7872
  %v8001 = vunpack.c.l.b16 %v7873
  %v8002 = vunpack.c.l.b16 %v7874
  %v8003 = vunpack.c.l.b16 %v7875
  %v8004 = vunpack.c.l.b16 %v7876
  %v8005 = vunpack.c.l.b16 %v7877
  %v8006 = vunpack.c.l.b16 %v7878
  %v8007 = vunpack.c.l.b16 %v7879
  %v8008 = vunpack.c.l.b16 %v7880
  %v8009 = vunpack.c.l.b16 %v7881
  %v8010 = vunpack.c.l.b16 %v7882
  %v8011 = vunpack.c.l.b16 %v7883
  %v8012 = vunpack.c.l.b16 %v7884
  %v8013 = vunpack.c.l.b16 %v7885
  %v8014 = vunpack.c.l.b16 %v7886
  %v8015 = vunpack.c.l.b16 %v7887
  %v8016 = vunpack.c.l.b16 %v7888
  %v8017 = vunpack.c.l.b16 %v7889
  %v8018 = vunpack.c.l.b16 %v7890
  %v8019 = vunpack.c.l.b16 %v7891
  %v8020 = vunpack.c.l.b16 %v7892
  %v8021 = vunpack.c.l.b16 %v7893
  %v8022 = vunpack.c.l.b16 %v7894
  %v8023 = vunpack.c.l.b16 %v7895
  %v8024 = vunpack.c.l.b16 %v7896
  %v8025 = vunpack.c.l.b16 %v7897
  %v8026 = vunpack.c.l.b16 %v7898
  %v8027 = vunpack.c.l.b16 %v7899
  %v8028 = vunpack.c.l.b16 %v7900
  %v8029 = vunpack.c.l.b16 %v7901
  %v8030 = vunpack.c.l.b16 %v7902
  %v8031 = vunpack.c.l.b16 %v7903
  %v8032 = vunpack.c.l.b16 %v7904
  %v8033 = vunpack.c.l.b16 %v7905
  %v8034 = vunpack.c.l.b16 %v7906
  %v8035 = vunpack.c.l.b16 %v7907
  %v8036 = vunpack.c.l.b16 %v7908
  %v8037 = vunpack.c.l.b16 %v7909
  %v8038 = vunpack.c.l.b16 %v7910
  %v8039 = vunpack.c.l.b16 %v7911
  %v8040 = vunpack.c.l.b16 %v7912
  %v8041 = vunpack.c.l.b16 %v7913
  %v8042 = vunpack.c.l.b16 %v7914
  %v8043 = vunpack.c.l.b16 %v7915
  %v8044 = vunpack.c.l.b16 %v7916
  %v8045 = vunpack.c.l.b16 %v7917
  %v8046 = vunpack.c.l.b16 %v7918
  %v8047 = vunpack.c.l.b16 %v7919
  %v8048 = vunpack.c.l.b16 %v7920
  %v8049 = vunpack.c.l.b16 %v7921
  %v8050 = vunpack.c.l.b16 %v7922
  %v8051 = vunpack.c.l.b16 %v7923
  %v8052 = vunpack.c.l.b16 %v7924
  %v8053 = vunpack.c.l.b16 %v7925
  %v8054 = vunpack.c.l.b16 %v7926
  %v8055 = vunpack.c.l.b16 %v7927
  %v8056 = vunpack.c.l.b16 %v7928
  %v8057 = vunpack.c.l.b16 %v7929
  %v8058 = vunpack.c.l.b16 %v7930
  %v8059 = vunpack.c.l.b16 %v7931
  %v8060 = vunpack.c.l.b16 %v7932
  %v8061 = vunpack.c.l.b16 %v7933
  %v8062 = vunpack.c.l.b16 %v7934
  %v8063 = vpack.c.b16 %v8000, %v7999
  %v8064 = vpack.c.b16 %v8002, %v8001
  %v8065 = vpack.c.b16 %v8004, %v8003
  %v8066 = vpack.c.b16 %v8006, %v8005
  %v8067 = vpack.c.b16 %v8008, %v8007
  %v8068 = vpack.c.b16 %v8010, %v8009
  %v8069 = vpack.c.b16 %v8012, %v8011
  %v8070 = vpack.c.b16 %v8014, %v8013
  %v8071 = vpack.c.b16 %v8016, %v8015
  %v8072 = vpack.c.b16 %v8018, %v8017
  %v8073 = vpack.c.b16 %v8020, %v8019
  %v8074 = vpack.c.b16 %v8022, %v8021
  %v8075 = vpack.c.b16 %v8024, %v8023
  %v8076 = vpack.c.b16 %v8026, %v8025
  %v8077 = vpack.c.b16 %v8028, %v8027
  %v8078 = vpack.c.b16 %v8030, %v8029
  %v8079 = vpack.c.b16 %v8032, %v8031
  %v8080 = vpack.c.b16 %v8034, %v8033
  %v8081 = vpack.c.b16 %v8036, %v8035
  %v8082 = vpack.c.b16 %v8038, %v8037
  %v8083 = vpack.c.b16 %v8040, %v8039
  %v8084 = vpack.c.b16 %v8042, %v8041
  %v8085 = vpack.c.b16 %v8044, %v8043
  %v8086 = vpack.c.b16 %v8046, %v8045
  %v8087 = vpack.c.b16 %v8048, %v8047
  %v8088 = vpack.c.b16 %v8050, %v8049
  %v8089 = vpack.c.b16 %v8052, %v8051
  %v8090 = vpack.c.b16 %v8054, %v8053
  %v8091 = vpack.c.b16 %v8056, %v8055
  %v8092 = vpack.c.b16 %v8058, %v8057
  %v8093 = vpack.c.b16 %v8060, %v8059
  %v8094 = vpack.c.b16 %v8062, %v8061
  %vm8127 = vcmask 64512
  %8128 = vst.msk [vmem:[#allocation3] sm:$0xff] %vm8127, %v8063
  %8129 = vst.msk [vmem:[#allocation3 + $0x8] sm:$0xff] %vm8127, %v8064
  %8130 = vst.msk [vmem:[#allocation3 + $0x10] sm:$0xff] %vm8127, %v8065
  %8131 = vst.msk [vmem:[#allocation3 + $0x18] sm:$0xff] %vm8127, %v8066
  %8132 = vst.msk [vmem:[#allocation3 + $0x20] sm:$0xff] %vm8127, %v8067
  %8133 = vst.msk [vmem:[#allocation3 + $0x28] sm:$0xff] %vm8127, %v8068
  %8134 = vst.msk [vmem:[#allocation3 + $0x30] sm:$0xff] %vm8127, %v8069
  %8135 = vst.msk [vmem:[#allocation3 + $0x38] sm:$0xff] %vm8127, %v8070
  %8136 = vst.msk [vmem:[#allocation3 + $0x40] sm:$0xff] %vm8127, %v8071
  %8137 = vst.msk [vmem:[#allocation3 + $0x48] sm:$0xff] %vm8127, %v8072
  %8138 = vst.msk [vmem:[#allocation3 + $0x50] sm:$0xff] %vm8127, %v8073
  %8139 = vst.msk [vmem:[#allocation3 + $0x58] sm:$0xff] %vm8127, %v8074
  %8140 = vst.msk [vmem:[#allocation3 + $0x60] sm:$0xff] %vm8127, %v8075
  %8141 = vst.msk [vmem:[#allocation3 + $0x68] sm:$0xff] %vm8127, %v8076
  %8142 = vst.msk [vmem:[#allocation3 + $0x70] sm:$0xff] %vm8127, %v8077
  %8143 = vst.msk [vmem:[#allocation3 + $0x78] sm:$0xff] %vm8127, %v8078
  %8144 = vst.msk [vmem:[#allocation3 + $0x80] sm:$0xff] %vm8127, %v8079
  %8145 = vst.msk [vmem:[#allocation3 + $0x88] sm:$0xff] %vm8127, %v8080
  %8146 = vst.msk [vmem:[#allocation3 + $0x90] sm:$0xff] %vm8127, %v8081
  %8147 = vst.msk [vmem:[#allocation3 + $0x98] sm:$0xff] %vm8127, %v8082
  %8148 = vst.msk [vmem:[#allocation3 + $0xa0] sm:$0xff] %vm8127, %v8083
  %8149 = vst.msk [vmem:[#allocation3 + $0xa8] sm:$0xff] %vm8127, %v8084
  %8150 = vst.msk [vmem:[#allocation3 + $0xb0] sm:$0xff] %vm8127, %v8085
  %8151 = vst.msk [vmem:[#allocation3 + $0xb8] sm:$0xff] %vm8127, %v8086
  %8152 = vst.msk [vmem:[#allocation3 + $0xc0] sm:$0xff] %vm8127, %v8087
  %8153 = vst.msk [vmem:[#allocation3 + $0xc8] sm:$0xff] %vm8127, %v8088
  %8154 = vst.msk [vmem:[#allocation3 + $0xd0] sm:$0xff] %vm8127, %v8089
  %8155 = vst.msk [vmem:[#allocation3 + $0xd8] sm:$0xff] %vm8127, %v8090
  %8156 = vst.msk [vmem:[#allocation3 + $0xe0] sm:$0xff] %vm8127, %v8091
  %8157 = vst.msk [vmem:[#allocation3 + $0xe8] sm:$0xff] %vm8127, %v8092
  %8158 = vst.msk [vmem:[#allocation3 + $0xf0] sm:$0xff] %vm8127, %v8093
  %8159 = vst.msk [vmem:[#allocation3 + $0xf8] sm:$0xff] %vm8127, %v8094
  %v8160 = vld [vmem:[#allocation4] sm:$0xf]
  %v8161 = vld [vmem:[#allocation4 + $0x4] sm:$0xf]
  %v8162 = vld [vmem:[#allocation4 + $0x8] sm:$0x1]
  %v8163 = vld [vmem:[#allocation4 + $0xc] sm:$0xf]
  %v8164 = vld [vmem:[#allocation4 + $0x10] sm:$0xf]
  %v8165 = vld [vmem:[#allocation4 + $0x14] sm:$0x1]
  %v8166 = vld [vmem:[#allocation4 + $0x18] sm:$0xf]
  %v8167 = vld [vmem:[#allocation4 + $0x1c] sm:$0xf]
  %v8168 = vld [vmem:[#allocation4 + $0x20] sm:$0x1]
  %v8169 = vld [vmem:[#allocation4 + $0x24] sm:$0xf]
  %v8170 = vld [vmem:[#allocation4 + $0x28] sm:$0xf]
  %v8171 = vld [vmem:[#allocation4 + $0x2c] sm:$0x1]
  %v8172 = vld [vmem:[#allocation4 + $0x30] sm:$0xf]
  %v8173 = vld [vmem:[#allocation4 + $0x34] sm:$0xf]
  %v8174 = vld [vmem:[#allocation4 + $0x38] sm:$0x1]
  %v8175 = vld [vmem:[#allocation4 + $0x3c] sm:$0xf]
  %v8176 = vld [vmem:[#allocation4 + $0x40] sm:$0xf]
  %v8177 = vld [vmem:[#allocation4 + $0x44] sm:$0x1]
  %v8178 = vld [vmem:[#allocation4 + $0x48] sm:$0xf]
  %v8179 = vld [vmem:[#allocation4 + $0x4c] sm:$0xf]
  %v8180 = vld [vmem:[#allocation4 + $0x50] sm:$0x1]
  %v8181 = vld [vmem:[#allocation4 + $0x54] sm:$0xf]
  %v8182 = vld [vmem:[#allocation4 + $0x58] sm:$0xf]
  %v8183 = vld [vmem:[#allocation4 + $0x5c] sm:$0x1]
  %v8184 = vld [vmem:[#allocation4 + $0x60] sm:$0xf]
  %v8185 = vld [vmem:[#allocation4 + $0x64] sm:$0xf]
  %v8186 = vld [vmem:[#allocation4 + $0x68] sm:$0x1]
  %v8187 = vld [vmem:[#allocation4 + $0x6c] sm:$0xf]
  %v8188 = vld [vmem:[#allocation4 + $0x70] sm:$0xf]
  %v8189 = vld [vmem:[#allocation4 + $0x74] sm:$0x1]
  %v8190 = vld [vmem:[#allocation4 + $0x78] sm:$0xf]
  %v8191 = vld [vmem:[#allocation4 + $0x7c] sm:$0xf]
  %v8192 = vld [vmem:[#allocation4 + $0x80] sm:$0x1]
  %v8193 = vld [vmem:[#allocation4 + $0x84] sm:$0xf]
  %v8194 = vld [vmem:[#allocation4 + $0x88] sm:$0xf]
  %v8195 = vld [vmem:[#allocation4 + $0x8c] sm:$0x1]
  %v8196 = vld [vmem:[#allocation4 + $0x90] sm:$0xf]
  %v8197 = vld [vmem:[#allocation4 + $0x94] sm:$0xf]
  %v8198 = vld [vmem:[#allocation4 + $0x98] sm:$0x1]
  %v8199 = vld [vmem:[#allocation4 + $0x9c] sm:$0xf]
  %v8200 = vld [vmem:[#allocation4 + $0xa0] sm:$0xf]
  %v8201 = vld [vmem:[#allocation4 + $0xa4] sm:$0x1]
  %v8202 = vld [vmem:[#allocation4 + $0xa8] sm:$0xf]
  %v8203 = vld [vmem:[#allocation4 + $0xac] sm:$0xf]
  %v8204 = vld [vmem:[#allocation4 + $0xb0] sm:$0x1]
  %v8205 = vld [vmem:[#allocation4 + $0xb4] sm:$0xf]
  %v8206 = vld [vmem:[#allocation4 + $0xb8] sm:$0xf]
  %v8207 = vld [vmem:[#allocation4 + $0xbc] sm:$0x1]
  %v8208 = vld [vmem:[#allocation4 + $0xd8] sm:$0xf]
  %v8209 = vld [vmem:[#allocation4 + $0xdc] sm:$0xf]
  %v8210 = vld [vmem:[#allocation4 + $0xe0] sm:$0x1]
  %v8211 = vld [vmem:[#allocation4 + $0xe4] sm:$0xf]
  %v8212 = vld [vmem:[#allocation4 + $0xe8] sm:$0xf]
  %v8213 = vld [vmem:[#allocation4 + $0xec] sm:$0x1]
  %v8214 = vld [vmem:[#allocation4 + $0xf0] sm:$0xf]
  %v8215 = vld [vmem:[#allocation4 + $0xf4] sm:$0xf]
  %v8216 = vld [vmem:[#allocation4 + $0xf8] sm:$0x1]
  %v8217 = vld [vmem:[#allocation4 + $0xfc] sm:$0xf]
  %v8218 = vld [vmem:[#allocation4 + $0x100] sm:$0xf]
  %v8219 = vld [vmem:[#allocation4 + $0x104] sm:$0x1]
  %v8220 = vld [vmem:[#allocation4 + $0x108] sm:$0xf]
  %v8221 = vld [vmem:[#allocation4 + $0x10c] sm:$0xf]
  %v8222 = vld [vmem:[#allocation4 + $0x110] sm:$0x1]
  %v8223 = vld [vmem:[#allocation4 + $0x114] sm:$0xf]
  %v8224 = vld [vmem:[#allocation4 + $0x118] sm:$0xf]
  %v8225 = vld [vmem:[#allocation4 + $0x11c] sm:$0x1]
  %v8226 = vld [vmem:[#allocation4 + $0x120] sm:$0xf]
  %v8227 = vld [vmem:[#allocation4 + $0x124] sm:$0xf]
  %v8228 = vld [vmem:[#allocation4 + $0x128] sm:$0x1]
  %v8229 = vld [vmem:[#allocation4 + $0x12c] sm:$0xf]
  %v8230 = vld [vmem:[#allocation4 + $0x130] sm:$0xf]
  %v8231 = vld [vmem:[#allocation4 + $0x134] sm:$0x1]
  %v8232 = vld [vmem:[#allocation4 + $0x138] sm:$0xf]
  %v8233 = vld [vmem:[#allocation4 + $0x13c] sm:$0xf]
  %v8234 = vld [vmem:[#allocation4 + $0x140] sm:$0x1]
  %v8235 = vld [vmem:[#allocation4 + $0x144] sm:$0xf]
  %v8236 = vld [vmem:[#allocation4 + $0x148] sm:$0xf]
  %v8237 = vld [vmem:[#allocation4 + $0x14c] sm:$0x1]
  %v8238 = vld [vmem:[#allocation4 + $0x150] sm:$0xf]
  %v8239 = vld [vmem:[#allocation4 + $0x154] sm:$0xf]
  %v8240 = vld [vmem:[#allocation4 + $0x158] sm:$0x1]
  %v8241 = vld [vmem:[#allocation4 + $0x15c] sm:$0xf]
  %v8242 = vld [vmem:[#allocation4 + $0x160] sm:$0xf]
  %v8243 = vld [vmem:[#allocation4 + $0x164] sm:$0x1]
  %v8244 = vld [vmem:[#allocation4 + $0x168] sm:$0xf]
  %v8245 = vld [vmem:[#allocation4 + $0x16c] sm:$0xf]
  %v8246 = vld [vmem:[#allocation4 + $0x170] sm:$0x1]
  %v8247 = vld [vmem:[#allocation4 + $0x174] sm:$0xf]
  %v8248 = vld [vmem:[#allocation4 + $0x178] sm:$0xf]
  %v8249 = vld [vmem:[#allocation4 + $0x17c] sm:$0x1]
  %v8250 = vld [vmem:[#allocation4 + $0x180] sm:$0xf]
  %v8251 = vld [vmem:[#allocation4 + $0x184] sm:$0xf]
  %v8252 = vld [vmem:[#allocation4 + $0x188] sm:$0x1]
  %v8253 = vld [vmem:[#allocation4 + $0x18c] sm:$0xf]
  %v8254 = vld [vmem:[#allocation4 + $0x190] sm:$0xf]
  %v8255 = vld [vmem:[#allocation4 + $0x194] sm:$0x1]
  %v8352 = vunpack.c.l.b16 %v8160
  %v8353 = vunpack.c.l.b16 %v8161
  %v8354 = vunpack.c.l.b16 %v8162
  %v8355 = vunpack.c.l.b16 %v8163
  %v8356 = vunpack.c.l.b16 %v8164
  %v8357 = vunpack.c.l.b16 %v8165
  %v8358 = vunpack.c.l.b16 %v8166
  %v8359 = vunpack.c.l.b16 %v8167
  %v8360 = vunpack.c.l.b16 %v8168
  %v8361 = vunpack.c.l.b16 %v8169
  %v8362 = vunpack.c.l.b16 %v8170
  %v8363 = vunpack.c.l.b16 %v8171
  %v8364 = vunpack.c.l.b16 %v8172
  %v8365 = vunpack.c.l.b16 %v8173
  %v8366 = vunpack.c.l.b16 %v8174
  %v8367 = vunpack.c.l.b16 %v8175
  %v8368 = vunpack.c.l.b16 %v8176
  %v8369 = vunpack.c.l.b16 %v8177
  %v8370 = vunpack.c.l.b16 %v8178
  %v8371 = vunpack.c.l.b16 %v8179
  %v8372 = vunpack.c.l.b16 %v8180
  %v8373 = vunpack.c.l.b16 %v8181
  %v8374 = vunpack.c.l.b16 %v8182
  %v8375 = vunpack.c.l.b16 %v8183
  %v8376 = vunpack.c.l.b16 %v8184
  %v8377 = vunpack.c.l.b16 %v8185
  %v8378 = vunpack.c.l.b16 %v8186
  %v8379 = vunpack.c.l.b16 %v8187
  %v8380 = vunpack.c.l.b16 %v8188
  %v8381 = vunpack.c.l.b16 %v8189
  %v8382 = vunpack.c.l.b16 %v8190
  %v8383 = vunpack.c.l.b16 %v8191
  %v8384 = vunpack.c.l.b16 %v8192
  %v8385 = vunpack.c.l.b16 %v8193
  %v8386 = vunpack.c.l.b16 %v8194
  %v8387 = vunpack.c.l.b16 %v8195
  %v8388 = vunpack.c.l.b16 %v8196
  %v8389 = vunpack.c.l.b16 %v8197
  %v8390 = vunpack.c.l.b16 %v8198
  %v8391 = vunpack.c.l.b16 %v8199
  %v8392 = vunpack.c.l.b16 %v8200
  %v8393 = vunpack.c.l.b16 %v8201
  %v8394 = vunpack.c.l.b16 %v8202
  %v8395 = vunpack.c.l.b16 %v8203
  %v8396 = vunpack.c.l.b16 %v8204
  %v8397 = vunpack.c.l.b16 %v8205
  %v8398 = vunpack.c.l.b16 %v8206
  %v8399 = vunpack.c.l.b16 %v8207
  %v8400 = vunpack.c.l.b16 %v8208
  %v8401 = vunpack.c.l.b16 %v8209
  %v8402 = vunpack.c.l.b16 %v8210
  %v8403 = vunpack.c.l.b16 %v8211
  %v8404 = vunpack.c.l.b16 %v8212
  %v8405 = vunpack.c.l.b16 %v8213
  %v8406 = vunpack.c.l.b16 %v8214
  %v8407 = vunpack.c.l.b16 %v8215
  %v8408 = vunpack.c.l.b16 %v8216
  %v8409 = vunpack.c.l.b16 %v8217
  %v8410 = vunpack.c.l.b16 %v8218
  %v8411 = vunpack.c.l.b16 %v8219
  %v8412 = vunpack.c.l.b16 %v8220
  %v8413 = vunpack.c.l.b16 %v8221
  %v8414 = vunpack.c.l.b16 %v8222
  %v8415 = vunpack.c.l.b16 %v8223
  %v8416 = vunpack.c.l.b16 %v8224
  %v8417 = vunpack.c.l.b16 %v8225
  %v8418 = vunpack.c.l.b16 %v8226
  %v8419 = vunpack.c.l.b16 %v8227
  %v8420 = vunpack.c.l.b16 %v8228
  %v8421 = vunpack.c.l.b16 %v8229
  %v8422 = vunpack.c.l.b16 %v8230
  %v8423 = vunpack.c.l.b16 %v8231
  %v8424 = vunpack.c.l.b16 %v8232
  %v8425 = vunpack.c.l.b16 %v8233
  %v8426 = vunpack.c.l.b16 %v8234
  %v8427 = vunpack.c.l.b16 %v8235
  %v8428 = vunpack.c.l.b16 %v8236
  %v8429 = vunpack.c.l.b16 %v8237
  %v8430 = vunpack.c.l.b16 %v8238
  %v8431 = vunpack.c.l.b16 %v8239
  %v8432 = vunpack.c.l.b16 %v8240
  %v8433 = vunpack.c.l.b16 %v8241
  %v8434 = vunpack.c.l.b16 %v8242
  %v8435 = vunpack.c.l.b16 %v8243
  %v8436 = vunpack.c.l.b16 %v8244
  %v8437 = vunpack.c.l.b16 %v8245
  %v8438 = vunpack.c.l.b16 %v8246
  %v8439 = vunpack.c.l.b16 %v8247
  %v8440 = vunpack.c.l.b16 %v8248
  %v8441 = vunpack.c.l.b16 %v8249
  %v8442 = vunpack.c.l.b16 %v8250
  %v8443 = vunpack.c.l.b16 %v8251
  %v8444 = vunpack.c.l.b16 %v8252
  %v8445 = vunpack.c.l.b16 %v8253
  %v8446 = vunpack.c.l.b16 %v8254
  %v8447 = vunpack.c.l.b16 %v8255
  %v8448 = vpack.c.b16 %v8353, %v8352
  %v8449 = vpack.c.b16 %v8354, %v8354
  %v8450 = vpack.c.b16 %v8356, %v8355
  %v8451 = vpack.c.b16 %v8357, %v8357
  %v8452 = vpack.c.b16 %v8359, %v8358
  %v8453 = vpack.c.b16 %v8360, %v8360
  %v8454 = vpack.c.b16 %v8362, %v8361
  %v8455 = vpack.c.b16 %v8363, %v8363
  %v8456 = vpack.c.b16 %v8365, %v8364
  %v8457 = vpack.c.b16 %v8366, %v8366
  %v8458 = vpack.c.b16 %v8368, %v8367
  %v8459 = vpack.c.b16 %v8369, %v8369
  %v8460 = vpack.c.b16 %v8371, %v8370
  %v8461 = vpack.c.b16 %v8372, %v8372
  %v8462 = vpack.c.b16 %v8374, %v8373
  %v8463 = vpack.c.b16 %v8375, %v8375
  %v8464 = vpack.c.b16 %v8377, %v8376
  %v8465 = vpack.c.b16 %v8378, %v8378
  %v8466 = vpack.c.b16 %v8380, %v8379
  %v8467 = vpack.c.b16 %v8381, %v8381
  %v8468 = vpack.c.b16 %v8383, %v8382
  %v8469 = vpack.c.b16 %v8384, %v8384
  %v8470 = vpack.c.b16 %v8386, %v8385
  %v8471 = vpack.c.b16 %v8387, %v8387
  %v8472 = vpack.c.b16 %v8389, %v8388
  %v8473 = vpack.c.b16 %v8390, %v8390
  %v8474 = vpack.c.b16 %v8392, %v8391
  %v8475 = vpack.c.b16 %v8393, %v8393
  %v8476 = vpack.c.b16 %v8395, %v8394
  %v8477 = vpack.c.b16 %v8396, %v8396
  %v8478 = vpack.c.b16 %v8398, %v8397
  %v8479 = vpack.c.b16 %v8399, %v8399
  %v8480 = vpack.c.b16 %v8401, %v8400
  %v8481 = vpack.c.b16 %v8402, %v8402
  %v8482 = vpack.c.b16 %v8404, %v8403
  %v8483 = vpack.c.b16 %v8405, %v8405
  %v8484 = vpack.c.b16 %v8407, %v8406
  %v8485 = vpack.c.b16 %v8408, %v8408
  %v8486 = vpack.c.b16 %v8410, %v8409
  %v8487 = vpack.c.b16 %v8411, %v8411
  %v8488 = vpack.c.b16 %v8413, %v8412
  %v8489 = vpack.c.b16 %v8414, %v8414
  %v8490 = vpack.c.b16 %v8416, %v8415
  %v8491 = vpack.c.b16 %v8417, %v8417
  %v8492 = vpack.c.b16 %v8419, %v8418
  %v8493 = vpack.c.b16 %v8420, %v8420
  %v8494 = vpack.c.b16 %v8422, %v8421
  %v8495 = vpack.c.b16 %v8423, %v8423
  %v8496 = vpack.c.b16 %v8425, %v8424
  %v8497 = vpack.c.b16 %v8426, %v8426
  %v8498 = vpack.c.b16 %v8428, %v8427
  %v8499 = vpack.c.b16 %v8429, %v8429
  %v8500 = vpack.c.b16 %v8431, %v8430
  %v8501 = vpack.c.b16 %v8432, %v8432
  %v8502 = vpack.c.b16 %v8434, %v8433
  %v8503 = vpack.c.b16 %v8435, %v8435
  %v8504 = vpack.c.b16 %v8437, %v8436
  %v8505 = vpack.c.b16 %v8438, %v8438
  %v8506 = vpack.c.b16 %v8440, %v8439
  %v8507 = vpack.c.b16 %v8441, %v8441
  %v8508 = vpack.c.b16 %v8443, %v8442
  %v8509 = vpack.c.b16 %v8444, %v8444
  %v8510 = vpack.c.b16 %v8446, %v8445
  %v8511 = vpack.c.b16 %v8447, %v8447
  %v8513 = vshrl.u32 %v8448, 16
  %v8515 = vshll.u32 %v8448, 16
  %v8517 = vrot.slane %v8515, 1
  %v8518 = vor.u32 %v8513, %v8517
  %v8520 = vshll.u32 %v8449, 16
  %v8522 = vrot.slane %v8520, 1
  %v8523 = vsel %vm662, %v8518, %v8522
  %v8525 = vshrl.u32 %v8450, 16
  %v8527 = vshll.u32 %v8450, 16
  %v8529 = vrot.slane %v8527, 1
  %v8530 = vor.u32 %v8525, %v8529
  %v8532 = vshll.u32 %v8451, 16
  %v8534 = vrot.slane %v8532, 1
  %v8535 = vsel %vm662, %v8530, %v8534
  %v8537 = vshrl.u32 %v8452, 16
  %v8539 = vshll.u32 %v8452, 16
  %v8541 = vrot.slane %v8539, 1
  %v8542 = vor.u32 %v8537, %v8541
  %v8544 = vshll.u32 %v8453, 16
  %v8546 = vrot.slane %v8544, 1
  %v8547 = vsel %vm662, %v8542, %v8546
  %v8549 = vshrl.u32 %v8454, 16
  %v8551 = vshll.u32 %v8454, 16
  %v8553 = vrot.slane %v8551, 1
  %v8554 = vor.u32 %v8549, %v8553
  %v8556 = vshll.u32 %v8455, 16
  %v8558 = vrot.slane %v8556, 1
  %v8559 = vsel %vm662, %v8554, %v8558
  %v8561 = vshrl.u32 %v8456, 16
  %v8563 = vshll.u32 %v8456, 16
  %v8565 = vrot.slane %v8563, 1
  %v8566 = vor.u32 %v8561, %v8565
  %v8568 = vshll.u32 %v8457, 16
  %v8570 = vrot.slane %v8568, 1
  %v8571 = vsel %vm662, %v8566, %v8570
  %v8573 = vshrl.u32 %v8458, 16
  %v8575 = vshll.u32 %v8458, 16
  %v8577 = vrot.slane %v8575, 1
  %v8578 = vor.u32 %v8573, %v8577
  %v8580 = vshll.u32 %v8459, 16
  %v8582 = vrot.slane %v8580, 1
  %v8583 = vsel %vm662, %v8578, %v8582
  %v8585 = vshrl.u32 %v8460, 16
  %v8587 = vshll.u32 %v8460, 16
  %v8589 = vrot.slane %v8587, 1
  %v8590 = vor.u32 %v8585, %v8589
  %v8592 = vshll.u32 %v8461, 16
  %v8594 = vrot.slane %v8592, 1
  %v8595 = vsel %vm662, %v8590, %v8594
  %v8597 = vshrl.u32 %v8462, 16
  %v8599 = vshll.u32 %v8462, 16
  %v8601 = vrot.slane %v8599, 1
  %v8602 = vor.u32 %v8597, %v8601
  %v8604 = vshll.u32 %v8463, 16
  %v8606 = vrot.slane %v8604, 1
  %v8607 = vsel %vm662, %v8602, %v8606
  %v8609 = vshrl.u32 %v8464, 16
  %v8611 = vshll.u32 %v8464, 16
  %v8613 = vrot.slane %v8611, 1
  %v8614 = vor.u32 %v8609, %v8613
  %v8616 = vshll.u32 %v8465, 16
  %v8618 = vrot.slane %v8616, 1
  %v8619 = vsel %vm662, %v8614, %v8618
  %v8621 = vshrl.u32 %v8466, 16
  %v8623 = vshll.u32 %v8466, 16
  %v8625 = vrot.slane %v8623, 1
  %v8626 = vor.u32 %v8621, %v8625
  %v8628 = vshll.u32 %v8467, 16
  %v8630 = vrot.slane %v8628, 1
  %v8631 = vsel %vm662, %v8626, %v8630
  %v8633 = vshrl.u32 %v8468, 16
  %v8635 = vshll.u32 %v8468, 16
  %v8637 = vrot.slane %v8635, 1
  %v8638 = vor.u32 %v8633, %v8637
  %v8640 = vshll.u32 %v8469, 16
  %v8642 = vrot.slane %v8640, 1
  %v8643 = vsel %vm662, %v8638, %v8642
  %v8645 = vshrl.u32 %v8470, 16
  %v8647 = vshll.u32 %v8470, 16
  %v8649 = vrot.slane %v8647, 1
  %v8650 = vor.u32 %v8645, %v8649
  %v8652 = vshll.u32 %v8471, 16
  %v8654 = vrot.slane %v8652, 1
  %v8655 = vsel %vm662, %v8650, %v8654
  %v8657 = vshrl.u32 %v8472, 16
  %v8659 = vshll.u32 %v8472, 16
  %v8661 = vrot.slane %v8659, 1
  %v8662 = vor.u32 %v8657, %v8661
  %v8664 = vshll.u32 %v8473, 16
  %v8666 = vrot.slane %v8664, 1
  %v8667 = vsel %vm662, %v8662, %v8666
  %v8669 = vshrl.u32 %v8474, 16
  %v8671 = vshll.u32 %v8474, 16
  %v8673 = vrot.slane %v8671, 1
  %v8674 = vor.u32 %v8669, %v8673
  %v8676 = vshll.u32 %v8475, 16
  %v8678 = vrot.slane %v8676, 1
  %v8679 = vsel %vm662, %v8674, %v8678
  %v8681 = vshrl.u32 %v8476, 16
  %v8683 = vshll.u32 %v8476, 16
  %v8685 = vrot.slane %v8683, 1
  %v8686 = vor.u32 %v8681, %v8685
  %v8688 = vshll.u32 %v8477, 16
  %v8690 = vrot.slane %v8688, 1
  %v8691 = vsel %vm662, %v8686, %v8690
  %v8693 = vshrl.u32 %v8478, 16
  %v8695 = vshll.u32 %v8478, 16
  %v8697 = vrot.slane %v8695, 1
  %v8698 = vor.u32 %v8693, %v8697
  %v8700 = vshll.u32 %v8479, 16
  %v8702 = vrot.slane %v8700, 1
  %v8703 = vsel %vm662, %v8698, %v8702
  %v8705 = vshrl.u32 %v8480, 16
  %v8707 = vshll.u32 %v8480, 16
  %v8709 = vrot.slane %v8707, 1
  %v8710 = vor.u32 %v8705, %v8709
  %v8712 = vshll.u32 %v8481, 16
  %v8714 = vrot.slane %v8712, 1
  %v8715 = vsel %vm662, %v8710, %v8714
  %v8717 = vshrl.u32 %v8482, 16
  %v8719 = vshll.u32 %v8482, 16
  %v8721 = vrot.slane %v8719, 1
  %v8722 = vor.u32 %v8717, %v8721
  %v8724 = vshll.u32 %v8483, 16
  %v8726 = vrot.slane %v8724, 1
  %v8727 = vsel %vm662, %v8722, %v8726
  %v8729 = vshrl.u32 %v8484, 16
  %v8731 = vshll.u32 %v8484, 16
  %v8733 = vrot.slane %v8731, 1
  %v8734 = vor.u32 %v8729, %v8733
  %v8736 = vshll.u32 %v8485, 16
  %v8738 = vrot.slane %v8736, 1
  %v8739 = vsel %vm662, %v8734, %v8738
  %v8741 = vshrl.u32 %v8486, 16
  %v8743 = vshll.u32 %v8486, 16
  %v8745 = vrot.slane %v8743, 1
  %v8746 = vor.u32 %v8741, %v8745
  %v8748 = vshll.u32 %v8487, 16
  %v8750 = vrot.slane %v8748, 1
  %v8751 = vsel %vm662, %v8746, %v8750
  %v8753 = vshrl.u32 %v8488, 16
  %v8755 = vshll.u32 %v8488, 16
  %v8757 = vrot.slane %v8755, 1
  %v8758 = vor.u32 %v8753, %v8757
  %v8760 = vshll.u32 %v8489, 16
  %v8762 = vrot.slane %v8760, 1
  %v8763 = vsel %vm662, %v8758, %v8762
  %v8765 = vshrl.u32 %v8490, 16
  %v8767 = vshll.u32 %v8490, 16
  %v8769 = vrot.slane %v8767, 1
  %v8770 = vor.u32 %v8765, %v8769
  %v8772 = vshll.u32 %v8491, 16
  %v8774 = vrot.slane %v8772, 1
  %v8775 = vsel %vm662, %v8770, %v8774
  %v8777 = vshrl.u32 %v8492, 16
  %v8779 = vshll.u32 %v8492, 16
  %v8781 = vrot.slane %v8779, 1
  %v8782 = vor.u32 %v8777, %v8781
  %v8784 = vshll.u32 %v8493, 16
  %v8786 = vrot.slane %v8784, 1
  %v8787 = vsel %vm662, %v8782, %v8786
  %v8789 = vshrl.u32 %v8494, 16
  %v8791 = vshll.u32 %v8494, 16
  %v8793 = vrot.slane %v8791, 1
  %v8794 = vor.u32 %v8789, %v8793
  %v8796 = vshll.u32 %v8495, 16
  %v8798 = vrot.slane %v8796, 1
  %v8799 = vsel %vm662, %v8794, %v8798
  %v8801 = vshrl.u32 %v8496, 16
  %v8803 = vshll.u32 %v8496, 16
  %v8805 = vrot.slane %v8803, 1
  %v8806 = vor.u32 %v8801, %v8805
  %v8808 = vshll.u32 %v8497, 16
  %v8810 = vrot.slane %v8808, 1
  %v8811 = vsel %vm662, %v8806, %v8810
  %v8813 = vshrl.u32 %v8498, 16
  %v8815 = vshll.u32 %v8498, 16
  %v8817 = vrot.slane %v8815, 1
  %v8818 = vor.u32 %v8813, %v8817
  %v8820 = vshll.u32 %v8499, 16
  %v8822 = vrot.slane %v8820, 1
  %v8823 = vsel %vm662, %v8818, %v8822
  %v8825 = vshrl.u32 %v8500, 16
  %v8827 = vshll.u32 %v8500, 16
  %v8829 = vrot.slane %v8827, 1
  %v8830 = vor.u32 %v8825, %v8829
  %v8832 = vshll.u32 %v8501, 16
  %v8834 = vrot.slane %v8832, 1
  %v8835 = vsel %vm662, %v8830, %v8834
  %v8837 = vshrl.u32 %v8502, 16
  %v8839 = vshll.u32 %v8502, 16
  %v8841 = vrot.slane %v8839, 1
  %v8842 = vor.u32 %v8837, %v8841
  %v8844 = vshll.u32 %v8503, 16
  %v8846 = vrot.slane %v8844, 1
  %v8847 = vsel %vm662, %v8842, %v8846
  %v8849 = vshrl.u32 %v8504, 16
  %v8851 = vshll.u32 %v8504, 16
  %v8853 = vrot.slane %v8851, 1
  %v8854 = vor.u32 %v8849, %v8853
  %v8856 = vshll.u32 %v8505, 16
  %v8858 = vrot.slane %v8856, 1
  %v8859 = vsel %vm662, %v8854, %v8858
  %v8861 = vshrl.u32 %v8506, 16
  %v8863 = vshll.u32 %v8506, 16
  %v8865 = vrot.slane %v8863, 1
  %v8866 = vor.u32 %v8861, %v8865
  %v8868 = vshll.u32 %v8507, 16
  %v8870 = vrot.slane %v8868, 1
  %v8871 = vsel %vm662, %v8866, %v8870
  %v8873 = vshrl.u32 %v8508, 16
  %v8875 = vshll.u32 %v8508, 16
  %v8877 = vrot.slane %v8875, 1
  %v8878 = vor.u32 %v8873, %v8877
  %v8880 = vshll.u32 %v8509, 16
  %v8882 = vrot.slane %v8880, 1
  %v8883 = vsel %vm662, %v8878, %v8882
  %v8885 = vshrl.u32 %v8510, 16
  %v8887 = vshll.u32 %v8510, 16
  %v8889 = vrot.slane %v8887, 1
  %v8890 = vor.u32 %v8885, %v8889
  %v8892 = vshll.u32 %v8511, 16
  %v8894 = vrot.slane %v8892, 1
  %v8895 = vsel %vm662, %v8890, %v8894
  %8896 = vrot.lane.b32.xlu0 %v8523, 8
  %v8897 = vpop.permute.xlu0 %8896
  %8898 = vrot.lane.b32.xlu0 %v8535, 8
  %v8899 = vpop.permute.xlu0 %8898
  %8900 = vrot.lane.b32.xlu0 %v8547, 8
  %v8901 = vpop.permute.xlu0 %8900
  %8902 = vrot.lane.b32.xlu0 %v8559, 8
  %v8903 = vpop.permute.xlu0 %8902
  %8904 = vrot.lane.b32.xlu0 %v8571, 8
  %v8905 = vpop.permute.xlu0 %8904
  %8906 = vrot.lane.b32.xlu0 %v8583, 8
  %v8907 = vpop.permute.xlu0 %8906
  %8908 = vrot.lane.b32.xlu0 %v8595, 8
  %v8909 = vpop.permute.xlu0 %8908
  %8910 = vrot.lane.b32.xlu0 %v8607, 8
  %v8911 = vpop.permute.xlu0 %8910
  %8912 = vrot.lane.b32.xlu0 %v8619, 8
  %v8913 = vpop.permute.xlu0 %8912
  %8914 = vrot.lane.b32.xlu0 %v8631, 8
  %v8915 = vpop.permute.xlu0 %8914
  %8916 = vrot.lane.b32.xlu0 %v8643, 8
  %v8917 = vpop.permute.xlu0 %8916
  %8918 = vrot.lane.b32.xlu0 %v8655, 8
  %v8919 = vpop.permute.xlu0 %8918
  %8920 = vrot.lane.b32.xlu0 %v8667, 8
  %v8921 = vpop.permute.xlu0 %8920
  %8922 = vrot.lane.b32.xlu0 %v8679, 8
  %v8923 = vpop.permute.xlu0 %8922
  %8924 = vrot.lane.b32.xlu0 %v8691, 8
  %v8925 = vpop.permute.xlu0 %8924
  %8926 = vrot.lane.b32.xlu0 %v8703, 8
  %v8927 = vpop.permute.xlu0 %8926
  %8928 = vrot.lane.b32.xlu0 %v8715, 8
  %v8929 = vpop.permute.xlu0 %8928
  %8930 = vrot.lane.b32.xlu0 %v8727, 8
  %v8931 = vpop.permute.xlu0 %8930
  %8932 = vrot.lane.b32.xlu0 %v8739, 8
  %v8933 = vpop.permute.xlu0 %8932
  %8934 = vrot.lane.b32.xlu0 %v8751, 8
  %v8935 = vpop.permute.xlu0 %8934
  %8936 = vrot.lane.b32.xlu0 %v8763, 8
  %v8937 = vpop.permute.xlu0 %8936
  %8938 = vrot.lane.b32.xlu0 %v8775, 8
  %v8939 = vpop.permute.xlu0 %8938
  %8940 = vrot.lane.b32.xlu0 %v8787, 8
  %v8941 = vpop.permute.xlu0 %8940
  %8942 = vrot.lane.b32.xlu0 %v8799, 8
  %v8943 = vpop.permute.xlu0 %8942
  %8944 = vrot.lane.b32.xlu0 %v8811, 8
  %v8945 = vpop.permute.xlu0 %8944
  %8946 = vrot.lane.b32.xlu0 %v8823, 8
  %v8947 = vpop.permute.xlu0 %8946
  %8948 = vrot.lane.b32.xlu0 %v8835, 8
  %v8949 = vpop.permute.xlu0 %8948
  %8950 = vrot.lane.b32.xlu0 %v8847, 8
  %v8951 = vpop.permute.xlu0 %8950
  %8952 = vrot.lane.b32.xlu0 %v8859, 8
  %v8953 = vpop.permute.xlu0 %8952
  %8954 = vrot.lane.b32.xlu0 %v8871, 8
  %v8955 = vpop.permute.xlu0 %8954
  %8956 = vrot.lane.b32.xlu0 %v8883, 8
  %v8957 = vpop.permute.xlu0 %8956
  %8958 = vrot.lane.b32.xlu0 %v8895, 8
  %v8959 = vpop.permute.xlu0 %8958
  %vm8992 = vcmask 130112
  %8993 = vst.msk [vmem:[#allocation3] sm:$0xff] %vm8992, %v8897
  %8994 = vst.msk [vmem:[#allocation3 + $0x8] sm:$0xff] %vm8992, %v8899
  %8995 = vst.msk [vmem:[#allocation3 + $0x10] sm:$0xff] %vm8992, %v8901
  %8996 = vst.msk [vmem:[#allocation3 + $0x18] sm:$0xff] %vm8992, %v8903
  %8997 = vst.msk [vmem:[#allocation3 + $0x20] sm:$0xff] %vm8992, %v8905
  %8998 = vst.msk [vmem:[#allocation3 + $0x28] sm:$0xff] %vm8992, %v8907
  %8999 = vst.msk [vmem:[#allocation3 + $0x30] sm:$0xff] %vm8992, %v8909
  %9000 = vst.msk [vmem:[#allocation3 + $0x38] sm:$0xff] %vm8992, %v8911
  %9001 = vst.msk [vmem:[#allocation3 + $0x40] sm:$0xff] %vm8992, %v8913
  %9002 = vst.msk [vmem:[#allocation3 + $0x48] sm:$0xff] %vm8992, %v8915
  %9003 = vst.msk [vmem:[#allocation3 + $0x50] sm:$0xff] %vm8992, %v8917
  %9004 = vst.msk [vmem:[#allocation3 + $0x58] sm:$0xff] %vm8992, %v8919
  %9005 = vst.msk [vmem:[#allocation3 + $0x60] sm:$0xff] %vm8992, %v8921
  %9006 = vst.msk [vmem:[#allocation3 + $0x68] sm:$0xff] %vm8992, %v8923
  %9007 = vst.msk [vmem:[#allocation3 + $0x70] sm:$0xff] %vm8992, %v8925
  %9008 = vst.msk [vmem:[#allocation3 + $0x78] sm:$0xff] %vm8992, %v8927
  %9009 = vst.msk [vmem:[#allocation3 + $0x80] sm:$0xff] %vm8992, %v8929
  %9010 = vst.msk [vmem:[#allocation3 + $0x88] sm:$0xff] %vm8992, %v8931
  %9011 = vst.msk [vmem:[#allocation3 + $0x90] sm:$0xff] %vm8992, %v8933
  %9012 = vst.msk [vmem:[#allocation3 + $0x98] sm:$0xff] %vm8992, %v8935
  %9013 = vst.msk [vmem:[#allocation3 + $0xa0] sm:$0xff] %vm8992, %v8937
  %9014 = vst.msk [vmem:[#allocation3 + $0xa8] sm:$0xff] %vm8992, %v8939
  %9015 = vst.msk [vmem:[#allocation3 + $0xb0] sm:$0xff] %vm8992, %v8941
  %9016 = vst.msk [vmem:[#allocation3 + $0xb8] sm:$0xff] %vm8992, %v8943
  %9017 = vst.msk [vmem:[#allocation3 + $0xc0] sm:$0xff] %vm8992, %v8945
  %9018 = vst.msk [vmem:[#allocation3 + $0xc8] sm:$0xff] %vm8992, %v8947
  %9019 = vst.msk [vmem:[#allocation3 + $0xd0] sm:$0xff] %vm8992, %v8949
  %9020 = vst.msk [vmem:[#allocation3 + $0xd8] sm:$0xff] %vm8992, %v8951
  %9021 = vst.msk [vmem:[#allocation3 + $0xe0] sm:$0xff] %vm8992, %v8953
  %9022 = vst.msk [vmem:[#allocation3 + $0xe8] sm:$0xff] %vm8992, %v8955
  %9023 = vst.msk [vmem:[#allocation3 + $0xf0] sm:$0xff] %vm8992, %v8957
  %9024 = vst.msk [vmem:[#allocation3 + $0xf8] sm:$0xff] %vm8992, %v8959
  %v9025 = vld [vmem:[#allocation4] sm:$0xe]
  %v9026 = vld [vmem:[#allocation4 + $0x4] sm:$0xf]
  %v9027 = vld [vmem:[#allocation4 + $0x8] sm:$0x1]
  %v9028 = vld [vmem:[#allocation4 + $0xc] sm:$0xe]
  %v9029 = vld [vmem:[#allocation4 + $0x10] sm:$0xf]
  %v9030 = vld [vmem:[#allocation4 + $0x14] sm:$0x1]
  %v9031 = vld [vmem:[#allocation4 + $0x18] sm:$0xe]
  %v9032 = vld [vmem:[#allocation4 + $0x1c] sm:$0xf]
  %v9033 = vld [vmem:[#allocation4 + $0x20] sm:$0x1]
  %v9034 = vld [vmem:[#allocation4 + $0x24] sm:$0xe]
  %v9035 = vld [vmem:[#allocation4 + $0x28] sm:$0xf]
  %v9036 = vld [vmem:[#allocation4 + $0x2c] sm:$0x1]
  %v9037 = vld [vmem:[#allocation4 + $0x30] sm:$0xe]
  %v9038 = vld [vmem:[#allocation4 + $0x34] sm:$0xf]
  %v9039 = vld [vmem:[#allocation4 + $0x38] sm:$0x1]
  %v9040 = vld [vmem:[#allocation4 + $0x3c] sm:$0xe]
  %v9041 = vld [vmem:[#allocation4 + $0x40] sm:$0xf]
  %v9042 = vld [vmem:[#allocation4 + $0x44] sm:$0x1]
  %v9043 = vld [vmem:[#allocation4 + $0x48] sm:$0xe]
  %v9044 = vld [vmem:[#allocation4 + $0x4c] sm:$0xf]
  %v9045 = vld [vmem:[#allocation4 + $0x50] sm:$0x1]
  %v9046 = vld [vmem:[#allocation4 + $0x54] sm:$0xe]
  %v9047 = vld [vmem:[#allocation4 + $0x58] sm:$0xf]
  %v9048 = vld [vmem:[#allocation4 + $0x5c] sm:$0x1]
  %v9049 = vld [vmem:[#allocation4 + $0x60] sm:$0xe]
  %v9050 = vld [vmem:[#allocation4 + $0x64] sm:$0xf]
  %v9051 = vld [vmem:[#allocation4 + $0x68] sm:$0x1]
  %v9052 = vld [vmem:[#allocation4 + $0x6c] sm:$0xe]
  %v9053 = vld [vmem:[#allocation4 + $0x70] sm:$0xf]
  %v9054 = vld [vmem:[#allocation4 + $0x74] sm:$0x1]
  %v9055 = vld [vmem:[#allocation4 + $0x78] sm:$0xe]
  %v9056 = vld [vmem:[#allocation4 + $0x7c] sm:$0xf]
  %v9057 = vld [vmem:[#allocation4 + $0x80] sm:$0x1]
  %v9058 = vld [vmem:[#allocation4 + $0x84] sm:$0xe]
  %v9059 = vld [vmem:[#allocation4 + $0x88] sm:$0xf]
  %v9060 = vld [vmem:[#allocation4 + $0x8c] sm:$0x1]
  %v9061 = vld [vmem:[#allocation4 + $0x90] sm:$0xe]
  %v9062 = vld [vmem:[#allocation4 + $0x94] sm:$0xf]
  %v9063 = vld [vmem:[#allocation4 + $0x98] sm:$0x1]
  %v9064 = vld [vmem:[#allocation4 + $0x9c] sm:$0xe]
  %v9065 = vld [vmem:[#allocation4 + $0xa0] sm:$0xf]
  %v9066 = vld [vmem:[#allocation4 + $0xa4] sm:$0x1]
  %v9067 = vld [vmem:[#allocation4 + $0xa8] sm:$0xe]
  %v9068 = vld [vmem:[#allocation4 + $0xac] sm:$0xf]
  %v9069 = vld [vmem:[#allocation4 + $0xb0] sm:$0x1]
  %v9070 = vld [vmem:[#allocation4 + $0xb4] sm:$0xe]
  %v9071 = vld [vmem:[#allocation4 + $0xb8] sm:$0xf]
  %v9072 = vld [vmem:[#allocation4 + $0xbc] sm:$0x1]
  %v9073 = vld [vmem:[#allocation4 + $0xd8] sm:$0xe]
  %v9074 = vld [vmem:[#allocation4 + $0xdc] sm:$0xf]
  %v9075 = vld [vmem:[#allocation4 + $0xe0] sm:$0x1]
  %v9076 = vld [vmem:[#allocation4 + $0xe4] sm:$0xe]
  %v9077 = vld [vmem:[#allocation4 + $0xe8] sm:$0xf]
  %v9078 = vld [vmem:[#allocation4 + $0xec] sm:$0x1]
  %v9079 = vld [vmem:[#allocation4 + $0xf0] sm:$0xe]
  %v9080 = vld [vmem:[#allocation4 + $0xf4] sm:$0xf]
  %v9081 = vld [vmem:[#allocation4 + $0xf8] sm:$0x1]
  %v9082 = vld [vmem:[#allocation4 + $0xfc] sm:$0xe]
  %v9083 = vld [vmem:[#allocation4 + $0x100] sm:$0xf]
  %v9084 = vld [vmem:[#allocation4 + $0x104] sm:$0x1]
  %v9085 = vld [vmem:[#allocation4 + $0x108] sm:$0xe]
  %v9086 = vld [vmem:[#allocation4 + $0x10c] sm:$0xf]
  %v9087 = vld [vmem:[#allocation4 + $0x110] sm:$0x1]
  %v9088 = vld [vmem:[#allocation4 + $0x114] sm:$0xe]
  %v9089 = vld [vmem:[#allocation4 + $0x118] sm:$0xf]
  %v9090 = vld [vmem:[#allocation4 + $0x11c] sm:$0x1]
  %v9091 = vld [vmem:[#allocation4 + $0x120] sm:$0xe]
  %v9092 = vld [vmem:[#allocation4 + $0x124] sm:$0xf]
  %v9093 = vld [vmem:[#allocation4 + $0x128] sm:$0x1]
  %v9094 = vld [vmem:[#allocation4 + $0x12c] sm:$0xe]
  %v9095 = vld [vmem:[#allocation4 + $0x130] sm:$0xf]
  %v9096 = vld [vmem:[#allocation4 + $0x134] sm:$0x1]
  %v9097 = vld [vmem:[#allocation4 + $0x138] sm:$0xe]
  %v9098 = vld [vmem:[#allocation4 + $0x13c] sm:$0xf]
  %v9099 = vld [vmem:[#allocation4 + $0x140] sm:$0x1]
  %v9100 = vld [vmem:[#allocation4 + $0x144] sm:$0xe]
  %v9101 = vld [vmem:[#allocation4 + $0x148] sm:$0xf]
  %v9102 = vld [vmem:[#allocation4 + $0x14c] sm:$0x1]
  %v9103 = vld [vmem:[#allocation4 + $0x150] sm:$0xe]
  %v9104 = vld [vmem:[#allocation4 + $0x154] sm:$0xf]
  %v9105 = vld [vmem:[#allocation4 + $0x158] sm:$0x1]
  %v9106 = vld [vmem:[#allocation4 + $0x15c] sm:$0xe]
  %v9107 = vld [vmem:[#allocation4 + $0x160] sm:$0xf]
  %v9108 = vld [vmem:[#allocation4 + $0x164] sm:$0x1]
  %v9109 = vld [vmem:[#allocation4 + $0x168] sm:$0xe]
  %v9110 = vld [vmem:[#allocation4 + $0x16c] sm:$0xf]
  %v9111 = vld [vmem:[#allocation4 + $0x170] sm:$0x1]
  %v9112 = vld [vmem:[#allocation4 + $0x174] sm:$0xe]
  %v9113 = vld [vmem:[#allocation4 + $0x178] sm:$0xf]
  %v9114 = vld [vmem:[#allocation4 + $0x17c] sm:$0x1]
  %v9115 = vld [vmem:[#allocation4 + $0x180] sm:$0xe]
  %v9116 = vld [vmem:[#allocation4 + $0x184] sm:$0xf]
  %v9117 = vld [vmem:[#allocation4 + $0x188] sm:$0x1]
  %v9118 = vld [vmem:[#allocation4 + $0x18c] sm:$0xe]
  %v9119 = vld [vmem:[#allocation4 + $0x190] sm:$0xf]
  %v9120 = vld [vmem:[#allocation4 + $0x194] sm:$0x1]
  %v9217 = vunpack.c.l.b16 %v9025
  %v9218 = vunpack.c.l.b16 %v9026
  %v9219 = vunpack.c.l.b16 %v9027
  %v9220 = vunpack.c.l.b16 %v9028
  %v9221 = vunpack.c.l.b16 %v9029
  %v9222 = vunpack.c.l.b16 %v9030
  %v9223 = vunpack.c.l.b16 %v9031
  %v9224 = vunpack.c.l.b16 %v9032
  %v9225 = vunpack.c.l.b16 %v9033
  %v9226 = vunpack.c.l.b16 %v9034
  %v9227 = vunpack.c.l.b16 %v9035
  %v9228 = vunpack.c.l.b16 %v9036
  %v9229 = vunpack.c.l.b16 %v9037
  %v9230 = vunpack.c.l.b16 %v9038
  %v9231 = vunpack.c.l.b16 %v9039
  %v9232 = vunpack.c.l.b16 %v9040
  %v9233 = vunpack.c.l.b16 %v9041
  %v9234 = vunpack.c.l.b16 %v9042
  %v9235 = vunpack.c.l.b16 %v9043
  %v9236 = vunpack.c.l.b16 %v9044
  %v9237 = vunpack.c.l.b16 %v9045
  %v9238 = vunpack.c.l.b16 %v9046
  %v9239 = vunpack.c.l.b16 %v9047
  %v9240 = vunpack.c.l.b16 %v9048
  %v9241 = vunpack.c.l.b16 %v9049
  %v9242 = vunpack.c.l.b16 %v9050
  %v9243 = vunpack.c.l.b16 %v9051
  %v9244 = vunpack.c.l.b16 %v9052
  %v9245 = vunpack.c.l.b16 %v9053
  %v9246 = vunpack.c.l.b16 %v9054
  %v9247 = vunpack.c.l.b16 %v9055
  %v9248 = vunpack.c.l.b16 %v9056
  %v9249 = vunpack.c.l.b16 %v9057
  %v9250 = vunpack.c.l.b16 %v9058
  %v9251 = vunpack.c.l.b16 %v9059
  %v9252 = vunpack.c.l.b16 %v9060
  %v9253 = vunpack.c.l.b16 %v9061
  %v9254 = vunpack.c.l.b16 %v9062
  %v9255 = vunpack.c.l.b16 %v9063
  %v9256 = vunpack.c.l.b16 %v9064
  %v9257 = vunpack.c.l.b16 %v9065
  %v9258 = vunpack.c.l.b16 %v9066
  %v9259 = vunpack.c.l.b16 %v9067
  %v9260 = vunpack.c.l.b16 %v9068
  %v9261 = vunpack.c.l.b16 %v9069
  %v9262 = vunpack.c.l.b16 %v9070
  %v9263 = vunpack.c.l.b16 %v9071
  %v9264 = vunpack.c.l.b16 %v9072
  %v9265 = vunpack.c.l.b16 %v9073
  %v9266 = vunpack.c.l.b16 %v9074
  %v9267 = vunpack.c.l.b16 %v9075
  %v9268 = vunpack.c.l.b16 %v9076
  %v9269 = vunpack.c.l.b16 %v9077
  %v9270 = vunpack.c.l.b16 %v9078
  %v9271 = vunpack.c.l.b16 %v9079
  %v9272 = vunpack.c.l.b16 %v9080
  %v9273 = vunpack.c.l.b16 %v9081
  %v9274 = vunpack.c.l.b16 %v9082
  %v9275 = vunpack.c.l.b16 %v9083
  %v9276 = vunpack.c.l.b16 %v9084
  %v9277 = vunpack.c.l.b16 %v9085
  %v9278 = vunpack.c.l.b16 %v9086
  %v9279 = vunpack.c.l.b16 %v9087
  %v9280 = vunpack.c.l.b16 %v9088
  %v9281 = vunpack.c.l.b16 %v9089
  %v9282 = vunpack.c.l.b16 %v9090
  %v9283 = vunpack.c.l.b16 %v9091
  %v9284 = vunpack.c.l.b16 %v9092
  %v9285 = vunpack.c.l.b16 %v9093
  %v9286 = vunpack.c.l.b16 %v9094
  %v9287 = vunpack.c.l.b16 %v9095
  %v9288 = vunpack.c.l.b16 %v9096
  %v9289 = vunpack.c.l.b16 %v9097
  %v9290 = vunpack.c.l.b16 %v9098
  %v9291 = vunpack.c.l.b16 %v9099
  %v9292 = vunpack.c.l.b16 %v9100
  %v9293 = vunpack.c.l.b16 %v9101
  %v9294 = vunpack.c.l.b16 %v9102
  %v9295 = vunpack.c.l.b16 %v9103
  %v9296 = vunpack.c.l.b16 %v9104
  %v9297 = vunpack.c.l.b16 %v9105
  %v9298 = vunpack.c.l.b16 %v9106
  %v9299 = vunpack.c.l.b16 %v9107
  %v9300 = vunpack.c.l.b16 %v9108
  %v9301 = vunpack.c.l.b16 %v9109
  %v9302 = vunpack.c.l.b16 %v9110
  %v9303 = vunpack.c.l.b16 %v9111
  %v9304 = vunpack.c.l.b16 %v9112
  %v9305 = vunpack.c.l.b16 %v9113
  %v9306 = vunpack.c.l.b16 %v9114
  %v9307 = vunpack.c.l.b16 %v9115
  %v9308 = vunpack.c.l.b16 %v9116
  %v9309 = vunpack.c.l.b16 %v9117
  %v9310 = vunpack.c.l.b16 %v9118
  %v9311 = vunpack.c.l.b16 %v9119
  %v9312 = vunpack.c.l.b16 %v9120
  %v9313 = vpack.c.b16 %v9218, %v9217
  %v9314 = vpack.c.b16 %v9219, %v9219
  %v9315 = vpack.c.b16 %v9221, %v9220
  %v9316 = vpack.c.b16 %v9222, %v9222
  %v9317 = vpack.c.b16 %v9224, %v9223
  %v9318 = vpack.c.b16 %v9225, %v9225
  %v9319 = vpack.c.b16 %v9227, %v9226
  %v9320 = vpack.c.b16 %v9228, %v9228
  %v9321 = vpack.c.b16 %v9230, %v9229
  %v9322 = vpack.c.b16 %v9231, %v9231
  %v9323 = vpack.c.b16 %v9233, %v9232
  %v9324 = vpack.c.b16 %v9234, %v9234
  %v9325 = vpack.c.b16 %v9236, %v9235
  %v9326 = vpack.c.b16 %v9237, %v9237
  %v9327 = vpack.c.b16 %v9239, %v9238
  %v9328 = vpack.c.b16 %v9240, %v9240
  %v9329 = vpack.c.b16 %v9242, %v9241
  %v9330 = vpack.c.b16 %v9243, %v9243
  %v9331 = vpack.c.b16 %v9245, %v9244
  %v9332 = vpack.c.b16 %v9246, %v9246
  %v9333 = vpack.c.b16 %v9248, %v9247
  %v9334 = vpack.c.b16 %v9249, %v9249
  %v9335 = vpack.c.b16 %v9251, %v9250
  %v9336 = vpack.c.b16 %v9252, %v9252
  %v9337 = vpack.c.b16 %v9254, %v9253
  %v9338 = vpack.c.b16 %v9255, %v9255
  %v9339 = vpack.c.b16 %v9257, %v9256
  %v9340 = vpack.c.b16 %v9258, %v9258
  %v9341 = vpack.c.b16 %v9260, %v9259
  %v9342 = vpack.c.b16 %v9261, %v9261
  %v9343 = vpack.c.b16 %v9263, %v9262
  %v9344 = vpack.c.b16 %v9264, %v9264
  %v9345 = vpack.c.b16 %v9266, %v9265
  %v9346 = vpack.c.b16 %v9267, %v9267
  %v9347 = vpack.c.b16 %v9269, %v9268
  %v9348 = vpack.c.b16 %v9270, %v9270
  %v9349 = vpack.c.b16 %v9272, %v9271
  %v9350 = vpack.c.b16 %v9273, %v9273
  %v9351 = vpack.c.b16 %v9275, %v9274
  %v9352 = vpack.c.b16 %v9276, %v9276
  %v9353 = vpack.c.b16 %v9278, %v9277
  %v9354 = vpack.c.b16 %v9279, %v9279
  %v9355 = vpack.c.b16 %v9281, %v9280
  %v9356 = vpack.c.b16 %v9282, %v9282
  %v9357 = vpack.c.b16 %v9284, %v9283
  %v9358 = vpack.c.b16 %v9285, %v9285
  %v9359 = vpack.c.b16 %v9287, %v9286
  %v9360 = vpack.c.b16 %v9288, %v9288
  %v9361 = vpack.c.b16 %v9290, %v9289
  %v9362 = vpack.c.b16 %v9291, %v9291
  %v9363 = vpack.c.b16 %v9293, %v9292
  %v9364 = vpack.c.b16 %v9294, %v9294
  %v9365 = vpack.c.b16 %v9296, %v9295
  %v9366 = vpack.c.b16 %v9297, %v9297
  %v9367 = vpack.c.b16 %v9299, %v9298
  %v9368 = vpack.c.b16 %v9300, %v9300
  %v9369 = vpack.c.b16 %v9302, %v9301
  %v9370 = vpack.c.b16 %v9303, %v9303
  %v9371 = vpack.c.b16 %v9305, %v9304
  %v9372 = vpack.c.b16 %v9306, %v9306
  %v9373 = vpack.c.b16 %v9308, %v9307
  %v9374 = vpack.c.b16 %v9309, %v9309
  %v9375 = vpack.c.b16 %v9311, %v9310
  %v9376 = vpack.c.b16 %v9312, %v9312
  %v9377 = vrot.slane %v9313, 1
  %v9378 = vrot.slane %v9314, 1
  %v9379 = vsel %vm1528, %v9377, %v9378
  %v9380 = vrot.slane %v9315, 1
  %v9381 = vrot.slane %v9316, 1
  %v9382 = vsel %vm1528, %v9380, %v9381
  %v9383 = vrot.slane %v9317, 1
  %v9384 = vrot.slane %v9318, 1
  %v9385 = vsel %vm1528, %v9383, %v9384
  %v9386 = vrot.slane %v9319, 1
  %v9387 = vrot.slane %v9320, 1
  %v9388 = vsel %vm1528, %v9386, %v9387
  %v9389 = vrot.slane %v9321, 1
  %v9390 = vrot.slane %v9322, 1
  %v9391 = vsel %vm1528, %v9389, %v9390
  %v9392 = vrot.slane %v9323, 1
  %v9393 = vrot.slane %v9324, 1
  %v9394 = vsel %vm1528, %v9392, %v9393
  %v9395 = vrot.slane %v9325, 1
  %v9396 = vrot.slane %v9326, 1
  %v9397 = vsel %vm1528, %v9395, %v9396
  %v9398 = vrot.slane %v9327, 1
  %v9399 = vrot.slane %v9328, 1
  %v9400 = vsel %vm1528, %v9398, %v9399
  %v9401 = vrot.slane %v9329, 1
  %v9402 = vrot.slane %v9330, 1
  %v9403 = vsel %vm1528, %v9401, %v9402
  %v9404 = vrot.slane %v9331, 1
  %v9405 = vrot.slane %v9332, 1
  %v9406 = vsel %vm1528, %v9404, %v9405
  %v9407 = vrot.slane %v9333, 1
  %v9408 = vrot.slane %v9334, 1
  %v9409 = vsel %vm1528, %v9407, %v9408
  %v9410 = vrot.slane %v9335, 1
  %v9411 = vrot.slane %v9336, 1
  %v9412 = vsel %vm1528, %v9410, %v9411
  %v9413 = vrot.slane %v9337, 1
  %v9414 = vrot.slane %v9338, 1
  %v9415 = vsel %vm1528, %v9413, %v9414
  %v9416 = vrot.slane %v9339, 1
  %v9417 = vrot.slane %v9340, 1
  %v9418 = vsel %vm1528, %v9416, %v9417
  %v9419 = vrot.slane %v9341, 1
  %v9420 = vrot.slane %v9342, 1
  %v9421 = vsel %vm1528, %v9419, %v9420
  %v9422 = vrot.slane %v9343, 1
  %v9423 = vrot.slane %v9344, 1
  %v9424 = vsel %vm1528, %v9422, %v9423
  %v9425 = vrot.slane %v9345, 1
  %v9426 = vrot.slane %v9346, 1
  %v9427 = vsel %vm1528, %v9425, %v9426
  %v9428 = vrot.slane %v9347, 1
  %v9429 = vrot.slane %v9348, 1
  %v9430 = vsel %vm1528, %v9428, %v9429
  %v9431 = vrot.slane %v9349, 1
  %v9432 = vrot.slane %v9350, 1
  %v9433 = vsel %vm1528, %v9431, %v9432
  %v9434 = vrot.slane %v9351, 1
  %v9435 = vrot.slane %v9352, 1
  %v9436 = vsel %vm1528, %v9434, %v9435
  %v9437 = vrot.slane %v9353, 1
  %v9438 = vrot.slane %v9354, 1
  %v9439 = vsel %vm1528, %v9437, %v9438
  %v9440 = vrot.slane %v9355, 1
  %v9441 = vrot.slane %v9356, 1
  %v9442 = vsel %vm1528, %v9440, %v9441
  %v9443 = vrot.slane %v9357, 1
  %v9444 = vrot.slane %v9358, 1
  %v9445 = vsel %vm1528, %v9443, %v9444
  %v9446 = vrot.slane %v9359, 1
  %v9447 = vrot.slane %v9360, 1
  %v9448 = vsel %vm1528, %v9446, %v9447
  %v9449 = vrot.slane %v9361, 1
  %v9450 = vrot.slane %v9362, 1
  %v9451 = vsel %vm1528, %v9449, %v9450
  %v9452 = vrot.slane %v9363, 1
  %v9453 = vrot.slane %v9364, 1
  %v9454 = vsel %vm1528, %v9452, %v9453
  %v9455 = vrot.slane %v9365, 1
  %v9456 = vrot.slane %v9366, 1
  %v9457 = vsel %vm1528, %v9455, %v9456
  %v9458 = vrot.slane %v9367, 1
  %v9459 = vrot.slane %v9368, 1
  %v9460 = vsel %vm1528, %v9458, %v9459
  %v9461 = vrot.slane %v9369, 1
  %v9462 = vrot.slane %v9370, 1
  %v9463 = vsel %vm1528, %v9461, %v9462
  %v9464 = vrot.slane %v9371, 1
  %v9465 = vrot.slane %v9372, 1
  %v9466 = vsel %vm1528, %v9464, %v9465
  %v9467 = vrot.slane %v9373, 1
  %v9468 = vrot.slane %v9374, 1
  %v9469 = vsel %vm1528, %v9467, %v9468
  %v9470 = vrot.slane %v9375, 1
  %v9471 = vrot.slane %v9376, 1
  %v9472 = vsel %vm1528, %v9470, %v9471
  %9473 = vrot.lane.b32.xlu0 %v9379, 16
  %v9474 = vpop.permute.xlu0 %9473
  %9475 = vrot.lane.b32.xlu0 %v9382, 16
  %v9476 = vpop.permute.xlu0 %9475
  %9477 = vrot.lane.b32.xlu0 %v9385, 16
  %v9478 = vpop.permute.xlu0 %9477
  %9479 = vrot.lane.b32.xlu0 %v9388, 16
  %v9480 = vpop.permute.xlu0 %9479
  %9481 = vrot.lane.b32.xlu0 %v9391, 16
  %v9482 = vpop.permute.xlu0 %9481
  %9483 = vrot.lane.b32.xlu0 %v9394, 16
  %v9484 = vpop.permute.xlu0 %9483
  %9485 = vrot.lane.b32.xlu0 %v9397, 16
  %v9486 = vpop.permute.xlu0 %9485
  %9487 = vrot.lane.b32.xlu0 %v9400, 16
  %v9488 = vpop.permute.xlu0 %9487
  %9489 = vrot.lane.b32.xlu0 %v9403, 16
  %v9490 = vpop.permute.xlu0 %9489
  %9491 = vrot.lane.b32.xlu0 %v9406, 16
  %v9492 = vpop.permute.xlu0 %9491
  %9493 = vrot.lane.b32.xlu0 %v9409, 16
  %v9494 = vpop.permute.xlu0 %9493
  %9495 = vrot.lane.b32.xlu0 %v9412, 16
  %v9496 = vpop.permute.xlu0 %9495
  %9497 = vrot.lane.b32.xlu0 %v9415, 16
  %v9498 = vpop.permute.xlu0 %9497
  %9499 = vrot.lane.b32.xlu0 %v9418, 16
  %v9500 = vpop.permute.xlu0 %9499
  %9501 = vrot.lane.b32.xlu0 %v9421, 16
  %v9502 = vpop.permute.xlu0 %9501
  %9503 = vrot.lane.b32.xlu0 %v9424, 16
  %v9504 = vpop.permute.xlu0 %9503
  %9505 = vrot.lane.b32.xlu0 %v9427, 16
  %v9506 = vpop.permute.xlu0 %9505
  %9507 = vrot.lane.b32.xlu0 %v9430, 16
  %v9508 = vpop.permute.xlu0 %9507
  %9509 = vrot.lane.b32.xlu0 %v9433, 16
  %v9510 = vpop.permute.xlu0 %9509
  %9511 = vrot.lane.b32.xlu0 %v9436, 16
  %v9512 = vpop.permute.xlu0 %9511
  %9513 = vrot.lane.b32.xlu0 %v9439, 16
  %v9514 = vpop.permute.xlu0 %9513
  %9515 = vrot.lane.b32.xlu0 %v9442, 16
  %v9516 = vpop.permute.xlu0 %9515
  %9517 = vrot.lane.b32.xlu0 %v9445, 16
  %v9518 = vpop.permute.xlu0 %9517
  %9519 = vrot.lane.b32.xlu0 %v9448, 16
  %v9520 = vpop.permute.xlu0 %9519
  %9521 = vrot.lane.b32.xlu0 %v9451, 16
  %v9522 = vpop.permute.xlu0 %9521
  %9523 = vrot.lane.b32.xlu0 %v9454, 16
  %v9524 = vpop.permute.xlu0 %9523
  %9525 = vrot.lane.b32.xlu0 %v9457, 16
  %v9526 = vpop.permute.xlu0 %9525
  %9527 = vrot.lane.b32.xlu0 %v9460, 16
  %v9528 = vpop.permute.xlu0 %9527
  %9529 = vrot.lane.b32.xlu0 %v9463, 16
  %v9530 = vpop.permute.xlu0 %9529
  %9531 = vrot.lane.b32.xlu0 %v9466, 16
  %v9532 = vpop.permute.xlu0 %9531
  %9533 = vrot.lane.b32.xlu0 %v9469, 16
  %v9534 = vpop.permute.xlu0 %9533
  %9535 = vrot.lane.b32.xlu0 %v9472, 16
  %v9536 = vpop.permute.xlu0 %9535
  %vm9569 = vcmask 195712
  %9570 = vst.msk [vmem:[#allocation3] sm:$0xff] %vm9569, %v9474
  %9571 = vst.msk [vmem:[#allocation3 + $0x8] sm:$0xff] %vm9569, %v9476
  %9572 = vst.msk [vmem:[#allocation3 + $0x10] sm:$0xff] %vm9569, %v9478
  %9573 = vst.msk [vmem:[#allocation3 + $0x18] sm:$0xff] %vm9569, %v9480
  %9574 = vst.msk [vmem:[#allocation3 + $0x20] sm:$0xff] %vm9569, %v9482
  %9575 = vst.msk [vmem:[#allocation3 + $0x28] sm:$0xff] %vm9569, %v9484
  %9576 = vst.msk [vmem:[#allocation3 + $0x30] sm:$0xff] %vm9569, %v9486
  %9577 = vst.msk [vmem:[#allocation3 + $0x38] sm:$0xff] %vm9569, %v9488
  %9578 = vst.msk [vmem:[#allocation3 + $0x40] sm:$0xff] %vm9569, %v9490
  %9579 = vst.msk [vmem:[#allocation3 + $0x48] sm:$0xff] %vm9569, %v9492
  %9580 = vst.msk [vmem:[#allocation3 + $0x50] sm:$0xff] %vm9569, %v9494
  %9581 = vst.msk [vmem:[#allocation3 + $0x58] sm:$0xff] %vm9569, %v9496
  %9582 = vst.msk [vmem:[#allocation3 + $0x60] sm:$0xff] %vm9569, %v9498
  %9583 = vst.msk [vmem:[#allocation3 + $0x68] sm:$0xff] %vm9569, %v9500
  %9584 = vst.msk [vmem:[#allocation3 + $0x70] sm:$0xff] %vm9569, %v9502
  %9585 = vst.msk [vmem:[#allocation3 + $0x78] sm:$0xff] %vm9569, %v9504
  %9586 = vst.msk [vmem:[#allocation3 + $0x80] sm:$0xff] %vm9569, %v9506
  %9587 = vst.msk [vmem:[#allocation3 + $0x88] sm:$0xff] %vm9569, %v9508
  %9588 = vst.msk [vmem:[#allocation3 + $0x90] sm:$0xff] %vm9569, %v9510
  %9589 = vst.msk [vmem:[#allocation3 + $0x98] sm:$0xff] %vm9569, %v9512
  %9590 = vst.msk [vmem:[#allocation3 + $0xa0] sm:$0xff] %vm9569, %v9514
  %9591 = vst.msk [vmem:[#allocation3 + $0xa8] sm:$0xff] %vm9569, %v9516
  %9592 = vst.msk [vmem:[#allocation3 + $0xb0] sm:$0xff] %vm9569, %v9518
  %9593 = vst.msk [vmem:[#allocation3 + $0xb8] sm:$0xff] %vm9569, %v9520
  %9594 = vst.msk [vmem:[#allocation3 + $0xc0] sm:$0xff] %vm9569, %v9522
  %9595 = vst.msk [vmem:[#allocation3 + $0xc8] sm:$0xff] %vm9569, %v9524
  %9596 = vst.msk [vmem:[#allocation3 + $0xd0] sm:$0xff] %vm9569, %v9526
  %9597 = vst.msk [vmem:[#allocation3 + $0xd8] sm:$0xff] %vm9569, %v9528
  %9598 = vst.msk [vmem:[#allocation3 + $0xe0] sm:$0xff] %vm9569, %v9530
  %9599 = vst.msk [vmem:[#allocation3 + $0xe8] sm:$0xff] %vm9569, %v9532
  %9600 = vst.msk [vmem:[#allocation3 + $0xf0] sm:$0xff] %vm9569, %v9534
  %9601 = vst.msk [vmem:[#allocation3 + $0xf8] sm:$0xff] %vm9569, %v9536
  %v9602 = vld [vmem:[%s6645] sm:$0xf]
  %v9603 = vld [vmem:[%s6645 + $0x4] sm:$0xf]
  %v9604 = vld [vmem:[%s6645 + $0xc] sm:$0xf]
  %v9605 = vld [vmem:[%s6645 + $0x10] sm:$0xf]
  %v9606 = vld [vmem:[%s6645 + $0x18] sm:$0xf]
  %v9607 = vld [vmem:[%s6645 + $0x1c] sm:$0xf]
  %v9608 = vld [vmem:[%s6645 + $0x24] sm:$0xf]
  %v9609 = vld [vmem:[%s6645 + $0x28] sm:$0xf]
  %v9610 = vld [vmem:[%s6645 + $0x30] sm:$0xf]
  %v9611 = vld [vmem:[%s6645 + $0x34] sm:$0xf]
  %v9612 = vld [vmem:[%s6645 + $0x3c] sm:$0xf]
  %v9613 = vld [vmem:[%s6645 + $0x40] sm:$0xf]
  %v9614 = vld [vmem:[%s6645 + $0x48] sm:$0xf]
  %v9615 = vld [vmem:[%s6645 + $0x4c] sm:$0xf]
  %v9616 = vld [vmem:[%s6645 + $0x54] sm:$0xf]
  %v9617 = vld [vmem:[%s6645 + $0x58] sm:$0xf]
  %v9618 = vld [vmem:[%s6645 + $0x60] sm:$0xf]
  %v9619 = vld [vmem:[%s6645 + $0x64] sm:$0xf]
  %v9620 = vld [vmem:[%s6645 + $0x6c] sm:$0xf]
  %v9621 = vld [vmem:[%s6645 + $0x70] sm:$0xf]
  %v9622 = vld [vmem:[%s6645 + $0x78] sm:$0xf]
  %v9623 = vld [vmem:[%s6645 + $0x7c] sm:$0xf]
  %v9624 = vld [vmem:[%s6645 + $0x84] sm:$0xf]
  %v9625 = vld [vmem:[%s6645 + $0x88] sm:$0xf]
  %v9626 = vld [vmem:[%s6645 + $0x90] sm:$0xf]
  %v9627 = vld [vmem:[%s6645 + $0x94] sm:$0xf]
  %v9628 = vld [vmem:[%s6645 + $0x9c] sm:$0xf]
  %v9629 = vld [vmem:[%s6645 + $0xa0] sm:$0xf]
  %v9630 = vld [vmem:[%s6645 + $0xa8] sm:$0xf]
  %v9631 = vld [vmem:[%s6645 + $0xac] sm:$0xf]
  %v9632 = vld [vmem:[%s6645 + $0xb4] sm:$0xf]
  %v9633 = vld [vmem:[%s6645 + $0xb8] sm:$0xf]
  %v9634 = vld [vmem:[%s6645 + $0xd8] sm:$0xf]
  %v9635 = vld [vmem:[%s6645 + $0xdc] sm:$0xf]
  %v9636 = vld [vmem:[%s6645 + $0xe4] sm:$0xf]
  %v9637 = vld [vmem:[%s6645 + $0xe8] sm:$0xf]
  %v9638 = vld [vmem:[%s6645 + $0xf0] sm:$0xf]
  %v9639 = vld [vmem:[%s6645 + $0xf4] sm:$0xf]
  %v9640 = vld [vmem:[%s6645 + $0xfc] sm:$0xf]
  %v9641 = vld [vmem:[%s6645 + $0x100] sm:$0xf]
  %v9642 = vld [vmem:[%s6645 + $0x108] sm:$0xf]
  %v9643 = vld [vmem:[%s6645 + $0x10c] sm:$0xf]
  %v9644 = vld [vmem:[%s6645 + $0x114] sm:$0xf]
  %v9645 = vld [vmem:[%s6645 + $0x118] sm:$0xf]
  %v9646 = vld [vmem:[%s6645 + $0x120] sm:$0xf]
  %v9647 = vld [vmem:[%s6645 + $0x124] sm:$0xf]
  %v9648 = vld [vmem:[%s6645 + $0x12c] sm:$0xf]
  %v9649 = vld [vmem:[%s6645 + $0x130] sm:$0xf]
  %v9650 = vld [vmem:[%s6645 + $0x138] sm:$0xf]
  %v9651 = vld [vmem:[%s6645 + $0x13c] sm:$0xf]
  %v9652 = vld [vmem:[%s6645 + $0x144] sm:$0xf]
  %v9653 = vld [vmem:[%s6645 + $0x148] sm:$0xf]
  %v9654 = vld [vmem:[%s6645 + $0x150] sm:$0xf]
  %v9655 = vld [vmem:[%s6645 + $0x154] sm:$0xf]
  %v9656 = vld [vmem:[%s6645 + $0x15c] sm:$0xf]
  %v9657 = vld [vmem:[%s6645 + $0x160] sm:$0xf]
  %v9658 = vld [vmem:[%s6645 + $0x168] sm:$0xf]
  %v9659 = vld [vmem:[%s6645 + $0x16c] sm:$0xf]
  %v9660 = vld [vmem:[%s6645 + $0x174] sm:$0xf]
  %v9661 = vld [vmem:[%s6645 + $0x178] sm:$0xf]
  %v9662 = vld [vmem:[%s6645 + $0x180] sm:$0xf]
  %v9663 = vld [vmem:[%s6645 + $0x184] sm:$0xf]
  %v9664 = vld [vmem:[%s6645 + $0x18c] sm:$0xf]
  %v9665 = vld [vmem:[%s6645 + $0x190] sm:$0xf]
  %v9730 = vunpack.c.l.b16 %v9602
  %v9731 = vunpack.c.l.b16 %v9603
  %v9732 = vunpack.c.l.b16 %v9604
  %v9733 = vunpack.c.l.b16 %v9605
  %v9734 = vunpack.c.l.b16 %v9606
  %v9735 = vunpack.c.l.b16 %v9607
  %v9736 = vunpack.c.l.b16 %v9608
  %v9737 = vunpack.c.l.b16 %v9609
  %v9738 = vunpack.c.l.b16 %v9610
  %v9739 = vunpack.c.l.b16 %v9611
  %v9740 = vunpack.c.l.b16 %v9612
  %v9741 = vunpack.c.l.b16 %v9613
  %v9742 = vunpack.c.l.b16 %v9614
  %v9743 = vunpack.c.l.b16 %v9615
  %v9744 = vunpack.c.l.b16 %v9616
  %v9745 = vunpack.c.l.b16 %v9617
  %v9746 = vunpack.c.l.b16 %v9618
  %v9747 = vunpack.c.l.b16 %v9619
  %v9748 = vunpack.c.l.b16 %v9620
  %v9749 = vunpack.c.l.b16 %v9621
  %v9750 = vunpack.c.l.b16 %v9622
  %v9751 = vunpack.c.l.b16 %v9623
  %v9752 = vunpack.c.l.b16 %v9624
  %v9753 = vunpack.c.l.b16 %v9625
  %v9754 = vunpack.c.l.b16 %v9626
  %v9755 = vunpack.c.l.b16 %v9627
  %v9756 = vunpack.c.l.b16 %v9628
  %v9757 = vunpack.c.l.b16 %v9629
  %v9758 = vunpack.c.l.b16 %v9630
  %v9759 = vunpack.c.l.b16 %v9631
  %v9760 = vunpack.c.l.b16 %v9632
  %v9761 = vunpack.c.l.b16 %v9633
  %v9762 = vunpack.c.l.b16 %v9634
  %v9763 = vunpack.c.l.b16 %v9635
  %v9764 = vunpack.c.l.b16 %v9636
  %v9765 = vunpack.c.l.b16 %v9637
  %v9766 = vunpack.c.l.b16 %v9638
  %v9767 = vunpack.c.l.b16 %v9639
  %v9768 = vunpack.c.l.b16 %v9640
  %v9769 = vunpack.c.l.b16 %v9641
  %v9770 = vunpack.c.l.b16 %v9642
  %v9771 = vunpack.c.l.b16 %v9643
  %v9772 = vunpack.c.l.b16 %v9644
  %v9773 = vunpack.c.l.b16 %v9645
  %v9774 = vunpack.c.l.b16 %v9646
  %v9775 = vunpack.c.l.b16 %v9647
  %v9776 = vunpack.c.l.b16 %v9648
  %v9777 = vunpack.c.l.b16 %v9649
  %v9778 = vunpack.c.l.b16 %v9650
  %v9779 = vunpack.c.l.b16 %v9651
  %v9780 = vunpack.c.l.b16 %v9652
  %v9781 = vunpack.c.l.b16 %v9653
  %v9782 = vunpack.c.l.b16 %v9654
  %v9783 = vunpack.c.l.b16 %v9655
  %v9784 = vunpack.c.l.b16 %v9656
  %v9785 = vunpack.c.l.b16 %v9657
  %v9786 = vunpack.c.l.b16 %v9658
  %v9787 = vunpack.c.l.b16 %v9659
  %v9788 = vunpack.c.l.b16 %v9660
  %v9789 = vunpack.c.l.b16 %v9661
  %v9790 = vunpack.c.l.b16 %v9662
  %v9791 = vunpack.c.l.b16 %v9663
  %v9792 = vunpack.c.l.b16 %v9664
  %v9793 = vunpack.c.l.b16 %v9665
  %v9794 = vpack.c.b16 %v9731, %v9730
  %v9795 = vpack.c.b16 %v9733, %v9732
  %v9796 = vpack.c.b16 %v9735, %v9734
  %v9797 = vpack.c.b16 %v9737, %v9736
  %v9798 = vpack.c.b16 %v9739, %v9738
  %v9799 = vpack.c.b16 %v9741, %v9740
  %v9800 = vpack.c.b16 %v9743, %v9742
  %v9801 = vpack.c.b16 %v9745, %v9744
  %v9802 = vpack.c.b16 %v9747, %v9746
  %v9803 = vpack.c.b16 %v9749, %v9748
  %v9804 = vpack.c.b16 %v9751, %v9750
  %v9805 = vpack.c.b16 %v9753, %v9752
  %v9806 = vpack.c.b16 %v9755, %v9754
  %v9807 = vpack.c.b16 %v9757, %v9756
  %v9808 = vpack.c.b16 %v9759, %v9758
  %v9809 = vpack.c.b16 %v9761, %v9760
  %v9810 = vpack.c.b16 %v9763, %v9762
  %v9811 = vpack.c.b16 %v9765, %v9764
  %v9812 = vpack.c.b16 %v9767, %v9766
  %v9813 = vpack.c.b16 %v9769, %v9768
  %v9814 = vpack.c.b16 %v9771, %v9770
  %v9815 = vpack.c.b16 %v9773, %v9772
  %v9816 = vpack.c.b16 %v9775, %v9774
  %v9817 = vpack.c.b16 %v9777, %v9776
  %v9818 = vpack.c.b16 %v9779, %v9778
  %v9819 = vpack.c.b16 %v9781, %v9780
  %v9820 = vpack.c.b16 %v9783, %v9782
  %v9821 = vpack.c.b16 %v9785, %v9784
  %v9822 = vpack.c.b16 %v9787, %v9786
  %v9823 = vpack.c.b16 %v9789, %v9788
  %v9824 = vpack.c.b16 %v9791, %v9790
  %v9825 = vpack.c.b16 %v9793, %v9792
  %9826 = vrot.lane.b32.xlu0 %v9794, 24
  %v9827 = vpop.permute.xlu0 %9826
  %9828 = vrot.lane.b32.xlu0 %v9795, 24
  %v9829 = vpop.permute.xlu0 %9828
  %9830 = vrot.lane.b32.xlu0 %v9796, 24
  %v9831 = vpop.permute.xlu0 %9830
  %9832 = vrot.lane.b32.xlu0 %v9797, 24
  %v9833 = vpop.permute.xlu0 %9832
  %9834 = vrot.lane.b32.xlu0 %v9798, 24
  %v9835 = vpop.permute.xlu0 %9834
  %9836 = vrot.lane.b32.xlu0 %v9799, 24
  %v9837 = vpop.permute.xlu0 %9836
  %9838 = vrot.lane.b32.xlu0 %v9800, 24
  %v9839 = vpop.permute.xlu0 %9838
  %9840 = vrot.lane.b32.xlu0 %v9801, 24
  %v9841 = vpop.permute.xlu0 %9840
  %9842 = vrot.lane.b32.xlu0 %v9802, 24
  %v9843 = vpop.permute.xlu0 %9842
  %9844 = vrot.lane.b32.xlu0 %v9803, 24
  %v9845 = vpop.permute.xlu0 %9844
  %9846 = vrot.lane.b32.xlu0 %v9804, 24
  %v9847 = vpop.permute.xlu0 %9846
  %9848 = vrot.lane.b32.xlu0 %v9805, 24
  %v9849 = vpop.permute.xlu0 %9848
  %9850 = vrot.lane.b32.xlu0 %v9806, 24
  %v9851 = vpop.permute.xlu0 %9850
  %9852 = vrot.lane.b32.xlu0 %v9807, 24
  %v9853 = vpop.permute.xlu0 %9852
  %9854 = vrot.lane.b32.xlu0 %v9808, 24
  %v9855 = vpop.permute.xlu0 %9854
  %9856 = vrot.lane.b32.xlu0 %v9809, 24
  %v9857 = vpop.permute.xlu0 %9856
  %9858 = vrot.lane.b32.xlu0 %v9810, 24
  %v9859 = vpop.permute.xlu0 %9858
  %9860 = vrot.lane.b32.xlu0 %v9811, 24
  %v9861 = vpop.permute.xlu0 %9860
  %9862 = vrot.lane.b32.xlu0 %v9812, 24
  %v9863 = vpop.permute.xlu0 %9862
  %9864 = vrot.lane.b32.xlu0 %v9813, 24
  %v9865 = vpop.permute.xlu0 %9864
  %9866 = vrot.lane.b32.xlu0 %v9814, 24
  %v9867 = vpop.permute.xlu0 %9866
  %9868 = vrot.lane.b32.xlu0 %v9815, 24
  %v9869 = vpop.permute.xlu0 %9868
  %9870 = vrot.lane.b32.xlu0 %v9816, 24
  %v9871 = vpop.permute.xlu0 %9870
  %9872 = vrot.lane.b32.xlu0 %v9817, 24
  %v9873 = vpop.permute.xlu0 %9872
  %9874 = vrot.lane.b32.xlu0 %v9818, 24
  %v9875 = vpop.permute.xlu0 %9874
  %9876 = vrot.lane.b32.xlu0 %v9819, 24
  %v9877 = vpop.permute.xlu0 %9876
  %9878 = vrot.lane.b32.xlu0 %v9820, 24
  %v9879 = vpop.permute.xlu0 %9878
  %9880 = vrot.lane.b32.xlu0 %v9821, 24
  %v9881 = vpop.permute.xlu0 %9880
  %9882 = vrot.lane.b32.xlu0 %v9822, 24
  %v9883 = vpop.permute.xlu0 %9882
  %9884 = vrot.lane.b32.xlu0 %v9823, 24
  %v9885 = vpop.permute.xlu0 %9884
  %9886 = vrot.lane.b32.xlu0 %v9824, 24
  %v9887 = vpop.permute.xlu0 %9886
  %9888 = vrot.lane.b32.xlu0 %v9825, 24
  %v9889 = vpop.permute.xlu0 %9888
  %vm9922 = vcmask 261312
  %9923 = vst.msk [vmem:[#allocation3] sm:$0xff] %vm9922, %v9827
  %9924 = vst.msk [vmem:[#allocation3 + $0x8] sm:$0xff] %vm9922, %v9829
  %9925 = vst.msk [vmem:[#allocation3 + $0x10] sm:$0xff] %vm9922, %v9831
  %9926 = vst.msk [vmem:[#allocation3 + $0x18] sm:$0xff] %vm9922, %v9833
  %9927 = vst.msk [vmem:[#allocation3 + $0x20] sm:$0xff] %vm9922, %v9835
  %9928 = vst.msk [vmem:[#allocation3 + $0x28] sm:$0xff] %vm9922, %v9837
  %9929 = vst.msk [vmem:[#allocation3 + $0x30] sm:$0xff] %vm9922, %v9839
  %9930 = vst.msk [vmem:[#allocation3 + $0x38] sm:$0xff] %vm9922, %v9841
  %9931 = vst.msk [vmem:[#allocation3 + $0x40] sm:$0xff] %vm9922, %v9843
  %9932 = vst.msk [vmem:[#allocation3 + $0x48] sm:$0xff] %vm9922, %v9845
  %9933 = vst.msk [vmem:[#allocation3 + $0x50] sm:$0xff] %vm9922, %v9847
  %9934 = vst.msk [vmem:[#allocation3 + $0x58] sm:$0xff] %vm9922, %v9849
  %9935 = vst.msk [vmem:[#allocation3 + $0x60] sm:$0xff] %vm9922, %v9851
  %9936 = vst.msk [vmem:[#allocation3 + $0x68] sm:$0xff] %vm9922, %v9853
  %9937 = vst.msk [vmem:[#allocation3 + $0x70] sm:$0xff] %vm9922, %v9855
  %9938 = vst.msk [vmem:[#allocation3 + $0x78] sm:$0xff] %vm9922, %v9857
  %9939 = vst.msk [vmem:[#allocation3 + $0x80] sm:$0xff] %vm9922, %v9859
  %9940 = vst.msk [vmem:[#allocation3 + $0x88] sm:$0xff] %vm9922, %v9861
  %9941 = vst.msk [vmem:[#allocation3 + $0x90] sm:$0xff] %vm9922, %v9863
  %9942 = vst.msk [vmem:[#allocation3 + $0x98] sm:$0xff] %vm9922, %v9865
  %9943 = vst.msk [vmem:[#allocation3 + $0xa0] sm:$0xff] %vm9922, %v9867
  %9944 = vst.msk [vmem:[#allocation3 + $0xa8] sm:$0xff] %vm9922, %v9869
  %9945 = vst.msk [vmem:[#allocation3 + $0xb0] sm:$0xff] %vm9922, %v9871
  %9946 = vst.msk [vmem:[#allocation3 + $0xb8] sm:$0xff] %vm9922, %v9873
  %9947 = vst.msk [vmem:[#allocation3 + $0xc0] sm:$0xff] %vm9922, %v9875
  %9948 = vst.msk [vmem:[#allocation3 + $0xc8] sm:$0xff] %vm9922, %v9877
  %9949 = vst.msk [vmem:[#allocation3 + $0xd0] sm:$0xff] %vm9922, %v9879
  %9950 = vst.msk [vmem:[#allocation3 + $0xd8] sm:$0xff] %vm9922, %v9881
  %9951 = vst.msk [vmem:[#allocation3 + $0xe0] sm:$0xff] %vm9922, %v9883
  %9952 = vst.msk [vmem:[#allocation3 + $0xe8] sm:$0xff] %vm9922, %v9885
  %9953 = vst.msk [vmem:[#allocation3 + $0xf0] sm:$0xff] %vm9922, %v9887
  %9954 = vst.msk [vmem:[#allocation3 + $0xf8] sm:$0xff] %vm9922, %v9889
  %v9955 = vld [vmem:[%s6645] sm:$0xf]
  %v9956 = vld [vmem:[%s6645 + $0x4] sm:$0xf]
  %v9957 = vld [vmem:[%s6645 + $0x8] sm:$0x1]
  %v9958 = vld [vmem:[%s6645 + $0xc] sm:$0xf]
  %v9959 = vld [vmem:[%s6645 + $0x10] sm:$0xf]
  %v9960 = vld [vmem:[%s6645 + $0x14] sm:$0x1]
  %v9961 = vld [vmem:[%s6645 + $0x18] sm:$0xf]
  %v9962 = vld [vmem:[%s6645 + $0x1c] sm:$0xf]
  %v9963 = vld [vmem:[%s6645 + $0x20] sm:$0x1]
  %v9964 = vld [vmem:[%s6645 + $0x24] sm:$0xf]
  %v9965 = vld [vmem:[%s6645 + $0x28] sm:$0xf]
  %v9966 = vld [vmem:[%s6645 + $0x2c] sm:$0x1]
  %v9967 = vld [vmem:[%s6645 + $0x30] sm:$0xf]
  %v9968 = vld [vmem:[%s6645 + $0x34] sm:$0xf]
  %v9969 = vld [vmem:[%s6645 + $0x38] sm:$0x1]
  %v9970 = vld [vmem:[%s6645 + $0x3c] sm:$0xf]
  %v9971 = vld [vmem:[%s6645 + $0x40] sm:$0xf]
  %v9972 = vld [vmem:[%s6645 + $0x44] sm:$0x1]
  %v9973 = vld [vmem:[%s6645 + $0x48] sm:$0xf]
  %v9974 = vld [vmem:[%s6645 + $0x4c] sm:$0xf]
  %v9975 = vld [vmem:[%s6645 + $0x50] sm:$0x1]
  %v9976 = vld [vmem:[%s6645 + $0x54] sm:$0xf]
  %v9977 = vld [vmem:[%s6645 + $0x58] sm:$0xf]
  %v9978 = vld [vmem:[%s6645 + $0x5c] sm:$0x1]
  %v9979 = vld [vmem:[%s6645 + $0x60] sm:$0xf]
  %v9980 = vld [vmem:[%s6645 + $0x64] sm:$0xf]
  %v9981 = vld [vmem:[%s6645 + $0x68] sm:$0x1]
  %v9982 = vld [vmem:[%s6645 + $0x6c] sm:$0xf]
  %v9983 = vld [vmem:[%s6645 + $0x70] sm:$0xf]
  %v9984 = vld [vmem:[%s6645 + $0x74] sm:$0x1]
  %v9985 = vld [vmem:[%s6645 + $0x78] sm:$0xf]
  %v9986 = vld [vmem:[%s6645 + $0x7c] sm:$0xf]
  %v9987 = vld [vmem:[%s6645 + $0x80] sm:$0x1]
  %v9988 = vld [vmem:[%s6645 + $0x84] sm:$0xf]
  %v9989 = vld [vmem:[%s6645 + $0x88] sm:$0xf]
  %v9990 = vld [vmem:[%s6645 + $0x8c] sm:$0x1]
  %v9991 = vld [vmem:[%s6645 + $0x90] sm:$0xf]
  %v9992 = vld [vmem:[%s6645 + $0x94] sm:$0xf]
  %v9993 = vld [vmem:[%s6645 + $0x98] sm:$0x1]
  %v9994 = vld [vmem:[%s6645 + $0x9c] sm:$0xf]
  %v9995 = vld [vmem:[%s6645 + $0xa0] sm:$0xf]
  %v9996 = vld [vmem:[%s6645 + $0xa4] sm:$0x1]
  %v9997 = vld [vmem:[%s6645 + $0xa8] sm:$0xf]
  %v9998 = vld [vmem:[%s6645 + $0xac] sm:$0xf]
  %v9999 = vld [vmem:[%s6645 + $0xb0] sm:$0x1]
  %v10000 = vld [vmem:[%s6645 + $0xb4] sm:$0xf]
  %v10001 = vld [vmem:[%s6645 + $0xb8] sm:$0xf]
  %v10002 = vld [vmem:[%s6645 + $0xbc] sm:$0x1]
  %v10003 = vld [vmem:[%s6645 + $0xd8] sm:$0xf]
  %v10004 = vld [vmem:[%s6645 + $0xdc] sm:$0xf]
  %v10005 = vld [vmem:[%s6645 + $0xe0] sm:$0x1]
  %v10006 = vld [vmem:[%s6645 + $0xe4] sm:$0xf]
  %v10007 = vld [vmem:[%s6645 + $0xe8] sm:$0xf]
  %v10008 = vld [vmem:[%s6645 + $0xec] sm:$0x1]
  %v10009 = vld [vmem:[%s6645 + $0xf0] sm:$0xf]
  %v10010 = vld [vmem:[%s6645 + $0xf4] sm:$0xf]
  %v10011 = vld [vmem:[%s6645 + $0xf8] sm:$0x1]
  %v10012 = vld [vmem:[%s6645 + $0xfc] sm:$0xf]
  %v10013 = vld [vmem:[%s6645 + $0x100] sm:$0xf]
  %v10014 = vld [vmem:[%s6645 + $0x104] sm:$0x1]
  %v10015 = vld [vmem:[%s6645 + $0x108] sm:$0xf]
  %v10016 = vld [vmem:[%s6645 + $0x10c] sm:$0xf]
  %v10017 = vld [vmem:[%s6645 + $0x110] sm:$0x1]
  %v10018 = vld [vmem:[%s6645 + $0x114] sm:$0xf]
  %v10019 = vld [vmem:[%s6645 + $0x118] sm:$0xf]
  %v10020 = vld [vmem:[%s6645 + $0x11c] sm:$0x1]
  %v10021 = vld [vmem:[%s6645 + $0x120] sm:$0xf]
  %v10022 = vld [vmem:[%s6645 + $0x124] sm:$0xf]
  %v10023 = vld [vmem:[%s6645 + $0x128] sm:$0x1]
  %v10024 = vld [vmem:[%s6645 + $0x12c] sm:$0xf]
  %v10025 = vld [vmem:[%s6645 + $0x130] sm:$0xf]
  %v10026 = vld [vmem:[%s6645 + $0x134] sm:$0x1]
  %v10027 = vld [vmem:[%s6645 + $0x138] sm:$0xf]
  %v10028 = vld [vmem:[%s6645 + $0x13c] sm:$0xf]
  %v10029 = vld [vmem:[%s6645 + $0x140] sm:$0x1]
  %v10030 = vld [vmem:[%s6645 + $0x144] sm:$0xf]
  %v10031 = vld [vmem:[%s6645 + $0x148] sm:$0xf]
  %v10032 = vld [vmem:[%s6645 + $0x14c] sm:$0x1]
  %v10033 = vld [vmem:[%s6645 + $0x150] sm:$0xf]
  %v10034 = vld [vmem:[%s6645 + $0x154] sm:$0xf]
  %v10035 = vld [vmem:[%s6645 + $0x158] sm:$0x1]
  %v10036 = vld [vmem:[%s6645 + $0x15c] sm:$0xf]
  %v10037 = vld [vmem:[%s6645 + $0x160] sm:$0xf]
  %v10038 = vld [vmem:[%s6645 + $0x164] sm:$0x1]
  %v10039 = vld [vmem:[%s6645 + $0x168] sm:$0xf]
  %v10040 = vld [vmem:[%s6645 + $0x16c] sm:$0xf]
  %v10041 = vld [vmem:[%s6645 + $0x170] sm:$0x1]
  %v10042 = vld [vmem:[%s6645 + $0x174] sm:$0xf]
  %v10043 = vld [vmem:[%s6645 + $0x178] sm:$0xf]
  %v10044 = vld [vmem:[%s6645 + $0x17c] sm:$0x1]
  %v10045 = vld [vmem:[%s6645 + $0x180] sm:$0xf]
  %v10046 = vld [vmem:[%s6645 + $0x184] sm:$0xf]
  %v10047 = vld [vmem:[%s6645 + $0x188] sm:$0x1]
  %v10048 = vld [vmem:[%s6645 + $0x18c] sm:$0xf]
  %v10049 = vld [vmem:[%s6645 + $0x190] sm:$0xf]
  %v10050 = vld [vmem:[%s6645 + $0x194] sm:$0x1]
  %v10147 = vunpack.c.l.b16 %v9955
  %v10148 = vunpack.c.l.b16 %v9956
  %v10149 = vunpack.c.l.b16 %v9957
  %v10150 = vunpack.c.l.b16 %v9958
  %v10151 = vunpack.c.l.b16 %v9959
  %v10152 = vunpack.c.l.b16 %v9960
  %v10153 = vunpack.c.l.b16 %v9961
  %v10154 = vunpack.c.l.b16 %v9962
  %v10155 = vunpack.c.l.b16 %v9963
  %v10156 = vunpack.c.l.b16 %v9964
  %v10157 = vunpack.c.l.b16 %v9965
  %v10158 = vunpack.c.l.b16 %v9966
  %v10159 = vunpack.c.l.b16 %v9967
  %v10160 = vunpack.c.l.b16 %v9968
  %v10161 = vunpack.c.l.b16 %v9969
  %v10162 = vunpack.c.l.b16 %v9970
  %v10163 = vunpack.c.l.b16 %v9971
  %v10164 = vunpack.c.l.b16 %v9972
  %v10165 = vunpack.c.l.b16 %v9973
  %v10166 = vunpack.c.l.b16 %v9974
  %v10167 = vunpack.c.l.b16 %v9975
  %v10168 = vunpack.c.l.b16 %v9976
  %v10169 = vunpack.c.l.b16 %v9977
  %v10170 = vunpack.c.l.b16 %v9978
  %v10171 = vunpack.c.l.b16 %v9979
  %v10172 = vunpack.c.l.b16 %v9980
  %v10173 = vunpack.c.l.b16 %v9981
  %v10174 = vunpack.c.l.b16 %v9982
  %v10175 = vunpack.c.l.b16 %v9983
  %v10176 = vunpack.c.l.b16 %v9984
  %v10177 = vunpack.c.l.b16 %v9985
  %v10178 = vunpack.c.l.b16 %v9986
  %v10179 = vunpack.c.l.b16 %v9987
  %v10180 = vunpack.c.l.b16 %v9988
  %v10181 = vunpack.c.l.b16 %v9989
  %v10182 = vunpack.c.l.b16 %v9990
  %v10183 = vunpack.c.l.b16 %v9991
  %v10184 = vunpack.c.l.b16 %v9992
  %v10185 = vunpack.c.l.b16 %v9993
  %v10186 = vunpack.c.l.b16 %v9994
  %v10187 = vunpack.c.l.b16 %v9995
  %v10188 = vunpack.c.l.b16 %v9996
  %v10189 = vunpack.c.l.b16 %v9997
  %v10190 = vunpack.c.l.b16 %v9998
  %v10191 = vunpack.c.l.b16 %v9999
  %v10192 = vunpack.c.l.b16 %v10000
  %v10193 = vunpack.c.l.b16 %v10001
  %v10194 = vunpack.c.l.b16 %v10002
  %v10195 = vunpack.c.l.b16 %v10003
  %v10196 = vunpack.c.l.b16 %v10004
  %v10197 = vunpack.c.l.b16 %v10005
  %v10198 = vunpack.c.l.b16 %v10006
  %v10199 = vunpack.c.l.b16 %v10007
  %v10200 = vunpack.c.l.b16 %v10008
  %v10201 = vunpack.c.l.b16 %v10009
  %v10202 = vunpack.c.l.b16 %v10010
  %v10203 = vunpack.c.l.b16 %v10011
  %v10204 = vunpack.c.l.b16 %v10012
  %v10205 = vunpack.c.l.b16 %v10013
  %v10206 = vunpack.c.l.b16 %v10014
  %v10207 = vunpack.c.l.b16 %v10015
  %v10208 = vunpack.c.l.b16 %v10016
  %v10209 = vunpack.c.l.b16 %v10017
  %v10210 = vunpack.c.l.b16 %v10018
  %v10211 = vunpack.c.l.b16 %v10019
  %v10212 = vunpack.c.l.b16 %v10020
  %v10213 = vunpack.c.l.b16 %v10021
  %v10214 = vunpack.c.l.b16 %v10022
  %v10215 = vunpack.c.l.b16 %v10023
  %v10216 = vunpack.c.l.b16 %v10024
  %v10217 = vunpack.c.l.b16 %v10025
  %v10218 = vunpack.c.l.b16 %v10026
  %v10219 = vunpack.c.l.b16 %v10027
  %v10220 = vunpack.c.l.b16 %v10028
  %v10221 = vunpack.c.l.b16 %v10029
  %v10222 = vunpack.c.l.b16 %v10030
  %v10223 = vunpack.c.l.b16 %v10031
  %v10224 = vunpack.c.l.b16 %v10032
  %v10225 = vunpack.c.l.b16 %v10033
  %v10226 = vunpack.c.l.b16 %v10034
  %v10227 = vunpack.c.l.b16 %v10035
  %v10228 = vunpack.c.l.b16 %v10036
  %v10229 = vunpack.c.l.b16 %v10037
  %v10230 = vunpack.c.l.b16 %v10038
  %v10231 = vunpack.c.l.b16 %v10039
  %v10232 = vunpack.c.l.b16 %v10040
  %v10233 = vunpack.c.l.b16 %v10041
  %v10234 = vunpack.c.l.b16 %v10042
  %v10235 = vunpack.c.l.b16 %v10043
  %v10236 = vunpack.c.l.b16 %v10044
  %v10237 = vunpack.c.l.b16 %v10045
  %v10238 = vunpack.c.l.b16 %v10046
  %v10239 = vunpack.c.l.b16 %v10047
  %v10240 = vunpack.c.l.b16 %v10048
  %v10241 = vunpack.c.l.b16 %v10049
  %v10242 = vunpack.c.l.b16 %v10050
  %v10243 = vpack.c.b16 %v10148, %v10147
  %v10244 = vpack.c.b16 %v10149, %v10149
  %v10245 = vpack.c.b16 %v10151, %v10150
  %v10246 = vpack.c.b16 %v10152, %v10152
  %v10247 = vpack.c.b16 %v10154, %v10153
  %v10248 = vpack.c.b16 %v10155, %v10155
  %v10249 = vpack.c.b16 %v10157, %v10156
  %v10250 = vpack.c.b16 %v10158, %v10158
  %v10251 = vpack.c.b16 %v10160, %v10159
  %v10252 = vpack.c.b16 %v10161, %v10161
  %v10253 = vpack.c.b16 %v10163, %v10162
  %v10254 = vpack.c.b16 %v10164, %v10164
  %v10255 = vpack.c.b16 %v10166, %v10165
  %v10256 = vpack.c.b16 %v10167, %v10167
  %v10257 = vpack.c.b16 %v10169, %v10168
  %v10258 = vpack.c.b16 %v10170, %v10170
  %v10259 = vpack.c.b16 %v10172, %v10171
  %v10260 = vpack.c.b16 %v10173, %v10173
  %v10261 = vpack.c.b16 %v10175, %v10174
  %v10262 = vpack.c.b16 %v10176, %v10176
  %v10263 = vpack.c.b16 %v10178, %v10177
  %v10264 = vpack.c.b16 %v10179, %v10179
  %v10265 = vpack.c.b16 %v10181, %v10180
  %v10266 = vpack.c.b16 %v10182, %v10182
  %v10267 = vpack.c.b16 %v10184, %v10183
  %v10268 = vpack.c.b16 %v10185, %v10185
  %v10269 = vpack.c.b16 %v10187, %v10186
  %v10270 = vpack.c.b16 %v10188, %v10188
  %v10271 = vpack.c.b16 %v10190, %v10189
  %v10272 = vpack.c.b16 %v10191, %v10191
  %v10273 = vpack.c.b16 %v10193, %v10192
  %v10274 = vpack.c.b16 %v10194, %v10194
  %v10275 = vpack.c.b16 %v10196, %v10195
  %v10276 = vpack.c.b16 %v10197, %v10197
  %v10277 = vpack.c.b16 %v10199, %v10198
  %v10278 = vpack.c.b16 %v10200, %v10200
  %v10279 = vpack.c.b16 %v10202, %v10201
  %v10280 = vpack.c.b16 %v10203, %v10203
  %v10281 = vpack.c.b16 %v10205, %v10204
  %v10282 = vpack.c.b16 %v10206, %v10206
  %v10283 = vpack.c.b16 %v10208, %v10207
  %v10284 = vpack.c.b16 %v10209, %v10209
  %v10285 = vpack.c.b16 %v10211, %v10210
  %v10286 = vpack.c.b16 %v10212, %v10212
  %v10287 = vpack.c.b16 %v10214, %v10213
  %v10288 = vpack.c.b16 %v10215, %v10215
  %v10289 = vpack.c.b16 %v10217, %v10216
  %v10290 = vpack.c.b16 %v10218, %v10218
  %v10291 = vpack.c.b16 %v10220, %v10219
  %v10292 = vpack.c.b16 %v10221, %v10221
  %v10293 = vpack.c.b16 %v10223, %v10222
  %v10294 = vpack.c.b16 %v10224, %v10224
  %v10295 = vpack.c.b16 %v10226, %v10225
  %v10296 = vpack.c.b16 %v10227, %v10227
  %v10297 = vpack.c.b16 %v10229, %v10228
  %v10298 = vpack.c.b16 %v10230, %v10230
  %v10299 = vpack.c.b16 %v10232, %v10231
  %v10300 = vpack.c.b16 %v10233, %v10233
  %v10301 = vpack.c.b16 %v10235, %v10234
  %v10302 = vpack.c.b16 %v10236, %v10236
  %v10303 = vpack.c.b16 %v10238, %v10237
  %v10304 = vpack.c.b16 %v10239, %v10239
  %v10305 = vpack.c.b16 %v10241, %v10240
  %v10306 = vpack.c.b16 %v10242, %v10242
  %v10308 = vshrl.u32 %v10243, 16
  %v10310 = vshll.u32 %v10243, 16
  %v10312 = vrot.slane %v10310, 1
  %v10313 = vor.u32 %v10308, %v10312
  %v10315 = vshll.u32 %v10244, 16
  %v10317 = vrot.slane %v10315, 1
  %v10318 = vsel %vm662, %v10313, %v10317
  %v10320 = vshrl.u32 %v10245, 16
  %v10322 = vshll.u32 %v10245, 16
  %v10324 = vrot.slane %v10322, 1
  %v10325 = vor.u32 %v10320, %v10324
  %v10327 = vshll.u32 %v10246, 16
  %v10329 = vrot.slane %v10327, 1
  %v10330 = vsel %vm662, %v10325, %v10329
  %v10332 = vshrl.u32 %v10247, 16
  %v10334 = vshll.u32 %v10247, 16
  %v10336 = vrot.slane %v10334, 1
  %v10337 = vor.u32 %v10332, %v10336
  %v10339 = vshll.u32 %v10248, 16
  %v10341 = vrot.slane %v10339, 1
  %v10342 = vsel %vm662, %v10337, %v10341
  %v10344 = vshrl.u32 %v10249, 16
  %v10346 = vshll.u32 %v10249, 16
  %v10348 = vrot.slane %v10346, 1
  %v10349 = vor.u32 %v10344, %v10348
  %v10351 = vshll.u32 %v10250, 16
  %v10353 = vrot.slane %v10351, 1
  %v10354 = vsel %vm662, %v10349, %v10353
  %v10356 = vshrl.u32 %v10251, 16
  %v10358 = vshll.u32 %v10251, 16
  %v10360 = vrot.slane %v10358, 1
  %v10361 = vor.u32 %v10356, %v10360
  %v10363 = vshll.u32 %v10252, 16
  %v10365 = vrot.slane %v10363, 1
  %v10366 = vsel %vm662, %v10361, %v10365
  %v10368 = vshrl.u32 %v10253, 16
  %v10370 = vshll.u32 %v10253, 16
  %v10372 = vrot.slane %v10370, 1
  %v10373 = vor.u32 %v10368, %v10372
  %v10375 = vshll.u32 %v10254, 16
  %v10377 = vrot.slane %v10375, 1
  %v10378 = vsel %vm662, %v10373, %v10377
  %v10380 = vshrl.u32 %v10255, 16
  %v10382 = vshll.u32 %v10255, 16
  %v10384 = vrot.slane %v10382, 1
  %v10385 = vor.u32 %v10380, %v10384
  %v10387 = vshll.u32 %v10256, 16
  %v10389 = vrot.slane %v10387, 1
  %v10390 = vsel %vm662, %v10385, %v10389
  %v10392 = vshrl.u32 %v10257, 16
  %v10394 = vshll.u32 %v10257, 16
  %v10396 = vrot.slane %v10394, 1
  %v10397 = vor.u32 %v10392, %v10396
  %v10399 = vshll.u32 %v10258, 16
  %v10401 = vrot.slane %v10399, 1
  %v10402 = vsel %vm662, %v10397, %v10401
  %v10404 = vshrl.u32 %v10259, 16
  %v10406 = vshll.u32 %v10259, 16
  %v10408 = vrot.slane %v10406, 1
  %v10409 = vor.u32 %v10404, %v10408
  %v10411 = vshll.u32 %v10260, 16
  %v10413 = vrot.slane %v10411, 1
  %v10414 = vsel %vm662, %v10409, %v10413
  %v10416 = vshrl.u32 %v10261, 16
  %v10418 = vshll.u32 %v10261, 16
  %v10420 = vrot.slane %v10418, 1
  %v10421 = vor.u32 %v10416, %v10420
  %v10423 = vshll.u32 %v10262, 16
  %v10425 = vrot.slane %v10423, 1
  %v10426 = vsel %vm662, %v10421, %v10425
  %v10428 = vshrl.u32 %v10263, 16
  %v10430 = vshll.u32 %v10263, 16
  %v10432 = vrot.slane %v10430, 1
  %v10433 = vor.u32 %v10428, %v10432
  %v10435 = vshll.u32 %v10264, 16
  %v10437 = vrot.slane %v10435, 1
  %v10438 = vsel %vm662, %v10433, %v10437
  %v10440 = vshrl.u32 %v10265, 16
  %v10442 = vshll.u32 %v10265, 16
  %v10444 = vrot.slane %v10442, 1
  %v10445 = vor.u32 %v10440, %v10444
  %v10447 = vshll.u32 %v10266, 16
  %v10449 = vrot.slane %v10447, 1
  %v10450 = vsel %vm662, %v10445, %v10449
  %v10452 = vshrl.u32 %v10267, 16
  %v10454 = vshll.u32 %v10267, 16
  %v10456 = vrot.slane %v10454, 1
  %v10457 = vor.u32 %v10452, %v10456
  %v10459 = vshll.u32 %v10268, 16
  %v10461 = vrot.slane %v10459, 1
  %v10462 = vsel %vm662, %v10457, %v10461
  %v10464 = vshrl.u32 %v10269, 16
  %v10466 = vshll.u32 %v10269, 16
  %v10468 = vrot.slane %v10466, 1
  %v10469 = vor.u32 %v10464, %v10468
  %v10471 = vshll.u32 %v10270, 16
  %v10473 = vrot.slane %v10471, 1
  %v10474 = vsel %vm662, %v10469, %v10473
  %v10476 = vshrl.u32 %v10271, 16
  %v10478 = vshll.u32 %v10271, 16
  %v10480 = vrot.slane %v10478, 1
  %v10481 = vor.u32 %v10476, %v10480
  %v10483 = vshll.u32 %v10272, 16
  %v10485 = vrot.slane %v10483, 1
  %v10486 = vsel %vm662, %v10481, %v10485
  %v10488 = vshrl.u32 %v10273, 16
  %v10490 = vshll.u32 %v10273, 16
  %v10492 = vrot.slane %v10490, 1
  %v10493 = vor.u32 %v10488, %v10492
  %v10495 = vshll.u32 %v10274, 16
  %v10497 = vrot.slane %v10495, 1
  %v10498 = vsel %vm662, %v10493, %v10497
  %v10500 = vshrl.u32 %v10275, 16
  %v10502 = vshll.u32 %v10275, 16
  %v10504 = vrot.slane %v10502, 1
  %v10505 = vor.u32 %v10500, %v10504
  %v10507 = vshll.u32 %v10276, 16
  %v10509 = vrot.slane %v10507, 1
  %v10510 = vsel %vm662, %v10505, %v10509
  %v10512 = vshrl.u32 %v10277, 16
  %v10514 = vshll.u32 %v10277, 16
  %v10516 = vrot.slane %v10514, 1
  %v10517 = vor.u32 %v10512, %v10516
  %v10519 = vshll.u32 %v10278, 16
  %v10521 = vrot.slane %v10519, 1
  %v10522 = vsel %vm662, %v10517, %v10521
  %v10524 = vshrl.u32 %v10279, 16
  %v10526 = vshll.u32 %v10279, 16
  %v10528 = vrot.slane %v10526, 1
  %v10529 = vor.u32 %v10524, %v10528
  %v10531 = vshll.u32 %v10280, 16
  %v10533 = vrot.slane %v10531, 1
  %v10534 = vsel %vm662, %v10529, %v10533
  %v10536 = vshrl.u32 %v10281, 16
  %v10538 = vshll.u32 %v10281, 16
  %v10540 = vrot.slane %v10538, 1
  %v10541 = vor.u32 %v10536, %v10540
  %v10543 = vshll.u32 %v10282, 16
  %v10545 = vrot.slane %v10543, 1
  %v10546 = vsel %vm662, %v10541, %v10545
  %v10548 = vshrl.u32 %v10283, 16
  %v10550 = vshll.u32 %v10283, 16
  %v10552 = vrot.slane %v10550, 1
  %v10553 = vor.u32 %v10548, %v10552
  %v10555 = vshll.u32 %v10284, 16
  %v10557 = vrot.slane %v10555, 1
  %v10558 = vsel %vm662, %v10553, %v10557
  %v10560 = vshrl.u32 %v10285, 16
  %v10562 = vshll.u32 %v10285, 16
  %v10564 = vrot.slane %v10562, 1
  %v10565 = vor.u32 %v10560, %v10564
  %v10567 = vshll.u32 %v10286, 16
  %v10569 = vrot.slane %v10567, 1
  %v10570 = vsel %vm662, %v10565, %v10569
  %v10572 = vshrl.u32 %v10287, 16
  %v10574 = vshll.u32 %v10287, 16
  %v10576 = vrot.slane %v10574, 1
  %v10577 = vor.u32 %v10572, %v10576
  %v10579 = vshll.u32 %v10288, 16
  %v10581 = vrot.slane %v10579, 1
  %v10582 = vsel %vm662, %v10577, %v10581
  %v10584 = vshrl.u32 %v10289, 16
  %v10586 = vshll.u32 %v10289, 16
  %v10588 = vrot.slane %v10586, 1
  %v10589 = vor.u32 %v10584, %v10588
  %v10591 = vshll.u32 %v10290, 16
  %v10593 = vrot.slane %v10591, 1
  %v10594 = vsel %vm662, %v10589, %v10593
  %v10596 = vshrl.u32 %v10291, 16
  %v10598 = vshll.u32 %v10291, 16
  %v10600 = vrot.slane %v10598, 1
  %v10601 = vor.u32 %v10596, %v10600
  %v10603 = vshll.u32 %v10292, 16
  %v10605 = vrot.slane %v10603, 1
  %v10606 = vsel %vm662, %v10601, %v10605
  %v10608 = vshrl.u32 %v10293, 16
  %v10610 = vshll.u32 %v10293, 16
  %v10612 = vrot.slane %v10610, 1
  %v10613 = vor.u32 %v10608, %v10612
  %v10615 = vshll.u32 %v10294, 16
  %v10617 = vrot.slane %v10615, 1
  %v10618 = vsel %vm662, %v10613, %v10617
  %v10620 = vshrl.u32 %v10295, 16
  %v10622 = vshll.u32 %v10295, 16
  %v10624 = vrot.slane %v10622, 1
  %v10625 = vor.u32 %v10620, %v10624
  %v10627 = vshll.u32 %v10296, 16
  %v10629 = vrot.slane %v10627, 1
  %v10630 = vsel %vm662, %v10625, %v10629
  %v10632 = vshrl.u32 %v10297, 16
  %v10634 = vshll.u32 %v10297, 16
  %v10636 = vrot.slane %v10634, 1
  %v10637 = vor.u32 %v10632, %v10636
  %v10639 = vshll.u32 %v10298, 16
  %v10641 = vrot.slane %v10639, 1
  %v10642 = vsel %vm662, %v10637, %v10641
  %v10644 = vshrl.u32 %v10299, 16
  %v10646 = vshll.u32 %v10299, 16
  %v10648 = vrot.slane %v10646, 1
  %v10649 = vor.u32 %v10644, %v10648
  %v10651 = vshll.u32 %v10300, 16
  %v10653 = vrot.slane %v10651, 1
  %v10654 = vsel %vm662, %v10649, %v10653
  %v10656 = vshrl.u32 %v10301, 16
  %v10658 = vshll.u32 %v10301, 16
  %v10660 = vrot.slane %v10658, 1
  %v10661 = vor.u32 %v10656, %v10660
  %v10663 = vshll.u32 %v10302, 16
  %v10665 = vrot.slane %v10663, 1
  %v10666 = vsel %vm662, %v10661, %v10665
  %v10668 = vshrl.u32 %v10303, 16
  %v10670 = vshll.u32 %v10303, 16
  %v10672 = vrot.slane %v10670, 1
  %v10673 = vor.u32 %v10668, %v10672
  %v10675 = vshll.u32 %v10304, 16
  %v10677 = vrot.slane %v10675, 1
  %v10678 = vsel %vm662, %v10673, %v10677
  %v10680 = vshrl.u32 %v10305, 16
  %v10682 = vshll.u32 %v10305, 16
  %v10684 = vrot.slane %v10682, 1
  %v10685 = vor.u32 %v10680, %v10684
  %v10687 = vshll.u32 %v10306, 16
  %v10689 = vrot.slane %v10687, 1
  %v10690 = vsel %vm662, %v10685, %v10689
  %10691 = vrot.lane.b32.xlu0 %v10318, 32
  %v10692 = vpop.permute.xlu0 %10691
  %10693 = vrot.lane.b32.xlu0 %v10330, 32
  %v10694 = vpop.permute.xlu0 %10693
  %10695 = vrot.lane.b32.xlu0 %v10342, 32
  %v10696 = vpop.permute.xlu0 %10695
  %10697 = vrot.lane.b32.xlu0 %v10354, 32
  %v10698 = vpop.permute.xlu0 %10697
  %10699 = vrot.lane.b32.xlu0 %v10366, 32
  %v10700 = vpop.permute.xlu0 %10699
  %10701 = vrot.lane.b32.xlu0 %v10378, 32
  %v10702 = vpop.permute.xlu0 %10701
  %10703 = vrot.lane.b32.xlu0 %v10390, 32
  %v10704 = vpop.permute.xlu0 %10703
  %10705 = vrot.lane.b32.xlu0 %v10402, 32
  %v10706 = vpop.permute.xlu0 %10705
  %10707 = vrot.lane.b32.xlu0 %v10414, 32
  %v10708 = vpop.permute.xlu0 %10707
  %10709 = vrot.lane.b32.xlu0 %v10426, 32
  %v10710 = vpop.permute.xlu0 %10709
  %10711 = vrot.lane.b32.xlu0 %v10438, 32
  %v10712 = vpop.permute.xlu0 %10711
  %10713 = vrot.lane.b32.xlu0 %v10450, 32
  %v10714 = vpop.permute.xlu0 %10713
  %10715 = vrot.lane.b32.xlu0 %v10462, 32
  %v10716 = vpop.permute.xlu0 %10715
  %10717 = vrot.lane.b32.xlu0 %v10474, 32
  %v10718 = vpop.permute.xlu0 %10717
  %10719 = vrot.lane.b32.xlu0 %v10486, 32
  %v10720 = vpop.permute.xlu0 %10719
  %10721 = vrot.lane.b32.xlu0 %v10498, 32
  %v10722 = vpop.permute.xlu0 %10721
  %10723 = vrot.lane.b32.xlu0 %v10510, 32
  %v10724 = vpop.permute.xlu0 %10723
  %10725 = vrot.lane.b32.xlu0 %v10522, 32
  %v10726 = vpop.permute.xlu0 %10725
  %10727 = vrot.lane.b32.xlu0 %v10534, 32
  %v10728 = vpop.permute.xlu0 %10727
  %10729 = vrot.lane.b32.xlu0 %v10546, 32
  %v10730 = vpop.permute.xlu0 %10729
  %10731 = vrot.lane.b32.xlu0 %v10558, 32
  %v10732 = vpop.permute.xlu0 %10731
  %10733 = vrot.lane.b32.xlu0 %v10570, 32
  %v10734 = vpop.permute.xlu0 %10733
  %10735 = vrot.lane.b32.xlu0 %v10582, 32
  %v10736 = vpop.permute.xlu0 %10735
  %10737 = vrot.lane.b32.xlu0 %v10594, 32
  %v10738 = vpop.permute.xlu0 %10737
  %10739 = vrot.lane.b32.xlu0 %v10606, 32
  %v10740 = vpop.permute.xlu0 %10739
  %10741 = vrot.lane.b32.xlu0 %v10618, 32
  %v10742 = vpop.permute.xlu0 %10741
  %10743 = vrot.lane.b32.xlu0 %v10630, 32
  %v10744 = vpop.permute.xlu0 %10743
  %10745 = vrot.lane.b32.xlu0 %v10642, 32
  %v10746 = vpop.permute.xlu0 %10745
  %10747 = vrot.lane.b32.xlu0 %v10654, 32
  %v10748 = vpop.permute.xlu0 %10747
  %10749 = vrot.lane.b32.xlu0 %v10666, 32
  %v10750 = vpop.permute.xlu0 %10749
  %10751 = vrot.lane.b32.xlu0 %v10678, 32
  %v10752 = vpop.permute.xlu0 %10751
  %10753 = vrot.lane.b32.xlu0 %v10690, 32
  %v10754 = vpop.permute.xlu0 %10753
  %vm10787 = vcmask 326912
  %10788 = vst.msk [vmem:[#allocation3] sm:$0xff] %vm10787, %v10692
  %10789 = vst.msk [vmem:[#allocation3 + $0x8] sm:$0xff] %vm10787, %v10694
  %10790 = vst.msk [vmem:[#allocation3 + $0x10] sm:$0xff] %vm10787, %v10696
  %10791 = vst.msk [vmem:[#allocation3 + $0x18] sm:$0xff] %vm10787, %v10698
  %10792 = vst.msk [vmem:[#allocation3 + $0x20] sm:$0xff] %vm10787, %v10700
  %10793 = vst.msk [vmem:[#allocation3 + $0x28] sm:$0xff] %vm10787, %v10702
  %10794 = vst.msk [vmem:[#allocation3 + $0x30] sm:$0xff] %vm10787, %v10704
  %10795 = vst.msk [vmem:[#allocation3 + $0x38] sm:$0xff] %vm10787, %v10706
  %10796 = vst.msk [vmem:[#allocation3 + $0x40] sm:$0xff] %vm10787, %v10708
  %10797 = vst.msk [vmem:[#allocation3 + $0x48] sm:$0xff] %vm10787, %v10710
  %10798 = vst.msk [vmem:[#allocation3 + $0x50] sm:$0xff] %vm10787, %v10712
  %10799 = vst.msk [vmem:[#allocation3 + $0x58] sm:$0xff] %vm10787, %v10714
  %10800 = vst.msk [vmem:[#allocation3 + $0x60] sm:$0xff] %vm10787, %v10716
  %10801 = vst.msk [vmem:[#allocation3 + $0x68] sm:$0xff] %vm10787, %v10718
  %10802 = vst.msk [vmem:[#allocation3 + $0x70] sm:$0xff] %vm10787, %v10720
  %10803 = vst.msk [vmem:[#allocation3 + $0x78] sm:$0xff] %vm10787, %v10722
  %10804 = vst.msk [vmem:[#allocation3 + $0x80] sm:$0xff] %vm10787, %v10724
  %10805 = vst.msk [vmem:[#allocation3 + $0x88] sm:$0xff] %vm10787, %v10726
  %10806 = vst.msk [vmem:[#allocation3 + $0x90] sm:$0xff] %vm10787, %v10728
  %10807 = vst.msk [vmem:[#allocation3 + $0x98] sm:$0xff] %vm10787, %v10730
  %10808 = vst.msk [vmem:[#allocation3 + $0xa0] sm:$0xff] %vm10787, %v10732
  %10809 = vst.msk [vmem:[#allocation3 + $0xa8] sm:$0xff] %vm10787, %v10734
  %10810 = vst.msk [vmem:[#allocation3 + $0xb0] sm:$0xff] %vm10787, %v10736
  %10811 = vst.msk [vmem:[#allocation3 + $0xb8] sm:$0xff] %vm10787, %v10738
  %10812 = vst.msk [vmem:[#allocation3 + $0xc0] sm:$0xff] %vm10787, %v10740
  %10813 = vst.msk [vmem:[#allocation3 + $0xc8] sm:$0xff] %vm10787, %v10742
  %10814 = vst.msk [vmem:[#allocation3 + $0xd0] sm:$0xff] %vm10787, %v10744
  %10815 = vst.msk [vmem:[#allocation3 + $0xd8] sm:$0xff] %vm10787, %v10746
  %10816 = vst.msk [vmem:[#allocation3 + $0xe0] sm:$0xff] %vm10787, %v10748
  %10817 = vst.msk [vmem:[#allocation3 + $0xe8] sm:$0xff] %vm10787, %v10750
  %10818 = vst.msk [vmem:[#allocation3 + $0xf0] sm:$0xff] %vm10787, %v10752
  %10819 = vst.msk [vmem:[#allocation3 + $0xf8] sm:$0xff] %vm10787, %v10754
  %v10820 = vld [vmem:[%s6645] sm:$0xe]
  %v10821 = vld [vmem:[%s6645 + $0x4] sm:$0xf]
  %v10822 = vld [vmem:[%s6645 + $0x8] sm:$0x1]
  %v10823 = vld [vmem:[%s6645 + $0xc] sm:$0xe]
  %v10824 = vld [vmem:[%s6645 + $0x10] sm:$0xf]
  %v10825 = vld [vmem:[%s6645 + $0x14] sm:$0x1]
  %v10826 = vld [vmem:[%s6645 + $0x18] sm:$0xe]
  %v10827 = vld [vmem:[%s6645 + $0x1c] sm:$0xf]
  %v10828 = vld [vmem:[%s6645 + $0x20] sm:$0x1]
  %v10829 = vld [vmem:[%s6645 + $0x24] sm:$0xe]
  %v10830 = vld [vmem:[%s6645 + $0x28] sm:$0xf]
  %v10831 = vld [vmem:[%s6645 + $0x2c] sm:$0x1]
  %v10832 = vld [vmem:[%s6645 + $0x30] sm:$0xe]
  %v10833 = vld [vmem:[%s6645 + $0x34] sm:$0xf]
  %v10834 = vld [vmem:[%s6645 + $0x38] sm:$0x1]
  %v10835 = vld [vmem:[%s6645 + $0x3c] sm:$0xe]
  %v10836 = vld [vmem:[%s6645 + $0x40] sm:$0xf]
  %v10837 = vld [vmem:[%s6645 + $0x44] sm:$0x1]
  %v10838 = vld [vmem:[%s6645 + $0x48] sm:$0xe]
  %v10839 = vld [vmem:[%s6645 + $0x4c] sm:$0xf]
  %v10840 = vld [vmem:[%s6645 + $0x50] sm:$0x1]
  %v10841 = vld [vmem:[%s6645 + $0x54] sm:$0xe]
  %v10842 = vld [vmem:[%s6645 + $0x58] sm:$0xf]
  %v10843 = vld [vmem:[%s6645 + $0x5c] sm:$0x1]
  %v10844 = vld [vmem:[%s6645 + $0x60] sm:$0xe]
  %v10845 = vld [vmem:[%s6645 + $0x64] sm:$0xf]
  %v10846 = vld [vmem:[%s6645 + $0x68] sm:$0x1]
  %v10847 = vld [vmem:[%s6645 + $0x6c] sm:$0xe]
  %v10848 = vld [vmem:[%s6645 + $0x70] sm:$0xf]
  %v10849 = vld [vmem:[%s6645 + $0x74] sm:$0x1]
  %v10850 = vld [vmem:[%s6645 + $0x78] sm:$0xe]
  %v10851 = vld [vmem:[%s6645 + $0x7c] sm:$0xf]
  %v10852 = vld [vmem:[%s6645 + $0x80] sm:$0x1]
  %v10853 = vld [vmem:[%s6645 + $0x84] sm:$0xe]
  %v10854 = vld [vmem:[%s6645 + $0x88] sm:$0xf]
  %v10855 = vld [vmem:[%s6645 + $0x8c] sm:$0x1]
  %v10856 = vld [vmem:[%s6645 + $0x90] sm:$0xe]
  %v10857 = vld [vmem:[%s6645 + $0x94] sm:$0xf]
  %v10858 = vld [vmem:[%s6645 + $0x98] sm:$0x1]
  %v10859 = vld [vmem:[%s6645 + $0x9c] sm:$0xe]
  %v10860 = vld [vmem:[%s6645 + $0xa0] sm:$0xf]
  %v10861 = vld [vmem:[%s6645 + $0xa4] sm:$0x1]
  %v10862 = vld [vmem:[%s6645 + $0xa8] sm:$0xe]
  %v10863 = vld [vmem:[%s6645 + $0xac] sm:$0xf]
  %v10864 = vld [vmem:[%s6645 + $0xb0] sm:$0x1]
  %v10865 = vld [vmem:[%s6645 + $0xb4] sm:$0xe]
  %v10866 = vld [vmem:[%s6645 + $0xb8] sm:$0xf]
  %v10867 = vld [vmem:[%s6645 + $0xbc] sm:$0x1]
  %v10868 = vld [vmem:[%s6645 + $0xd8] sm:$0xe]
  %v10869 = vld [vmem:[%s6645 + $0xdc] sm:$0xf]
  %v10870 = vld [vmem:[%s6645 + $0xe0] sm:$0x1]
  %v10871 = vld [vmem:[%s6645 + $0xe4] sm:$0xe]
  %v10872 = vld [vmem:[%s6645 + $0xe8] sm:$0xf]
  %v10873 = vld [vmem:[%s6645 + $0xec] sm:$0x1]
  %v10874 = vld [vmem:[%s6645 + $0xf0] sm:$0xe]
  %v10875 = vld [vmem:[%s6645 + $0xf4] sm:$0xf]
  %v10876 = vld [vmem:[%s6645 + $0xf8] sm:$0x1]
  %v10877 = vld [vmem:[%s6645 + $0xfc] sm:$0xe]
  %v10878 = vld [vmem:[%s6645 + $0x100] sm:$0xf]
  %v10879 = vld [vmem:[%s6645 + $0x104] sm:$0x1]
  %v10880 = vld [vmem:[%s6645 + $0x108] sm:$0xe]
  %v10881 = vld [vmem:[%s6645 + $0x10c] sm:$0xf]
  %v10882 = vld [vmem:[%s6645 + $0x110] sm:$0x1]
  %v10883 = vld [vmem:[%s6645 + $0x114] sm:$0xe]
  %v10884 = vld [vmem:[%s6645 + $0x118] sm:$0xf]
  %v10885 = vld [vmem:[%s6645 + $0x11c] sm:$0x1]
  %v10886 = vld [vmem:[%s6645 + $0x120] sm:$0xe]
  %v10887 = vld [vmem:[%s6645 + $0x124] sm:$0xf]
  %v10888 = vld [vmem:[%s6645 + $0x128] sm:$0x1]
  %v10889 = vld [vmem:[%s6645 + $0x12c] sm:$0xe]
  %v10890 = vld [vmem:[%s6645 + $0x130] sm:$0xf]
  %v10891 = vld [vmem:[%s6645 + $0x134] sm:$0x1]
  %v10892 = vld [vmem:[%s6645 + $0x138] sm:$0xe]
  %v10893 = vld [vmem:[%s6645 + $0x13c] sm:$0xf]
  %v10894 = vld [vmem:[%s6645 + $0x140] sm:$0x1]
  %v10895 = vld [vmem:[%s6645 + $0x144] sm:$0xe]
  %v10896 = vld [vmem:[%s6645 + $0x148] sm:$0xf]
  %v10897 = vld [vmem:[%s6645 + $0x14c] sm:$0x1]
  %v10898 = vld [vmem:[%s6645 + $0x150] sm:$0xe]
  %v10899 = vld [vmem:[%s6645 + $0x154] sm:$0xf]
  %v10900 = vld [vmem:[%s6645 + $0x158] sm:$0x1]
  %v10901 = vld [vmem:[%s6645 + $0x15c] sm:$0xe]
  %v10902 = vld [vmem:[%s6645 + $0x160] sm:$0xf]
  %v10903 = vld [vmem:[%s6645 + $0x164] sm:$0x1]
  %v10904 = vld [vmem:[%s6645 + $0x168] sm:$0xe]
  %v10905 = vld [vmem:[%s6645 + $0x16c] sm:$0xf]
  %v10906 = vld [vmem:[%s6645 + $0x170] sm:$0x1]
  %v10907 = vld [vmem:[%s6645 + $0x174] sm:$0xe]
  %v10908 = vld [vmem:[%s6645 + $0x178] sm:$0xf]
  %v10909 = vld [vmem:[%s6645 + $0x17c] sm:$0x1]
  %v10910 = vld [vmem:[%s6645 + $0x180] sm:$0xe]
  %v10911 = vld [vmem:[%s6645 + $0x184] sm:$0xf]
  %v10912 = vld [vmem:[%s6645 + $0x188] sm:$0x1]
  %v10913 = vld [vmem:[%s6645 + $0x18c] sm:$0xe]
  %v10914 = vld [vmem:[%s6645 + $0x190] sm:$0xf]
  %v10915 = vld [vmem:[%s6645 + $0x194] sm:$0x1]
  %v11012 = vunpack.c.l.b16 %v10820
  %v11013 = vunpack.c.l.b16 %v10821
  %v11014 = vunpack.c.l.b16 %v10822
  %v11015 = vunpack.c.l.b16 %v10823
  %v11016 = vunpack.c.l.b16 %v10824
  %v11017 = vunpack.c.l.b16 %v10825
  %v11018 = vunpack.c.l.b16 %v10826
  %v11019 = vunpack.c.l.b16 %v10827
  %v11020 = vunpack.c.l.b16 %v10828
  %v11021 = vunpack.c.l.b16 %v10829
  %v11022 = vunpack.c.l.b16 %v10830
  %v11023 = vunpack.c.l.b16 %v10831
  %v11024 = vunpack.c.l.b16 %v10832
  %v11025 = vunpack.c.l.b16 %v10833
  %v11026 = vunpack.c.l.b16 %v10834
  %v11027 = vunpack.c.l.b16 %v10835
  %v11028 = vunpack.c.l.b16 %v10836
  %v11029 = vunpack.c.l.b16 %v10837
  %v11030 = vunpack.c.l.b16 %v10838
  %v11031 = vunpack.c.l.b16 %v10839
  %v11032 = vunpack.c.l.b16 %v10840
  %v11033 = vunpack.c.l.b16 %v10841
  %v11034 = vunpack.c.l.b16 %v10842
  %v11035 = vunpack.c.l.b16 %v10843
  %v11036 = vunpack.c.l.b16 %v10844
  %v11037 = vunpack.c.l.b16 %v10845
  %v11038 = vunpack.c.l.b16 %v10846
  %v11039 = vunpack.c.l.b16 %v10847
  %v11040 = vunpack.c.l.b16 %v10848
  %v11041 = vunpack.c.l.b16 %v10849
  %v11042 = vunpack.c.l.b16 %v10850
  %v11043 = vunpack.c.l.b16 %v10851
  %v11044 = vunpack.c.l.b16 %v10852
  %v11045 = vunpack.c.l.b16 %v10853
  %v11046 = vunpack.c.l.b16 %v10854
  %v11047 = vunpack.c.l.b16 %v10855
  %v11048 = vunpack.c.l.b16 %v10856
  %v11049 = vunpack.c.l.b16 %v10857
  %v11050 = vunpack.c.l.b16 %v10858
  %v11051 = vunpack.c.l.b16 %v10859
  %v11052 = vunpack.c.l.b16 %v10860
  %v11053 = vunpack.c.l.b16 %v10861
  %v11054 = vunpack.c.l.b16 %v10862
  %v11055 = vunpack.c.l.b16 %v10863
  %v11056 = vunpack.c.l.b16 %v10864
  %v11057 = vunpack.c.l.b16 %v10865
  %v11058 = vunpack.c.l.b16 %v10866
  %v11059 = vunpack.c.l.b16 %v10867
  %v11060 = vunpack.c.l.b16 %v10868
  %v11061 = vunpack.c.l.b16 %v10869
  %v11062 = vunpack.c.l.b16 %v10870
  %v11063 = vunpack.c.l.b16 %v10871
  %v11064 = vunpack.c.l.b16 %v10872
  %v11065 = vunpack.c.l.b16 %v10873
  %v11066 = vunpack.c.l.b16 %v10874
  %v11067 = vunpack.c.l.b16 %v10875
  %v11068 = vunpack.c.l.b16 %v10876
  %v11069 = vunpack.c.l.b16 %v10877
  %v11070 = vunpack.c.l.b16 %v10878
  %v11071 = vunpack.c.l.b16 %v10879
  %v11072 = vunpack.c.l.b16 %v10880
  %v11073 = vunpack.c.l.b16 %v10881
  %v11074 = vunpack.c.l.b16 %v10882
  %v11075 = vunpack.c.l.b16 %v10883
  %v11076 = vunpack.c.l.b16 %v10884
  %v11077 = vunpack.c.l.b16 %v10885
  %v11078 = vunpack.c.l.b16 %v10886
  %v11079 = vunpack.c.l.b16 %v10887
  %v11080 = vunpack.c.l.b16 %v10888
  %v11081 = vunpack.c.l.b16 %v10889
  %v11082 = vunpack.c.l.b16 %v10890
  %v11083 = vunpack.c.l.b16 %v10891
  %v11084 = vunpack.c.l.b16 %v10892
  %v11085 = vunpack.c.l.b16 %v10893
  %v11086 = vunpack.c.l.b16 %v10894
  %v11087 = vunpack.c.l.b16 %v10895
  %v11088 = vunpack.c.l.b16 %v10896
  %v11089 = vunpack.c.l.b16 %v10897
  %v11090 = vunpack.c.l.b16 %v10898
  %v11091 = vunpack.c.l.b16 %v10899
  %v11092 = vunpack.c.l.b16 %v10900
  %v11093 = vunpack.c.l.b16 %v10901
  %v11094 = vunpack.c.l.b16 %v10902
  %v11095 = vunpack.c.l.b16 %v10903
  %v11096 = vunpack.c.l.b16 %v10904
  %v11097 = vunpack.c.l.b16 %v10905
  %v11098 = vunpack.c.l.b16 %v10906
  %v11099 = vunpack.c.l.b16 %v10907
  %v11100 = vunpack.c.l.b16 %v10908
  %v11101 = vunpack.c.l.b16 %v10909
  %v11102 = vunpack.c.l.b16 %v10910
  %v11103 = vunpack.c.l.b16 %v10911
  %v11104 = vunpack.c.l.b16 %v10912
  %v11105 = vunpack.c.l.b16 %v10913
  %v11106 = vunpack.c.l.b16 %v10914
  %v11107 = vunpack.c.l.b16 %v10915
  %v11108 = vpack.c.b16 %v11013, %v11012
  %v11109 = vpack.c.b16 %v11014, %v11014
  %v11110 = vpack.c.b16 %v11016, %v11015
  %v11111 = vpack.c.b16 %v11017, %v11017
  %v11112 = vpack.c.b16 %v11019, %v11018
  %v11113 = vpack.c.b16 %v11020, %v11020
  %v11114 = vpack.c.b16 %v11022, %v11021
  %v11115 = vpack.c.b16 %v11023, %v11023
  %v11116 = vpack.c.b16 %v11025, %v11024
  %v11117 = vpack.c.b16 %v11026, %v11026
  %v11118 = vpack.c.b16 %v11028, %v11027
  %v11119 = vpack.c.b16 %v11029, %v11029
  %v11120 = vpack.c.b16 %v11031, %v11030
  %v11121 = vpack.c.b16 %v11032, %v11032
  %v11122 = vpack.c.b16 %v11034, %v11033
  %v11123 = vpack.c.b16 %v11035, %v11035
  %v11124 = vpack.c.b16 %v11037, %v11036
  %v11125 = vpack.c.b16 %v11038, %v11038
  %v11126 = vpack.c.b16 %v11040, %v11039
  %v11127 = vpack.c.b16 %v11041, %v11041
  %v11128 = vpack.c.b16 %v11043, %v11042
  %v11129 = vpack.c.b16 %v11044, %v11044
  %v11130 = vpack.c.b16 %v11046, %v11045
  %v11131 = vpack.c.b16 %v11047, %v11047
  %v11132 = vpack.c.b16 %v11049, %v11048
  %v11133 = vpack.c.b16 %v11050, %v11050
  %v11134 = vpack.c.b16 %v11052, %v11051
  %v11135 = vpack.c.b16 %v11053, %v11053
  %v11136 = vpack.c.b16 %v11055, %v11054
  %v11137 = vpack.c.b16 %v11056, %v11056
  %v11138 = vpack.c.b16 %v11058, %v11057
  %v11139 = vpack.c.b16 %v11059, %v11059
  %v11140 = vpack.c.b16 %v11061, %v11060
  %v11141 = vpack.c.b16 %v11062, %v11062
  %v11142 = vpack.c.b16 %v11064, %v11063
  %v11143 = vpack.c.b16 %v11065, %v11065
  %v11144 = vpack.c.b16 %v11067, %v11066
  %v11145 = vpack.c.b16 %v11068, %v11068
  %v11146 = vpack.c.b16 %v11070, %v11069
  %v11147 = vpack.c.b16 %v11071, %v11071
  %v11148 = vpack.c.b16 %v11073, %v11072
  %v11149 = vpack.c.b16 %v11074, %v11074
  %v11150 = vpack.c.b16 %v11076, %v11075
  %v11151 = vpack.c.b16 %v11077, %v11077
  %v11152 = vpack.c.b16 %v11079, %v11078
  %v11153 = vpack.c.b16 %v11080, %v11080
  %v11154 = vpack.c.b16 %v11082, %v11081
  %v11155 = vpack.c.b16 %v11083, %v11083
  %v11156 = vpack.c.b16 %v11085, %v11084
  %v11157 = vpack.c.b16 %v11086, %v11086
  %v11158 = vpack.c.b16 %v11088, %v11087
  %v11159 = vpack.c.b16 %v11089, %v11089
  %v11160 = vpack.c.b16 %v11091, %v11090
  %v11161 = vpack.c.b16 %v11092, %v11092
  %v11162 = vpack.c.b16 %v11094, %v11093
  %v11163 = vpack.c.b16 %v11095, %v11095
  %v11164 = vpack.c.b16 %v11097, %v11096
  %v11165 = vpack.c.b16 %v11098, %v11098
  %v11166 = vpack.c.b16 %v11100, %v11099
  %v11167 = vpack.c.b16 %v11101, %v11101
  %v11168 = vpack.c.b16 %v11103, %v11102
  %v11169 = vpack.c.b16 %v11104, %v11104
  %v11170 = vpack.c.b16 %v11106, %v11105
  %v11171 = vpack.c.b16 %v11107, %v11107
  %v11172 = vrot.slane %v11108, 1
  %v11173 = vrot.slane %v11109, 1
  %v11174 = vsel %vm1528, %v11172, %v11173
  %v11175 = vrot.slane %v11110, 1
  %v11176 = vrot.slane %v11111, 1
  %v11177 = vsel %vm1528, %v11175, %v11176
  %v11178 = vrot.slane %v11112, 1
  %v11179 = vrot.slane %v11113, 1
  %v11180 = vsel %vm1528, %v11178, %v11179
  %v11181 = vrot.slane %v11114, 1
  %v11182 = vrot.slane %v11115, 1
  %v11183 = vsel %vm1528, %v11181, %v11182
  %v11184 = vrot.slane %v11116, 1
  %v11185 = vrot.slane %v11117, 1
  %v11186 = vsel %vm1528, %v11184, %v11185
  %v11187 = vrot.slane %v11118, 1
  %v11188 = vrot.slane %v11119, 1
  %v11189 = vsel %vm1528, %v11187, %v11188
  %v11190 = vrot.slane %v11120, 1
  %v11191 = vrot.slane %v11121, 1
  %v11192 = vsel %vm1528, %v11190, %v11191
  %v11193 = vrot.slane %v11122, 1
  %v11194 = vrot.slane %v11123, 1
  %v11195 = vsel %vm1528, %v11193, %v11194
  %v11196 = vrot.slane %v11124, 1
  %v11197 = vrot.slane %v11125, 1
  %v11198 = vsel %vm1528, %v11196, %v11197
  %v11199 = vrot.slane %v11126, 1
  %v11200 = vrot.slane %v11127, 1
  %v11201 = vsel %vm1528, %v11199, %v11200
  %v11202 = vrot.slane %v11128, 1
  %v11203 = vrot.slane %v11129, 1
  %v11204 = vsel %vm1528, %v11202, %v11203
  %v11205 = vrot.slane %v11130, 1
  %v11206 = vrot.slane %v11131, 1
  %v11207 = vsel %vm1528, %v11205, %v11206
  %v11208 = vrot.slane %v11132, 1
  %v11209 = vrot.slane %v11133, 1
  %v11210 = vsel %vm1528, %v11208, %v11209
  %v11211 = vrot.slane %v11134, 1
  %v11212 = vrot.slane %v11135, 1
  %v11213 = vsel %vm1528, %v11211, %v11212
  %v11214 = vrot.slane %v11136, 1
  %v11215 = vrot.slane %v11137, 1
  %v11216 = vsel %vm1528, %v11214, %v11215
  %v11217 = vrot.slane %v11138, 1
  %v11218 = vrot.slane %v11139, 1
  %v11219 = vsel %vm1528, %v11217, %v11218
  %v11220 = vrot.slane %v11140, 1
  %v11221 = vrot.slane %v11141, 1
  %v11222 = vsel %vm1528, %v11220, %v11221
  %v11223 = vrot.slane %v11142, 1
  %v11224 = vrot.slane %v11143, 1
  %v11225 = vsel %vm1528, %v11223, %v11224
  %v11226 = vrot.slane %v11144, 1
  %v11227 = vrot.slane %v11145, 1
  %v11228 = vsel %vm1528, %v11226, %v11227
  %v11229 = vrot.slane %v11146, 1
  %v11230 = vrot.slane %v11147, 1
  %v11231 = vsel %vm1528, %v11229, %v11230
  %v11232 = vrot.slane %v11148, 1
  %v11233 = vrot.slane %v11149, 1
  %v11234 = vsel %vm1528, %v11232, %v11233
  %v11235 = vrot.slane %v11150, 1
  %v11236 = vrot.slane %v11151, 1
  %v11237 = vsel %vm1528, %v11235, %v11236
  %v11238 = vrot.slane %v11152, 1
  %v11239 = vrot.slane %v11153, 1
  %v11240 = vsel %vm1528, %v11238, %v11239
  %v11241 = vrot.slane %v11154, 1
  %v11242 = vrot.slane %v11155, 1
  %v11243 = vsel %vm1528, %v11241, %v11242
  %v11244 = vrot.slane %v11156, 1
  %v11245 = vrot.slane %v11157, 1
  %v11246 = vsel %vm1528, %v11244, %v11245
  %v11247 = vrot.slane %v11158, 1
  %v11248 = vrot.slane %v11159, 1
  %v11249 = vsel %vm1528, %v11247, %v11248
  %v11250 = vrot.slane %v11160, 1
  %v11251 = vrot.slane %v11161, 1
  %v11252 = vsel %vm1528, %v11250, %v11251
  %v11253 = vrot.slane %v11162, 1
  %v11254 = vrot.slane %v11163, 1
  %v11255 = vsel %vm1528, %v11253, %v11254
  %v11256 = vrot.slane %v11164, 1
  %v11257 = vrot.slane %v11165, 1
  %v11258 = vsel %vm1528, %v11256, %v11257
  %v11259 = vrot.slane %v11166, 1
  %v11260 = vrot.slane %v11167, 1
  %v11261 = vsel %vm1528, %v11259, %v11260
  %v11262 = vrot.slane %v11168, 1
  %v11263 = vrot.slane %v11169, 1
  %v11264 = vsel %vm1528, %v11262, %v11263
  %v11265 = vrot.slane %v11170, 1
  %v11266 = vrot.slane %v11171, 1
  %v11267 = vsel %vm1528, %v11265, %v11266
  %11268 = vrot.lane.b32.xlu0 %v11174, 40
  %v11269 = vpop.permute.xlu0 %11268
  %11270 = vrot.lane.b32.xlu0 %v11177, 40
  %v11271 = vpop.permute.xlu0 %11270
  %11272 = vrot.lane.b32.xlu0 %v11180, 40
  %v11273 = vpop.permute.xlu0 %11272
  %11274 = vrot.lane.b32.xlu0 %v11183, 40
  %v11275 = vpop.permute.xlu0 %11274
  %11276 = vrot.lane.b32.xlu0 %v11186, 40
  %v11277 = vpop.permute.xlu0 %11276
  %11278 = vrot.lane.b32.xlu0 %v11189, 40
  %v11279 = vpop.permute.xlu0 %11278
  %11280 = vrot.lane.b32.xlu0 %v11192, 40
  %v11281 = vpop.permute.xlu0 %11280
  %11282 = vrot.lane.b32.xlu0 %v11195, 40
  %v11283 = vpop.permute.xlu0 %11282
  %11284 = vrot.lane.b32.xlu0 %v11198, 40
  %v11285 = vpop.permute.xlu0 %11284
  %11286 = vrot.lane.b32.xlu0 %v11201, 40
  %v11287 = vpop.permute.xlu0 %11286
  %11288 = vrot.lane.b32.xlu0 %v11204, 40
  %v11289 = vpop.permute.xlu0 %11288
  %11290 = vrot.lane.b32.xlu0 %v11207, 40
  %v11291 = vpop.permute.xlu0 %11290
  %11292 = vrot.lane.b32.xlu0 %v11210, 40
  %v11293 = vpop.permute.xlu0 %11292
  %11294 = vrot.lane.b32.xlu0 %v11213, 40
  %v11295 = vpop.permute.xlu0 %11294
  %11296 = vrot.lane.b32.xlu0 %v11216, 40
  %v11297 = vpop.permute.xlu0 %11296
  %11298 = vrot.lane.b32.xlu0 %v11219, 40
  %v11299 = vpop.permute.xlu0 %11298
  %11300 = vrot.lane.b32.xlu0 %v11222, 40
  %v11301 = vpop.permute.xlu0 %11300
  %11302 = vrot.lane.b32.xlu0 %v11225, 40
  %v11303 = vpop.permute.xlu0 %11302
  %11304 = vrot.lane.b32.xlu0 %v11228, 40
  %v11305 = vpop.permute.xlu0 %11304
  %11306 = vrot.lane.b32.xlu0 %v11231, 40
  %v11307 = vpop.permute.xlu0 %11306
  %11308 = vrot.lane.b32.xlu0 %v11234, 40
  %v11309 = vpop.permute.xlu0 %11308
  %11310 = vrot.lane.b32.xlu0 %v11237, 40
  %v11311 = vpop.permute.xlu0 %11310
  %11312 = vrot.lane.b32.xlu0 %v11240, 40
  %v11313 = vpop.permute.xlu0 %11312
  %11314 = vrot.lane.b32.xlu0 %v11243, 40
  %v11315 = vpop.permute.xlu0 %11314
  %11316 = vrot.lane.b32.xlu0 %v11246, 40
  %v11317 = vpop.permute.xlu0 %11316
  %11318 = vrot.lane.b32.xlu0 %v11249, 40
  %v11319 = vpop.permute.xlu0 %11318
  %11320 = vrot.lane.b32.xlu0 %v11252, 40
  %v11321 = vpop.permute.xlu0 %11320
  %11322 = vrot.lane.b32.xlu0 %v11255, 40
  %v11323 = vpop.permute.xlu0 %11322
  %11324 = vrot.lane.b32.xlu0 %v11258, 40
  %v11325 = vpop.permute.xlu0 %11324
  %11326 = vrot.lane.b32.xlu0 %v11261, 40
  %v11327 = vpop.permute.xlu0 %11326
  %11328 = vrot.lane.b32.xlu0 %v11264, 40
  %v11329 = vpop.permute.xlu0 %11328
  %11330 = vrot.lane.b32.xlu0 %v11267, 40
  %v11331 = vpop.permute.xlu0 %11330
  %vm11364 = vcmask 392512
  %11365 = vst.msk [vmem:[#allocation3] sm:$0xff] %vm11364, %v11269
  %11366 = vst.msk [vmem:[#allocation3 + $0x8] sm:$0xff] %vm11364, %v11271
  %11367 = vst.msk [vmem:[#allocation3 + $0x10] sm:$0xff] %vm11364, %v11273
  %11368 = vst.msk [vmem:[#allocation3 + $0x18] sm:$0xff] %vm11364, %v11275
  %11369 = vst.msk [vmem:[#allocation3 + $0x20] sm:$0xff] %vm11364, %v11277
  %11370 = vst.msk [vmem:[#allocation3 + $0x28] sm:$0xff] %vm11364, %v11279
  %11371 = vst.msk [vmem:[#allocation3 + $0x30] sm:$0xff] %vm11364, %v11281
  %11372 = vst.msk [vmem:[#allocation3 + $0x38] sm:$0xff] %vm11364, %v11283
  %11373 = vst.msk [vmem:[#allocation3 + $0x40] sm:$0xff] %vm11364, %v11285
  %11374 = vst.msk [vmem:[#allocation3 + $0x48] sm:$0xff] %vm11364, %v11287
  %11375 = vst.msk [vmem:[#allocation3 + $0x50] sm:$0xff] %vm11364, %v11289
  %11376 = vst.msk [vmem:[#allocation3 + $0x58] sm:$0xff] %vm11364, %v11291
  %11377 = vst.msk [vmem:[#allocation3 + $0x60] sm:$0xff] %vm11364, %v11293
  %11378 = vst.msk [vmem:[#allocation3 + $0x68] sm:$0xff] %vm11364, %v11295
  %11379 = vst.msk [vmem:[#allocation3 + $0x70] sm:$0xff] %vm11364, %v11297
  %11380 = vst.msk [vmem:[#allocation3 + $0x78] sm:$0xff] %vm11364, %v11299
  %11381 = vst.msk [vmem:[#allocation3 + $0x80] sm:$0xff] %vm11364, %v11301
  %11382 = vst.msk [vmem:[#allocation3 + $0x88] sm:$0xff] %vm11364, %v11303
  %11383 = vst.msk [vmem:[#allocation3 + $0x90] sm:$0xff] %vm11364, %v11305
  %11384 = vst.msk [vmem:[#allocation3 + $0x98] sm:$0xff] %vm11364, %v11307
  %11385 = vst.msk [vmem:[#allocation3 + $0xa0] sm:$0xff] %vm11364, %v11309
  %11386 = vst.msk [vmem:[#allocation3 + $0xa8] sm:$0xff] %vm11364, %v11311
  %11387 = vst.msk [vmem:[#allocation3 + $0xb0] sm:$0xff] %vm11364, %v11313
  %11388 = vst.msk [vmem:[#allocation3 + $0xb8] sm:$0xff] %vm11364, %v11315
  %11389 = vst.msk [vmem:[#allocation3 + $0xc0] sm:$0xff] %vm11364, %v11317
  %11390 = vst.msk [vmem:[#allocation3 + $0xc8] sm:$0xff] %vm11364, %v11319
  %11391 = vst.msk [vmem:[#allocation3 + $0xd0] sm:$0xff] %vm11364, %v11321
  %11392 = vst.msk [vmem:[#allocation3 + $0xd8] sm:$0xff] %vm11364, %v11323
  %11393 = vst.msk [vmem:[#allocation3 + $0xe0] sm:$0xff] %vm11364, %v11325
  %11394 = vst.msk [vmem:[#allocation3 + $0xe8] sm:$0xff] %vm11364, %v11327
  %11395 = vst.msk [vmem:[#allocation3 + $0xf0] sm:$0xff] %vm11364, %v11329
  %11396 = vst.msk [vmem:[#allocation3 + $0xf8] sm:$0xff] %vm11364, %v11331
  %s11397 = scalar_lea.vmem [#allocation4], 24
  %v11398 = vld [vmem:[%s11397] sm:$0xf]
  %v11399 = vld [vmem:[%s11397 + $0x4] sm:$0xf]
  %v11400 = vld [vmem:[%s11397 + $0xc] sm:$0xf]
  %v11401 = vld [vmem:[%s11397 + $0x10] sm:$0xf]
  %v11402 = vld [vmem:[%s11397 + $0x18] sm:$0xf]
  %v11403 = vld [vmem:[%s11397 + $0x1c] sm:$0xf]
  %v11404 = vld [vmem:[%s11397 + $0x24] sm:$0xf]
  %v11405 = vld [vmem:[%s11397 + $0x28] sm:$0xf]
  %v11406 = vld [vmem:[%s11397 + $0x30] sm:$0xf]
  %v11407 = vld [vmem:[%s11397 + $0x34] sm:$0xf]
  %v11408 = vld [vmem:[%s11397 + $0x3c] sm:$0xf]
  %v11409 = vld [vmem:[%s11397 + $0x40] sm:$0xf]
  %v11410 = vld [vmem:[%s11397 + $0x48] sm:$0xf]
  %v11411 = vld [vmem:[%s11397 + $0x4c] sm:$0xf]
  %v11412 = vld [vmem:[%s11397 + $0x54] sm:$0xf]
  %v11413 = vld [vmem:[%s11397 + $0x58] sm:$0xf]
  %v11414 = vld [vmem:[%s11397 + $0x60] sm:$0xf]
  %v11415 = vld [vmem:[%s11397 + $0x64] sm:$0xf]
  %v11416 = vld [vmem:[%s11397 + $0x6c] sm:$0xf]
  %v11417 = vld [vmem:[%s11397 + $0x70] sm:$0xf]
  %v11418 = vld [vmem:[%s11397 + $0x78] sm:$0xf]
  %v11419 = vld [vmem:[%s11397 + $0x7c] sm:$0xf]
  %v11420 = vld [vmem:[%s11397 + $0x84] sm:$0xf]
  %v11421 = vld [vmem:[%s11397 + $0x88] sm:$0xf]
  %v11422 = vld [vmem:[%s11397 + $0x90] sm:$0xf]
  %v11423 = vld [vmem:[%s11397 + $0x94] sm:$0xf]
  %v11424 = vld [vmem:[%s11397 + $0x9c] sm:$0xf]
  %v11425 = vld [vmem:[%s11397 + $0xa0] sm:$0xf]
  %v11426 = vld [vmem:[%s11397 + $0xa8] sm:$0xf]
  %v11427 = vld [vmem:[%s11397 + $0xac] sm:$0xf]
  %v11428 = vld [vmem:[%s11397 + $0xb4] sm:$0xf]
  %v11429 = vld [vmem:[%s11397 + $0xb8] sm:$0xf]
  %v11430 = vld [vmem:[%s11397 + $0xd8] sm:$0xf]
  %v11431 = vld [vmem:[%s11397 + $0xdc] sm:$0xf]
  %v11432 = vld [vmem:[%s11397 + $0xe4] sm:$0xf]
  %v11433 = vld [vmem:[%s11397 + $0xe8] sm:$0xf]
  %v11434 = vld [vmem:[%s11397 + $0xf0] sm:$0xf]
  %v11435 = vld [vmem:[%s11397 + $0xf4] sm:$0xf]
  %v11436 = vld [vmem:[%s11397 + $0xfc] sm:$0xf]
  %v11437 = vld [vmem:[%s11397 + $0x100] sm:$0xf]
  %v11438 = vld [vmem:[%s11397 + $0x108] sm:$0xf]
  %v11439 = vld [vmem:[%s11397 + $0x10c] sm:$0xf]
  %v11440 = vld [vmem:[%s11397 + $0x114] sm:$0xf]
  %v11441 = vld [vmem:[%s11397 + $0x118] sm:$0xf]
  %v11442 = vld [vmem:[%s11397 + $0x120] sm:$0xf]
  %v11443 = vld [vmem:[%s11397 + $0x124] sm:$0xf]
  %v11444 = vld [vmem:[%s11397 + $0x12c] sm:$0xf]
  %v11445 = vld [vmem:[%s11397 + $0x130] sm:$0xf]
  %v11446 = vld [vmem:[%s11397 + $0x138] sm:$0xf]
  %v11447 = vld [vmem:[%s11397 + $0x13c] sm:$0xf]
  %v11448 = vld [vmem:[%s11397 + $0x144] sm:$0xf]
  %v11449 = vld [vmem:[%s11397 + $0x148] sm:$0xf]
  %v11450 = vld [vmem:[%s11397 + $0x150] sm:$0xf]
  %v11451 = vld [vmem:[%s11397 + $0x154] sm:$0xf]
  %v11452 = vld [vmem:[%s11397 + $0x15c] sm:$0xf]
  %v11453 = vld [vmem:[%s11397 + $0x160] sm:$0xf]
  %v11454 = vld [vmem:[%s11397 + $0x168] sm:$0xf]
  %v11455 = vld [vmem:[%s11397 + $0x16c] sm:$0xf]
  %v11456 = vld [vmem:[%s11397 + $0x174] sm:$0xf]
  %v11457 = vld [vmem:[%s11397 + $0x178] sm:$0xf]
  %v11458 = vld [vmem:[%s11397 + $0x180] sm:$0xf]
  %v11459 = vld [vmem:[%s11397 + $0x184] sm:$0xf]
  %v11460 = vld [vmem:[%s11397 + $0x18c] sm:$0xf]
  %v11461 = vld [vmem:[%s11397 + $0x190] sm:$0xf]
  %v11526 = vunpack.c.l.b16 %v11398
  %v11527 = vunpack.c.l.b16 %v11399
  %v11528 = vunpack.c.l.b16 %v11400
  %v11529 = vunpack.c.l.b16 %v11401
  %v11530 = vunpack.c.l.b16 %v11402
  %v11531 = vunpack.c.l.b16 %v11403
  %v11532 = vunpack.c.l.b16 %v11404
  %v11533 = vunpack.c.l.b16 %v11405
  %v11534 = vunpack.c.l.b16 %v11406
  %v11535 = vunpack.c.l.b16 %v11407
  %v11536 = vunpack.c.l.b16 %v11408
  %v11537 = vunpack.c.l.b16 %v11409
  %v11538 = vunpack.c.l.b16 %v11410
  %v11539 = vunpack.c.l.b16 %v11411
  %v11540 = vunpack.c.l.b16 %v11412
  %v11541 = vunpack.c.l.b16 %v11413
  %v11542 = vunpack.c.l.b16 %v11414
  %v11543 = vunpack.c.l.b16 %v11415
  %v11544 = vunpack.c.l.b16 %v11416
  %v11545 = vunpack.c.l.b16 %v11417
  %v11546 = vunpack.c.l.b16 %v11418
  %v11547 = vunpack.c.l.b16 %v11419
  %v11548 = vunpack.c.l.b16 %v11420
  %v11549 = vunpack.c.l.b16 %v11421
  %v11550 = vunpack.c.l.b16 %v11422
  %v11551 = vunpack.c.l.b16 %v11423
  %v11552 = vunpack.c.l.b16 %v11424
  %v11553 = vunpack.c.l.b16 %v11425
  %v11554 = vunpack.c.l.b16 %v11426
  %v11555 = vunpack.c.l.b16 %v11427
  %v11556 = vunpack.c.l.b16 %v11428
  %v11557 = vunpack.c.l.b16 %v11429
  %v11558 = vunpack.c.l.b16 %v11430
  %v11559 = vunpack.c.l.b16 %v11431
  %v11560 = vunpack.c.l.b16 %v11432
  %v11561 = vunpack.c.l.b16 %v11433
  %v11562 = vunpack.c.l.b16 %v11434
  %v11563 = vunpack.c.l.b16 %v11435
  %v11564 = vunpack.c.l.b16 %v11436
  %v11565 = vunpack.c.l.b16 %v11437
  %v11566 = vunpack.c.l.b16 %v11438
  %v11567 = vunpack.c.l.b16 %v11439
  %v11568 = vunpack.c.l.b16 %v11440
  %v11569 = vunpack.c.l.b16 %v11441
  %v11570 = vunpack.c.l.b16 %v11442
  %v11571 = vunpack.c.l.b16 %v11443
  %v11572 = vunpack.c.l.b16 %v11444
  %v11573 = vunpack.c.l.b16 %v11445
  %v11574 = vunpack.c.l.b16 %v11446
  %v11575 = vunpack.c.l.b16 %v11447
  %v11576 = vunpack.c.l.b16 %v11448
  %v11577 = vunpack.c.l.b16 %v11449
  %v11578 = vunpack.c.l.b16 %v11450
  %v11579 = vunpack.c.l.b16 %v11451
  %v11580 = vunpack.c.l.b16 %v11452
  %v11581 = vunpack.c.l.b16 %v11453
  %v11582 = vunpack.c.l.b16 %v11454
  %v11583 = vunpack.c.l.b16 %v11455
  %v11584 = vunpack.c.l.b16 %v11456
  %v11585 = vunpack.c.l.b16 %v11457
  %v11586 = vunpack.c.l.b16 %v11458
  %v11587 = vunpack.c.l.b16 %v11459
  %v11588 = vunpack.c.l.b16 %v11460
  %v11589 = vunpack.c.l.b16 %v11461
  %v11590 = vpack.c.b16 %v11527, %v11526
  %v11591 = vpack.c.b16 %v11529, %v11528
  %v11592 = vpack.c.b16 %v11531, %v11530
  %v11593 = vpack.c.b16 %v11533, %v11532
  %v11594 = vpack.c.b16 %v11535, %v11534
  %v11595 = vpack.c.b16 %v11537, %v11536
  %v11596 = vpack.c.b16 %v11539, %v11538
  %v11597 = vpack.c.b16 %v11541, %v11540
  %v11598 = vpack.c.b16 %v11543, %v11542
  %v11599 = vpack.c.b16 %v11545, %v11544
  %v11600 = vpack.c.b16 %v11547, %v11546
  %v11601 = vpack.c.b16 %v11549, %v11548
  %v11602 = vpack.c.b16 %v11551, %v11550
  %v11603 = vpack.c.b16 %v11553, %v11552
  %v11604 = vpack.c.b16 %v11555, %v11554
  %v11605 = vpack.c.b16 %v11557, %v11556
  %v11606 = vpack.c.b16 %v11559, %v11558
  %v11607 = vpack.c.b16 %v11561, %v11560
  %v11608 = vpack.c.b16 %v11563, %v11562
  %v11609 = vpack.c.b16 %v11565, %v11564
  %v11610 = vpack.c.b16 %v11567, %v11566
  %v11611 = vpack.c.b16 %v11569, %v11568
  %v11612 = vpack.c.b16 %v11571, %v11570
  %v11613 = vpack.c.b16 %v11573, %v11572
  %v11614 = vpack.c.b16 %v11575, %v11574
  %v11615 = vpack.c.b16 %v11577, %v11576
  %v11616 = vpack.c.b16 %v11579, %v11578
  %v11617 = vpack.c.b16 %v11581, %v11580
  %v11618 = vpack.c.b16 %v11583, %v11582
  %v11619 = vpack.c.b16 %v11585, %v11584
  %v11620 = vpack.c.b16 %v11587, %v11586
  %v11621 = vpack.c.b16 %v11589, %v11588
  %11622 = vrot.lane.b32.xlu0 %v11590, 48
  %v11623 = vpop.permute.xlu0 %11622
  %11624 = vrot.lane.b32.xlu0 %v11591, 48
  %v11625 = vpop.permute.xlu0 %11624
  %11626 = vrot.lane.b32.xlu0 %v11592, 48
  %v11627 = vpop.permute.xlu0 %11626
  %11628 = vrot.lane.b32.xlu0 %v11593, 48
  %v11629 = vpop.permute.xlu0 %11628
  %11630 = vrot.lane.b32.xlu0 %v11594, 48
  %v11631 = vpop.permute.xlu0 %11630
  %11632 = vrot.lane.b32.xlu0 %v11595, 48
  %v11633 = vpop.permute.xlu0 %11632
  %11634 = vrot.lane.b32.xlu0 %v11596, 48
  %v11635 = vpop.permute.xlu0 %11634
  %11636 = vrot.lane.b32.xlu0 %v11597, 48
  %v11637 = vpop.permute.xlu0 %11636
  %11638 = vrot.lane.b32.xlu0 %v11598, 48
  %v11639 = vpop.permute.xlu0 %11638
  %11640 = vrot.lane.b32.xlu0 %v11599, 48
  %v11641 = vpop.permute.xlu0 %11640
  %11642 = vrot.lane.b32.xlu0 %v11600, 48
  %v11643 = vpop.permute.xlu0 %11642
  %11644 = vrot.lane.b32.xlu0 %v11601, 48
  %v11645 = vpop.permute.xlu0 %11644
  %11646 = vrot.lane.b32.xlu0 %v11602, 48
  %v11647 = vpop.permute.xlu0 %11646
  %11648 = vrot.lane.b32.xlu0 %v11603, 48
  %v11649 = vpop.permute.xlu0 %11648
  %11650 = vrot.lane.b32.xlu0 %v11604, 48
  %v11651 = vpop.permute.xlu0 %11650
  %11652 = vrot.lane.b32.xlu0 %v11605, 48
  %v11653 = vpop.permute.xlu0 %11652
  %11654 = vrot.lane.b32.xlu0 %v11606, 48
  %v11655 = vpop.permute.xlu0 %11654
  %11656 = vrot.lane.b32.xlu0 %v11607, 48
  %v11657 = vpop.permute.xlu0 %11656
  %11658 = vrot.lane.b32.xlu0 %v11608, 48
  %v11659 = vpop.permute.xlu0 %11658
  %11660 = vrot.lane.b32.xlu0 %v11609, 48
  %v11661 = vpop.permute.xlu0 %11660
  %11662 = vrot.lane.b32.xlu0 %v11610, 48
  %v11663 = vpop.permute.xlu0 %11662
  %11664 = vrot.lane.b32.xlu0 %v11611, 48
  %v11665 = vpop.permute.xlu0 %11664
  %11666 = vrot.lane.b32.xlu0 %v11612, 48
  %v11667 = vpop.permute.xlu0 %11666
  %11668 = vrot.lane.b32.xlu0 %v11613, 48
  %v11669 = vpop.permute.xlu0 %11668
  %11670 = vrot.lane.b32.xlu0 %v11614, 48
  %v11671 = vpop.permute.xlu0 %11670
  %11672 = vrot.lane.b32.xlu0 %v11615, 48
  %v11673 = vpop.permute.xlu0 %11672
  %11674 = vrot.lane.b32.xlu0 %v11616, 48
  %v11675 = vpop.permute.xlu0 %11674
  %11676 = vrot.lane.b32.xlu0 %v11617, 48
  %v11677 = vpop.permute.xlu0 %11676
  %11678 = vrot.lane.b32.xlu0 %v11618, 48
  %v11679 = vpop.permute.xlu0 %11678
  %11680 = vrot.lane.b32.xlu0 %v11619, 48
  %v11681 = vpop.permute.xlu0 %11680
  %11682 = vrot.lane.b32.xlu0 %v11620, 48
  %v11683 = vpop.permute.xlu0 %11682
  %11684 = vrot.lane.b32.xlu0 %v11621, 48
  %v11685 = vpop.permute.xlu0 %11684
  %vm11718 = vcmask 458112
  %11719 = vst.msk [vmem:[#allocation3] sm:$0xff] %vm11718, %v11623
  %11720 = vst.msk [vmem:[#allocation3 + $0x8] sm:$0xff] %vm11718, %v11625
  %11721 = vst.msk [vmem:[#allocation3 + $0x10] sm:$0xff] %vm11718, %v11627
  %11722 = vst.msk [vmem:[#allocation3 + $0x18] sm:$0xff] %vm11718, %v11629
  %11723 = vst.msk [vmem:[#allocation3 + $0x20] sm:$0xff] %vm11718, %v11631
  %11724 = vst.msk [vmem:[#allocation3 + $0x28] sm:$0xff] %vm11718, %v11633
  %11725 = vst.msk [vmem:[#allocation3 + $0x30] sm:$0xff] %vm11718, %v11635
  %11726 = vst.msk [vmem:[#allocation3 + $0x38] sm:$0xff] %vm11718, %v11637
  %11727 = vst.msk [vmem:[#allocation3 + $0x40] sm:$0xff] %vm11718, %v11639
  %11728 = vst.msk [vmem:[#allocation3 + $0x48] sm:$0xff] %vm11718, %v11641
  %11729 = vst.msk [vmem:[#allocation3 + $0x50] sm:$0xff] %vm11718, %v11643
  %11730 = vst.msk [vmem:[#allocation3 + $0x58] sm:$0xff] %vm11718, %v11645
  %11731 = vst.msk [vmem:[#allocation3 + $0x60] sm:$0xff] %vm11718, %v11647
  %11732 = vst.msk [vmem:[#allocation3 + $0x68] sm:$0xff] %vm11718, %v11649
  %11733 = vst.msk [vmem:[#allocation3 + $0x70] sm:$0xff] %vm11718, %v11651
  %11734 = vst.msk [vmem:[#allocation3 + $0x78] sm:$0xff] %vm11718, %v11653
  %11735 = vst.msk [vmem:[#allocation3 + $0x80] sm:$0xff] %vm11718, %v11655
  %11736 = vst.msk [vmem:[#allocation3 + $0x88] sm:$0xff] %vm11718, %v11657
  %11737 = vst.msk [vmem:[#allocation3 + $0x90] sm:$0xff] %vm11718, %v11659
  %11738 = vst.msk [vmem:[#allocation3 + $0x98] sm:$0xff] %vm11718, %v11661
  %11739 = vst.msk [vmem:[#allocation3 + $0xa0] sm:$0xff] %vm11718, %v11663
  %11740 = vst.msk [vmem:[#allocation3 + $0xa8] sm:$0xff] %vm11718, %v11665
  %11741 = vst.msk [vmem:[#allocation3 + $0xb0] sm:$0xff] %vm11718, %v11667
  %11742 = vst.msk [vmem:[#allocation3 + $0xb8] sm:$0xff] %vm11718, %v11669
  %11743 = vst.msk [vmem:[#allocation3 + $0xc0] sm:$0xff] %vm11718, %v11671
  %11744 = vst.msk [vmem:[#allocation3 + $0xc8] sm:$0xff] %vm11718, %v11673
  %11745 = vst.msk [vmem:[#allocation3 + $0xd0] sm:$0xff] %vm11718, %v11675
  %11746 = vst.msk [vmem:[#allocation3 + $0xd8] sm:$0xff] %vm11718, %v11677
  %11747 = vst.msk [vmem:[#allocation3 + $0xe0] sm:$0xff] %vm11718, %v11679
  %11748 = vst.msk [vmem:[#allocation3 + $0xe8] sm:$0xff] %vm11718, %v11681
  %11749 = vst.msk [vmem:[#allocation3 + $0xf0] sm:$0xff] %vm11718, %v11683
  %11750 = vst.msk [vmem:[#allocation3 + $0xf8] sm:$0xff] %vm11718, %v11685
  %v11751 = vld [vmem:[%s11397] sm:$0xf]
  %v11752 = vld [vmem:[%s11397 + $0x4] sm:$0xf]
  %v11753 = vld [vmem:[%s11397 + $0x8] sm:$0x1]
  %v11754 = vld [vmem:[%s11397 + $0xc] sm:$0xf]
  %v11755 = vld [vmem:[%s11397 + $0x10] sm:$0xf]
  %v11756 = vld [vmem:[%s11397 + $0x14] sm:$0x1]
  %v11757 = vld [vmem:[%s11397 + $0x18] sm:$0xf]
  %v11758 = vld [vmem:[%s11397 + $0x1c] sm:$0xf]
  %v11759 = vld [vmem:[%s11397 + $0x20] sm:$0x1]
  %v11760 = vld [vmem:[%s11397 + $0x24] sm:$0xf]
  %v11761 = vld [vmem:[%s11397 + $0x28] sm:$0xf]
  %v11762 = vld [vmem:[%s11397 + $0x2c] sm:$0x1]
  %v11763 = vld [vmem:[%s11397 + $0x30] sm:$0xf]
  %v11764 = vld [vmem:[%s11397 + $0x34] sm:$0xf]
  %v11765 = vld [vmem:[%s11397 + $0x38] sm:$0x1]
  %v11766 = vld [vmem:[%s11397 + $0x3c] sm:$0xf]
  %v11767 = vld [vmem:[%s11397 + $0x40] sm:$0xf]
  %v11768 = vld [vmem:[%s11397 + $0x44] sm:$0x1]
  %v11769 = vld [vmem:[%s11397 + $0x48] sm:$0xf]
  %v11770 = vld [vmem:[%s11397 + $0x4c] sm:$0xf]
  %v11771 = vld [vmem:[%s11397 + $0x50] sm:$0x1]
  %v11772 = vld [vmem:[%s11397 + $0x54] sm:$0xf]
  %v11773 = vld [vmem:[%s11397 + $0x58] sm:$0xf]
  %v11774 = vld [vmem:[%s11397 + $0x5c] sm:$0x1]
  %v11775 = vld [vmem:[%s11397 + $0x60] sm:$0xf]
  %v11776 = vld [vmem:[%s11397 + $0x64] sm:$0xf]
  %v11777 = vld [vmem:[%s11397 + $0x68] sm:$0x1]
  %v11778 = vld [vmem:[%s11397 + $0x6c] sm:$0xf]
  %v11779 = vld [vmem:[%s11397 + $0x70] sm:$0xf]
  %v11780 = vld [vmem:[%s11397 + $0x74] sm:$0x1]
  %v11781 = vld [vmem:[%s11397 + $0x78] sm:$0xf]
  %v11782 = vld [vmem:[%s11397 + $0x7c] sm:$0xf]
  %v11783 = vld [vmem:[%s11397 + $0x80] sm:$0x1]
  %v11784 = vld [vmem:[%s11397 + $0x84] sm:$0xf]
  %v11785 = vld [vmem:[%s11397 + $0x88] sm:$0xf]
  %v11786 = vld [vmem:[%s11397 + $0x8c] sm:$0x1]
  %v11787 = vld [vmem:[%s11397 + $0x90] sm:$0xf]
  %v11788 = vld [vmem:[%s11397 + $0x94] sm:$0xf]
  %v11789 = vld [vmem:[%s11397 + $0x98] sm:$0x1]
  %v11790 = vld [vmem:[%s11397 + $0x9c] sm:$0xf]
  %v11791 = vld [vmem:[%s11397 + $0xa0] sm:$0xf]
  %v11792 = vld [vmem:[%s11397 + $0xa4] sm:$0x1]
  %v11793 = vld [vmem:[%s11397 + $0xa8] sm:$0xf]
  %v11794 = vld [vmem:[%s11397 + $0xac] sm:$0xf]
  %v11795 = vld [vmem:[%s11397 + $0xb0] sm:$0x1]
  %v11796 = vld [vmem:[%s11397 + $0xb4] sm:$0xf]
  %v11797 = vld [vmem:[%s11397 + $0xb8] sm:$0xf]
  %v11798 = vld [vmem:[%s11397 + $0xbc] sm:$0x1]
  %v11799 = vld [vmem:[%s11397 + $0xd8] sm:$0xf]
  %v11800 = vld [vmem:[%s11397 + $0xdc] sm:$0xf]
  %v11801 = vld [vmem:[%s11397 + $0xe0] sm:$0x1]
  %v11802 = vld [vmem:[%s11397 + $0xe4] sm:$0xf]
  %v11803 = vld [vmem:[%s11397 + $0xe8] sm:$0xf]
  %v11804 = vld [vmem:[%s11397 + $0xec] sm:$0x1]
  %v11805 = vld [vmem:[%s11397 + $0xf0] sm:$0xf]
  %v11806 = vld [vmem:[%s11397 + $0xf4] sm:$0xf]
  %v11807 = vld [vmem:[%s11397 + $0xf8] sm:$0x1]
  %v11808 = vld [vmem:[%s11397 + $0xfc] sm:$0xf]
  %v11809 = vld [vmem:[%s11397 + $0x100] sm:$0xf]
  %v11810 = vld [vmem:[%s11397 + $0x104] sm:$0x1]
  %v11811 = vld [vmem:[%s11397 + $0x108] sm:$0xf]
  %v11812 = vld [vmem:[%s11397 + $0x10c] sm:$0xf]
  %v11813 = vld [vmem:[%s11397 + $0x110] sm:$0x1]
  %v11814 = vld [vmem:[%s11397 + $0x114] sm:$0xf]
  %v11815 = vld [vmem:[%s11397 + $0x118] sm:$0xf]
  %v11816 = vld [vmem:[%s11397 + $0x11c] sm:$0x1]
  %v11817 = vld [vmem:[%s11397 + $0x120] sm:$0xf]
  %v11818 = vld [vmem:[%s11397 + $0x124] sm:$0xf]
  %v11819 = vld [vmem:[%s11397 + $0x128] sm:$0x1]
  %v11820 = vld [vmem:[%s11397 + $0x12c] sm:$0xf]
  %v11821 = vld [vmem:[%s11397 + $0x130] sm:$0xf]
  %v11822 = vld [vmem:[%s11397 + $0x134] sm:$0x1]
  %v11823 = vld [vmem:[%s11397 + $0x138] sm:$0xf]
  %v11824 = vld [vmem:[%s11397 + $0x13c] sm:$0xf]
  %v11825 = vld [vmem:[%s11397 + $0x140] sm:$0x1]
  %v11826 = vld [vmem:[%s11397 + $0x144] sm:$0xf]
  %v11827 = vld [vmem:[%s11397 + $0x148] sm:$0xf]
  %v11828 = vld [vmem:[%s11397 + $0x14c] sm:$0x1]
  %v11829 = vld [vmem:[%s11397 + $0x150] sm:$0xf]
  %v11830 = vld [vmem:[%s11397 + $0x154] sm:$0xf]
  %v11831 = vld [vmem:[%s11397 + $0x158] sm:$0x1]
  %v11832 = vld [vmem:[%s11397 + $0x15c] sm:$0xf]
  %v11833 = vld [vmem:[%s11397 + $0x160] sm:$0xf]
  %v11834 = vld [vmem:[%s11397 + $0x164] sm:$0x1]
  %v11835 = vld [vmem:[%s11397 + $0x168] sm:$0xf]
  %v11836 = vld [vmem:[%s11397 + $0x16c] sm:$0xf]
  %v11837 = vld [vmem:[%s11397 + $0x170] sm:$0x1]
  %v11838 = vld [vmem:[%s11397 + $0x174] sm:$0xf]
  %v11839 = vld [vmem:[%s11397 + $0x178] sm:$0xf]
  %v11840 = vld [vmem:[%s11397 + $0x17c] sm:$0x1]
  %v11841 = vld [vmem:[%s11397 + $0x180] sm:$0xf]
  %v11842 = vld [vmem:[%s11397 + $0x184] sm:$0xf]
  %v11843 = vld [vmem:[%s11397 + $0x188] sm:$0x1]
  %v11844 = vld [vmem:[%s11397 + $0x18c] sm:$0xf]
  %v11845 = vld [vmem:[%s11397 + $0x190] sm:$0xf]
  %v11846 = vld [vmem:[%s11397 + $0x194] sm:$0x1]
  %v11943 = vunpack.c.l.b16 %v11751
  %v11944 = vunpack.c.l.b16 %v11752
  %v11945 = vunpack.c.l.b16 %v11753
  %v11946 = vunpack.c.l.b16 %v11754
  %v11947 = vunpack.c.l.b16 %v11755
  %v11948 = vunpack.c.l.b16 %v11756
  %v11949 = vunpack.c.l.b16 %v11757
  %v11950 = vunpack.c.l.b16 %v11758
  %v11951 = vunpack.c.l.b16 %v11759
  %v11952 = vunpack.c.l.b16 %v11760
  %v11953 = vunpack.c.l.b16 %v11761
  %v11954 = vunpack.c.l.b16 %v11762
  %v11955 = vunpack.c.l.b16 %v11763
  %v11956 = vunpack.c.l.b16 %v11764
  %v11957 = vunpack.c.l.b16 %v11765
  %v11958 = vunpack.c.l.b16 %v11766
  %v11959 = vunpack.c.l.b16 %v11767
  %v11960 = vunpack.c.l.b16 %v11768
  %v11961 = vunpack.c.l.b16 %v11769
  %v11962 = vunpack.c.l.b16 %v11770
  %v11963 = vunpack.c.l.b16 %v11771
  %v11964 = vunpack.c.l.b16 %v11772
  %v11965 = vunpack.c.l.b16 %v11773
  %v11966 = vunpack.c.l.b16 %v11774
  %v11967 = vunpack.c.l.b16 %v11775
  %v11968 = vunpack.c.l.b16 %v11776
  %v11969 = vunpack.c.l.b16 %v11777
  %v11970 = vunpack.c.l.b16 %v11778
  %v11971 = vunpack.c.l.b16 %v11779
  %v11972 = vunpack.c.l.b16 %v11780
  %v11973 = vunpack.c.l.b16 %v11781
  %v11974 = vunpack.c.l.b16 %v11782
  %v11975 = vunpack.c.l.b16 %v11783
  %v11976 = vunpack.c.l.b16 %v11784
  %v11977 = vunpack.c.l.b16 %v11785
  %v11978 = vunpack.c.l.b16 %v11786
  %v11979 = vunpack.c.l.b16 %v11787
  %v11980 = vunpack.c.l.b16 %v11788
  %v11981 = vunpack.c.l.b16 %v11789
  %v11982 = vunpack.c.l.b16 %v11790
  %v11983 = vunpack.c.l.b16 %v11791
  %v11984 = vunpack.c.l.b16 %v11792
  %v11985 = vunpack.c.l.b16 %v11793
  %v11986 = vunpack.c.l.b16 %v11794
  %v11987 = vunpack.c.l.b16 %v11795
  %v11988 = vunpack.c.l.b16 %v11796
  %v11989 = vunpack.c.l.b16 %v11797
  %v11990 = vunpack.c.l.b16 %v11798
  %v11991 = vunpack.c.l.b16 %v11799
  %v11992 = vunpack.c.l.b16 %v11800
  %v11993 = vunpack.c.l.b16 %v11801
  %v11994 = vunpack.c.l.b16 %v11802
  %v11995 = vunpack.c.l.b16 %v11803
  %v11996 = vunpack.c.l.b16 %v11804
  %v11997 = vunpack.c.l.b16 %v11805
  %v11998 = vunpack.c.l.b16 %v11806
  %v11999 = vunpack.c.l.b16 %v11807
  %v12000 = vunpack.c.l.b16 %v11808
  %v12001 = vunpack.c.l.b16 %v11809
  %v12002 = vunpack.c.l.b16 %v11810
  %v12003 = vunpack.c.l.b16 %v11811
  %v12004 = vunpack.c.l.b16 %v11812
  %v12005 = vunpack.c.l.b16 %v11813
  %v12006 = vunpack.c.l.b16 %v11814
  %v12007 = vunpack.c.l.b16 %v11815
  %v12008 = vunpack.c.l.b16 %v11816
  %v12009 = vunpack.c.l.b16 %v11817
  %v12010 = vunpack.c.l.b16 %v11818
  %v12011 = vunpack.c.l.b16 %v11819
  %v12012 = vunpack.c.l.b16 %v11820
  %v12013 = vunpack.c.l.b16 %v11821
  %v12014 = vunpack.c.l.b16 %v11822
  %v12015 = vunpack.c.l.b16 %v11823
  %v12016 = vunpack.c.l.b16 %v11824
  %v12017 = vunpack.c.l.b16 %v11825
  %v12018 = vunpack.c.l.b16 %v11826
  %v12019 = vunpack.c.l.b16 %v11827
  %v12020 = vunpack.c.l.b16 %v11828
  %v12021 = vunpack.c.l.b16 %v11829
  %v12022 = vunpack.c.l.b16 %v11830
  %v12023 = vunpack.c.l.b16 %v11831
  %v12024 = vunpack.c.l.b16 %v11832
  %v12025 = vunpack.c.l.b16 %v11833
  %v12026 = vunpack.c.l.b16 %v11834
  %v12027 = vunpack.c.l.b16 %v11835
  %v12028 = vunpack.c.l.b16 %v11836
  %v12029 = vunpack.c.l.b16 %v11837
  %v12030 = vunpack.c.l.b16 %v11838
  %v12031 = vunpack.c.l.b16 %v11839
  %v12032 = vunpack.c.l.b16 %v11840
  %v12033 = vunpack.c.l.b16 %v11841
  %v12034 = vunpack.c.l.b16 %v11842
  %v12035 = vunpack.c.l.b16 %v11843
  %v12036 = vunpack.c.l.b16 %v11844
  %v12037 = vunpack.c.l.b16 %v11845
  %v12038 = vunpack.c.l.b16 %v11846
  %v12039 = vpack.c.b16 %v11944, %v11943
  %v12040 = vpack.c.b16 %v11945, %v11945
  %v12041 = vpack.c.b16 %v11947, %v11946
  %v12042 = vpack.c.b16 %v11948, %v11948
  %v12043 = vpack.c.b16 %v11950, %v11949
  %v12044 = vpack.c.b16 %v11951, %v11951
  %v12045 = vpack.c.b16 %v11953, %v11952
  %v12046 = vpack.c.b16 %v11954, %v11954
  %v12047 = vpack.c.b16 %v11956, %v11955
  %v12048 = vpack.c.b16 %v11957, %v11957
  %v12049 = vpack.c.b16 %v11959, %v11958
  %v12050 = vpack.c.b16 %v11960, %v11960
  %v12051 = vpack.c.b16 %v11962, %v11961
  %v12052 = vpack.c.b16 %v11963, %v11963
  %v12053 = vpack.c.b16 %v11965, %v11964
  %v12054 = vpack.c.b16 %v11966, %v11966
  %v12055 = vpack.c.b16 %v11968, %v11967
  %v12056 = vpack.c.b16 %v11969, %v11969
  %v12057 = vpack.c.b16 %v11971, %v11970
  %v12058 = vpack.c.b16 %v11972, %v11972
  %v12059 = vpack.c.b16 %v11974, %v11973
  %v12060 = vpack.c.b16 %v11975, %v11975
  %v12061 = vpack.c.b16 %v11977, %v11976
  %v12062 = vpack.c.b16 %v11978, %v11978
  %v12063 = vpack.c.b16 %v11980, %v11979
  %v12064 = vpack.c.b16 %v11981, %v11981
  %v12065 = vpack.c.b16 %v11983, %v11982
  %v12066 = vpack.c.b16 %v11984, %v11984
  %v12067 = vpack.c.b16 %v11986, %v11985
  %v12068 = vpack.c.b16 %v11987, %v11987
  %v12069 = vpack.c.b16 %v11989, %v11988
  %v12070 = vpack.c.b16 %v11990, %v11990
  %v12071 = vpack.c.b16 %v11992, %v11991
  %v12072 = vpack.c.b16 %v11993, %v11993
  %v12073 = vpack.c.b16 %v11995, %v11994
  %v12074 = vpack.c.b16 %v11996, %v11996
  %v12075 = vpack.c.b16 %v11998, %v11997
  %v12076 = vpack.c.b16 %v11999, %v11999
  %v12077 = vpack.c.b16 %v12001, %v12000
  %v12078 = vpack.c.b16 %v12002, %v12002
  %v12079 = vpack.c.b16 %v12004, %v12003
  %v12080 = vpack.c.b16 %v12005, %v12005
  %v12081 = vpack.c.b16 %v12007, %v12006
  %v12082 = vpack.c.b16 %v12008, %v12008
  %v12083 = vpack.c.b16 %v12010, %v12009
  %v12084 = vpack.c.b16 %v12011, %v12011
  %v12085 = vpack.c.b16 %v12013, %v12012
  %v12086 = vpack.c.b16 %v12014, %v12014
  %v12087 = vpack.c.b16 %v12016, %v12015
  %v12088 = vpack.c.b16 %v12017, %v12017
  %v12089 = vpack.c.b16 %v12019, %v12018
  %v12090 = vpack.c.b16 %v12020, %v12020
  %v12091 = vpack.c.b16 %v12022, %v12021
  %v12092 = vpack.c.b16 %v12023, %v12023
  %v12093 = vpack.c.b16 %v12025, %v12024
  %v12094 = vpack.c.b16 %v12026, %v12026
  %v12095 = vpack.c.b16 %v12028, %v12027
  %v12096 = vpack.c.b16 %v12029, %v12029
  %v12097 = vpack.c.b16 %v12031, %v12030
  %v12098 = vpack.c.b16 %v12032, %v12032
  %v12099 = vpack.c.b16 %v12034, %v12033
  %v12100 = vpack.c.b16 %v12035, %v12035
  %v12101 = vpack.c.b16 %v12037, %v12036
  %v12102 = vpack.c.b16 %v12038, %v12038
  %v12104 = vshrl.u32 %v12039, 16
  %v12106 = vshll.u32 %v12039, 16
  %v12108 = vrot.slane %v12106, 1
  %v12109 = vor.u32 %v12104, %v12108
  %v12111 = vshll.u32 %v12040, 16
  %v12113 = vrot.slane %v12111, 1
  %v12114 = vsel %vm662, %v12109, %v12113
  %v12116 = vshrl.u32 %v12041, 16
  %v12118 = vshll.u32 %v12041, 16
  %v12120 = vrot.slane %v12118, 1
  %v12121 = vor.u32 %v12116, %v12120
  %v12123 = vshll.u32 %v12042, 16
  %v12125 = vrot.slane %v12123, 1
  %v12126 = vsel %vm662, %v12121, %v12125
  %v12128 = vshrl.u32 %v12043, 16
  %v12130 = vshll.u32 %v12043, 16
  %v12132 = vrot.slane %v12130, 1
  %v12133 = vor.u32 %v12128, %v12132
  %v12135 = vshll.u32 %v12044, 16
  %v12137 = vrot.slane %v12135, 1
  %v12138 = vsel %vm662, %v12133, %v12137
  %v12140 = vshrl.u32 %v12045, 16
  %v12142 = vshll.u32 %v12045, 16
  %v12144 = vrot.slane %v12142, 1
  %v12145 = vor.u32 %v12140, %v12144
  %v12147 = vshll.u32 %v12046, 16
  %v12149 = vrot.slane %v12147, 1
  %v12150 = vsel %vm662, %v12145, %v12149
  %v12152 = vshrl.u32 %v12047, 16
  %v12154 = vshll.u32 %v12047, 16
  %v12156 = vrot.slane %v12154, 1
  %v12157 = vor.u32 %v12152, %v12156
  %v12159 = vshll.u32 %v12048, 16
  %v12161 = vrot.slane %v12159, 1
  %v12162 = vsel %vm662, %v12157, %v12161
  %v12164 = vshrl.u32 %v12049, 16
  %v12166 = vshll.u32 %v12049, 16
  %v12168 = vrot.slane %v12166, 1
  %v12169 = vor.u32 %v12164, %v12168
  %v12171 = vshll.u32 %v12050, 16
  %v12173 = vrot.slane %v12171, 1
  %v12174 = vsel %vm662, %v12169, %v12173
  %v12176 = vshrl.u32 %v12051, 16
  %v12178 = vshll.u32 %v12051, 16
  %v12180 = vrot.slane %v12178, 1
  %v12181 = vor.u32 %v12176, %v12180
  %v12183 = vshll.u32 %v12052, 16
  %v12185 = vrot.slane %v12183, 1
  %v12186 = vsel %vm662, %v12181, %v12185
  %v12188 = vshrl.u32 %v12053, 16
  %v12190 = vshll.u32 %v12053, 16
  %v12192 = vrot.slane %v12190, 1
  %v12193 = vor.u32 %v12188, %v12192
  %v12195 = vshll.u32 %v12054, 16
  %v12197 = vrot.slane %v12195, 1
  %v12198 = vsel %vm662, %v12193, %v12197
  %v12200 = vshrl.u32 %v12055, 16
  %v12202 = vshll.u32 %v12055, 16
  %v12204 = vrot.slane %v12202, 1
  %v12205 = vor.u32 %v12200, %v12204
  %v12207 = vshll.u32 %v12056, 16
  %v12209 = vrot.slane %v12207, 1
  %v12210 = vsel %vm662, %v12205, %v12209
  %v12212 = vshrl.u32 %v12057, 16
  %v12214 = vshll.u32 %v12057, 16
  %v12216 = vrot.slane %v12214, 1
  %v12217 = vor.u32 %v12212, %v12216
  %v12219 = vshll.u32 %v12058, 16
  %v12221 = vrot.slane %v12219, 1
  %v12222 = vsel %vm662, %v12217, %v12221
  %v12224 = vshrl.u32 %v12059, 16
  %v12226 = vshll.u32 %v12059, 16
  %v12228 = vrot.slane %v12226, 1
  %v12229 = vor.u32 %v12224, %v12228
  %v12231 = vshll.u32 %v12060, 16
  %v12233 = vrot.slane %v12231, 1
  %v12234 = vsel %vm662, %v12229, %v12233
  %v12236 = vshrl.u32 %v12061, 16
  %v12238 = vshll.u32 %v12061, 16
  %v12240 = vrot.slane %v12238, 1
  %v12241 = vor.u32 %v12236, %v12240
  %v12243 = vshll.u32 %v12062, 16
  %v12245 = vrot.slane %v12243, 1
  %v12246 = vsel %vm662, %v12241, %v12245
  %v12248 = vshrl.u32 %v12063, 16
  %v12250 = vshll.u32 %v12063, 16
  %v12252 = vrot.slane %v12250, 1
  %v12253 = vor.u32 %v12248, %v12252
  %v12255 = vshll.u32 %v12064, 16
  %v12257 = vrot.slane %v12255, 1
  %v12258 = vsel %vm662, %v12253, %v12257
  %v12260 = vshrl.u32 %v12065, 16
  %v12262 = vshll.u32 %v12065, 16
  %v12264 = vrot.slane %v12262, 1
  %v12265 = vor.u32 %v12260, %v12264
  %v12267 = vshll.u32 %v12066, 16
  %v12269 = vrot.slane %v12267, 1
  %v12270 = vsel %vm662, %v12265, %v12269
  %v12272 = vshrl.u32 %v12067, 16
  %v12274 = vshll.u32 %v12067, 16
  %v12276 = vrot.slane %v12274, 1
  %v12277 = vor.u32 %v12272, %v12276
  %v12279 = vshll.u32 %v12068, 16
  %v12281 = vrot.slane %v12279, 1
  %v12282 = vsel %vm662, %v12277, %v12281
  %v12284 = vshrl.u32 %v12069, 16
  %v12286 = vshll.u32 %v12069, 16
  %v12288 = vrot.slane %v12286, 1
  %v12289 = vor.u32 %v12284, %v12288
  %v12291 = vshll.u32 %v12070, 16
  %v12293 = vrot.slane %v12291, 1
  %v12294 = vsel %vm662, %v12289, %v12293
  %v12296 = vshrl.u32 %v12071, 16
  %v12298 = vshll.u32 %v12071, 16
  %v12300 = vrot.slane %v12298, 1
  %v12301 = vor.u32 %v12296, %v12300
  %v12303 = vshll.u32 %v12072, 16
  %v12305 = vrot.slane %v12303, 1
  %v12306 = vsel %vm662, %v12301, %v12305
  %v12308 = vshrl.u32 %v12073, 16
  %v12310 = vshll.u32 %v12073, 16
  %v12312 = vrot.slane %v12310, 1
  %v12313 = vor.u32 %v12308, %v12312
  %v12315 = vshll.u32 %v12074, 16
  %v12317 = vrot.slane %v12315, 1
  %v12318 = vsel %vm662, %v12313, %v12317
  %v12320 = vshrl.u32 %v12075, 16
  %v12322 = vshll.u32 %v12075, 16
  %v12324 = vrot.slane %v12322, 1
  %v12325 = vor.u32 %v12320, %v12324
  %v12327 = vshll.u32 %v12076, 16
  %v12329 = vrot.slane %v12327, 1
  %v12330 = vsel %vm662, %v12325, %v12329
  %v12332 = vshrl.u32 %v12077, 16
  %v12334 = vshll.u32 %v12077, 16
  %v12336 = vrot.slane %v12334, 1
  %v12337 = vor.u32 %v12332, %v12336
  %v12339 = vshll.u32 %v12078, 16
  %v12341 = vrot.slane %v12339, 1
  %v12342 = vsel %vm662, %v12337, %v12341
  %v12344 = vshrl.u32 %v12079, 16
  %v12346 = vshll.u32 %v12079, 16
  %v12348 = vrot.slane %v12346, 1
  %v12349 = vor.u32 %v12344, %v12348
  %v12351 = vshll.u32 %v12080, 16
  %v12353 = vrot.slane %v12351, 1
  %v12354 = vsel %vm662, %v12349, %v12353
  %v12356 = vshrl.u32 %v12081, 16
  %v12358 = vshll.u32 %v12081, 16
  %v12360 = vrot.slane %v12358, 1
  %v12361 = vor.u32 %v12356, %v12360
  %v12363 = vshll.u32 %v12082, 16
  %v12365 = vrot.slane %v12363, 1
  %v12366 = vsel %vm662, %v12361, %v12365
  %v12368 = vshrl.u32 %v12083, 16
  %v12370 = vshll.u32 %v12083, 16
  %v12372 = vrot.slane %v12370, 1
  %v12373 = vor.u32 %v12368, %v12372
  %v12375 = vshll.u32 %v12084, 16
  %v12377 = vrot.slane %v12375, 1
  %v12378 = vsel %vm662, %v12373, %v12377
  %v12380 = vshrl.u32 %v12085, 16
  %v12382 = vshll.u32 %v12085, 16
  %v12384 = vrot.slane %v12382, 1
  %v12385 = vor.u32 %v12380, %v12384
  %v12387 = vshll.u32 %v12086, 16
  %v12389 = vrot.slane %v12387, 1
  %v12390 = vsel %vm662, %v12385, %v12389
  %v12392 = vshrl.u32 %v12087, 16
  %v12394 = vshll.u32 %v12087, 16
  %v12396 = vrot.slane %v12394, 1
  %v12397 = vor.u32 %v12392, %v12396
  %v12399 = vshll.u32 %v12088, 16
  %v12401 = vrot.slane %v12399, 1
  %v12402 = vsel %vm662, %v12397, %v12401
  %v12404 = vshrl.u32 %v12089, 16
  %v12406 = vshll.u32 %v12089, 16
  %v12408 = vrot.slane %v12406, 1
  %v12409 = vor.u32 %v12404, %v12408
  %v12411 = vshll.u32 %v12090, 16
  %v12413 = vrot.slane %v12411, 1
  %v12414 = vsel %vm662, %v12409, %v12413
  %v12416 = vshrl.u32 %v12091, 16
  %v12418 = vshll.u32 %v12091, 16
  %v12420 = vrot.slane %v12418, 1
  %v12421 = vor.u32 %v12416, %v12420
  %v12423 = vshll.u32 %v12092, 16
  %v12425 = vrot.slane %v12423, 1
  %v12426 = vsel %vm662, %v12421, %v12425
  %v12428 = vshrl.u32 %v12093, 16
  %v12430 = vshll.u32 %v12093, 16
  %v12432 = vrot.slane %v12430, 1
  %v12433 = vor.u32 %v12428, %v12432
  %v12435 = vshll.u32 %v12094, 16
  %v12437 = vrot.slane %v12435, 1
  %v12438 = vsel %vm662, %v12433, %v12437
  %v12440 = vshrl.u32 %v12095, 16
  %v12442 = vshll.u32 %v12095, 16
  %v12444 = vrot.slane %v12442, 1
  %v12445 = vor.u32 %v12440, %v12444
  %v12447 = vshll.u32 %v12096, 16
  %v12449 = vrot.slane %v12447, 1
  %v12450 = vsel %vm662, %v12445, %v12449
  %v12452 = vshrl.u32 %v12097, 16
  %v12454 = vshll.u32 %v12097, 16
  %v12456 = vrot.slane %v12454, 1
  %v12457 = vor.u32 %v12452, %v12456
  %v12459 = vshll.u32 %v12098, 16
  %v12461 = vrot.slane %v12459, 1
  %v12462 = vsel %vm662, %v12457, %v12461
  %v12464 = vshrl.u32 %v12099, 16
  %v12466 = vshll.u32 %v12099, 16
  %v12468 = vrot.slane %v12466, 1
  %v12469 = vor.u32 %v12464, %v12468
  %v12471 = vshll.u32 %v12100, 16
  %v12473 = vrot.slane %v12471, 1
  %v12474 = vsel %vm662, %v12469, %v12473
  %v12476 = vshrl.u32 %v12101, 16
  %v12478 = vshll.u32 %v12101, 16
  %v12480 = vrot.slane %v12478, 1
  %v12481 = vor.u32 %v12476, %v12480
  %v12483 = vshll.u32 %v12102, 16
  %v12485 = vrot.slane %v12483, 1
  %v12486 = vsel %vm662, %v12481, %v12485
  %12487 = vrot.lane.b32.xlu0 %v12114, 56
  %v12488 = vpop.permute.xlu0 %12487
  %12489 = vrot.lane.b32.xlu0 %v12126, 56
  %v12490 = vpop.permute.xlu0 %12489
  %12491 = vrot.lane.b32.xlu0 %v12138, 56
  %v12492 = vpop.permute.xlu0 %12491
  %12493 = vrot.lane.b32.xlu0 %v12150, 56
  %v12494 = vpop.permute.xlu0 %12493
  %12495 = vrot.lane.b32.xlu0 %v12162, 56
  %v12496 = vpop.permute.xlu0 %12495
  %12497 = vrot.lane.b32.xlu0 %v12174, 56
  %v12498 = vpop.permute.xlu0 %12497
  %12499 = vrot.lane.b32.xlu0 %v12186, 56
  %v12500 = vpop.permute.xlu0 %12499
  %12501 = vrot.lane.b32.xlu0 %v12198, 56
  %v12502 = vpop.permute.xlu0 %12501
  %12503 = vrot.lane.b32.xlu0 %v12210, 56
  %v12504 = vpop.permute.xlu0 %12503
  %12505 = vrot.lane.b32.xlu0 %v12222, 56
  %v12506 = vpop.permute.xlu0 %12505
  %12507 = vrot.lane.b32.xlu0 %v12234, 56
  %v12508 = vpop.permute.xlu0 %12507
  %12509 = vrot.lane.b32.xlu0 %v12246, 56
  %v12510 = vpop.permute.xlu0 %12509
  %12511 = vrot.lane.b32.xlu0 %v12258, 56
  %v12512 = vpop.permute.xlu0 %12511
  %12513 = vrot.lane.b32.xlu0 %v12270, 56
  %v12514 = vpop.permute.xlu0 %12513
  %12515 = vrot.lane.b32.xlu0 %v12282, 56
  %v12516 = vpop.permute.xlu0 %12515
  %12517 = vrot.lane.b32.xlu0 %v12294, 56
  %v12518 = vpop.permute.xlu0 %12517
  %12519 = vrot.lane.b32.xlu0 %v12306, 56
  %v12520 = vpop.permute.xlu0 %12519
  %12521 = vrot.lane.b32.xlu0 %v12318, 56
  %v12522 = vpop.permute.xlu0 %12521
  %12523 = vrot.lane.b32.xlu0 %v12330, 56
  %v12524 = vpop.permute.xlu0 %12523
  %12525 = vrot.lane.b32.xlu0 %v12342, 56
  %v12526 = vpop.permute.xlu0 %12525
  %12527 = vrot.lane.b32.xlu0 %v12354, 56
  %v12528 = vpop.permute.xlu0 %12527
  %12529 = vrot.lane.b32.xlu0 %v12366, 56
  %v12530 = vpop.permute.xlu0 %12529
  %12531 = vrot.lane.b32.xlu0 %v12378, 56
  %v12532 = vpop.permute.xlu0 %12531
  %12533 = vrot.lane.b32.xlu0 %v12390, 56
  %v12534 = vpop.permute.xlu0 %12533
  %12535 = vrot.lane.b32.xlu0 %v12402, 56
  %v12536 = vpop.permute.xlu0 %12535
  %12537 = vrot.lane.b32.xlu0 %v12414, 56
  %v12538 = vpop.permute.xlu0 %12537
  %12539 = vrot.lane.b32.xlu0 %v12426, 56
  %v12540 = vpop.permute.xlu0 %12539
  %12541 = vrot.lane.b32.xlu0 %v12438, 56
  %v12542 = vpop.permute.xlu0 %12541
  %12543 = vrot.lane.b32.xlu0 %v12450, 56
  %v12544 = vpop.permute.xlu0 %12543
  %12545 = vrot.lane.b32.xlu0 %v12462, 56
  %v12546 = vpop.permute.xlu0 %12545
  %12547 = vrot.lane.b32.xlu0 %v12474, 56
  %v12548 = vpop.permute.xlu0 %12547
  %12549 = vrot.lane.b32.xlu0 %v12486, 56
  %v12550 = vpop.permute.xlu0 %12549
  %vm12583 = vcmask 523712
  %12584 = vst.msk [vmem:[#allocation3] sm:$0xff] %vm12583, %v12488
  %12585 = vst.msk [vmem:[#allocation3 + $0x8] sm:$0xff] %vm12583, %v12490
  %12586 = vst.msk [vmem:[#allocation3 + $0x10] sm:$0xff] %vm12583, %v12492
  %12587 = vst.msk [vmem:[#allocation3 + $0x18] sm:$0xff] %vm12583, %v12494
  %12588 = vst.msk [vmem:[#allocation3 + $0x20] sm:$0xff] %vm12583, %v12496
  %12589 = vst.msk [vmem:[#allocation3 + $0x28] sm:$0xff] %vm12583, %v12498
  %12590 = vst.msk [vmem:[#allocation3 + $0x30] sm:$0xff] %vm12583, %v12500
  %12591 = vst.msk [vmem:[#allocation3 + $0x38] sm:$0xff] %vm12583, %v12502
  %12592 = vst.msk [vmem:[#allocation3 + $0x40] sm:$0xff] %vm12583, %v12504
  %12593 = vst.msk [vmem:[#allocation3 + $0x48] sm:$0xff] %vm12583, %v12506
  %12594 = vst.msk [vmem:[#allocation3 + $0x50] sm:$0xff] %vm12583, %v12508
  %12595 = vst.msk [vmem:[#allocation3 + $0x58] sm:$0xff] %vm12583, %v12510
  %12596 = vst.msk [vmem:[#allocation3 + $0x60] sm:$0xff] %vm12583, %v12512
  %12597 = vst.msk [vmem:[#allocation3 + $0x68] sm:$0xff] %vm12583, %v12514
  %12598 = vst.msk [vmem:[#allocation3 + $0x70] sm:$0xff] %vm12583, %v12516
  %12599 = vst.msk [vmem:[#allocation3 + $0x78] sm:$0xff] %vm12583, %v12518
  %12600 = vst.msk [vmem:[#allocation3 + $0x80] sm:$0xff] %vm12583, %v12520
  %12601 = vst.msk [vmem:[#allocation3 + $0x88] sm:$0xff] %vm12583, %v12522
  %12602 = vst.msk [vmem:[#allocation3 + $0x90] sm:$0xff] %vm12583, %v12524
  %12603 = vst.msk [vmem:[#allocation3 + $0x98] sm:$0xff] %vm12583, %v12526
  %12604 = vst.msk [vmem:[#allocation3 + $0xa0] sm:$0xff] %vm12583, %v12528
  %12605 = vst.msk [vmem:[#allocation3 + $0xa8] sm:$0xff] %vm12583, %v12530
  %12606 = vst.msk [vmem:[#allocation3 + $0xb0] sm:$0xff] %vm12583, %v12532
  %12607 = vst.msk [vmem:[#allocation3 + $0xb8] sm:$0xff] %vm12583, %v12534
  %12608 = vst.msk [vmem:[#allocation3 + $0xc0] sm:$0xff] %vm12583, %v12536
  %12609 = vst.msk [vmem:[#allocation3 + $0xc8] sm:$0xff] %vm12583, %v12538
  %12610 = vst.msk [vmem:[#allocation3 + $0xd0] sm:$0xff] %vm12583, %v12540
  %12611 = vst.msk [vmem:[#allocation3 + $0xd8] sm:$0xff] %vm12583, %v12542
  %12612 = vst.msk [vmem:[#allocation3 + $0xe0] sm:$0xff] %vm12583, %v12544
  %12613 = vst.msk [vmem:[#allocation3 + $0xe8] sm:$0xff] %vm12583, %v12546
  %12614 = vst.msk [vmem:[#allocation3 + $0xf0] sm:$0xff] %vm12583, %v12548
  %12615 = vst.msk [vmem:[#allocation3 + $0xf8] sm:$0xff] %vm12583, %v12550
  %v12616 = vld [vmem:[%s11397] sm:$0xe]
  %v12617 = vld [vmem:[%s11397 + $0x4] sm:$0xf]
  %v12618 = vld [vmem:[%s11397 + $0x8] sm:$0x1]
  %v12619 = vld [vmem:[%s11397 + $0xc] sm:$0xe]
  %v12620 = vld [vmem:[%s11397 + $0x10] sm:$0xf]
  %v12621 = vld [vmem:[%s11397 + $0x14] sm:$0x1]
  %v12622 = vld [vmem:[%s11397 + $0x18] sm:$0xe]
  %v12623 = vld [vmem:[%s11397 + $0x1c] sm:$0xf]
  %v12624 = vld [vmem:[%s11397 + $0x20] sm:$0x1]
  %v12625 = vld [vmem:[%s11397 + $0x24] sm:$0xe]
  %v12626 = vld [vmem:[%s11397 + $0x28] sm:$0xf]
  %v12627 = vld [vmem:[%s11397 + $0x2c] sm:$0x1]
  %v12628 = vld [vmem:[%s11397 + $0x30] sm:$0xe]
  %v12629 = vld [vmem:[%s11397 + $0x34] sm:$0xf]
  %v12630 = vld [vmem:[%s11397 + $0x38] sm:$0x1]
  %v12631 = vld [vmem:[%s11397 + $0x3c] sm:$0xe]
  %v12632 = vld [vmem:[%s11397 + $0x40] sm:$0xf]
  %v12633 = vld [vmem:[%s11397 + $0x44] sm:$0x1]
  %v12634 = vld [vmem:[%s11397 + $0x48] sm:$0xe]
  %v12635 = vld [vmem:[%s11397 + $0x4c] sm:$0xf]
  %v12636 = vld [vmem:[%s11397 + $0x50] sm:$0x1]
  %v12637 = vld [vmem:[%s11397 + $0x54] sm:$0xe]
  %v12638 = vld [vmem:[%s11397 + $0x58] sm:$0xf]
  %v12639 = vld [vmem:[%s11397 + $0x5c] sm:$0x1]
  %v12640 = vld [vmem:[%s11397 + $0x60] sm:$0xe]
  %v12641 = vld [vmem:[%s11397 + $0x64] sm:$0xf]
  %v12642 = vld [vmem:[%s11397 + $0x68] sm:$0x1]
  %v12643 = vld [vmem:[%s11397 + $0x6c] sm:$0xe]
  %v12644 = vld [vmem:[%s11397 + $0x70] sm:$0xf]
  %v12645 = vld [vmem:[%s11397 + $0x74] sm:$0x1]
  %v12646 = vld [vmem:[%s11397 + $0x78] sm:$0xe]
  %v12647 = vld [vmem:[%s11397 + $0x7c] sm:$0xf]
  %v12648 = vld [vmem:[%s11397 + $0x80] sm:$0x1]
  %v12649 = vld [vmem:[%s11397 + $0x84] sm:$0xe]
  %v12650 = vld [vmem:[%s11397 + $0x88] sm:$0xf]
  %v12651 = vld [vmem:[%s11397 + $0x8c] sm:$0x1]
  %v12652 = vld [vmem:[%s11397 + $0x90] sm:$0xe]
  %v12653 = vld [vmem:[%s11397 + $0x94] sm:$0xf]
  %v12654 = vld [vmem:[%s11397 + $0x98] sm:$0x1]
  %v12655 = vld [vmem:[%s11397 + $0x9c] sm:$0xe]
  %v12656 = vld [vmem:[%s11397 + $0xa0] sm:$0xf]
  %v12657 = vld [vmem:[%s11397 + $0xa4] sm:$0x1]
  %v12658 = vld [vmem:[%s11397 + $0xa8] sm:$0xe]
  %v12659 = vld [vmem:[%s11397 + $0xac] sm:$0xf]
  %v12660 = vld [vmem:[%s11397 + $0xb0] sm:$0x1]
  %v12661 = vld [vmem:[%s11397 + $0xb4] sm:$0xe]
  %v12662 = vld [vmem:[%s11397 + $0xb8] sm:$0xf]
  %v12663 = vld [vmem:[%s11397 + $0xbc] sm:$0x1]
  %v12664 = vld [vmem:[%s11397 + $0xd8] sm:$0xe]
  %v12665 = vld [vmem:[%s11397 + $0xdc] sm:$0xf]
  %v12666 = vld [vmem:[%s11397 + $0xe0] sm:$0x1]
  %v12667 = vld [vmem:[%s11397 + $0xe4] sm:$0xe]
  %v12668 = vld [vmem:[%s11397 + $0xe8] sm:$0xf]
  %v12669 = vld [vmem:[%s11397 + $0xec] sm:$0x1]
  %v12670 = vld [vmem:[%s11397 + $0xf0] sm:$0xe]
  %v12671 = vld [vmem:[%s11397 + $0xf4] sm:$0xf]
  %v12672 = vld [vmem:[%s11397 + $0xf8] sm:$0x1]
  %v12673 = vld [vmem:[%s11397 + $0xfc] sm:$0xe]
  %v12674 = vld [vmem:[%s11397 + $0x100] sm:$0xf]
  %v12675 = vld [vmem:[%s11397 + $0x104] sm:$0x1]
  %v12676 = vld [vmem:[%s11397 + $0x108] sm:$0xe]
  %v12677 = vld [vmem:[%s11397 + $0x10c] sm:$0xf]
  %v12678 = vld [vmem:[%s11397 + $0x110] sm:$0x1]
  %v12679 = vld [vmem:[%s11397 + $0x114] sm:$0xe]
  %v12680 = vld [vmem:[%s11397 + $0x118] sm:$0xf]
  %v12681 = vld [vmem:[%s11397 + $0x11c] sm:$0x1]
  %v12682 = vld [vmem:[%s11397 + $0x120] sm:$0xe]
  %v12683 = vld [vmem:[%s11397 + $0x124] sm:$0xf]
  %v12684 = vld [vmem:[%s11397 + $0x128] sm:$0x1]
  %v12685 = vld [vmem:[%s11397 + $0x12c] sm:$0xe]
  %v12686 = vld [vmem:[%s11397 + $0x130] sm:$0xf]
  %v12687 = vld [vmem:[%s11397 + $0x134] sm:$0x1]
  %v12688 = vld [vmem:[%s11397 + $0x138] sm:$0xe]
  %v12689 = vld [vmem:[%s11397 + $0x13c] sm:$0xf]
  %v12690 = vld [vmem:[%s11397 + $0x140] sm:$0x1]
  %v12691 = vld [vmem:[%s11397 + $0x144] sm:$0xe]
  %v12692 = vld [vmem:[%s11397 + $0x148] sm:$0xf]
  %v12693 = vld [vmem:[%s11397 + $0x14c] sm:$0x1]
  %v12694 = vld [vmem:[%s11397 + $0x150] sm:$0xe]
  %v12695 = vld [vmem:[%s11397 + $0x154] sm:$0xf]
  %v12696 = vld [vmem:[%s11397 + $0x158] sm:$0x1]
  %v12697 = vld [vmem:[%s11397 + $0x15c] sm:$0xe]
  %v12698 = vld [vmem:[%s11397 + $0x160] sm:$0xf]
  %v12699 = vld [vmem:[%s11397 + $0x164] sm:$0x1]
  %v12700 = vld [vmem:[%s11397 + $0x168] sm:$0xe]
  %v12701 = vld [vmem:[%s11397 + $0x16c] sm:$0xf]
  %v12702 = vld [vmem:[%s11397 + $0x170] sm:$0x1]
  %v12703 = vld [vmem:[%s11397 + $0x174] sm:$0xe]
  %v12704 = vld [vmem:[%s11397 + $0x178] sm:$0xf]
  %v12705 = vld [vmem:[%s11397 + $0x17c] sm:$0x1]
  %v12706 = vld [vmem:[%s11397 + $0x180] sm:$0xe]
  %v12707 = vld [vmem:[%s11397 + $0x184] sm:$0xf]
  %v12708 = vld [vmem:[%s11397 + $0x188] sm:$0x1]
  %v12709 = vld [vmem:[%s11397 + $0x18c] sm:$0xe]
  %v12710 = vld [vmem:[%s11397 + $0x190] sm:$0xf]
  %v12711 = vld [vmem:[%s11397 + $0x194] sm:$0x1]
  %v12808 = vunpack.c.l.b16 %v12616
  %v12809 = vunpack.c.l.b16 %v12617
  %v12810 = vunpack.c.l.b16 %v12618
  %v12811 = vunpack.c.l.b16 %v12619
  %v12812 = vunpack.c.l.b16 %v12620
  %v12813 = vunpack.c.l.b16 %v12621
  %v12814 = vunpack.c.l.b16 %v12622
  %v12815 = vunpack.c.l.b16 %v12623
  %v12816 = vunpack.c.l.b16 %v12624
  %v12817 = vunpack.c.l.b16 %v12625
  %v12818 = vunpack.c.l.b16 %v12626
  %v12819 = vunpack.c.l.b16 %v12627
  %v12820 = vunpack.c.l.b16 %v12628
  %v12821 = vunpack.c.l.b16 %v12629
  %v12822 = vunpack.c.l.b16 %v12630
  %v12823 = vunpack.c.l.b16 %v12631
  %v12824 = vunpack.c.l.b16 %v12632
  %v12825 = vunpack.c.l.b16 %v12633
  %v12826 = vunpack.c.l.b16 %v12634
  %v12827 = vunpack.c.l.b16 %v12635
  %v12828 = vunpack.c.l.b16 %v12636
  %v12829 = vunpack.c.l.b16 %v12637
  %v12830 = vunpack.c.l.b16 %v12638
  %v12831 = vunpack.c.l.b16 %v12639
  %v12832 = vunpack.c.l.b16 %v12640
  %v12833 = vunpack.c.l.b16 %v12641
  %v12834 = vunpack.c.l.b16 %v12642
  %v12835 = vunpack.c.l.b16 %v12643
  %v12836 = vunpack.c.l.b16 %v12644
  %v12837 = vunpack.c.l.b16 %v12645
  %v12838 = vunpack.c.l.b16 %v12646
  %v12839 = vunpack.c.l.b16 %v12647
  %v12840 = vunpack.c.l.b16 %v12648
  %v12841 = vunpack.c.l.b16 %v12649
  %v12842 = vunpack.c.l.b16 %v12650
  %v12843 = vunpack.c.l.b16 %v12651
  %v12844 = vunpack.c.l.b16 %v12652
  %v12845 = vunpack.c.l.b16 %v12653
  %v12846 = vunpack.c.l.b16 %v12654
  %v12847 = vunpack.c.l.b16 %v12655
  %v12848 = vunpack.c.l.b16 %v12656
  %v12849 = vunpack.c.l.b16 %v12657
  %v12850 = vunpack.c.l.b16 %v12658
  %v12851 = vunpack.c.l.b16 %v12659
  %v12852 = vunpack.c.l.b16 %v12660
  %v12853 = vunpack.c.l.b16 %v12661
  %v12854 = vunpack.c.l.b16 %v12662
  %v12855 = vunpack.c.l.b16 %v12663
  %v12856 = vunpack.c.l.b16 %v12664
  %v12857 = vunpack.c.l.b16 %v12665
  %v12858 = vunpack.c.l.b16 %v12666
  %v12859 = vunpack.c.l.b16 %v12667
  %v12860 = vunpack.c.l.b16 %v12668
  %v12861 = vunpack.c.l.b16 %v12669
  %v12862 = vunpack.c.l.b16 %v12670
  %v12863 = vunpack.c.l.b16 %v12671
  %v12864 = vunpack.c.l.b16 %v12672
  %v12865 = vunpack.c.l.b16 %v12673
  %v12866 = vunpack.c.l.b16 %v12674
  %v12867 = vunpack.c.l.b16 %v12675
  %v12868 = vunpack.c.l.b16 %v12676
  %v12869 = vunpack.c.l.b16 %v12677
  %v12870 = vunpack.c.l.b16 %v12678
  %v12871 = vunpack.c.l.b16 %v12679
  %v12872 = vunpack.c.l.b16 %v12680
  %v12873 = vunpack.c.l.b16 %v12681
  %v12874 = vunpack.c.l.b16 %v12682
  %v12875 = vunpack.c.l.b16 %v12683
  %v12876 = vunpack.c.l.b16 %v12684
  %v12877 = vunpack.c.l.b16 %v12685
  %v12878 = vunpack.c.l.b16 %v12686
  %v12879 = vunpack.c.l.b16 %v12687
  %v12880 = vunpack.c.l.b16 %v12688
  %v12881 = vunpack.c.l.b16 %v12689
  %v12882 = vunpack.c.l.b16 %v12690
  %v12883 = vunpack.c.l.b16 %v12691
  %v12884 = vunpack.c.l.b16 %v12692
  %v12885 = vunpack.c.l.b16 %v12693
  %v12886 = vunpack.c.l.b16 %v12694
  %v12887 = vunpack.c.l.b16 %v12695
  %v12888 = vunpack.c.l.b16 %v12696
  %v12889 = vunpack.c.l.b16 %v12697
  %v12890 = vunpack.c.l.b16 %v12698
  %v12891 = vunpack.c.l.b16 %v12699
  %v12892 = vunpack.c.l.b16 %v12700
  %v12893 = vunpack.c.l.b16 %v12701
  %v12894 = vunpack.c.l.b16 %v12702
  %v12895 = vunpack.c.l.b16 %v12703
  %v12896 = vunpack.c.l.b16 %v12704
  %v12897 = vunpack.c.l.b16 %v12705
  %v12898 = vunpack.c.l.b16 %v12706
  %v12899 = vunpack.c.l.b16 %v12707
  %v12900 = vunpack.c.l.b16 %v12708
  %v12901 = vunpack.c.l.b16 %v12709
  %v12902 = vunpack.c.l.b16 %v12710
  %v12903 = vunpack.c.l.b16 %v12711
  %v12904 = vpack.c.b16 %v12809, %v12808
  %v12905 = vpack.c.b16 %v12810, %v12810
  %v12906 = vpack.c.b16 %v12812, %v12811
  %v12907 = vpack.c.b16 %v12813, %v12813
  %v12908 = vpack.c.b16 %v12815, %v12814
  %v12909 = vpack.c.b16 %v12816, %v12816
  %v12910 = vpack.c.b16 %v12818, %v12817
  %v12911 = vpack.c.b16 %v12819, %v12819
  %v12912 = vpack.c.b16 %v12821, %v12820
  %v12913 = vpack.c.b16 %v12822, %v12822
  %v12914 = vpack.c.b16 %v12824, %v12823
  %v12915 = vpack.c.b16 %v12825, %v12825
  %v12916 = vpack.c.b16 %v12827, %v12826
  %v12917 = vpack.c.b16 %v12828, %v12828
  %v12918 = vpack.c.b16 %v12830, %v12829
  %v12919 = vpack.c.b16 %v12831, %v12831
  %v12920 = vpack.c.b16 %v12833, %v12832
  %v12921 = vpack.c.b16 %v12834, %v12834
  %v12922 = vpack.c.b16 %v12836, %v12835
  %v12923 = vpack.c.b16 %v12837, %v12837
  %v12924 = vpack.c.b16 %v12839, %v12838
  %v12925 = vpack.c.b16 %v12840, %v12840
  %v12926 = vpack.c.b16 %v12842, %v12841
  %v12927 = vpack.c.b16 %v12843, %v12843
  %v12928 = vpack.c.b16 %v12845, %v12844
  %v12929 = vpack.c.b16 %v12846, %v12846
  %v12930 = vpack.c.b16 %v12848, %v12847
  %v12931 = vpack.c.b16 %v12849, %v12849
  %v12932 = vpack.c.b16 %v12851, %v12850
  %v12933 = vpack.c.b16 %v12852, %v12852
  %v12934 = vpack.c.b16 %v12854, %v12853
  %v12935 = vpack.c.b16 %v12855, %v12855
  %v12936 = vpack.c.b16 %v12857, %v12856
  %v12937 = vpack.c.b16 %v12858, %v12858
  %v12938 = vpack.c.b16 %v12860, %v12859
  %v12939 = vpack.c.b16 %v12861, %v12861
  %v12940 = vpack.c.b16 %v12863, %v12862
  %v12941 = vpack.c.b16 %v12864, %v12864
  %v12942 = vpack.c.b16 %v12866, %v12865
  %v12943 = vpack.c.b16 %v12867, %v12867
  %v12944 = vpack.c.b16 %v12869, %v12868
  %v12945 = vpack.c.b16 %v12870, %v12870
  %v12946 = vpack.c.b16 %v12872, %v12871
  %v12947 = vpack.c.b16 %v12873, %v12873
  %v12948 = vpack.c.b16 %v12875, %v12874
  %v12949 = vpack.c.b16 %v12876, %v12876
  %v12950 = vpack.c.b16 %v12878, %v12877
  %v12951 = vpack.c.b16 %v12879, %v12879
  %v12952 = vpack.c.b16 %v12881, %v12880
  %v12953 = vpack.c.b16 %v12882, %v12882
  %v12954 = vpack.c.b16 %v12884, %v12883
  %v12955 = vpack.c.b16 %v12885, %v12885
  %v12956 = vpack.c.b16 %v12887, %v12886
  %v12957 = vpack.c.b16 %v12888, %v12888
  %v12958 = vpack.c.b16 %v12890, %v12889
  %v12959 = vpack.c.b16 %v12891, %v12891
  %v12960 = vpack.c.b16 %v12893, %v12892
  %v12961 = vpack.c.b16 %v12894, %v12894
  %v12962 = vpack.c.b16 %v12896, %v12895
  %v12963 = vpack.c.b16 %v12897, %v12897
  %v12964 = vpack.c.b16 %v12899, %v12898
  %v12965 = vpack.c.b16 %v12900, %v12900
  %v12966 = vpack.c.b16 %v12902, %v12901
  %v12967 = vpack.c.b16 %v12903, %v12903
  %v12968 = vrot.slane %v12904, 1
  %v12969 = vrot.slane %v12905, 1
  %v12970 = vsel %vm1528, %v12968, %v12969
  %v12971 = vrot.slane %v12906, 1
  %v12972 = vrot.slane %v12907, 1
  %v12973 = vsel %vm1528, %v12971, %v12972
  %v12974 = vrot.slane %v12908, 1
  %v12975 = vrot.slane %v12909, 1
  %v12976 = vsel %vm1528, %v12974, %v12975
  %v12977 = vrot.slane %v12910, 1
  %v12978 = vrot.slane %v12911, 1
  %v12979 = vsel %vm1528, %v12977, %v12978
  %v12980 = vrot.slane %v12912, 1
  %v12981 = vrot.slane %v12913, 1
  %v12982 = vsel %vm1528, %v12980, %v12981
  %v12983 = vrot.slane %v12914, 1
  %v12984 = vrot.slane %v12915, 1
  %v12985 = vsel %vm1528, %v12983, %v12984
  %v12986 = vrot.slane %v12916, 1
  %v12987 = vrot.slane %v12917, 1
  %v12988 = vsel %vm1528, %v12986, %v12987
  %v12989 = vrot.slane %v12918, 1
  %v12990 = vrot.slane %v12919, 1
  %v12991 = vsel %vm1528, %v12989, %v12990
  %v12992 = vrot.slane %v12920, 1
  %v12993 = vrot.slane %v12921, 1
  %v12994 = vsel %vm1528, %v12992, %v12993
  %v12995 = vrot.slane %v12922, 1
  %v12996 = vrot.slane %v12923, 1
  %v12997 = vsel %vm1528, %v12995, %v12996
  %v12998 = vrot.slane %v12924, 1
  %v12999 = vrot.slane %v12925, 1
  %v13000 = vsel %vm1528, %v12998, %v12999
  %v13001 = vrot.slane %v12926, 1
  %v13002 = vrot.slane %v12927, 1
  %v13003 = vsel %vm1528, %v13001, %v13002
  %v13004 = vrot.slane %v12928, 1
  %v13005 = vrot.slane %v12929, 1
  %v13006 = vsel %vm1528, %v13004, %v13005
  %v13007 = vrot.slane %v12930, 1
  %v13008 = vrot.slane %v12931, 1
  %v13009 = vsel %vm1528, %v13007, %v13008
  %v13010 = vrot.slane %v12932, 1
  %v13011 = vrot.slane %v12933, 1
  %v13012 = vsel %vm1528, %v13010, %v13011
  %v13013 = vrot.slane %v12934, 1
  %v13014 = vrot.slane %v12935, 1
  %v13015 = vsel %vm1528, %v13013, %v13014
  %v13016 = vrot.slane %v12936, 1
  %v13017 = vrot.slane %v12937, 1
  %v13018 = vsel %vm1528, %v13016, %v13017
  %v13019 = vrot.slane %v12938, 1
  %v13020 = vrot.slane %v12939, 1
  %v13021 = vsel %vm1528, %v13019, %v13020
  %v13022 = vrot.slane %v12940, 1
  %v13023 = vrot.slane %v12941, 1
  %v13024 = vsel %vm1528, %v13022, %v13023
  %v13025 = vrot.slane %v12942, 1
  %v13026 = vrot.slane %v12943, 1
  %v13027 = vsel %vm1528, %v13025, %v13026
  %v13028 = vrot.slane %v12944, 1
  %v13029 = vrot.slane %v12945, 1
  %v13030 = vsel %vm1528, %v13028, %v13029
  %v13031 = vrot.slane %v12946, 1
  %v13032 = vrot.slane %v12947, 1
  %v13033 = vsel %vm1528, %v13031, %v13032
  %v13034 = vrot.slane %v12948, 1
  %v13035 = vrot.slane %v12949, 1
  %v13036 = vsel %vm1528, %v13034, %v13035
  %v13037 = vrot.slane %v12950, 1
  %v13038 = vrot.slane %v12951, 1
  %v13039 = vsel %vm1528, %v13037, %v13038
  %v13040 = vrot.slane %v12952, 1
  %v13041 = vrot.slane %v12953, 1
  %v13042 = vsel %vm1528, %v13040, %v13041
  %v13043 = vrot.slane %v12954, 1
  %v13044 = vrot.slane %v12955, 1
  %v13045 = vsel %vm1528, %v13043, %v13044
  %v13046 = vrot.slane %v12956, 1
  %v13047 = vrot.slane %v12957, 1
  %v13048 = vsel %vm1528, %v13046, %v13047
  %v13049 = vrot.slane %v12958, 1
  %v13050 = vrot.slane %v12959, 1
  %v13051 = vsel %vm1528, %v13049, %v13050
  %v13052 = vrot.slane %v12960, 1
  %v13053 = vrot.slane %v12961, 1
  %v13054 = vsel %vm1528, %v13052, %v13053
  %v13055 = vrot.slane %v12962, 1
  %v13056 = vrot.slane %v12963, 1
  %v13057 = vsel %vm1528, %v13055, %v13056
  %v13058 = vrot.slane %v12964, 1
  %v13059 = vrot.slane %v12965, 1
  %v13060 = vsel %vm1528, %v13058, %v13059
  %v13061 = vrot.slane %v12966, 1
  %v13062 = vrot.slane %v12967, 1
  %v13063 = vsel %vm1528, %v13061, %v13062
  %13064 = vrot.lane.b32.xlu0 %v12970, 64
  %v13065 = vpop.permute.xlu0 %13064
  %13066 = vrot.lane.b32.xlu0 %v12973, 64
  %v13067 = vpop.permute.xlu0 %13066
  %13068 = vrot.lane.b32.xlu0 %v12976, 64
  %v13069 = vpop.permute.xlu0 %13068
  %13070 = vrot.lane.b32.xlu0 %v12979, 64
  %v13071 = vpop.permute.xlu0 %13070
  %13072 = vrot.lane.b32.xlu0 %v12982, 64
  %v13073 = vpop.permute.xlu0 %13072
  %13074 = vrot.lane.b32.xlu0 %v12985, 64
  %v13075 = vpop.permute.xlu0 %13074
  %13076 = vrot.lane.b32.xlu0 %v12988, 64
  %v13077 = vpop.permute.xlu0 %13076
  %13078 = vrot.lane.b32.xlu0 %v12991, 64
  %v13079 = vpop.permute.xlu0 %13078
  %13080 = vrot.lane.b32.xlu0 %v12994, 64
  %v13081 = vpop.permute.xlu0 %13080
  %13082 = vrot.lane.b32.xlu0 %v12997, 64
  %v13083 = vpop.permute.xlu0 %13082
  %13084 = vrot.lane.b32.xlu0 %v13000, 64
  %v13085 = vpop.permute.xlu0 %13084
  %13086 = vrot.lane.b32.xlu0 %v13003, 64
  %v13087 = vpop.permute.xlu0 %13086
  %13088 = vrot.lane.b32.xlu0 %v13006, 64
  %v13089 = vpop.permute.xlu0 %13088
  %13090 = vrot.lane.b32.xlu0 %v13009, 64
  %v13091 = vpop.permute.xlu0 %13090
  %13092 = vrot.lane.b32.xlu0 %v13012, 64
  %v13093 = vpop.permute.xlu0 %13092
  %13094 = vrot.lane.b32.xlu0 %v13015, 64
  %v13095 = vpop.permute.xlu0 %13094
  %13096 = vrot.lane.b32.xlu0 %v13018, 64
  %v13097 = vpop.permute.xlu0 %13096
  %13098 = vrot.lane.b32.xlu0 %v13021, 64
  %v13099 = vpop.permute.xlu0 %13098
  %13100 = vrot.lane.b32.xlu0 %v13024, 64
  %v13101 = vpop.permute.xlu0 %13100
  %13102 = vrot.lane.b32.xlu0 %v13027, 64
  %v13103 = vpop.permute.xlu0 %13102
  %13104 = vrot.lane.b32.xlu0 %v13030, 64
  %v13105 = vpop.permute.xlu0 %13104
  %13106 = vrot.lane.b32.xlu0 %v13033, 64
  %v13107 = vpop.permute.xlu0 %13106
  %13108 = vrot.lane.b32.xlu0 %v13036, 64
  %v13109 = vpop.permute.xlu0 %13108
  %13110 = vrot.lane.b32.xlu0 %v13039, 64
  %v13111 = vpop.permute.xlu0 %13110
  %13112 = vrot.lane.b32.xlu0 %v13042, 64
  %v13113 = vpop.permute.xlu0 %13112
  %13114 = vrot.lane.b32.xlu0 %v13045, 64
  %v13115 = vpop.permute.xlu0 %13114
  %13116 = vrot.lane.b32.xlu0 %v13048, 64
  %v13117 = vpop.permute.xlu0 %13116
  %13118 = vrot.lane.b32.xlu0 %v13051, 64
  %v13119 = vpop.permute.xlu0 %13118
  %13120 = vrot.lane.b32.xlu0 %v13054, 64
  %v13121 = vpop.permute.xlu0 %13120
  %13122 = vrot.lane.b32.xlu0 %v13057, 64
  %v13123 = vpop.permute.xlu0 %13122
  %13124 = vrot.lane.b32.xlu0 %v13060, 64
  %v13125 = vpop.permute.xlu0 %13124
  %13126 = vrot.lane.b32.xlu0 %v13063, 64
  %v13127 = vpop.permute.xlu0 %13126
  %vm13160 = vcmask 589312
  %13161 = vst.msk [vmem:[#allocation3] sm:$0xff] %vm13160, %v13065
  %13162 = vst.msk [vmem:[#allocation3 + $0x8] sm:$0xff] %vm13160, %v13067
  %13163 = vst.msk [vmem:[#allocation3 + $0x10] sm:$0xff] %vm13160, %v13069
  %13164 = vst.msk [vmem:[#allocation3 + $0x18] sm:$0xff] %vm13160, %v13071
  %13165 = vst.msk [vmem:[#allocation3 + $0x20] sm:$0xff] %vm13160, %v13073
  %13166 = vst.msk [vmem:[#allocation3 + $0x28] sm:$0xff] %vm13160, %v13075
  %13167 = vst.msk [vmem:[#allocation3 + $0x30] sm:$0xff] %vm13160, %v13077
  %13168 = vst.msk [vmem:[#allocation3 + $0x38] sm:$0xff] %vm13160, %v13079
  %13169 = vst.msk [vmem:[#allocation3 + $0x40] sm:$0xff] %vm13160, %v13081
  %13170 = vst.msk [vmem:[#allocation3 + $0x48] sm:$0xff] %vm13160, %v13083
  %13171 = vst.msk [vmem:[#allocation3 + $0x50] sm:$0xff] %vm13160, %v13085
  %13172 = vst.msk [vmem:[#allocation3 + $0x58] sm:$0xff] %vm13160, %v13087
  %13173 = vst.msk [vmem:[#allocation3 + $0x60] sm:$0xff] %vm13160, %v13089
  %13174 = vst.msk [vmem:[#allocation3 + $0x68] sm:$0xff] %vm13160, %v13091
  %13175 = vst.msk [vmem:[#allocation3 + $0x70] sm:$0xff] %vm13160, %v13093
  %13176 = vst.msk [vmem:[#allocation3 + $0x78] sm:$0xff] %vm13160, %v13095
  %13177 = vst.msk [vmem:[#allocation3 + $0x80] sm:$0xff] %vm13160, %v13097
  %13178 = vst.msk [vmem:[#allocation3 + $0x88] sm:$0xff] %vm13160, %v13099
  %13179 = vst.msk [vmem:[#allocation3 + $0x90] sm:$0xff] %vm13160, %v13101
  %13180 = vst.msk [vmem:[#allocation3 + $0x98] sm:$0xff] %vm13160, %v13103
  %13181 = vst.msk [vmem:[#allocation3 + $0xa0] sm:$0xff] %vm13160, %v13105
  %13182 = vst.msk [vmem:[#allocation3 + $0xa8] sm:$0xff] %vm13160, %v13107
  %13183 = vst.msk [vmem:[#allocation3 + $0xb0] sm:$0xff] %vm13160, %v13109
  %13184 = vst.msk [vmem:[#allocation3 + $0xb8] sm:$0xff] %vm13160, %v13111
  %13185 = vst.msk [vmem:[#allocation3 + $0xc0] sm:$0xff] %vm13160, %v13113
  %13186 = vst.msk [vmem:[#allocation3 + $0xc8] sm:$0xff] %vm13160, %v13115
  %13187 = vst.msk [vmem:[#allocation3 + $0xd0] sm:$0xff] %vm13160, %v13117
  %13188 = vst.msk [vmem:[#allocation3 + $0xd8] sm:$0xff] %vm13160, %v13119
  %13189 = vst.msk [vmem:[#allocation3 + $0xe0] sm:$0xff] %vm13160, %v13121
  %13190 = vst.msk [vmem:[#allocation3 + $0xe8] sm:$0xff] %vm13160, %v13123
  %13191 = vst.msk [vmem:[#allocation3 + $0xf0] sm:$0xff] %vm13160, %v13125
  %13192 = vst.msk [vmem:[#allocation3 + $0xf8] sm:$0xff] %vm13160, %v13127
  %v13193 = vld [vmem:[#allocation3] sm:$0xff]
  %v13194 = vld [vmem:[#allocation3 + $0x8] sm:$0xff]
  %v13195 = vld [vmem:[#allocation3 + $0x10] sm:$0xff]
  %v13196 = vld [vmem:[#allocation3 + $0x18] sm:$0xff]
  %v13197 = vld [vmem:[#allocation3 + $0x20] sm:$0xff]
  %v13198 = vld [vmem:[#allocation3 + $0x28] sm:$0xff]
  %v13199 = vld [vmem:[#allocation3 + $0x30] sm:$0xff]
  %v13200 = vld [vmem:[#allocation3 + $0x38] sm:$0xff]
  %v13201 = vld [vmem:[#allocation3 + $0x40] sm:$0xff]
  %v13202 = vld [vmem:[#allocation3 + $0x48] sm:$0xff]
  %v13203 = vld [vmem:[#allocation3 + $0x50] sm:$0xff]
  %v13204 = vld [vmem:[#allocation3 + $0x58] sm:$0xff]
  %v13205 = vld [vmem:[#allocation3 + $0x60] sm:$0xff]
  %v13206 = vld [vmem:[#allocation3 + $0x68] sm:$0xff]
  %v13207 = vld [vmem:[#allocation3 + $0x70] sm:$0xff]
  %v13208 = vld [vmem:[#allocation3 + $0x78] sm:$0xff]
  %v13209 = vld [vmem:[#allocation3 + $0x80] sm:$0xff]
  %v13210 = vld [vmem:[#allocation3 + $0x88] sm:$0xff]
  %v13211 = vld [vmem:[#allocation3 + $0x90] sm:$0xff]
  %v13212 = vld [vmem:[#allocation3 + $0x98] sm:$0xff]
  %v13213 = vld [vmem:[#allocation3 + $0xa0] sm:$0xff]
  %v13214 = vld [vmem:[#allocation3 + $0xa8] sm:$0xff]
  %v13215 = vld [vmem:[#allocation3 + $0xb0] sm:$0xff]
  %v13216 = vld [vmem:[#allocation3 + $0xb8] sm:$0xff]
  %v13217 = vld [vmem:[#allocation3 + $0xc0] sm:$0xff]
  %v13218 = vld [vmem:[#allocation3 + $0xc8] sm:$0xff]
  %v13219 = vld [vmem:[#allocation3 + $0xd0] sm:$0xff]
  %v13220 = vld [vmem:[#allocation3 + $0xd8] sm:$0xff]
  %v13221 = vld [vmem:[#allocation3 + $0xe0] sm:$0xff]
  %v13222 = vld [vmem:[#allocation3 + $0xe8] sm:$0xff]
  %v13223 = vld [vmem:[#allocation3 + $0xf0] sm:$0xff]
  %v13224 = vld [vmem:[#allocation3 + $0xf8] sm:$0xff]
  %v13225 = vld [vmem:[%s3] sm:$0xf]
  %v13226 = vld [vmem:[%s3 + $0x4] sm:$0xf]
  %v13227 = vld [vmem:[%s3 + $0x8] sm:$0xf]
  %v13228 = vld [vmem:[%s3 + $0xc] sm:$0xf]
  %v13229 = vld [vmem:[%s3 + $0x10] sm:$0xf]
  %v13230 = vld [vmem:[%s3 + $0x14] sm:$0xf]
  %v13231 = vld [vmem:[%s3 + $0x18] sm:$0xf]
  %v13232 = vld [vmem:[%s3 + $0x1c] sm:$0xf]
  %v13233 = vld [vmem:[%s3 + $0x20] sm:$0xf]
  %v13243 = vunpack.c.l.b16 %v13225
  %v13244 = vunpack.c.l.b16 %v13226
  %v13245 = vunpack.c.l.b16 %v13227
  %v13246 = vunpack.c.l.b16 %v13228
  %v13247 = vunpack.c.l.b16 %v13229
  %v13248 = vunpack.c.l.b16 %v13230
  %v13249 = vunpack.c.l.b16 %v13231
  %v13250 = vunpack.c.l.b16 %v13232
  %v13251 = vunpack.c.l.b16 %v13233
  %v13252 = vpack.c.b16 %v13244, %v13243
  %v13253 = vpack.c.b16 %v13246, %v13245
  %v13254 = vpack.c.b16 %v13248, %v13247
  %v13255 = vpack.c.b16 %v13250, %v13249
  %v13256 = vpack.c.b16 %v13251, %v13251
  %vm13261 = vcmask 588800
  %v13263 = vsel %vm13261, %v13193, 0
  %v13266 = vsel %vm13261, %v13194, 0
  %v13269 = vsel %vm13261, %v13195, 0
  %v13272 = vsel %vm13261, %v13196, 0
  %v13275 = vsel %vm13261, %v13197, 0
  %v13278 = vsel %vm13261, %v13198, 0
  %v13281 = vsel %vm13261, %v13199, 0
  %v13284 = vsel %vm13261, %v13200, 0
  %v13287 = vsel %vm13261, %v13201, 0
  %v13290 = vsel %vm13261, %v13202, 0
  %v13293 = vsel %vm13261, %v13203, 0
  %v13296 = vsel %vm13261, %v13204, 0
  %v13299 = vsel %vm13261, %v13205, 0
  %v13302 = vsel %vm13261, %v13206, 0
  %v13305 = vsel %vm13261, %v13207, 0
  %v13308 = vsel %vm13261, %v13208, 0
  %v13311 = vsel %vm13261, %v13209, 0
  %v13314 = vsel %vm13261, %v13210, 0
  %v13317 = vsel %vm13261, %v13211, 0
  %v13320 = vsel %vm13261, %v13212, 0
  %v13323 = vsel %vm13261, %v13213, 0
  %v13326 = vsel %vm13261, %v13214, 0
  %v13329 = vsel %vm13261, %v13215, 0
  %v13332 = vsel %vm13261, %v13216, 0
  %v13335 = vsel %vm13261, %v13217, 0
  %v13338 = vsel %vm13261, %v13218, 0
  %v13341 = vsel %vm13261, %v13219, 0
  %v13344 = vsel %vm13261, %v13220, 0
  %v13347 = vsel %vm13261, %v13221, 0
  %v13350 = vsel %vm13261, %v13222, 0
  %v13353 = vsel %vm13261, %v13223, 0
  %v13356 = vsel %vm13261, %v13224, 0
  %vm13358 = vcmask 1043456
  %v13360 = vsel %vm13358, %v13256, 0
  %13362 = vmatprep.subr.bf16.mxu0 0
  %13363 = vmatpush1.bf16.msra.mxu0 %v13252
  %13364 = vmatprep.subr.bf16.mxu0 0
  %13365 = vmatpush1.bf16.msra.mxu0 %v13253
  %13366 = vmatprep.subr.bf16.mxu0 0
  %13367 = vmatpush1.bf16.msra.mxu0 %v13254
  %13368 = vmatprep.subr.bf16.mxu0 0
  %13369 = vmatpush1.bf16.msra.mxu0 %v13255
  %13370 = vmatprep.subr.bf16.mxu0 0
  %13371 = vmatpush1.bf16.msra.mxu0 %v13360
  %13372 = vmatprep.subr.bf16.mxu0 0
  %13373 = vmatpush1.bf16.msra.mxu0 0
  %13374 = vmatprep.subr.bf16.mxu0 0
  %13375 = vmatpush1.bf16.msra.mxu0 0
  %13376 = vmatprep.subr.bf16.mxu0 0
  %13377 = vmatpush1.bf16.msra.mxu0 0
  %13378 = vmatprep.subr.bf16.mxu0 0
  %13379 = vmatpush1.bf16.msra.mxu0 0
  %13380 = vmatprep.subr.bf16.mxu0 0
  %13381 = vmatpush1.bf16.msra.mxu0 0
  %13382 = vmatprep.subr.bf16.mxu0 0
  %13383 = vmatpush1.bf16.msra.mxu0 0
  %13384 = vmatprep.subr.bf16.mxu0 0
  %13385 = vmatpush1.bf16.msra.mxu0 0
  %13386 = vmatprep.subr.bf16.mxu0 0
  %13387 = vmatpush1.bf16.msra.mxu0 0
  %13388 = vmatprep.subr.bf16.mxu0 0
  %13389 = vmatpush1.bf16.msra.mxu0 0
  %13390 = vmatprep.subr.bf16.mxu0 0
  %13391 = vmatpush1.bf16.msra.mxu0 0
  %13392 = vmatprep.subr.bf16.mxu0 0
  %13393 = vmatpush1.bf16.msra.mxu0 0
  %13394 = vmatprep.mubr.bf16.mxu0 0
  %13395 = vmatmul.mubr.bf16.gmra.mrb[0].mxu0 %v13263
  %v13396 = vpop.f32.mrb[0].mxu0
  %v13397 = vadd.f32 0.0, %v13396
  %v13398 = vpop.f32.mrb[0].mxu0
  %v13399 = vpop.f32.mrb[0].mxu0
  %v13400 = vadd.f32 0.0, %v13399
  %v13401 = vpop.f32.mrb[0].mxu0
  %13402 = vmatprep.mubr.bf16.mxu0 0
  %13403 = vmatmul.mubr.bf16.gmra.mrb[0].mxu0 %v13266
  %v13404 = vpop.f32.mrb[0].mxu0
  %v13405 = vadd.f32 0.0, %v13404
  %v13406 = vpop.f32.mrb[0].mxu0
  %v13407 = vpop.f32.mrb[0].mxu0
  %v13408 = vadd.f32 0.0, %v13407
  %v13409 = vpop.f32.mrb[0].mxu0
  %13410 = vmatprep.mubr.bf16.mxu0 0
  %13411 = vmatmul.mubr.bf16.gmra.mrb[0].mxu0 %v13269
  %v13412 = vpop.f32.mrb[0].mxu0
  %v13413 = vadd.f32 0.0, %v13412
  %v13414 = vpop.f32.mrb[0].mxu0
  %v13415 = vpop.f32.mrb[0].mxu0
  %v13416 = vadd.f32 0.0, %v13415
  %v13417 = vpop.f32.mrb[0].mxu0
  %13418 = vmatprep.mubr.bf16.mxu0 0
  %13419 = vmatmul.mubr.bf16.gmra.mrb[0].mxu0 %v13272
  %v13420 = vpop.f32.mrb[0].mxu0
  %v13421 = vadd.f32 0.0, %v13420
  %v13422 = vpop.f32.mrb[0].mxu0
  %v13423 = vpop.f32.mrb[0].mxu0
  %v13424 = vadd.f32 0.0, %v13423
  %v13425 = vpop.f32.mrb[0].mxu0
  %13426 = vmatprep.mubr.bf16.mxu0 0
  %13427 = vmatmul.mubr.bf16.gmra.mrb[0].mxu0 %v13275
  %v13428 = vpop.f32.mrb[0].mxu0
  %v13429 = vadd.f32 0.0, %v13428
  %v13430 = vpop.f32.mrb[0].mxu0
  %v13431 = vpop.f32.mrb[0].mxu0
  %v13432 = vadd.f32 0.0, %v13431
  %v13433 = vpop.f32.mrb[0].mxu0
  %13434 = vmatprep.mubr.bf16.mxu0 0
  %13435 = vmatmul.mubr.bf16.gmra.mrb[0].mxu0 %v13278
  %v13436 = vpop.f32.mrb[0].mxu0
  %v13437 = vadd.f32 0.0, %v13436
  %v13438 = vpop.f32.mrb[0].mxu0
  %v13439 = vpop.f32.mrb[0].mxu0
  %v13440 = vadd.f32 0.0, %v13439
  %v13441 = vpop.f32.mrb[0].mxu0
  %13442 = vmatprep.mubr.bf16.mxu0 0
  %13443 = vmatmul.mubr.bf16.gmra.mrb[0].mxu0 %v13281
  %v13444 = vpop.f32.mrb[0].mxu0
  %v13445 = vadd.f32 0.0, %v13444
  %v13446 = vpop.f32.mrb[0].mxu0
  %v13447 = vpop.f32.mrb[0].mxu0
  %v13448 = vadd.f32 0.0, %v13447
  %v13449 = vpop.f32.mrb[0].mxu0
  %13450 = vmatprep.mubr.bf16.mxu0 0
  %13451 = vmatmul.mubr.bf16.gmra.mrb[0].mxu0 %v13284
  %v13452 = vpop.f32.mrb[0].mxu0
  %v13453 = vadd.f32 0.0, %v13452
  %v13454 = vpop.f32.mrb[0].mxu0
  %v13455 = vpop.f32.mrb[0].mxu0
  %v13456 = vadd.f32 0.0, %v13455
  %v13457 = vpop.f32.mrb[0].mxu0
  %13458 = vmatprep.mubr.bf16.mxu0 0
  %13459 = vmatmul.mubr.bf16.gmra.mrb[0].mxu0 %v13287
  %v13460 = vpop.f32.mrb[0].mxu0
  %v13461 = vadd.f32 0.0, %v13460
  %v13462 = vpop.f32.mrb[0].mxu0
  %v13463 = vpop.f32.mrb[0].mxu0
  %v13464 = vadd.f32 0.0, %v13463
  %v13465 = vpop.f32.mrb[0].mxu0
  %13466 = vmatprep.mubr.bf16.mxu0 0
  %13467 = vmatmul.mubr.bf16.gmra.mrb[0].mxu0 %v13290
  %v13468 = vpop.f32.mrb[0].mxu0
  %v13469 = vadd.f32 0.0, %v13468
  %v13470 = vpop.f32.mrb[0].mxu0
  %v13471 = vpop.f32.mrb[0].mxu0
  %v13472 = vadd.f32 0.0, %v13471
  %v13473 = vpop.f32.mrb[0].mxu0
  %13474 = vmatprep.mubr.bf16.mxu0 0
  %13475 = vmatmul.mubr.bf16.gmra.mrb[0].mxu0 %v13293
  %v13476 = vpop.f32.mrb[0].mxu0
  %v13477 = vadd.f32 0.0, %v13476
  %v13478 = vpop.f32.mrb[0].mxu0
  %v13479 = vpop.f32.mrb[0].mxu0
  %v13480 = vadd.f32 0.0, %v13479
  %v13481 = vpop.f32.mrb[0].mxu0
  %13482 = vmatprep.mubr.bf16.mxu0 0
  %13483 = vmatmul.mubr.bf16.gmra.mrb[0].mxu0 %v13296
  %v13484 = vpop.f32.mrb[0].mxu0
  %v13485 = vadd.f32 0.0, %v13484
  %v13486 = vpop.f32.mrb[0].mxu0
  %v13487 = vpop.f32.mrb[0].mxu0
  %v13488 = vadd.f32 0.0, %v13487
  %v13489 = vpop.f32.mrb[0].mxu0
  %13490 = vmatprep.mubr.bf16.mxu0 0
  %13491 = vmatmul.mubr.bf16.gmra.mrb[0].mxu0 %v13299
  %v13492 = vpop.f32.mrb[0].mxu0
  %v13493 = vadd.f32 0.0, %v13492
  %v13494 = vpop.f32.mrb[0].mxu0
  %v13495 = vpop.f32.mrb[0].mxu0
  %v13496 = vadd.f32 0.0, %v13495
  %v13497 = vpop.f32.mrb[0].mxu0
  %13498 = vmatprep.mubr.bf16.mxu0 0
  %13499 = vmatmul.mubr.bf16.gmra.mrb[0].mxu0 %v13302
  %v13500 = vpop.f32.mrb[0].mxu0
  %v13501 = vadd.f32 0.0, %v13500
  %v13502 = vpop.f32.mrb[0].mxu0
  %v13503 = vpop.f32.mrb[0].mxu0
  %v13504 = vadd.f32 0.0, %v13503
  %v13505 = vpop.f32.mrb[0].mxu0
  %13506 = vmatprep.mubr.bf16.mxu0 0
  %13507 = vmatmul.mubr.bf16.gmra.mrb[0].mxu0 %v13305
  %v13508 = vpop.f32.mrb[0].mxu0
  %v13509 = vadd.f32 0.0, %v13508
  %v13510 = vpop.f32.mrb[0].mxu0
  %v13511 = vpop.f32.mrb[0].mxu0
  %v13512 = vadd.f32 0.0, %v13511
  %v13513 = vpop.f32.mrb[0].mxu0
  %13514 = vmatprep.mubr.bf16.mxu0 0
  %13515 = vmatmul.mubr.bf16.gmra.mrb[0].mxu0 %v13308
  %v13516 = vpop.f32.mrb[0].mxu0
  %v13517 = vadd.f32 0.0, %v13516
  %v13518 = vpop.f32.mrb[0].mxu0
  %v13519 = vpop.f32.mrb[0].mxu0
  %v13520 = vadd.f32 0.0, %v13519
  %v13521 = vpop.f32.mrb[0].mxu0
  %13522 = vmatprep.mubr.bf16.mxu0 0
  %13523 = vmatmul.mubr.bf16.gmra.mrb[0].mxu0 %v13311
  %v13524 = vpop.f32.mrb[0].mxu0
  %v13525 = vadd.f32 0.0, %v13524
  %v13526 = vpop.f32.mrb[0].mxu0
  %v13527 = vpop.f32.mrb[0].mxu0
  %v13528 = vadd.f32 0.0, %v13527
  %v13529 = vpop.f32.mrb[0].mxu0
  %13530 = vmatprep.mubr.bf16.mxu0 0
  %13531 = vmatmul.mubr.bf16.gmra.mrb[0].mxu0 %v13314
  %v13532 = vpop.f32.mrb[0].mxu0
  %v13533 = vadd.f32 0.0, %v13532
  %v13534 = vpop.f32.mrb[0].mxu0
  %v13535 = vpop.f32.mrb[0].mxu0
  %v13536 = vadd.f32 0.0, %v13535
  %v13537 = vpop.f32.mrb[0].mxu0
  %13538 = vmatprep.mubr.bf16.mxu0 0
  %13539 = vmatmul.mubr.bf16.gmra.mrb[0].mxu0 %v13317
  %v13540 = vpop.f32.mrb[0].mxu0
  %v13541 = vadd.f32 0.0, %v13540
  %v13542 = vpop.f32.mrb[0].mxu0
  %v13543 = vpop.f32.mrb[0].mxu0
  %v13544 = vadd.f32 0.0, %v13543
  %v13545 = vpop.f32.mrb[0].mxu0
  %13546 = vmatprep.mubr.bf16.mxu0 0
  %13547 = vmatmul.mubr.bf16.gmra.mrb[0].mxu0 %v13320
  %v13548 = vpop.f32.mrb[0].mxu0
  %v13549 = vadd.f32 0.0, %v13548
  %v13550 = vpop.f32.mrb[0].mxu0
  %v13551 = vpop.f32.mrb[0].mxu0
  %v13552 = vadd.f32 0.0, %v13551
  %v13553 = vpop.f32.mrb[0].mxu0
  %13554 = vmatprep.mubr.bf16.mxu0 0
  %13555 = vmatmul.mubr.bf16.gmra.mrb[0].mxu0 %v13323
  %v13556 = vpop.f32.mrb[0].mxu0
  %v13557 = vadd.f32 0.0, %v13556
  %v13558 = vpop.f32.mrb[0].mxu0
  %v13559 = vpop.f32.mrb[0].mxu0
  %v13560 = vadd.f32 0.0, %v13559
  %v13561 = vpop.f32.mrb[0].mxu0
  %13562 = vmatprep.mubr.bf16.mxu0 0
  %13563 = vmatmul.mubr.bf16.gmra.mrb[0].mxu0 %v13326
  %v13564 = vpop.f32.mrb[0].mxu0
  %v13565 = vadd.f32 0.0, %v13564
  %v13566 = vpop.f32.mrb[0].mxu0
  %v13567 = vpop.f32.mrb[0].mxu0
  %v13568 = vadd.f32 0.0, %v13567
  %v13569 = vpop.f32.mrb[0].mxu0
  %13570 = vmatprep.mubr.bf16.mxu0 0
  %13571 = vmatmul.mubr.bf16.gmra.mrb[0].mxu0 %v13329
  %v13572 = vpop.f32.mrb[0].mxu0
  %v13573 = vadd.f32 0.0, %v13572
  %v13574 = vpop.f32.mrb[0].mxu0
  %v13575 = vpop.f32.mrb[0].mxu0
  %v13576 = vadd.f32 0.0, %v13575
  %v13577 = vpop.f32.mrb[0].mxu0
  %13578 = vmatprep.mubr.bf16.mxu0 0
  %13579 = vmatmul.mubr.bf16.gmra.mrb[0].mxu0 %v13332
  %v13580 = vpop.f32.mrb[0].mxu0
  %v13581 = vadd.f32 0.0, %v13580
  %v13582 = vpop.f32.mrb[0].mxu0
  %v13583 = vpop.f32.mrb[0].mxu0
  %v13584 = vadd.f32 0.0, %v13583
  %v13585 = vpop.f32.mrb[0].mxu0
  %13586 = vmatprep.mubr.bf16.mxu0 0
  %13587 = vmatmul.mubr.bf16.gmra.mrb[0].mxu0 %v13335
  %v13588 = vpop.f32.mrb[0].mxu0
  %v13589 = vadd.f32 0.0, %v13588
  %v13590 = vpop.f32.mrb[0].mxu0
  %v13591 = vpop.f32.mrb[0].mxu0
  %v13592 = vadd.f32 0.0, %v13591
  %v13593 = vpop.f32.mrb[0].mxu0
  %13594 = vmatprep.mubr.bf16.mxu0 0
  %13595 = vmatmul.mubr.bf16.gmra.mrb[0].mxu0 %v13338
  %v13596 = vpop.f32.mrb[0].mxu0
  %v13597 = vadd.f32 0.0, %v13596
  %v13598 = vpop.f32.mrb[0].mxu0
  %v13599 = vpop.f32.mrb[0].mxu0
  %v13600 = vadd.f32 0.0, %v13599
  %v13601 = vpop.f32.mrb[0].mxu0
  %13602 = vmatprep.mubr.bf16.mxu0 0
  %13603 = vmatmul.mubr.bf16.gmra.mrb[0].mxu0 %v13341
  %v13604 = vpop.f32.mrb[0].mxu0
  %v13605 = vadd.f32 0.0, %v13604
  %v13606 = vpop.f32.mrb[0].mxu0
  %v13607 = vpop.f32.mrb[0].mxu0
  %v13608 = vadd.f32 0.0, %v13607
  %v13609 = vpop.f32.mrb[0].mxu0
  %13610 = vmatprep.mubr.bf16.mxu0 0
  %13611 = vmatmul.mubr.bf16.gmra.mrb[0].mxu0 %v13344
  %v13612 = vpop.f32.mrb[0].mxu0
  %v13613 = vadd.f32 0.0, %v13612
  %v13614 = vpop.f32.mrb[0].mxu0
  %v13615 = vpop.f32.mrb[0].mxu0
  %v13616 = vadd.f32 0.0, %v13615
  %v13617 = vpop.f32.mrb[0].mxu0
  %13618 = vmatprep.mubr.bf16.mxu0 0
  %13619 = vmatmul.mubr.bf16.gmra.mrb[0].mxu0 %v13347
  %v13620 = vpop.f32.mrb[0].mxu0
  %v13621 = vadd.f32 0.0, %v13620
  %v13622 = vpop.f32.mrb[0].mxu0
  %v13623 = vpop.f32.mrb[0].mxu0
  %v13624 = vadd.f32 0.0, %v13623
  %v13625 = vpop.f32.mrb[0].mxu0
  %13626 = vmatprep.mubr.bf16.mxu0 0
  %13627 = vmatmul.mubr.bf16.gmra.mrb[0].mxu0 %v13350
  %v13628 = vpop.f32.mrb[0].mxu0
  %v13629 = vadd.f32 0.0, %v13628
  %v13630 = vpop.f32.mrb[0].mxu0
  %v13631 = vpop.f32.mrb[0].mxu0
  %v13632 = vadd.f32 0.0, %v13631
  %v13633 = vpop.f32.mrb[0].mxu0
  %13634 = vmatprep.mubr.bf16.mxu0 0
  %13635 = vmatmul.mubr.bf16.gmra.mrb[0].mxu0 %v13353
  %v13636 = vpop.f32.mrb[0].mxu0
  %v13637 = vadd.f32 0.0, %v13636
  %v13638 = vpop.f32.mrb[0].mxu0
  %v13639 = vpop.f32.mrb[0].mxu0
  %v13640 = vadd.f32 0.0, %v13639
  %v13641 = vpop.f32.mrb[0].mxu0
  %13642 = vmatprep.mubr.bf16.mxu0 0
  %13643 = vmatmul.mubr.bf16.gmra.mrb[0].mxu0 %v13356
  %v13644 = vpop.f32.mrb[0].mxu0
  %v13645 = vadd.f32 0.0, %v13644
  %v13646 = vpop.f32.mrb[0].mxu0
  %v13647 = vpop.f32.mrb[0].mxu0
  %v13648 = vadd.f32 0.0, %v13647
  %v13649 = vpop.f32.mrb[0].mxu0
  %13650 = vdwg.mxu0
  %13715 = vrot.lane.b32.xlu0 %v13397, 16
  %v13716 = vpop.permute.xlu0 %13715
  %13717 = vrot.lane.b32.xlu0 %v13400, 16
  %v13718 = vpop.permute.xlu0 %13717
  %13719 = vrot.lane.b32.xlu0 %v13405, 16
  %v13720 = vpop.permute.xlu0 %13719
  %13721 = vrot.lane.b32.xlu0 %v13408, 16
  %v13722 = vpop.permute.xlu0 %13721
  %13723 = vrot.lane.b32.xlu0 %v13413, 16
  %v13724 = vpop.permute.xlu0 %13723
  %13725 = vrot.lane.b32.xlu0 %v13416, 16
  %v13726 = vpop.permute.xlu0 %13725
  %13727 = vrot.lane.b32.xlu0 %v13421, 16
  %v13728 = vpop.permute.xlu0 %13727
  %13729 = vrot.lane.b32.xlu0 %v13424, 16
  %v13730 = vpop.permute.xlu0 %13729
  %13731 = vrot.lane.b32.xlu0 %v13429, 16
  %v13732 = vpop.permute.xlu0 %13731
  %13733 = vrot.lane.b32.xlu0 %v13432, 16
  %v13734 = vpop.permute.xlu0 %13733
  %13735 = vrot.lane.b32.xlu0 %v13437, 16
  %v13736 = vpop.permute.xlu0 %13735
  %13737 = vrot.lane.b32.xlu0 %v13440, 16
  %v13738 = vpop.permute.xlu0 %13737
  %13739 = vrot.lane.b32.xlu0 %v13445, 16
  %v13740 = vpop.permute.xlu0 %13739
  %13741 = vrot.lane.b32.xlu0 %v13448, 16
  %v13742 = vpop.permute.xlu0 %13741
  %13743 = vrot.lane.b32.xlu0 %v13453, 16
  %v13744 = vpop.permute.xlu0 %13743
  %13745 = vrot.lane.b32.xlu0 %v13456, 16
  %v13746 = vpop.permute.xlu0 %13745
  %13747 = vrot.lane.b32.xlu0 %v13461, 16
  %v13748 = vpop.permute.xlu0 %13747
  %13749 = vrot.lane.b32.xlu0 %v13464, 16
  %v13750 = vpop.permute.xlu0 %13749
  %13751 = vrot.lane.b32.xlu0 %v13469, 16
  %v13752 = vpop.permute.xlu0 %13751
  %13753 = vrot.lane.b32.xlu0 %v13472, 16
  %v13754 = vpop.permute.xlu0 %13753
  %13755 = vrot.lane.b32.xlu0 %v13477, 16
  %v13756 = vpop.permute.xlu0 %13755
  %13757 = vrot.lane.b32.xlu0 %v13480, 16
  %v13758 = vpop.permute.xlu0 %13757
  %13759 = vrot.lane.b32.xlu0 %v13485, 16
  %v13760 = vpop.permute.xlu0 %13759
  %13761 = vrot.lane.b32.xlu0 %v13488, 16
  %v13762 = vpop.permute.xlu0 %13761
  %13763 = vrot.lane.b32.xlu0 %v13493, 16
  %v13764 = vpop.permute.xlu0 %13763
  %13765 = vrot.lane.b32.xlu0 %v13496, 16
  %v13766 = vpop.permute.xlu0 %13765
  %13767 = vrot.lane.b32.xlu0 %v13501, 16
  %v13768 = vpop.permute.xlu0 %13767
  %13769 = vrot.lane.b32.xlu0 %v13504, 16
  %v13770 = vpop.permute.xlu0 %13769
  %13771 = vrot.lane.b32.xlu0 %v13509, 16
  %v13772 = vpop.permute.xlu0 %13771
  %13773 = vrot.lane.b32.xlu0 %v13512, 16
  %v13774 = vpop.permute.xlu0 %13773
  %13775 = vrot.lane.b32.xlu0 %v13517, 16
  %v13776 = vpop.permute.xlu0 %13775
  %13777 = vrot.lane.b32.xlu0 %v13520, 16
  %v13778 = vpop.permute.xlu0 %13777
  %13779 = vrot.lane.b32.xlu0 %v13525, 16
  %v13780 = vpop.permute.xlu0 %13779
  %13781 = vrot.lane.b32.xlu0 %v13528, 16
  %v13782 = vpop.permute.xlu0 %13781
  %13783 = vrot.lane.b32.xlu0 %v13533, 16
  %v13784 = vpop.permute.xlu0 %13783
  %13785 = vrot.lane.b32.xlu0 %v13536, 16
  %v13786 = vpop.permute.xlu0 %13785
  %13787 = vrot.lane.b32.xlu0 %v13541, 16
  %v13788 = vpop.permute.xlu0 %13787
  %13789 = vrot.lane.b32.xlu0 %v13544, 16
  %v13790 = vpop.permute.xlu0 %13789
  %13791 = vrot.lane.b32.xlu0 %v13549, 16
  %v13792 = vpop.permute.xlu0 %13791
  %13793 = vrot.lane.b32.xlu0 %v13552, 16
  %v13794 = vpop.permute.xlu0 %13793
  %13795 = vrot.lane.b32.xlu0 %v13557, 16
  %v13796 = vpop.permute.xlu0 %13795
  %13797 = vrot.lane.b32.xlu0 %v13560, 16
  %v13798 = vpop.permute.xlu0 %13797
  %13799 = vrot.lane.b32.xlu0 %v13565, 16
  %v13800 = vpop.permute.xlu0 %13799
  %13801 = vrot.lane.b32.xlu0 %v13568, 16
  %v13802 = vpop.permute.xlu0 %13801
  %13803 = vrot.lane.b32.xlu0 %v13573, 16
  %v13804 = vpop.permute.xlu0 %13803
  %13805 = vrot.lane.b32.xlu0 %v13576, 16
  %v13806 = vpop.permute.xlu0 %13805
  %13807 = vrot.lane.b32.xlu0 %v13581, 16
  %v13808 = vpop.permute.xlu0 %13807
  %13809 = vrot.lane.b32.xlu0 %v13584, 16
  %v13810 = vpop.permute.xlu0 %13809
  %13811 = vrot.lane.b32.xlu0 %v13589, 16
  %v13812 = vpop.permute.xlu0 %13811
  %13813 = vrot.lane.b32.xlu0 %v13592, 16
  %v13814 = vpop.permute.xlu0 %13813
  %13815 = vrot.lane.b32.xlu0 %v13597, 16
  %v13816 = vpop.permute.xlu0 %13815
  %13817 = vrot.lane.b32.xlu0 %v13600, 16
  %v13818 = vpop.permute.xlu0 %13817
  %13819 = vrot.lane.b32.xlu0 %v13605, 16
  %v13820 = vpop.permute.xlu0 %13819
  %13821 = vrot.lane.b32.xlu0 %v13608, 16
  %v13822 = vpop.permute.xlu0 %13821
  %13823 = vrot.lane.b32.xlu0 %v13613, 16
  %v13824 = vpop.permute.xlu0 %13823
  %13825 = vrot.lane.b32.xlu0 %v13616, 16
  %v13826 = vpop.permute.xlu0 %13825
  %13827 = vrot.lane.b32.xlu0 %v13621, 16
  %v13828 = vpop.permute.xlu0 %13827
  %13829 = vrot.lane.b32.xlu0 %v13624, 16
  %v13830 = vpop.permute.xlu0 %13829
  %13831 = vrot.lane.b32.xlu0 %v13629, 16
  %v13832 = vpop.permute.xlu0 %13831
  %13833 = vrot.lane.b32.xlu0 %v13632, 16
  %v13834 = vpop.permute.xlu0 %13833
  %13835 = vrot.lane.b32.xlu0 %v13637, 16
  %v13836 = vpop.permute.xlu0 %13835
  %13837 = vrot.lane.b32.xlu0 %v13640, 16
  %v13838 = vpop.permute.xlu0 %13837
  %13839 = vrot.lane.b32.xlu0 %v13645, 16
  %v13840 = vpop.permute.xlu0 %13839
  %13841 = vrot.lane.b32.xlu0 %v13648, 16
  %v13842 = vpop.permute.xlu0 %13841
  %v13907 = vadd.f32 %v5576, %v13716
  %v13908 = vadd.f32 %v5579, %v13718
  %v13909 = vadd.f32 %v5584, %v13720
  %v13910 = vadd.f32 %v5587, %v13722
  %v13911 = vadd.f32 %v5592, %v13724
  %v13912 = vadd.f32 %v5595, %v13726
  %v13913 = vadd.f32 %v5600, %v13728
  %v13914 = vadd.f32 %v5603, %v13730
  %v13915 = vadd.f32 %v5608, %v13732
  %v13916 = vadd.f32 %v5611, %v13734
  %v13917 = vadd.f32 %v5616, %v13736
  %v13918 = vadd.f32 %v5619, %v13738
  %v13919 = vadd.f32 %v5624, %v13740
  %v13920 = vadd.f32 %v5627, %v13742
  %v13921 = vadd.f32 %v5632, %v13744
  %v13922 = vadd.f32 %v5635, %v13746
  %v13923 = vadd.f32 %v5640, %v13748
  %v13924 = vadd.f32 %v5643, %v13750
  %v13925 = vadd.f32 %v5648, %v13752
  %v13926 = vadd.f32 %v5651, %v13754
  %v13927 = vadd.f32 %v5656, %v13756
  %v13928 = vadd.f32 %v5659, %v13758
  %v13929 = vadd.f32 %v5664, %v13760
  %v13930 = vadd.f32 %v5667, %v13762
  %v13931 = vadd.f32 %v5672, %v13764
  %v13932 = vadd.f32 %v5675, %v13766
  %v13933 = vadd.f32 %v5680, %v13768
  %v13934 = vadd.f32 %v5683, %v13770
  %v13935 = vadd.f32 %v5688, %v13772
  %v13936 = vadd.f32 %v5691, %v13774
  %v13937 = vadd.f32 %v5696, %v13776
  %v13938 = vadd.f32 %v5699, %v13778
  %v13939 = vadd.f32 %v5704, %v13780
  %v13940 = vadd.f32 %v5707, %v13782
  %v13941 = vadd.f32 %v5712, %v13784
  %v13942 = vadd.f32 %v5715, %v13786
  %v13943 = vadd.f32 %v5720, %v13788
  %v13944 = vadd.f32 %v5723, %v13790
  %v13945 = vadd.f32 %v5728, %v13792
  %v13946 = vadd.f32 %v5731, %v13794
  %v13947 = vadd.f32 %v5736, %v13796
  %v13948 = vadd.f32 %v5739, %v13798
  %v13949 = vadd.f32 %v5744, %v13800
  %v13950 = vadd.f32 %v5747, %v13802
  %v13951 = vadd.f32 %v5752, %v13804
  %v13952 = vadd.f32 %v5755, %v13806
  %v13953 = vadd.f32 %v5760, %v13808
  %v13954 = vadd.f32 %v5763, %v13810
  %v13955 = vadd.f32 %v5768, %v13812
  %v13956 = vadd.f32 %v5771, %v13814
  %v13957 = vadd.f32 %v5776, %v13816
  %v13958 = vadd.f32 %v5779, %v13818
  %v13959 = vadd.f32 %v5784, %v13820
  %v13960 = vadd.f32 %v5787, %v13822
  %v13961 = vadd.f32 %v5792, %v13824
  %v13962 = vadd.f32 %v5795, %v13826
  %v13963 = vadd.f32 %v5800, %v13828
  %v13964 = vadd.f32 %v5803, %v13830
  %v13965 = vadd.f32 %v5808, %v13832
  %v13966 = vadd.f32 %v5811, %v13834
  %v13967 = vadd.f32 %v5816, %v13836
  %v13968 = vadd.f32 %v5819, %v13838
  %v13969 = vadd.f32 %v5824, %v13840
  %v13970 = vadd.f32 %v5827, %v13842
  %v13971 = vtanh.pop %v13907
  %v13972 = vtanh.pop %v13908
  %v13973 = vtanh.pop %v13909
  %v13974 = vtanh.pop %v13910
  %v13975 = vtanh.pop %v13911
  %v13976 = vtanh.pop %v13912
  %v13977 = vtanh.pop %v13913
  %v13978 = vtanh.pop %v13914
  %v13979 = vtanh.pop %v13915
  %v13980 = vtanh.pop %v13916
  %v13981 = vtanh.pop %v13917
  %v13982 = vtanh.pop %v13918
  %v13983 = vtanh.pop %v13919
  %v13984 = vtanh.pop %v13920
  %v13985 = vtanh.pop %v13921
  %v13986 = vtanh.pop %v13922
  %v13987 = vtanh.pop %v13923
  %v13988 = vtanh.pop %v13924
  %v13989 = vtanh.pop %v13925
  %v13990 = vtanh.pop %v13926
  %v13991 = vtanh.pop %v13927
  %v13992 = vtanh.pop %v13928
  %v13993 = vtanh.pop %v13929
  %v13994 = vtanh.pop %v13930
  %v13995 = vtanh.pop %v13931
  %v13996 = vtanh.pop %v13932
  %v13997 = vtanh.pop %v13933
  %v13998 = vtanh.pop %v13934
  %v13999 = vtanh.pop %v13935
  %v14000 = vtanh.pop %v13936
  %v14001 = vtanh.pop %v13937
  %v14002 = vtanh.pop %v13938
  %v14003 = vtanh.pop %v13939
  %v14004 = vtanh.pop %v13940
  %v14005 = vtanh.pop %v13941
  %v14006 = vtanh.pop %v13942
  %v14007 = vtanh.pop %v13943
  %v14008 = vtanh.pop %v13944
  %v14009 = vtanh.pop %v13945
  %v14010 = vtanh.pop %v13946
  %v14011 = vtanh.pop %v13947
  %v14012 = vtanh.pop %v13948
  %v14013 = vtanh.pop %v13949
  %v14014 = vtanh.pop %v13950
  %v14015 = vtanh.pop %v13951
  %v14016 = vtanh.pop %v13952
  %v14017 = vtanh.pop %v13953
  %v14018 = vtanh.pop %v13954
  %v14019 = vtanh.pop %v13955
  %v14020 = vtanh.pop %v13956
  %v14021 = vtanh.pop %v13957
  %v14022 = vtanh.pop %v13958
  %v14023 = vtanh.pop %v13959
  %v14024 = vtanh.pop %v13960
  %v14025 = vtanh.pop %v13961
  %v14026 = vtanh.pop %v13962
  %v14027 = vtanh.pop %v13963
  %v14028 = vtanh.pop %v13964
  %v14029 = vtanh.pop %v13965
  %v14030 = vtanh.pop %v13966
  %v14031 = vtanh.pop %v13967
  %v14032 = vtanh.pop %v13968
  %v14033 = vtanh.pop %v13969
  %v14034 = vtanh.pop %v13970
  %v14035 = vsub.f32 1.0, %v6087
  %v14036 = vsub.f32 1.0, %v6089
  %v14037 = vsub.f32 1.0, %v6091
  %v14038 = vsub.f32 1.0, %v6093
  %v14039 = vsub.f32 1.0, %v6095
  %v14040 = vsub.f32 1.0, %v6097
  %v14041 = vsub.f32 1.0, %v6099
  %v14042 = vsub.f32 1.0, %v6101
  %v14043 = vsub.f32 1.0, %v6103
  %v14044 = vsub.f32 1.0, %v6105
  %v14045 = vsub.f32 1.0, %v6107
  %v14046 = vsub.f32 1.0, %v6109
  %v14047 = vsub.f32 1.0, %v6111
  %v14048 = vsub.f32 1.0, %v6113
  %v14049 = vsub.f32 1.0, %v6115
  %v14050 = vsub.f32 1.0, %v6117
  %v14051 = vsub.f32 1.0, %v6119
  %v14052 = vsub.f32 1.0, %v6121
  %v14053 = vsub.f32 1.0, %v6123
  %v14054 = vsub.f32 1.0, %v6125
  %v14055 = vsub.f32 1.0, %v6127
  %v14056 = vsub.f32 1.0, %v6129
  %v14057 = vsub.f32 1.0, %v6131
  %v14058 = vsub.f32 1.0, %v6133
  %v14059 = vsub.f32 1.0, %v6135
  %v14060 = vsub.f32 1.0, %v6137
  %v14061 = vsub.f32 1.0, %v6139
  %v14062 = vsub.f32 1.0, %v6141
  %v14063 = vsub.f32 1.0, %v6143
  %v14064 = vsub.f32 1.0, %v6145
  %v14065 = vsub.f32 1.0, %v6147
  %v14066 = vsub.f32 1.0, %v6149
  %v14067 = vsub.f32 1.0, %v6151
  %v14068 = vsub.f32 1.0, %v6153
  %v14069 = vsub.f32 1.0, %v6155
  %v14070 = vsub.f32 1.0, %v6157
  %v14071 = vsub.f32 1.0, %v6159
  %v14072 = vsub.f32 1.0, %v6161
  %v14073 = vsub.f32 1.0, %v6163
  %v14074 = vsub.f32 1.0, %v6165
  %v14075 = vsub.f32 1.0, %v6167
  %v14076 = vsub.f32 1.0, %v6169
  %v14077 = vsub.f32 1.0, %v6171
  %v14078 = vsub.f32 1.0, %v6173
  %v14079 = vsub.f32 1.0, %v6175
  %v14080 = vsub.f32 1.0, %v6177
  %v14081 = vsub.f32 1.0, %v6179
  %v14082 = vsub.f32 1.0, %v6181
  %v14083 = vsub.f32 1.0, %v6183
  %v14084 = vsub.f32 1.0, %v6185
  %v14085 = vsub.f32 1.0, %v6187
  %v14086 = vsub.f32 1.0, %v6189
  %v14087 = vsub.f32 1.0, %v6191
  %v14088 = vsub.f32 1.0, %v6193
  %v14089 = vsub.f32 1.0, %v6195
  %v14090 = vsub.f32 1.0, %v6197
  %v14091 = vsub.f32 1.0, %v6199
  %v14092 = vsub.f32 1.0, %v6201
  %v14093 = vsub.f32 1.0, %v6203
  %v14094 = vsub.f32 1.0, %v6205
  %v14095 = vsub.f32 1.0, %v6207
  %v14096 = vsub.f32 1.0, %v6209
  %v14097 = vsub.f32 1.0, %v6211
  %v14098 = vsub.f32 1.0, %v6213
  %v14099 = vmul.f32 %v6214, %v14035
  %v14100 = vmul.f32 %v6215, %v14036
  %v14101 = vmul.f32 %v6216, %v14037
  %v14102 = vmul.f32 %v6217, %v14038
  %v14103 = vmul.f32 %v6218, %v14039
  %v14104 = vmul.f32 %v6219, %v14040
  %v14105 = vmul.f32 %v6220, %v14041
  %v14106 = vmul.f32 %v6221, %v14042
  %v14107 = vmul.f32 %v6222, %v14043
  %v14108 = vmul.f32 %v6223, %v14044
  %v14109 = vmul.f32 %v6224, %v14045
  %v14110 = vmul.f32 %v6225, %v14046
  %v14111 = vmul.f32 %v6226, %v14047
  %v14112 = vmul.f32 %v6227, %v14048
  %v14113 = vmul.f32 %v6228, %v14049
  %v14114 = vmul.f32 %v6229, %v14050
  %v14115 = vmul.f32 %v6230, %v14051
  %v14116 = vmul.f32 %v6231, %v14052
  %v14117 = vmul.f32 %v6232, %v14053
  %v14118 = vmul.f32 %v6233, %v14054
  %v14119 = vmul.f32 %v6234, %v14055
  %v14120 = vmul.f32 %v6235, %v14056
  %v14121 = vmul.f32 %v6236, %v14057
  %v14122 = vmul.f32 %v6237, %v14058
  %v14123 = vmul.f32 %v6238, %v14059
  %v14124 = vmul.f32 %v6239, %v14060
  %v14125 = vmul.f32 %v6240, %v14061
  %v14126 = vmul.f32 %v6241, %v14062
  %v14127 = vmul.f32 %v6242, %v14063
  %v14128 = vmul.f32 %v6243, %v14064
  %v14129 = vmul.f32 %v6244, %v14065
  %v14130 = vmul.f32 %v6245, %v14066
  %v14131 = vmul.f32 %v6246, %v14067
  %v14132 = vmul.f32 %v6247, %v14068
  %v14133 = vmul.f32 %v6248, %v14069
  %v14134 = vmul.f32 %v6249, %v14070
  %v14135 = vmul.f32 %v6250, %v14071
  %v14136 = vmul.f32 %v6251, %v14072
  %v14137 = vmul.f32 %v6252, %v14073
  %v14138 = vmul.f32 %v6253, %v14074
  %v14139 = vmul.f32 %v6254, %v14075
  %v14140 = vmul.f32 %v6255, %v14076
  %v14141 = vmul.f32 %v6256, %v14077
  %v14142 = vmul.f32 %v6257, %v14078
  %v14143 = vmul.f32 %v6258, %v14079
  %v14144 = vmul.f32 %v6259, %v14080
  %v14145 = vmul.f32 %v6260, %v14081
  %v14146 = vmul.f32 %v6261, %v14082
  %v14147 = vmul.f32 %v6262, %v14083
  %v14148 = vmul.f32 %v6263, %v14084
  %v14149 = vmul.f32 %v6264, %v14085
  %v14150 = vmul.f32 %v6265, %v14086
  %v14151 = vmul.f32 %v6266, %v14087
  %v14152 = vmul.f32 %v6267, %v14088
  %v14153 = vmul.f32 %v6268, %v14089
  %v14154 = vmul.f32 %v6269, %v14090
  %v14155 = vmul.f32 %v6270, %v14091
  %v14156 = vmul.f32 %v6271, %v14092
  %v14157 = vmul.f32 %v6272, %v14093
  %v14158 = vmul.f32 %v6273, %v14094
  %v14159 = vmul.f32 %v6274, %v14095
  %v14160 = vmul.f32 %v6275, %v14096
  %v14161 = vmul.f32 %v6276, %v14097
  %v14162 = vmul.f32 %v6277, %v14098
  %14163 = vrot.lane.b32.xlu0 %v6087, 16
  %v14164 = vpop.permute.xlu0 %14163
  %14165 = vrot.lane.b32.xlu0 %v6089, 16
  %v14166 = vpop.permute.xlu0 %14165
  %14167 = vrot.lane.b32.xlu0 %v6091, 16
  %v14168 = vpop.permute.xlu0 %14167
  %14169 = vrot.lane.b32.xlu0 %v6093, 16
  %v14170 = vpop.permute.xlu0 %14169
  %14171 = vrot.lane.b32.xlu0 %v6095, 16
  %v14172 = vpop.permute.xlu0 %14171
  %14173 = vrot.lane.b32.xlu0 %v6097, 16
  %v14174 = vpop.permute.xlu0 %14173
  %14175 = vrot.lane.b32.xlu0 %v6099, 16
  %v14176 = vpop.permute.xlu0 %14175
  %14177 = vrot.lane.b32.xlu0 %v6101, 16
  %v14178 = vpop.permute.xlu0 %14177
  %14179 = vrot.lane.b32.xlu0 %v6103, 16
  %v14180 = vpop.permute.xlu0 %14179
  %14181 = vrot.lane.b32.xlu0 %v6105, 16
  %v14182 = vpop.permute.xlu0 %14181
  %14183 = vrot.lane.b32.xlu0 %v6107, 16
  %v14184 = vpop.permute.xlu0 %14183
  %14185 = vrot.lane.b32.xlu0 %v6109, 16
  %v14186 = vpop.permute.xlu0 %14185
  %14187 = vrot.lane.b32.xlu0 %v6111, 16
  %v14188 = vpop.permute.xlu0 %14187
  %14189 = vrot.lane.b32.xlu0 %v6113, 16
  %v14190 = vpop.permute.xlu0 %14189
  %14191 = vrot.lane.b32.xlu0 %v6115, 16
  %v14192 = vpop.permute.xlu0 %14191
  %14193 = vrot.lane.b32.xlu0 %v6117, 16
  %v14194 = vpop.permute.xlu0 %14193
  %14195 = vrot.lane.b32.xlu0 %v6119, 16
  %v14196 = vpop.permute.xlu0 %14195
  %14197 = vrot.lane.b32.xlu0 %v6121, 16
  %v14198 = vpop.permute.xlu0 %14197
  %14199 = vrot.lane.b32.xlu0 %v6123, 16
  %v14200 = vpop.permute.xlu0 %14199
  %14201 = vrot.lane.b32.xlu0 %v6125, 16
  %v14202 = vpop.permute.xlu0 %14201
  %14203 = vrot.lane.b32.xlu0 %v6127, 16
  %v14204 = vpop.permute.xlu0 %14203
  %14205 = vrot.lane.b32.xlu0 %v6129, 16
  %v14206 = vpop.permute.xlu0 %14205
  %14207 = vrot.lane.b32.xlu0 %v6131, 16
  %v14208 = vpop.permute.xlu0 %14207
  %14209 = vrot.lane.b32.xlu0 %v6133, 16
  %v14210 = vpop.permute.xlu0 %14209
  %14211 = vrot.lane.b32.xlu0 %v6135, 16
  %v14212 = vpop.permute.xlu0 %14211
  %14213 = vrot.lane.b32.xlu0 %v6137, 16
  %v14214 = vpop.permute.xlu0 %14213
  %14215 = vrot.lane.b32.xlu0 %v6139, 16
  %v14216 = vpop.permute.xlu0 %14215
  %14217 = vrot.lane.b32.xlu0 %v6141, 16
  %v14218 = vpop.permute.xlu0 %14217
  %14219 = vrot.lane.b32.xlu0 %v6143, 16
  %v14220 = vpop.permute.xlu0 %14219
  %14221 = vrot.lane.b32.xlu0 %v6145, 16
  %v14222 = vpop.permute.xlu0 %14221
  %14223 = vrot.lane.b32.xlu0 %v6147, 16
  %v14224 = vpop.permute.xlu0 %14223
  %14225 = vrot.lane.b32.xlu0 %v6149, 16
  %v14226 = vpop.permute.xlu0 %14225
  %14227 = vrot.lane.b32.xlu0 %v6151, 16
  %v14228 = vpop.permute.xlu0 %14227
  %14229 = vrot.lane.b32.xlu0 %v6153, 16
  %v14230 = vpop.permute.xlu0 %14229
  %14231 = vrot.lane.b32.xlu0 %v6155, 16
  %v14232 = vpop.permute.xlu0 %14231
  %14233 = vrot.lane.b32.xlu0 %v6157, 16
  %v14234 = vpop.permute.xlu0 %14233
  %14235 = vrot.lane.b32.xlu0 %v6159, 16
  %v14236 = vpop.permute.xlu0 %14235
  %14237 = vrot.lane.b32.xlu0 %v6161, 16
  %v14238 = vpop.permute.xlu0 %14237
  %14239 = vrot.lane.b32.xlu0 %v6163, 16
  %v14240 = vpop.permute.xlu0 %14239
  %14241 = vrot.lane.b32.xlu0 %v6165, 16
  %v14242 = vpop.permute.xlu0 %14241
  %14243 = vrot.lane.b32.xlu0 %v6167, 16
  %v14244 = vpop.permute.xlu0 %14243
  %14245 = vrot.lane.b32.xlu0 %v6169, 16
  %v14246 = vpop.permute.xlu0 %14245
  %14247 = vrot.lane.b32.xlu0 %v6171, 16
  %v14248 = vpop.permute.xlu0 %14247
  %14249 = vrot.lane.b32.xlu0 %v6173, 16
  %v14250 = vpop.permute.xlu0 %14249
  %14251 = vrot.lane.b32.xlu0 %v6175, 16
  %v14252 = vpop.permute.xlu0 %14251
  %14253 = vrot.lane.b32.xlu0 %v6177, 16
  %v14254 = vpop.permute.xlu0 %14253
  %14255 = vrot.lane.b32.xlu0 %v6179, 16
  %v14256 = vpop.permute.xlu0 %14255
  %14257 = vrot.lane.b32.xlu0 %v6181, 16
  %v14258 = vpop.permute.xlu0 %14257
  %14259 = vrot.lane.b32.xlu0 %v6183, 16
  %v14260 = vpop.permute.xlu0 %14259
  %14261 = vrot.lane.b32.xlu0 %v6185, 16
  %v14262 = vpop.permute.xlu0 %14261
  %14263 = vrot.lane.b32.xlu0 %v6187, 16
  %v14264 = vpop.permute.xlu0 %14263
  %14265 = vrot.lane.b32.xlu0 %v6189, 16
  %v14266 = vpop.permute.xlu0 %14265
  %14267 = vrot.lane.b32.xlu0 %v6191, 16
  %v14268 = vpop.permute.xlu0 %14267
  %14269 = vrot.lane.b32.xlu0 %v6193, 16
  %v14270 = vpop.permute.xlu0 %14269
  %14271 = vrot.lane.b32.xlu0 %v6195, 16
  %v14272 = vpop.permute.xlu0 %14271
  %14273 = vrot.lane.b32.xlu0 %v6197, 16
  %v14274 = vpop.permute.xlu0 %14273
  %14275 = vrot.lane.b32.xlu0 %v6199, 16
  %v14276 = vpop.permute.xlu0 %14275
  %14277 = vrot.lane.b32.xlu0 %v6201, 16
  %v14278 = vpop.permute.xlu0 %14277
  %14279 = vrot.lane.b32.xlu0 %v6203, 16
  %v14280 = vpop.permute.xlu0 %14279
  %14281 = vrot.lane.b32.xlu0 %v6205, 16
  %v14282 = vpop.permute.xlu0 %14281
  %14283 = vrot.lane.b32.xlu0 %v6207, 16
  %v14284 = vpop.permute.xlu0 %14283
  %14285 = vrot.lane.b32.xlu0 %v6209, 16
  %v14286 = vpop.permute.xlu0 %14285
  %14287 = vrot.lane.b32.xlu0 %v6211, 16
  %v14288 = vpop.permute.xlu0 %14287
  %14289 = vrot.lane.b32.xlu0 %v6213, 16
  %v14290 = vpop.permute.xlu0 %14289
  %v14355 = vmul.f32 %v13971, %v14164
  %v14356 = vmul.f32 %v13972, %v14166
  %v14357 = vmul.f32 %v13973, %v14168
  %v14358 = vmul.f32 %v13974, %v14170
  %v14359 = vmul.f32 %v13975, %v14172
  %v14360 = vmul.f32 %v13976, %v14174
  %v14361 = vmul.f32 %v13977, %v14176
  %v14362 = vmul.f32 %v13978, %v14178
  %v14363 = vmul.f32 %v13979, %v14180
  %v14364 = vmul.f32 %v13980, %v14182
  %v14365 = vmul.f32 %v13981, %v14184
  %v14366 = vmul.f32 %v13982, %v14186
  %v14367 = vmul.f32 %v13983, %v14188
  %v14368 = vmul.f32 %v13984, %v14190
  %v14369 = vmul.f32 %v13985, %v14192
  %v14370 = vmul.f32 %v13986, %v14194
  %v14371 = vmul.f32 %v13987, %v14196
  %v14372 = vmul.f32 %v13988, %v14198
  %v14373 = vmul.f32 %v13989, %v14200
  %v14374 = vmul.f32 %v13990, %v14202
  %v14375 = vmul.f32 %v13991, %v14204
  %v14376 = vmul.f32 %v13992, %v14206
  %v14377 = vmul.f32 %v13993, %v14208
  %v14378 = vmul.f32 %v13994, %v14210
  %v14379 = vmul.f32 %v13995, %v14212
  %v14380 = vmul.f32 %v13996, %v14214
  %v14381 = vmul.f32 %v13997, %v14216
  %v14382 = vmul.f32 %v13998, %v14218
  %v14383 = vmul.f32 %v13999, %v14220
  %v14384 = vmul.f32 %v14000, %v14222
  %v14385 = vmul.f32 %v14001, %v14224
  %v14386 = vmul.f32 %v14002, %v14226
  %v14387 = vmul.f32 %v14003, %v14228
  %v14388 = vmul.f32 %v14004, %v14230
  %v14389 = vmul.f32 %v14005, %v14232
  %v14390 = vmul.f32 %v14006, %v14234
  %v14391 = vmul.f32 %v14007, %v14236
  %v14392 = vmul.f32 %v14008, %v14238
  %v14393 = vmul.f32 %v14009, %v14240
  %v14394 = vmul.f32 %v14010, %v14242
  %v14395 = vmul.f32 %v14011, %v14244
  %v14396 = vmul.f32 %v14012, %v14246
  %v14397 = vmul.f32 %v14013, %v14248
  %v14398 = vmul.f32 %v14014, %v14250
  %v14399 = vmul.f32 %v14015, %v14252
  %v14400 = vmul.f32 %v14016, %v14254
  %v14401 = vmul.f32 %v14017, %v14256
  %v14402 = vmul.f32 %v14018, %v14258
  %v14403 = vmul.f32 %v14019, %v14260
  %v14404 = vmul.f32 %v14020, %v14262
  %v14405 = vmul.f32 %v14021, %v14264
  %v14406 = vmul.f32 %v14022, %v14266
  %v14407 = vmul.f32 %v14023, %v14268
  %v14408 = vmul.f32 %v14024, %v14270
  %v14409 = vmul.f32 %v14025, %v14272
  %v14410 = vmul.f32 %v14026, %v14274
  %v14411 = vmul.f32 %v14027, %v14276
  %v14412 = vmul.f32 %v14028, %v14278
  %v14413 = vmul.f32 %v14029, %v14280
  %v14414 = vmul.f32 %v14030, %v14282
  %v14415 = vmul.f32 %v14031, %v14284
  %v14416 = vmul.f32 %v14032, %v14286
  %v14417 = vmul.f32 %v14033, %v14288
  %v14418 = vmul.f32 %v14034, %v14290
  %14483 = vrot.lane.b32.xlu0 %v14355, 112
  %v14484 = vpop.permute.xlu0 %14483
  %14485 = vrot.lane.b32.xlu0 %v14356, 112
  %v14486 = vpop.permute.xlu0 %14485
  %14487 = vrot.lane.b32.xlu0 %v14357, 112
  %v14488 = vpop.permute.xlu0 %14487
  %14489 = vrot.lane.b32.xlu0 %v14358, 112
  %v14490 = vpop.permute.xlu0 %14489
  %14491 = vrot.lane.b32.xlu0 %v14359, 112
  %v14492 = vpop.permute.xlu0 %14491
  %14493 = vrot.lane.b32.xlu0 %v14360, 112
  %v14494 = vpop.permute.xlu0 %14493
  %14495 = vrot.lane.b32.xlu0 %v14361, 112
  %v14496 = vpop.permute.xlu0 %14495
  %14497 = vrot.lane.b32.xlu0 %v14362, 112
  %v14498 = vpop.permute.xlu0 %14497
  %14499 = vrot.lane.b32.xlu0 %v14363, 112
  %v14500 = vpop.permute.xlu0 %14499
  %14501 = vrot.lane.b32.xlu0 %v14364, 112
  %v14502 = vpop.permute.xlu0 %14501
  %14503 = vrot.lane.b32.xlu0 %v14365, 112
  %v14504 = vpop.permute.xlu0 %14503
  %14505 = vrot.lane.b32.xlu0 %v14366, 112
  %v14506 = vpop.permute.xlu0 %14505
  %14507 = vrot.lane.b32.xlu0 %v14367, 112
  %v14508 = vpop.permute.xlu0 %14507
  %14509 = vrot.lane.b32.xlu0 %v14368, 112
  %v14510 = vpop.permute.xlu0 %14509
  %14511 = vrot.lane.b32.xlu0 %v14369, 112
  %v14512 = vpop.permute.xlu0 %14511
  %14513 = vrot.lane.b32.xlu0 %v14370, 112
  %v14514 = vpop.permute.xlu0 %14513
  %14515 = vrot.lane.b32.xlu0 %v14371, 112
  %v14516 = vpop.permute.xlu0 %14515
  %14517 = vrot.lane.b32.xlu0 %v14372, 112
  %v14518 = vpop.permute.xlu0 %14517
  %14519 = vrot.lane.b32.xlu0 %v14373, 112
  %v14520 = vpop.permute.xlu0 %14519
  %14521 = vrot.lane.b32.xlu0 %v14374, 112
  %v14522 = vpop.permute.xlu0 %14521
  %14523 = vrot.lane.b32.xlu0 %v14375, 112
  %v14524 = vpop.permute.xlu0 %14523
  %14525 = vrot.lane.b32.xlu0 %v14376, 112
  %v14526 = vpop.permute.xlu0 %14525
  %14527 = vrot.lane.b32.xlu0 %v14377, 112
  %v14528 = vpop.permute.xlu0 %14527
  %14529 = vrot.lane.b32.xlu0 %v14378, 112
  %v14530 = vpop.permute.xlu0 %14529
  %14531 = vrot.lane.b32.xlu0 %v14379, 112
  %v14532 = vpop.permute.xlu0 %14531
  %14533 = vrot.lane.b32.xlu0 %v14380, 112
  %v14534 = vpop.permute.xlu0 %14533
  %14535 = vrot.lane.b32.xlu0 %v14381, 112
  %v14536 = vpop.permute.xlu0 %14535
  %14537 = vrot.lane.b32.xlu0 %v14382, 112
  %v14538 = vpop.permute.xlu0 %14537
  %14539 = vrot.lane.b32.xlu0 %v14383, 112
  %v14540 = vpop.permute.xlu0 %14539
  %14541 = vrot.lane.b32.xlu0 %v14384, 112
  %v14542 = vpop.permute.xlu0 %14541
  %14543 = vrot.lane.b32.xlu0 %v14385, 112
  %v14544 = vpop.permute.xlu0 %14543
  %14545 = vrot.lane.b32.xlu0 %v14386, 112
  %v14546 = vpop.permute.xlu0 %14545
  %14547 = vrot.lane.b32.xlu0 %v14387, 112
  %v14548 = vpop.permute.xlu0 %14547
  %14549 = vrot.lane.b32.xlu0 %v14388, 112
  %v14550 = vpop.permute.xlu0 %14549
  %14551 = vrot.lane.b32.xlu0 %v14389, 112
  %v14552 = vpop.permute.xlu0 %14551
  %14553 = vrot.lane.b32.xlu0 %v14390, 112
  %v14554 = vpop.permute.xlu0 %14553
  %14555 = vrot.lane.b32.xlu0 %v14391, 112
  %v14556 = vpop.permute.xlu0 %14555
  %14557 = vrot.lane.b32.xlu0 %v14392, 112
  %v14558 = vpop.permute.xlu0 %14557
  %14559 = vrot.lane.b32.xlu0 %v14393, 112
  %v14560 = vpop.permute.xlu0 %14559
  %14561 = vrot.lane.b32.xlu0 %v14394, 112
  %v14562 = vpop.permute.xlu0 %14561
  %14563 = vrot.lane.b32.xlu0 %v14395, 112
  %v14564 = vpop.permute.xlu0 %14563
  %14565 = vrot.lane.b32.xlu0 %v14396, 112
  %v14566 = vpop.permute.xlu0 %14565
  %14567 = vrot.lane.b32.xlu0 %v14397, 112
  %v14568 = vpop.permute.xlu0 %14567
  %14569 = vrot.lane.b32.xlu0 %v14398, 112
  %v14570 = vpop.permute.xlu0 %14569
  %14571 = vrot.lane.b32.xlu0 %v14399, 112
  %v14572 = vpop.permute.xlu0 %14571
  %14573 = vrot.lane.b32.xlu0 %v14400, 112
  %v14574 = vpop.permute.xlu0 %14573
  %14575 = vrot.lane.b32.xlu0 %v14401, 112
  %v14576 = vpop.permute.xlu0 %14575
  %14577 = vrot.lane.b32.xlu0 %v14402, 112
  %v14578 = vpop.permute.xlu0 %14577
  %14579 = vrot.lane.b32.xlu0 %v14403, 112
  %v14580 = vpop.permute.xlu0 %14579
  %14581 = vrot.lane.b32.xlu0 %v14404, 112
  %v14582 = vpop.permute.xlu0 %14581
  %14583 = vrot.lane.b32.xlu0 %v14405, 112
  %v14584 = vpop.permute.xlu0 %14583
  %14585 = vrot.lane.b32.xlu0 %v14406, 112
  %v14586 = vpop.permute.xlu0 %14585
  %14587 = vrot.lane.b32.xlu0 %v14407, 112
  %v14588 = vpop.permute.xlu0 %14587
  %14589 = vrot.lane.b32.xlu0 %v14408, 112
  %v14590 = vpop.permute.xlu0 %14589
  %14591 = vrot.lane.b32.xlu0 %v14409, 112
  %v14592 = vpop.permute.xlu0 %14591
  %14593 = vrot.lane.b32.xlu0 %v14410, 112
  %v14594 = vpop.permute.xlu0 %14593
  %14595 = vrot.lane.b32.xlu0 %v14411, 112
  %v14596 = vpop.permute.xlu0 %14595
  %14597 = vrot.lane.b32.xlu0 %v14412, 112
  %v14598 = vpop.permute.xlu0 %14597
  %14599 = vrot.lane.b32.xlu0 %v14413, 112
  %v14600 = vpop.permute.xlu0 %14599
  %14601 = vrot.lane.b32.xlu0 %v14414, 112
  %v14602 = vpop.permute.xlu0 %14601
  %14603 = vrot.lane.b32.xlu0 %v14415, 112
  %v14604 = vpop.permute.xlu0 %14603
  %14605 = vrot.lane.b32.xlu0 %v14416, 112
  %v14606 = vpop.permute.xlu0 %14605
  %14607 = vrot.lane.b32.xlu0 %v14417, 112
  %v14608 = vpop.permute.xlu0 %14607
  %14609 = vrot.lane.b32.xlu0 %v14418, 112
  %v14610 = vpop.permute.xlu0 %14609
  %v14675 = vadd.f32 %v14099, %v14484
  %v14676 = vadd.f32 %v14100, %v14486
  %v14677 = vadd.f32 %v14101, %v14488
  %v14678 = vadd.f32 %v14102, %v14490
  %v14679 = vadd.f32 %v14103, %v14492
  %v14680 = vadd.f32 %v14104, %v14494
  %v14681 = vadd.f32 %v14105, %v14496
  %v14682 = vadd.f32 %v14106, %v14498
  %v14683 = vadd.f32 %v14107, %v14500
  %v14684 = vadd.f32 %v14108, %v14502
  %v14685 = vadd.f32 %v14109, %v14504
  %v14686 = vadd.f32 %v14110, %v14506
  %v14687 = vadd.f32 %v14111, %v14508
  %v14688 = vadd.f32 %v14112, %v14510
  %v14689 = vadd.f32 %v14113, %v14512
  %v14690 = vadd.f32 %v14114, %v14514
  %v14691 = vadd.f32 %v14115, %v14516
  %v14692 = vadd.f32 %v14116, %v14518
  %v14693 = vadd.f32 %v14117, %v14520
  %v14694 = vadd.f32 %v14118, %v14522
  %v14695 = vadd.f32 %v14119, %v14524
  %v14696 = vadd.f32 %v14120, %v14526
  %v14697 = vadd.f32 %v14121, %v14528
  %v14698 = vadd.f32 %v14122, %v14530
  %v14699 = vadd.f32 %v14123, %v14532
  %v14700 = vadd.f32 %v14124, %v14534
  %v14701 = vadd.f32 %v14125, %v14536
  %v14702 = vadd.f32 %v14126, %v14538
  %v14703 = vadd.f32 %v14127, %v14540
  %v14704 = vadd.f32 %v14128, %v14542
  %v14705 = vadd.f32 %v14129, %v14544
  %v14706 = vadd.f32 %v14130, %v14546
  %v14707 = vadd.f32 %v14131, %v14548
  %v14708 = vadd.f32 %v14132, %v14550
  %v14709 = vadd.f32 %v14133, %v14552
  %v14710 = vadd.f32 %v14134, %v14554
  %v14711 = vadd.f32 %v14135, %v14556
  %v14712 = vadd.f32 %v14136, %v14558
  %v14713 = vadd.f32 %v14137, %v14560
  %v14714 = vadd.f32 %v14138, %v14562
  %v14715 = vadd.f32 %v14139, %v14564
  %v14716 = vadd.f32 %v14140, %v14566
  %v14717 = vadd.f32 %v14141, %v14568
  %v14718 = vadd.f32 %v14142, %v14570
  %v14719 = vadd.f32 %v14143, %v14572
  %v14720 = vadd.f32 %v14144, %v14574
  %v14721 = vadd.f32 %v14145, %v14576
  %v14722 = vadd.f32 %v14146, %v14578
  %v14723 = vadd.f32 %v14147, %v14580
  %v14724 = vadd.f32 %v14148, %v14582
  %v14725 = vadd.f32 %v14149, %v14584
  %v14726 = vadd.f32 %v14150, %v14586
  %v14727 = vadd.f32 %v14151, %v14588
  %v14728 = vadd.f32 %v14152, %v14590
  %v14729 = vadd.f32 %v14153, %v14592
  %v14730 = vadd.f32 %v14154, %v14594
  %v14731 = vadd.f32 %v14155, %v14596
  %v14732 = vadd.f32 %v14156, %v14598
  %v14733 = vadd.f32 %v14157, %v14600
  %v14734 = vadd.f32 %v14158, %v14602
  %v14735 = vadd.f32 %v14159, %v14604
  %v14736 = vadd.f32 %v14160, %v14606
  %v14737 = vadd.f32 %v14161, %v14608
  %v14738 = vadd.f32 %v14162, %v14610
  %14739 = vst.msk [vmem:[%s5] sm:$0xff] %vm8127, %v14675
  %14740 = vst.msk [vmem:[%s5 + $0x8] sm:$0xff] %vm8127, %v14676
  %14741 = vst.msk [vmem:[%s5 + $0x10] sm:$0xff] %vm8127, %v14677
  %14742 = vst.msk [vmem:[%s5 + $0x18] sm:$0xff] %vm8127, %v14678
  %14743 = vst.msk [vmem:[%s5 + $0x20] sm:$0xff] %vm8127, %v14679
  %14744 = vst.msk [vmem:[%s5 + $0x28] sm:$0xff] %vm8127, %v14680
  %14745 = vst.msk [vmem:[%s5 + $0x30] sm:$0xff] %vm8127, %v14681
  %14746 = vst.msk [vmem:[%s5 + $0x38] sm:$0xff] %vm8127, %v14682
  %14747 = vst.msk [vmem:[%s5 + $0x40] sm:$0xff] %vm8127, %v14683
  %14748 = vst.msk [vmem:[%s5 + $0x48] sm:$0xff] %vm8127, %v14684
  %14749 = vst.msk [vmem:[%s5 + $0x50] sm:$0xff] %vm8127, %v14685
  %14750 = vst.msk [vmem:[%s5 + $0x58] sm:$0xff] %vm8127, %v14686
  %14751 = vst.msk [vmem:[%s5 + $0x60] sm:$0xff] %vm8127, %v14687
  %14752 = vst.msk [vmem:[%s5 + $0x68] sm:$0xff] %vm8127, %v14688
  %14753 = vst.msk [vmem:[%s5 + $0x70] sm:$0xff] %vm8127, %v14689
  %14754 = vst.msk [vmem:[%s5 + $0x78] sm:$0xff] %vm8127, %v14690
  %14755 = vst.msk [vmem:[%s5 + $0x80] sm:$0xff] %vm8127, %v14691
  %14756 = vst.msk [vmem:[%s5 + $0x88] sm:$0xff] %vm8127, %v14692
  %14757 = vst.msk [vmem:[%s5 + $0x90] sm:$0xff] %vm8127, %v14693
  %14758 = vst.msk [vmem:[%s5 + $0x98] sm:$0xff] %vm8127, %v14694
  %14759 = vst.msk [vmem:[%s5 + $0xa0] sm:$0xff] %vm8127, %v14695
  %14760 = vst.msk [vmem:[%s5 + $0xa8] sm:$0xff] %vm8127, %v14696
  %14761 = vst.msk [vmem:[%s5 + $0xb0] sm:$0xff] %vm8127, %v14697
  %14762 = vst.msk [vmem:[%s5 + $0xb8] sm:$0xff] %vm8127, %v14698
  %14763 = vst.msk [vmem:[%s5 + $0xc0] sm:$0xff] %vm8127, %v14699
  %14764 = vst.msk [vmem:[%s5 + $0xc8] sm:$0xff] %vm8127, %v14700
  %14765 = vst.msk [vmem:[%s5 + $0xd0] sm:$0xff] %vm8127, %v14701
  %14766 = vst.msk [vmem:[%s5 + $0xd8] sm:$0xff] %vm8127, %v14702
  %14767 = vst.msk [vmem:[%s5 + $0xe0] sm:$0xff] %vm8127, %v14703
  %14768 = vst.msk [vmem:[%s5 + $0xe8] sm:$0xff] %vm8127, %v14704
  %14769 = vst.msk [vmem:[%s5 + $0xf0] sm:$0xff] %vm8127, %v14705
  %14770 = vst.msk [vmem:[%s5 + $0xf8] sm:$0xff] %vm8127, %v14706
  %14771 = vst.msk [vmem:[%s5 + $0x100] sm:$0xff] %vm8127, %v14707
  %14772 = vst.msk [vmem:[%s5 + $0x108] sm:$0xff] %vm8127, %v14708
  %14773 = vst.msk [vmem:[%s5 + $0x110] sm:$0xff] %vm8127, %v14709
  %14774 = vst.msk [vmem:[%s5 + $0x118] sm:$0xff] %vm8127, %v14710
  %14775 = vst.msk [vmem:[%s5 + $0x120] sm:$0xff] %vm8127, %v14711
  %14776 = vst.msk [vmem:[%s5 + $0x128] sm:$0xff] %vm8127, %v14712
  %14777 = vst.msk [vmem:[%s5 + $0x130] sm:$0xff] %vm8127, %v14713
  %14778 = vst.msk [vmem:[%s5 + $0x138] sm:$0xff] %vm8127, %v14714
  %14779 = vst.msk [vmem:[%s5 + $0x140] sm:$0xff] %vm8127, %v14715
  %14780 = vst.msk [vmem:[%s5 + $0x148] sm:$0xff] %vm8127, %v14716
  %14781 = vst.msk [vmem:[%s5 + $0x150] sm:$0xff] %vm8127, %v14717
  %14782 = vst.msk [vmem:[%s5 + $0x158] sm:$0xff] %vm8127, %v14718
  %14783 = vst.msk [vmem:[%s5 + $0x160] sm:$0xff] %vm8127, %v14719
  %14784 = vst.msk [vmem:[%s5 + $0x168] sm:$0xff] %vm8127, %v14720
  %14785 = vst.msk [vmem:[%s5 + $0x170] sm:$0xff] %vm8127, %v14721
  %14786 = vst.msk [vmem:[%s5 + $0x178] sm:$0xff] %vm8127, %v14722
  %14787 = vst.msk [vmem:[%s5 + $0x180] sm:$0xff] %vm8127, %v14723
  %14788 = vst.msk [vmem:[%s5 + $0x188] sm:$0xff] %vm8127, %v14724
  %14789 = vst.msk [vmem:[%s5 + $0x190] sm:$0xff] %vm8127, %v14725
  %14790 = vst.msk [vmem:[%s5 + $0x198] sm:$0xff] %vm8127, %v14726
  %14791 = vst.msk [vmem:[%s5 + $0x1a0] sm:$0xff] %vm8127, %v14727
  %14792 = vst.msk [vmem:[%s5 + $0x1a8] sm:$0xff] %vm8127, %v14728
  %14793 = vst.msk [vmem:[%s5 + $0x1b0] sm:$0xff] %vm8127, %v14729
  %14794 = vst.msk [vmem:[%s5 + $0x1b8] sm:$0xff] %vm8127, %v14730
  %14795 = vst.msk [vmem:[%s5 + $0x1c0] sm:$0xff] %vm8127, %v14731
  %14796 = vst.msk [vmem:[%s5 + $0x1c8] sm:$0xff] %vm8127, %v14732
  %14797 = vst.msk [vmem:[%s5 + $0x1d0] sm:$0xff] %vm8127, %v14733
  %14798 = vst.msk [vmem:[%s5 + $0x1d8] sm:$0xff] %vm8127, %v14734
  %14799 = vst.msk [vmem:[%s5 + $0x1e0] sm:$0xff] %vm8127, %v14735
  %14800 = vst.msk [vmem:[%s5 + $0x1e8] sm:$0xff] %vm8127, %v14736
  %14801 = vst.msk [vmem:[%s5 + $0x1f0] sm:$0xff] %vm8127, %v14737
  %14802 = vst.msk [vmem:[%s5 + $0x1f8] sm:$0xff] %vm8127, %v14738
  // Predicated region
  $region22: #{tpu_custom_call.1} parent=0 // pred_check
    _
  $region23: #{tpu_custom_call.1} parent=0 // pred_check_branch
    %14804 = sbr.rel (0) target = $region25
  $region24: #{tpu_custom_call.1} parent=0 // pred_region
    _
  $region25: #{tpu_custom_call.1} parent=0 // pred_fallthru
    _
  // Predicated region
  $region26: #{tpu_custom_call.1} parent=0 // pred_check
    _
  $region27: #{tpu_custom_call.1} parent=0 // pred_check_branch
    %14806 = sbr.rel (0) target = $region29
  $region28: #{tpu_custom_call.1} parent=0 // pred_region
    _
  $region29: #{tpu_custom_call.1} parent=0 // pred_fallthru
    _

</llo_original>
